<compile_context>
chip_gen: v6e
topology: v6e:2x2x1
jax: 0.10.0
libtpu: 0.0.40
codegen_flags: <defaults>
</compile_context>

<pallas_src>
import numpy as np
import jax
import jax.numpy as jnp
from jax.experimental import pallas as pl
from jax.experimental.pallas import tpu as pltpu


# Geometry pinned by linear_layer1 = Linear(32*30*6 + 8, 128):
#   image (126, 30) -> conv1 (124, 28) -> pool (62, 14)
#                   -> conv2 (60, 12)  -> pool (30, 6)
IMG_H, IMG_W = 126, 30
PAD_H, PAD_W = 136, 32                       # padded so mod-4 planes are (34, 8)
PLANE_LEN = (PAD_H // 4) * (PAD_W // 4)      # 272 lanes per deinterleaved plane
COLS = 32 * 8                                # padded pooled spatial grid = 256 lanes
EPS = 1e-5


# ----------------------------------------------------------------------------
# Pallas kernels
# ----------------------------------------------------------------------------
def _cnn_kernel(x4_ref, l1_ref, b1_ref, s1_ref, t1_ref,
                l2_ref, b2_ref, s2_ref, t2_ref,
                o_ref, u1_ref, o1p_ref, u2_ref):
    """Fused cnn_layer1 + cnn_layer2 for one image (channels in sublanes,
    flattened spatial in lanes).

    x4_ref : (1, 16, 272)  mod-4 deinterleaved padded image; plane m*4+n holds
                           x[4i+m, 4j+n] flattened as i*8+j.
    l1_ref : (256, 36)     conv1 weights; pool position and output-parity are
                           folded into the rows, taps (u,v) into the columns.
    b1/s1/t1: (256, 1)     conv1 bias + folded BN scale/shift (row-tiled).
    l2_ref : (128, 256)    conv2 weights; pool position folded into the rows,
                           (tap u,v, cin) into the columns.
    b2/s2/t2: (128, 1)
    o_ref  : (1, 32, 256)  pooled conv2 features, lanes = hq*8 + wq (padded).
    u1_ref : (36, 256)     scratch: layer-1 patch rows, one per tap (u,v).
    o1p_ref: (16, 1040)    scratch: pooled layer-1 output as 4 parity planes
                           of 256 lanes each (+16 zeroed tail lanes).
    u2_ref : (256, 256)    scratch: layer-2 patch rows.
    """
    # ---------------- cnn_layer1: Conv(1->16) + ReLU + BN + MaxPool ----------
    # Patch rows: U1[u*6+v, i*8+j] = x[4i+u, 4j+v],  u, v in [0, 6).
    for u in range(6):
        for v in range(6):
            plane = (u % 4) * 4 + (v % 4)
            shift = (u // 4) * 8 + (v // 4)
            u1_ref[u * 6 + v, :] = x4_ref[0, plane, shift:shift + COLS]

    # One matmul for all 4 output parities x 4 pool positions x 16 channels.
    y1 = jnp.dot(l1_ref[...], u1_ref[...], preferred_element_type=jnp.float32)
    y1 = jnp.maximum(y1 + b1_ref[...], 0.0) * s1_ref[...] + t1_ref[...]

    # Streamed max over the 4 pool positions (aligned 16-row groups); store the
    # pooled activation as 4 parity planes of 256 lanes (lane-dense stores).
    o1p_ref[...] = jnp.zeros_like(o1p_ref)          # also zero the tail lanes
    for p in range(4):
        blk = y1[p * 64:(p + 1) * 64, :]
        o1p_ref[:, p * COLS:(p + 1) * COLS] = jnp.maximum(
            jnp.maximum(blk[0:16, :], blk[16:32, :]),
            jnp.maximum(blk[32:48, :], blk[48:64, :]))

    # ---------------- cnn_layer2: Conv(16->32) + ReLU + BN + MaxPool ---------
    # Patch rows: U2[(u*4+v)*16 + c, hq*8+wq] = o1[c, 2hq+u, 2wq+v].
    for u in range(4):
        for v in range(4):
            base = ((u % 2) * 2 + (v % 2)) * COLS + (u // 2) * 8 + (v // 2)
            r = (u * 4 + v) * 16
            u2_ref[r:r + 16, :] = o1p_ref[:, base:base + COLS]

    # One matmul for all 4 pool positions x 32 channels.
    y2 = jnp.dot(l2_ref[...], u2_ref[...], preferred_element_type=jnp.float32)
    y2 = jnp.maximum(y2 + b2_ref[...], 0.0) * s2_ref[...] + t2_ref[...]
    o_ref[0] = jnp.maximum(jnp.maximum(y2[0:32, :], y2[32:64, :]),
                           jnp.maximum(y2[64:96, :], y2[96:128, :]))


def _mlp_kernel(x_ref, f_ref, w1a_ref, w1b_ref, b1_ref,
                wp_ref, bp_ref, w2_ref, b2_ref, o_ref):
    """Linear(5768->128)+ReLU -> Linear(128->64)+ReLU -> Linear(64->2)+Sigmoid.

    The CNN part of linear_layer1 acts on the padded flatten (8192 lanes)
    through a row-scattered bf16 weight (padding rows are zero), `features`
    gets its own small matmul (no concat).  f32 accumulation everywhere.
    """
    x = x_ref[...].astype(jnp.bfloat16)
    f = f_ref[...].astype(jnp.bfloat16)
    h = (jnp.dot(x, w1a_ref[...], preferred_element_type=jnp.float32)
         + jnp.dot(f, w1b_ref[...], preferred_element_type=jnp.float32)
         + b1_ref[...])
    h = jnp.maximum(h, 0.0)
    h = jnp.dot(h.astype(jnp.bfloat16), wp_ref[...],
                preferred_element_type=jnp.float32) + bp_ref[...]
    h = jnp.maximum(h, 0.0)
    z = jnp.dot(h.astype(jnp.bfloat16), w2_ref[...],
                preferred_element_type=jnp.float32) + b2_ref[...]
    o_ref[...] = pl.reciprocal(1.0 + jnp.exp(-z), approx=False)   # sigmoid


# ----------------------------------------------------------------------------
# pallas_call wrappers
# ----------------------------------------------------------------------------
def conv_features(x4, p):
    """Fused cnn_layer1 + cnn_layer2; one grid step per image ("parallel")."""
    B = x4.shape[0]
    return pl.pallas_call(
        _cnn_kernel,
        out_shape=jax.ShapeDtypeStruct((B, 32, COLS), jnp.float32),
        grid=(B,),
        in_specs=[
            pl.BlockSpec((1, 16, PLANE_LEN), lambda b: (b, 0, 0)),
            pl.BlockSpec((256, 36), lambda b: (0, 0)),
            pl.BlockSpec((256, 1), lambda b: (0, 0)),
            pl.BlockSpec((256, 1), lambda b: (0, 0)),
            pl.BlockSpec((256, 1), lambda b: (0, 0)),
            pl.BlockSpec((128, 256), lambda b: (0, 0)),
            pl.BlockSpec((128, 1), lambda b: (0, 0)),
            pl.BlockSpec((128, 1), lambda b: (0, 0)),
            pl.BlockSpec((128, 1), lambda b: (0, 0)),
        ],
        out_specs=pl.BlockSpec((1, 32, COLS), lambda b: (b, 0, 0)),
        scratch_shapes=[
            pltpu.VMEM((36, COLS), jnp.float32),
            pltpu.VMEM((16, 4 * COLS + 16), jnp.float32),
            pltpu.VMEM((256, COLS), jnp.float32),
        ],
        compiler_params=pltpu.CompilerParams(
            dimension_semantics=("parallel",)),
    )(x4, p["conv1_lhs"], p["conv1_bias"], p["conv1_scale"], p["conv1_shift"],
      p["conv2_lhs"], p["conv2_bias"], p["conv2_scale"], p["conv2_shift"])


def mlp_head(cnn_flat, features, p):
    B = cnn_flat.shape[0]
    return pl.pallas_call(
        _mlp_kernel,
        out_shape=jax.ShapeDtypeStruct((B, 2), jnp.float32),
    )(cnn_flat, features, p["w1a"], p["w1b"], p["b1"],
      p["wp"], p["bp"], p["w2"], p["b2"])


# ----------------------------------------------------------------------------
# Parameters: PyTorch-layout init + one-time host-side repack for the kernels
# ----------------------------------------------------------------------------
def init_params(key):
    ks = jax.random.split(key, 18)
    p = {}
    # cnn_layer1: Conv2d(1, 16, 3) + BatchNorm2d(16)
    p["w_conv1"] = 0.10 * jax.random.normal(ks[0], (16, 1, 3, 3), jnp.float32)
    p["b_conv1"] = 0.10 * jax.random.normal(ks[1], (16,), jnp.float32)
    p["bn1_gamma"] = 1.0 + 0.10 * jax.random.normal(ks[2], (16,), jnp.float32)
    p["bn1_beta"] = 0.10 * jax.random.normal(ks[3], (16,), jnp.float32)
    p["bn1_mean"] = 0.05 * jax.random.normal(ks[4], (16,), jnp.float32)
    p["bn1_var"] = 1.0 + 0.10 * jnp.abs(jax.random.normal(ks[5], (16,), jnp.float32))
    # cnn_layer2: Conv2d(16, 32, 3) + BatchNorm2d(32)
    p["w_conv2"] = 0.05 * jax.random.normal(ks[6], (32, 16, 3, 3), jnp.float32)
    p["b_conv2"] = 0.10 * jax.random.normal(ks[7], (32,), jnp.float32)
    p["bn2_gamma"] = 1.0 + 0.10 * jax.random.normal(ks[8], (32,), jnp.float32)
    p["bn2_beta"] = 0.10 * jax.random.normal(ks[9], (32,), jnp.float32)
    p["bn2_mean"] = 0.05 * jax.random.normal(ks[10], (32,), jnp.float32)
    p["bn2_var"] = 1.0 + 0.10 * jnp.abs(jax.random.normal(ks[11], (32,), jnp.float32))
    # Linear layers (PyTorch layout: (out_features, in_features))
    p["w_lin1"] = 0.02 * jax.random.normal(ks[12], (128, 32 * 30 * 6 + 8), jnp.float32)
    p["b_lin1"] = 0.02 * jax.random.normal(ks[13], (128,), jnp.float32)
    p["w_linp"] = 0.05 * jax.random.normal(ks[14], (64, 128), jnp.float32)
    p["b_linp"] = 0.05 * jax.random.normal(ks[15], (64,), jnp.float32)
    p["w_lin2"] = 0.05 * jax.random.normal(ks[16], (2, 64), jnp.float32)
    p["b_lin2"] = 0.05 * jax.random.normal(ks[17], (2,), jnp.float32)
    return p


def prepare_params(p):
    """One-time host-side repack of PyTorch parameters into kernel layouts."""
    out = {}

    # ---- cnn_layer1 -> single matmul LHS (256, 36) -------------------------
    # Row = ((parity ph*2+pw) * 4 + (pool dh*2+dw)) * 16 + channel.
    # Col = u*6 + v with u = 2*ph+dh+kh, v = 2*pw+dw+kw (tap offset of the
    # mod-4 deinterleaved image); unused (row, col) combinations stay zero.
    w1 = np.asarray(p["w_conv1"], np.float32)          # (16, 1, 3, 3)
    l1 = np.zeros((256, 36), np.float32)
    for ph in range(2):
        for pw in range(2):
            for dh in range(2):
                for dw in range(2):
                    row = ((ph * 2 + pw) * 4 + (dh * 2 + dw)) * 16
                    for kh in range(3):
                        for kw in range(3):
                            u = 2 * ph + dh + kh
                            v = 2 * pw + dw + kw
                            l1[row:row + 16, u * 6 + v] = w1[:, 0, kh, kw]
    s1 = np.asarray(p["bn1_gamma"]) / np.sqrt(np.asarray(p["bn1_var"]) + EPS)
    t1 = np.asarray(p["bn1_beta"]) - np.asarray(p["bn1_mean"]) * s1
    out["conv1_lhs"] = jnp.asarray(l1)
    out["conv1_bias"] = jnp.asarray(np.tile(np.asarray(p["b_conv1"], np.float32), 16).reshape(256, 1))
    out["conv1_scale"] = jnp.asarray(np.tile(s1.astype(np.float32), 16).reshape(256, 1))
    out["conv1_shift"] = jnp.asarray(np.tile(t1.astype(np.float32), 16).reshape(256, 1))

    # ---- cnn_layer2 -> single matmul LHS (128, 256) ------------------------
    # Row = (pool dh*2+dw) * 32 + cout ; Col = (u*4+v)*16 + cin with
    # u = dh+kh, v = dw+kw (tap offset into the parity-split layer-1 output).
    w2 = np.asarray(p["w_conv2"], np.float32)          # (32, 16, 3, 3)
    l2 = np.zeros((128, 256), np.float32)
    for dh in range(2):
        for dw in range(2):
            row = (dh * 2 + dw) * 32
            for kh in range(3):
                for kw in range(3):
                    u = dh + kh
                    v = dw + kw
                    col = (u * 4 + v) * 16
                    l2[row:row + 32, col:col + 16] = w2[:, :, kh, kw]
    s2 = np.asarray(p["bn2_gamma"]) / np.sqrt(np.asarray(p["bn2_var"]) + EPS)
    t2 = np.asarray(p["bn2_beta"]) - np.asarray(p["bn2_mean"]) * s2
    out["conv2_lhs"] = jnp.asarray(l2)
    out["conv2_bias"] = jnp.asarray(np.tile(np.asarray(p["b_conv2"], np.float32), 4).reshape(128, 1))
    out["conv2_scale"] = jnp.asarray(np.tile(s2.astype(np.float32), 4).reshape(128, 1))
    out["conv2_shift"] = jnp.asarray(np.tile(t2.astype(np.float32), 4).reshape(128, 1))

    # ---- linear_layer1: scatter the CNN columns (PyTorch NCHW flatten order
    # c*180 + h*6 + w) onto the kernel's padded flatten grid c*256 + h*8 + w;
    # padded positions get zero rows, so the (finite) padding activations
    # contribute nothing.  Stored in bf16 (dominant HBM read of the forward).
    wl1 = np.asarray(p["w_lin1"], np.float32)          # (128, 5768)
    w_cnn = wl1[:, :5760].reshape(128, 32, 30, 6)
    w_pad = np.zeros((128, 32, 32, 8), np.float32)
    w_pad[:, :, :30, :6] = w_cnn
    out["w1a"] = jnp.asarray(w_pad.reshape(128, 32 * COLS).T, dtype=jnp.bfloat16)
    out["w1b"] = jnp.asarray(wl1[:, 5760:].T, dtype=jnp.bfloat16)
    out["b1"] = jnp.asarray(np.asarray(p["b_lin1"], np.float32).reshape(1, 128))
    out["wp"] = jnp.asarray(np.asarray(p["w_linp"], np.float32).T, dtype=jnp.bfloat16)
    out["bp"] = jnp.asarray(np.asarray(p["b_linp"], np.float32).reshape(1, 64))
    out["w2"] = jnp.asarray(np.asarray(p["w_lin2"], np.float32).T, dtype=jnp.bfloat16)
    out["b2"] = jnp.asarray(np.asarray(p["b_lin2"], np.float32).reshape(1, 2))
    return out


# ----------------------------------------------------------------------------
# Forward pass
# ----------------------------------------------------------------------------
@jax.jit
def cnn_regressor_forward(prepped, images, features):
    # TODO(synk): nn.Dropout layers are identity here (eval / inference mode).
    B = images.shape[0]
    assert images.shape[1:] == (IMG_H, IMG_W), "linear_layer1 pins the input to (126, 30)"

    # mod-4 deinterleave of the zero-padded image: the only XLA-side prep
    # (1x the input bytes; replaces the old 36-slice im2col glue).
    xp = jnp.pad(images, ((0, 0), (0, PAD_H - IMG_H), (0, PAD_W - IMG_W)))
    x4 = (xp.reshape(B, PAD_H // 4, 4, PAD_W // 4, 4)
            .transpose(0, 2, 4, 1, 3)
            .reshape(B, 16, PLANE_LEN))

    o2 = conv_features(x4, prepped)                 # (B, 32, 256), (C, H*W) padded
    cnn_flat = o2.reshape(B, 32 * COLS)             # free reshape, already NCHW order
    return mlp_head(cnn_flat, features, prepped)    # (B, 2)


if __name__ == "__main__":
    key = jax.random.PRNGKey(0)
    pkey, ikey, fkey = jax.random.split(key, 3)
    params = init_params(pkey)
    prepped = prepare_params(params)                # one-time host-side repack

    # linear_layer1 expects 32*30*6 + 8 inputs, which pins the image size to
    # (126, 30) — the smallest spatial size consistent with the module.
    images = jax.random.normal(ikey, (2, IMG_H, IMG_W), jnp.float32)
    features = jax.random.normal(fkey, (2, 8), jnp.float32)

    out = cnn_regressor_forward(prepped, images, features)
    out = jax.block_until_ready(out)
    assert out.shape == (2, 2)
    assert bool(jnp.all(jnp.isfinite(out)))
    assert bool(jnp.all((out >= 0.0) & (out <= 1.0)))  # sigmoid output range
    print("KERNEL_OK")
</pallas_src>

<mosaic_0001>
module attributes {stable_mosaic.version = 11 : i64} {
  func.func @_mlp_kernel(%arg0: memref<2x8192xf32, #tpu.memory_space<vmem>>, %arg1: memref<2x8xf32, #tpu.memory_space<vmem>>, %arg2: memref<8192x128xbf16, #tpu.memory_space<vmem>>, %arg3: memref<8x128xbf16, #tpu.memory_space<vmem>>, %arg4: memref<1x128xf32, #tpu.memory_space<vmem>>, %arg5: memref<128x64xbf16, #tpu.memory_space<vmem>>, %arg6: memref<1x64xf32, #tpu.memory_space<vmem>>, %arg7: memref<64x2xbf16, #tpu.memory_space<vmem>>, %arg8: memref<1x2xf32, #tpu.memory_space<vmem>>, %arg9: memref<2x2xf32, #tpu.memory_space<vmem>>) attributes {dimension_semantics = [], scalar_prefetch = 0 : i64, scratch_operands = 0 : i64, tpu.core_type = #tpu.core_type<tc>} {
    %c0 = arith.constant 0 : index
    %c0_0 = arith.constant 0 : index
    %0 = vector.load %arg0[%c0, %c0_0] : memref<2x8192xf32, #tpu.memory_space<vmem>>, vector<2x8192xf32>
    %1 = arith.truncf %0 : vector<2x8192xf32> to vector<2x8192xbf16>
    %c0_1 = arith.constant 0 : index
    %c0_2 = arith.constant 0 : index
    %2 = vector.load %arg1[%c0_1, %c0_2] : memref<2x8xf32, #tpu.memory_space<vmem>>, vector<2x8xf32>
    %3 = arith.truncf %2 : vector<2x8xf32> to vector<2x8xbf16>
    %c0_3 = arith.constant 0 : index
    %c0_4 = arith.constant 0 : index
    %4 = vector.load %arg2[%c0_3, %c0_4] : memref<8192x128xbf16, #tpu.memory_space<vmem>>, vector<8192x128xbf16>
    %cst = arith.constant dense<0.000000e+00> : vector<2x128xf32>
    %5 = tpu.matmul %1, %4, %cst {dimension_numbers = #tpu.dot_dimension_numbers<[1], [0], [0], [1], [0, 0, 1, 1], [], []>} : vector<2x8192xbf16>, vector<8192x128xbf16>, vector<2x128xf32> -> vector<2x128xf32>
    %c0_5 = arith.constant 0 : index
    %c0_6 = arith.constant 0 : index
    %6 = vector.load %arg3[%c0_5, %c0_6] : memref<8x128xbf16, #tpu.memory_space<vmem>>, vector<8x128xbf16>
    %cst_7 = arith.constant dense<0.000000e+00> : vector<2x128xf32>
    %7 = tpu.matmul %3, %6, %cst_7 {dimension_numbers = #tpu.dot_dimension_numbers<[1], [0], [0], [1], [0, 0, 1, 1], [], []>} : vector<2x8xbf16>, vector<8x128xbf16>, vector<2x128xf32> -> vector<2x128xf32>
    %8 = arith.addf %5, %7 : vector<2x128xf32>
    %c0_8 = arith.constant 0 : index
    %c0_9 = arith.constant 0 : index
    %9 = vector.load %arg4[%c0_8, %c0_9] : memref<1x128xf32, #tpu.memory_space<vmem>>, vector<1x128xf32>
    %10 = vector.broadcast %9 : vector<1x128xf32> to vector<2x128xf32>
    %11 = arith.addf %8, %10 : vector<2x128xf32>
    %cst_10 = arith.constant 0.000000e+00 : f32
    %12 = vector.broadcast %cst_10 : f32 to vector<2x128xf32>
    %13 = arith.maximumf %11, %12 : vector<2x128xf32>
    %14 = arith.truncf %13 : vector<2x128xf32> to vector<2x128xbf16>
    %c0_11 = arith.constant 0 : index
    %c0_12 = arith.constant 0 : index
    %15 = vector.load %arg5[%c0_11, %c0_12] : memref<128x64xbf16, #tpu.memory_space<vmem>>, vector<128x64xbf16>
    %cst_13 = arith.constant dense<0.000000e+00> : vector<2x64xf32>
    %16 = tpu.matmul %14, %15, %cst_13 {dimension_numbers = #tpu.dot_dimension_numbers<[1], [0], [0], [1], [0, 0, 1, 1], [], []>} : vector<2x128xbf16>, vector<128x64xbf16>, vector<2x64xf32> -> vector<2x64xf32>
    %c0_14 = arith.constant 0 : index
    %c0_15 = arith.constant 0 : index
    %17 = vector.load %arg6[%c0_14, %c0_15] : memref<1x64xf32, #tpu.memory_space<vmem>>, vector<1x64xf32>
    %18 = vector.broadcast %17 : vector<1x64xf32> to vector<2x64xf32>
    %19 = arith.addf %16, %18 : vector<2x64xf32>
    %cst_16 = arith.constant 0.000000e+00 : f32
    %20 = vector.broadcast %cst_16 : f32 to vector<2x64xf32>
    %21 = arith.maximumf %19, %20 : vector<2x64xf32>
    %22 = arith.truncf %21 : vector<2x64xf32> to vector<2x64xbf16>
    %c0_17 = arith.constant 0 : index
    %c0_18 = arith.constant 0 : index
    %23 = vector.load %arg7[%c0_17, %c0_18] : memref<64x2xbf16, #tpu.memory_space<vmem>>, vector<64x2xbf16>
    %cst_19 = arith.constant dense<0.000000e+00> : vector<2x2xf32>
    %24 = tpu.matmul %22, %23, %cst_19 {dimension_numbers = #tpu.dot_dimension_numbers<[1], [0], [0], [1], [0, 0, 1, 1], [], []>} : vector<2x64xbf16>, vector<64x2xbf16>, vector<2x2xf32> -> vector<2x2xf32>
    %c0_20 = arith.constant 0 : index
    %c0_21 = arith.constant 0 : index
    %25 = vector.load %arg8[%c0_20, %c0_21] : memref<1x2xf32, #tpu.memory_space<vmem>>, vector<1x2xf32>
    %26 = vector.broadcast %25 : vector<1x2xf32> to vector<2x2xf32>
    %27 = arith.addf %24, %26 : vector<2x2xf32>
    %cst_22 = arith.constant 0.000000e+00 : f32
    %28 = vector.broadcast %cst_22 : f32 to vector<2x2xf32>
    %29 = arith.subf %28, %27 : vector<2x2xf32>
    %30 = math.exp %29 : vector<2x2xf32>
    %cst_23 = arith.constant 1.000000e+00 : f32
    %31 = vector.broadcast %cst_23 : f32 to vector<2x2xf32>
    %32 = arith.addf %31, %30 : vector<2x2xf32>
    %33 = tpu.reciprocal %32 : vector<2x2xf32> -> vector<2x2xf32>
    %c0_24 = arith.constant 0 : index
    %c0_25 = arith.constant 0 : index
    %34 = vector.load %arg9[%c0_24, %c0_25] : memref<2x2xf32, #tpu.memory_space<vmem>>, vector<2x2xf32>
    tpu.vector_store %arg9[%c0_24, %c0_25], %33 {strides = array<i32>} : memref<2x2xf32, #tpu.memory_space<vmem>>, vector<2x2xf32>,
    return
  }
}

module attributes {stable_mosaic.version = 11 : i64} {
  func.func @_cnn_kernel(%arg0: i32, %arg1: memref<1x16x272xf32, #tpu.memory_space<vmem>>, %arg2: memref<256x36xf32, #tpu.memory_space<vmem>>, %arg3: memref<256x1xf32, #tpu.memory_space<vmem>>, %arg4: memref<256x1xf32, #tpu.memory_space<vmem>>, %arg5: memref<256x1xf32, #tpu.memory_space<vmem>>, %arg6: memref<128x256xf32, #tpu.memory_space<vmem>>, %arg7: memref<128x1xf32, #tpu.memory_space<vmem>>, %arg8: memref<128x1xf32, #tpu.memory_space<vmem>>, %arg9: memref<128x1xf32, #tpu.memory_space<vmem>>, %arg10: memref<1x32x256xf32, #tpu.memory_space<vmem>>, %arg11: memref<36x256xf32, #tpu.memory_space<vmem>>, %arg12: memref<16x1040xf32, #tpu.memory_space<vmem>>, %arg13: memref<256x256xf32, #tpu.memory_space<vmem>>) attributes {dimension_semantics = [#tpu.dimension_semantics<parallel>], iteration_bounds = array<i64: 2>, scalar_prefetch = 0 : i64, scratch_operands = 3 : i64, tpu.core_type = #tpu.core_type<tc>, window_params = [{transform_indices = @transform_0, window_bounds = array<i64: 1, 16, 272>}, {pipeline_mode = #tpu.pipeline_mode<synchronous>, transform_indices = @transform_1, window_bounds = array<i64: 256, 36>}, {pipeline_mode = #tpu.pipeline_mode<synchronous>, transform_indices = @transform_2, window_bounds = array<i64: 256, 1>}, {pipeline_mode = #tpu.pipeline_mode<synchronous>, transform_indices = @transform_3, window_bounds = array<i64: 256, 1>}, {pipeline_mode = #tpu.pipeline_mode<synchronous>, transform_indices = @transform_4, window_bounds = array<i64: 256, 1>}, {pipeline_mode = #tpu.pipeline_mode<synchronous>, transform_indices = @transform_5, window_bounds = array<i64: 128, 256>}, {pipeline_mode = #tpu.pipeline_mode<synchronous>, transform_indices = @transform_6, window_bounds = array<i64: 128, 1>}, {pipeline_mode = #tpu.pipeline_mode<synchronous>, transform_indices = @transform_7, window_bounds = array<i64: 128, 1>}, {pipeline_mode = #tpu.pipeline_mode<synchronous>, transform_indices = @transform_8, window_bounds = array<i64: 128, 1>}, {transform_indices = @transform_9, window_bounds = array<i64: 1, 32, 256>}]} {
    %c0 = arith.constant 0 : index
    %c0_0 = arith.constant 0 : index
    %c0_1 = arith.constant 0 : index
    %0 = vector.load %arg1[%c0, %c0_0, %c0_1] : memref<1x16x272xf32, #tpu.memory_space<vmem>>, vector<1x1x256xf32>
    %1 = vector.shape_cast %0 : vector<1x1x256xf32> to vector<256xf32>
    %c0_2 = arith.constant 0 : index
    %c0_3 = arith.constant 0 : index
    %2 = vector.load %arg11[%c0_2, %c0_3] : memref<36x256xf32, #tpu.memory_space<vmem>>, vector<1x256xf32>
    %3 = vector.shape_cast %2 : vector<1x256xf32> to vector<256xf32>
    %4 = vector.shape_cast %1 : vector<256xf32> to vector<1x256xf32>
    tpu.vector_store %arg11[%c0_2, %c0_3], %4 {strides = array<i32>} : memref<36x256xf32, #tpu.memory_space<vmem>>, vector<1x256xf32>,
    %c0_4 = arith.constant 0 : index
    %c1 = arith.constant 1 : index
    %c0_5 = arith.constant 0 : index
    %5 = vector.load %arg1[%c0_4, %c1, %c0_5] : memref<1x16x272xf32, #tpu.memory_space<vmem>>, vector<1x1x256xf32>
    %6 = vector.shape_cast %5 : vector<1x1x256xf32> to vector<256xf32>
    %c1_6 = arith.constant 1 : index
    %c0_7 = arith.constant 0 : index
    %7 = vector.load %arg11[%c1_6, %c0_7] : memref<36x256xf32, #tpu.memory_space<vmem>>, vector<1x256xf32>
    %8 = vector.shape_cast %7 : vector<1x256xf32> to vector<256xf32>
    %9 = vector.shape_cast %6 : vector<256xf32> to vector<1x256xf32>
    tpu.vector_store %arg11[%c1_6, %c0_7], %9 {strides = array<i32>} : memref<36x256xf32, #tpu.memory_space<vmem>>, vector<1x256xf32>,
    %c0_8 = arith.constant 0 : index
    %c2 = arith.constant 2 : index
    %c0_9 = arith.constant 0 : index
    %10 = vector.load %arg1[%c0_8, %c2, %c0_9] : memref<1x16x272xf32, #tpu.memory_space<vmem>>, vector<1x1x256xf32>
    %11 = vector.shape_cast %10 : vector<1x1x256xf32> to vector<256xf32>
    %c2_10 = arith.constant 2 : index
    %c0_11 = arith.constant 0 : index
    %12 = vector.load %arg11[%c2_10, %c0_11] : memref<36x256xf32, #tpu.memory_space<vmem>>, vector<1x256xf32>
    %13 = vector.shape_cast %12 : vector<1x256xf32> to vector<256xf32>
    %14 = vector.shape_cast %11 : vector<256xf32> to vector<1x256xf32>
    tpu.vector_store %arg11[%c2_10, %c0_11], %14 {strides = array<i32>} : memref<36x256xf32, #tpu.memory_space<vmem>>, vector<1x256xf32>,
    %c0_12 = arith.constant 0 : index
    %c3 = arith.constant 3 : index
    %c0_13 = arith.constant 0 : index
    %15 = vector.load %arg1[%c0_12, %c3, %c0_13] : memref<1x16x272xf32, #tpu.memory_space<vmem>>, vector<1x1x256xf32>
    %16 = vector.shape_cast %15 : vector<1x1x256xf32> to vector<256xf32>
    %c3_14 = arith.constant 3 : index
    %c0_15 = arith.constant 0 : index
    %17 = vector.load %arg11[%c3_14, %c0_15] : memref<36x256xf32, #tpu.memory_space<vmem>>, vector<1x256xf32>
    %18 = vector.shape_cast %17 : vector<1x256xf32> to vector<256xf32>
    %19 = vector.shape_cast %16 : vector<256xf32> to vector<1x256xf32>
    tpu.vector_store %arg11[%c3_14, %c0_15], %19 {strides = array<i32>} : memref<36x256xf32, #tpu.memory_space<vmem>>, vector<1x256xf32>,
    %c0_16 = arith.constant 0 : index
    %c0_17 = arith.constant 0 : index
    %c1_18 = arith.constant 1 : index
    %20 = vector.load %arg1[%c0_16, %c0_17, %c1_18] : memref<1x16x272xf32, #tpu.memory_space<vmem>>, vector<1x1x256xf32>
    %21 = vector.shape_cast %20 : vector<1x1x256xf32> to vector<256xf32>
    %c4 = arith.constant 4 : index
    %c0_19 = arith.constant 0 : index
    %22 = vector.load %arg11[%c4, %c0_19] : memref<36x256xf32, #tpu.memory_space<vmem>>, vector<1x256xf32>
    %23 = vector.shape_cast %22 : vector<1x256xf32> to vector<256xf32>
    %24 = vector.shape_cast %21 : vector<256xf32> to vector<1x256xf32>
    tpu.vector_store %arg11[%c4, %c0_19], %24 {strides = array<i32>} : memref<36x256xf32, #tpu.memory_space<vmem>>, vector<1x256xf32>,
    %c0_20 = arith.constant 0 : index
    %c1_21 = arith.constant 1 : index
    %c1_22 = arith.constant 1 : index
    %25 = vector.load %arg1[%c0_20, %c1_21, %c1_22] : memref<1x16x272xf32, #tpu.memory_space<vmem>>, vector<1x1x256xf32>
    %26 = vector.shape_cast %25 : vector<1x1x256xf32> to vector<256xf32>
    %c5 = arith.constant 5 : index
    %c0_23 = arith.constant 0 : index
    %27 = vector.load %arg11[%c5, %c0_23] : memref<36x256xf32, #tpu.memory_space<vmem>>, vector<1x256xf32>
    %28 = vector.shape_cast %27 : vector<1x256xf32> to vector<256xf32>
    %29 = vector.shape_cast %26 : vector<256xf32> to vector<1x256xf32>
    tpu.vector_store %arg11[%c5, %c0_23], %29 {strides = array<i32>} : memref<36x256xf32, #tpu.memory_space<vmem>>, vector<1x256xf32>,
    %c0_24 = arith.constant 0 : index
    %c4_25 = arith.constant 4 : index
    %c0_26 = arith.constant 0 : index
    %30 = vector.load %arg1[%c0_24, %c4_25, %c0_26] : memref<1x16x272xf32, #tpu.memory_space<vmem>>, vector<1x1x256xf32>
    %31 = vector.shape_cast %30 : vector<1x1x256xf32> to vector<256xf32>
    %c6 = arith.constant 6 : index
    %c0_27 = arith.constant 0 : index
    %32 = vector.load %arg11[%c6, %c0_27] : memref<36x256xf32, #tpu.memory_space<vmem>>, vector<1x256xf32>
    %33 = vector.shape_cast %32 : vector<1x256xf32> to vector<256xf32>
    %34 = vector.shape_cast %31 : vector<256xf32> to vector<1x256xf32>
    tpu.vector_store %arg11[%c6, %c0_27], %34 {strides = array<i32>} : memref<36x256xf32, #tpu.memory_space<vmem>>, vector<1x256xf32>,
    %c0_28 = arith.constant 0 : index
    %c5_29 = arith.constant 5 : index
    %c0_30 = arith.constant 0 : index
    %35 = vector.load %arg1[%c0_28, %c5_29, %c0_30] : memref<1x16x272xf32, #tpu.memory_space<vmem>>, vector<1x1x256xf32>
    %36 = vector.shape_cast %35 : vector<1x1x256xf32> to vector<256xf32>
    %c7 = arith.constant 7 : index
    %c0_31 = arith.constant 0 : index
    %37 = vector.load %arg11[%c7, %c0_31] : memref<36x256xf32, #tpu.memory_space<vmem>>, vector<1x256xf32>
    %38 = vector.shape_cast %37 : vector<1x256xf32> to vector<256xf32>
    %39 = vector.shape_cast %36 : vector<256xf32> to vector<1x256xf32>
    tpu.vector_store %arg11[%c7, %c0_31], %39 {strides = array<i32>} : memref<36x256xf32, #tpu.memory_space<vmem>>, vector<1x256xf32>,
    %c0_32 = arith.constant 0 : index
    %c6_33 = arith.constant 6 : index
    %c0_34 = arith.constant 0 : index
    %40 = vector.load %arg1[%c0_32, %c6_33, %c0_34] : memref<1x16x272xf32, #tpu.memory_space<vmem>>, vector<1x1x256xf32>
    %41 = vector.shape_cast %40 : vector<1x1x256xf32> to vector<256xf32>
    %c8 = arith.constant 8 : index
    %c0_35 = arith.constant 0 : index
    %42 = vector.load %arg11[%c8, %c0_35] : memref<36x256xf32, #tpu.memory_space<vmem>>, vector<1x256xf32>
    %43 = vector.shape_cast %42 : vector<1x256xf32> to vector<256xf32>
    %44 = vector.shape_cast %41 : vector<256xf32> to vector<1x256xf32>
    tpu.vector_store %arg11[%c8, %c0_35], %44 {strides = array<i32>} : memref<36x256xf32, #tpu.memory_space<vmem>>, vector<1x256xf32>,
    %c0_36 = arith.constant 0 : index
    %c7_37 = arith.constant 7 : index
    %c0_38 = arith.constant 0 : index
    %45 = vector.load %arg1[%c0_36, %c7_37, %c0_38] : memref<1x16x272xf32, #tpu.memory_space<vmem>>, vector<1x1x256xf32>
    %46 = vector.shape_cast %45 : vector<1x1x256xf32> to vector<256xf32>
    %c9 = arith.constant 9 : index
    %c0_39 = arith.constant 0 : index
    %47 = vector.load %arg11[%c9, %c0_39] : memref<36x256xf32, #tpu.memory_space<vmem>>, vector<1x256xf32>
    %48 = vector.shape_cast %47 : vector<1x256xf32> to vector<256xf32>
    %49 = vector.shape_cast %46 : vector<256xf32> to vector<1x256xf32>
    tpu.vector_store %arg11[%c9, %c0_39], %49 {strides = array<i32>} : memref<36x256xf32, #tpu.memory_space<vmem>>, vector<1x256xf32>,
    %c0_40 = arith.constant 0 : index
    %c4_41 = arith.constant 4 : index
    %c1_42 = arith.constant 1 : index
    %50 = vector.load %arg1[%c0_40, %c4_41, %c1_42] : memref<1x16x272xf32, #tpu.memory_space<vmem>>, vector<1x1x256xf32>
    %51 = vector.shape_cast %50 : vector<1x1x256xf32> to vector<256xf32>
    %c10 = arith.constant 10 : index
    %c0_43 = arith.constant 0 : index
    %52 = vector.load %arg11[%c10, %c0_43] : memref<36x256xf32, #tpu.memory_space<vmem>>, vector<1x256xf32>
    %53 = vector.shape_cast %52 : vector<1x256xf32> to vector<256xf32>
    %54 = vector.shape_cast %51 : vector<256xf32> to vector<1x256xf32>
    tpu.vector_store %arg11[%c10, %c0_43], %54 {strides = array<i32>} : memref<36x256xf32, #tpu.memory_space<vmem>>, vector<1x256xf32>,
    %c0_44 = arith.constant 0 : index
    %c5_45 = arith.constant 5 : index
    %c1_46 = arith.constant 1 : index
    %55 = vector.load %arg1[%c0_44, %c5_45, %c1_46] : memref<1x16x272xf32, #tpu.memory_space<vmem>>, vector<1x1x256xf32>
    %56 = vector.shape_cast %55 : vector<1x1x256xf32> to vector<256xf32>
    %c11 = arith.constant 11 : index
    %c0_47 = arith.constant 0 : index
    %57 = vector.load %arg11[%c11, %c0_47] : memref<36x256xf32, #tpu.memory_space<vmem>>, vector<1x256xf32>
    %58 = vector.shape_cast %57 : vector<1x256xf32> to vector<256xf32>
    %59 = vector.shape_cast %56 : vector<256xf32> to vector<1x256xf32>
    tpu.vector_store %arg11[%c11, %c0_47], %59 {strides = array<i32>} : memref<36x256xf32, #tpu.memory_space<vmem>>, vector<1x256xf32>,
    %c0_48 = arith.constant 0 : index
    %c8_49 = arith.constant 8 : index
    %c0_50 = arith.constant 0 : index
    %60 = vector.load %arg1[%c0_48, %c8_49, %c0_50] : memref<1x16x272xf32, #tpu.memory_space<vmem>>, vector<1x1x256xf32>
    %61 = vector.shape_cast %60 : vector<1x1x256xf32> to vector<256xf32>
    %c12 = arith.constant 12 : index
    %c0_51 = arith.constant 0 : index
    %62 = vector.load %arg11[%c12, %c0_51] : memref<36x256xf32, #tpu.memory_space<vmem>>, vector<1x256xf32>
    %63 = vector.shape_cast %62 : vector<1x256xf32> to vector<256xf32>
    %64 = vector.shape_cast %61 : vector<256xf32> to vector<1x256xf32>
    tpu.vector_store %arg11[%c12, %c0_51], %64 {strides = array<i32>} : memref<36x256xf32, #tpu.memory_space<vmem>>, vector<1x256xf32>,
    %c0_52 = arith.constant 0 : index
    %c9_53 = arith.constant 9 : index
    %c0_54 = arith.constant 0 : index
    %65 = vector.load %arg1[%c0_52, %c9_53, %c0_54] : memref<1x16x272xf32, #tpu.memory_space<vmem>>, vector<1x1x256xf32>
    %66 = vector.shape_cast %65 : vector<1x1x256xf32> to vector<256xf32>
    %c13 = arith.constant 13 : index
    %c0_55 = arith.constant 0 : index
    %67 = vector.load %arg11[%c13, %c0_55] : memref<36x256xf32, #tpu.memory_space<vmem>>, vector<1x256xf32>
    %68 = vector.shape_cast %67 : vector<1x256xf32> to vector<256xf32>
    %69 = vector.shape_cast %66 : vector<256xf32> to vector<1x256xf32>
    tpu.vector_store %arg11[%c13, %c0_55], %69 {strides = array<i32>} : memref<36x256xf32, #tpu.memory_space<vmem>>, vector<1x256xf32>,
    %c0_56 = arith.constant 0 : index
    %c10_57 = arith.constant 10 : index
    %c0_58 = arith.constant 0 : index
    %70 = vector.load %arg1[%c0_56, %c10_57, %c0_58] : memref<1x16x272xf32, #tpu.memory_space<vmem>>, vector<1x1x256xf32>
    %71 = vector.shape_cast %70 : vector<1x1x256xf32> to vector<256xf32>
    %c14 = arith.constant 14 : index
    %c0_59 = arith.constant 0 : index
    %72 = vector.load %arg11[%c14, %c0_59] : memref<36x256xf32, #tpu.memory_space<vmem>>, vector<1x256xf32>
    %73 = vector.shape_cast %72 : vector<1x256xf32> to vector<256xf32>
    %74 = vector.shape_cast %71 : vector<256xf32> to vector<1x256xf32>
    tpu.vector_store %arg11[%c14, %c0_59], %74 {strides = array<i32>} : memref<36x256xf32, #tpu.memory_space<vmem>>, vector<1x256xf32>,
    %c0_60 = arith.constant 0 : index
    %c11_61 = arith.constant 11 : index
    %c0_62 = arith.constant 0 : index
    %75 = vector.load %arg1[%c0_60, %c11_61, %c0_62] : memref<1x16x272xf32, #tpu.memory_space<vmem>>, vector<1x1x256xf32>
    %76 = vector.shape_cast %75 : vector<1x1x256xf32> to vector<256xf32>
    %c15 = arith.constant 15 : index
    %c0_63 = arith.constant 0 : index
    %77 = vector.load %arg11[%c15, %c0_63] : memref<36x256xf32, #tpu.memory_space<vmem>>, vector<1x256xf32>
    %78 = vector.shape_cast %77 : vector<1x256xf32> to vector<256xf32>
    %79 = vector.shape_cast %76 : vector<256xf32> to vector<1x256xf32>
    tpu.vector_store %arg11[%c15, %c0_63], %79 {strides = array<i32>} : memref<36x256xf32, #tpu.memory_space<vmem>>, vector<1x256xf32>,
    %c0_64 = arith.constant 0 : index
    %c8_65 = arith.constant 8 : index
    %c1_66 = arith.constant 1 : index
    %80 = vector.load %arg1[%c0_64, %c8_65, %c1_66] : memref<1x16x272xf32, #tpu.memory_space<vmem>>, vector<1x1x256xf32>
    %81 = vector.shape_cast %80 : vector<1x1x256xf32> to vector<256xf32>
    %c16 = arith.constant 16 : index
    %c0_67 = arith.constant 0 : index
    %82 = vector.load %arg11[%c16, %c0_67] : memref<36x256xf32, #tpu.memory_space<vmem>>, vector<1x256xf32>
    %83 = vector.shape_cast %82 : vector<1x256xf32> to vector<256xf32>
    %84 = vector.shape_cast %81 : vector<256xf32> to vector<1x256xf32>
    tpu.vector_store %arg11[%c16, %c0_67], %84 {strides = array<i32>} : memref<36x256xf32, #tpu.memory_space<vmem>>, vector<1x256xf32>,
    %c0_68 = arith.constant 0 : index
    %c9_69 = arith.constant 9 : index
    %c1_70 = arith.constant 1 : index
    %85 = vector.load %arg1[%c0_68, %c9_69, %c1_70] : memref<1x16x272xf32, #tpu.memory_space<vmem>>, vector<1x1x256xf32>
    %86 = vector.shape_cast %85 : vector<1x1x256xf32> to vector<256xf32>
    %c17 = arith.constant 17 : index
    %c0_71 = arith.constant 0 : index
    %87 = vector.load %arg11[%c17, %c0_71] : memref<36x256xf32, #tpu.memory_space<vmem>>, vector<1x256xf32>
    %88 = vector.shape_cast %87 : vector<1x256xf32> to vector<256xf32>
    %89 = vector.shape_cast %86 : vector<256xf32> to vector<1x256xf32>
    tpu.vector_store %arg11[%c17, %c0_71], %89 {strides = array<i32>} : memref<36x256xf32, #tpu.memory_space<vmem>>, vector<1x256xf32>,
    %c0_72 = arith.constant 0 : index
    %c12_73 = arith.constant 12 : index
    %c0_74 = arith.constant 0 : index
    %90 = vector.load %arg1[%c0_72, %c12_73, %c0_74] : memref<1x16x272xf32, #tpu.memory_space<vmem>>, vector<1x1x256xf32>
    %91 = vector.shape_cast %90 : vector<1x1x256xf32> to vector<256xf32>
    %c18 = arith.constant 18 : index
    %c0_75 = arith.constant 0 : index
    %92 = vector.load %arg11[%c18, %c0_75] : memref<36x256xf32, #tpu.memory_space<vmem>>, vector<1x256xf32>
    %93 = vector.shape_cast %92 : vector<1x256xf32> to vector<256xf32>
    %94 = vector.shape_cast %91 : vector<256xf32> to vector<1x256xf32>
    tpu.vector_store %arg11[%c18, %c0_75], %94 {strides = array<i32>} : memref<36x256xf32, #tpu.memory_space<vmem>>, vector<1x256xf32>,
    %c0_76 = arith.constant 0 : index
    %c13_77 = arith.constant 13 : index
    %c0_78 = arith.constant 0 : index
    %95 = vector.load %arg1[%c0_76, %c13_77, %c0_78] : memref<1x16x272xf32, #tpu.memory_space<vmem>>, vector<1x1x256xf32>
    %96 = vector.shape_cast %95 : vector<1x1x256xf32> to vector<256xf32>
    %c19 = arith.constant 19 : index
    %c0_79 = arith.constant 0 : index
    %97 = vector.load %arg11[%c19, %c0_79] : memref<36x256xf32, #tpu.memory_space<vmem>>, vector<1x256xf32>
    %98 = vector.shape_cast %97 : vector<1x256xf32> to vector<256xf32>
    %99 = vector.shape_cast %96 : vector<256xf32> to vector<1x256xf32>
    tpu.vector_store %arg11[%c19, %c0_79], %99 {strides = array<i32>} : memref<36x256xf32, #tpu.memory_space<vmem>>, vector<1x256xf32>,
    %c0_80 = arith.constant 0 : index
    %c14_81 = arith.constant 14 : index
    %c0_82 = arith.constant 0 : index
    %100 = vector.load %arg1[%c0_80, %c14_81, %c0_82] : memref<1x16x272xf32, #tpu.memory_space<vmem>>, vector<1x1x256xf32>
    %101 = vector.shape_cast %100 : vector<1x1x256xf32> to vector<256xf32>
    %c20 = arith.constant 20 : index
    %c0_83 = arith.constant 0 : index
    %102 = vector.load %arg11[%c20, %c0_83] : memref<36x256xf32, #tpu.memory_space<vmem>>, vector<1x256xf32>
    %103 = vector.shape_cast %102 : vector<1x256xf32> to vector<256xf32>
    %104 = vector.shape_cast %101 : vector<256xf32> to vector<1x256xf32>
    tpu.vector_store %arg11[%c20, %c0_83], %104 {strides = array<i32>} : memref<36x256xf32, #tpu.memory_space<vmem>>, vector<1x256xf32>,
    %c0_84 = arith.constant 0 : index
    %c15_85 = arith.constant 15 : index
    %c0_86 = arith.constant 0 : index
    %105 = vector.load %arg1[%c0_84, %c15_85, %c0_86] : memref<1x16x272xf32, #tpu.memory_space<vmem>>, vector<1x1x256xf32>
    %106 = vector.shape_cast %105 : vector<1x1x256xf32> to vector<256xf32>
    %c21 = arith.constant 21 : index
    %c0_87 = arith.constant 0 : index
    %107 = vector.load %arg11[%c21, %c0_87] : memref<36x256xf32, #tpu.memory_space<vmem>>, vector<1x256xf32>
    %108 = vector.shape_cast %107 : vector<1x256xf32> to vector<256xf32>
    %109 = vector.shape_cast %106 : vector<256xf32> to vector<1x256xf32>
    tpu.vector_store %arg11[%c21, %c0_87], %109 {strides = array<i32>} : memref<36x256xf32, #tpu.memory_space<vmem>>, vector<1x256xf32>,
    %c0_88 = arith.constant 0 : index
    %c12_89 = arith.constant 12 : index
    %c1_90 = arith.constant 1 : index
    %110 = vector.load %arg1[%c0_88, %c12_89, %c1_90] : memref<1x16x272xf32, #tpu.memory_space<vmem>>, vector<1x1x256xf32>
    %111 = vector.shape_cast %110 : vector<1x1x256xf32> to vector<256xf32>
    %c22 = arith.constant 22 : index
    %c0_91 = arith.constant 0 : index
    %112 = vector.load %arg11[%c22, %c0_91] : memref<36x256xf32, #tpu.memory_space<vmem>>, vector<1x256xf32>
    %113 = vector.shape_cast %112 : vector<1x256xf32> to vector<256xf32>
    %114 = vector.shape_cast %111 : vector<256xf32> to vector<1x256xf32>
    tpu.vector_store %arg11[%c22, %c0_91], %114 {strides = array<i32>} : memref<36x256xf32, #tpu.memory_space<vmem>>, vector<1x256xf32>,
    %c0_92 = arith.constant 0 : index
    %c13_93 = arith.constant 13 : index
    %c1_94 = arith.constant 1 : index
    %115 = vector.load %arg1[%c0_92, %c13_93, %c1_94] : memref<1x16x272xf32, #tpu.memory_space<vmem>>, vector<1x1x256xf32>
    %116 = vector.shape_cast %115 : vector<1x1x256xf32> to vector<256xf32>
    %c23 = arith.constant 23 : index
    %c0_95 = arith.constant 0 : index
    %117 = vector.load %arg11[%c23, %c0_95] : memref<36x256xf32, #tpu.memory_space<vmem>>, vector<1x256xf32>
    %118 = vector.shape_cast %117 : vector<1x256xf32> to vector<256xf32>
    %119 = vector.shape_cast %116 : vector<256xf32> to vector<1x256xf32>
    tpu.vector_store %arg11[%c23, %c0_95], %119 {strides = array<i32>} : memref<36x256xf32, #tpu.memory_space<vmem>>, vector<1x256xf32>,
    %c0_96 = arith.constant 0 : index
    %c0_97 = arith.constant 0 : index
    %c8_98 = arith.constant 8 : index
    %120 = vector.load %arg1[%c0_96, %c0_97, %c8_98] : memref<1x16x272xf32, #tpu.memory_space<vmem>>, vector<1x1x256xf32>
    %121 = vector.shape_cast %120 : vector<1x1x256xf32> to vector<256xf32>
    %c24 = arith.constant 24 : index
    %c0_99 = arith.constant 0 : index
    %122 = vector.load %arg11[%c24, %c0_99] : memref<36x256xf32, #tpu.memory_space<vmem>>, vector<1x256xf32>
    %123 = vector.shape_cast %122 : vector<1x256xf32> to vector<256xf32>
    %124 = vector.shape_cast %121 : vector<256xf32> to vector<1x256xf32>
    tpu.vector_store %arg11[%c24, %c0_99], %124 {strides = array<i32>} : memref<36x256xf32, #tpu.memory_space<vmem>>, vector<1x256xf32>,
    %c0_100 = arith.constant 0 : index
    %c1_101 = arith.constant 1 : index
    %c8_102 = arith.constant 8 : index
    %125 = vector.load %arg1[%c0_100, %c1_101, %c8_102] : memref<1x16x272xf32, #tpu.memory_space<vmem>>, vector<1x1x256xf32>
    %126 = vector.shape_cast %125 : vector<1x1x256xf32> to vector<256xf32>
    %c25 = arith.constant 25 : index
    %c0_103 = arith.constant 0 : index
    %127 = vector.load %arg11[%c25, %c0_103] : memref<36x256xf32, #tpu.memory_space<vmem>>, vector<1x256xf32>
    %128 = vector.shape_cast %127 : vector<1x256xf32> to vector<256xf32>
    %129 = vector.shape_cast %126 : vector<256xf32> to vector<1x256xf32>
    tpu.vector_store %arg11[%c25, %c0_103], %129 {strides = array<i32>} : memref<36x256xf32, #tpu.memory_space<vmem>>, vector<1x256xf32>,
    %c0_104 = arith.constant 0 : index
    %c2_105 = arith.constant 2 : index
    %c8_106 = arith.constant 8 : index
    %130 = vector.load %arg1[%c0_104, %c2_105, %c8_106] : memref<1x16x272xf32, #tpu.memory_space<vmem>>, vector<1x1x256xf32>
    %131 = vector.shape_cast %130 : vector<1x1x256xf32> to vector<256xf32>
    %c26 = arith.constant 26 : index
    %c0_107 = arith.constant 0 : index
    %132 = vector.load %arg11[%c26, %c0_107] : memref<36x256xf32, #tpu.memory_space<vmem>>, vector<1x256xf32>
    %133 = vector.shape_cast %132 : vector<1x256xf32> to vector<256xf32>
    %134 = vector.shape_cast %131 : vector<256xf32> to vector<1x256xf32>
    tpu.vector_store %arg11[%c26, %c0_107], %134 {strides = array<i32>} : memref<36x256xf32, #tpu.memory_space<vmem>>, vector<1x256xf32>,
    %c0_108 = arith.constant 0 : index
    %c3_109 = arith.constant 3 : index
    %c8_110 = arith.constant 8 : index
    %135 = vector.load %arg1[%c0_108, %c3_109, %c8_110] : memref<1x16x272xf32, #tpu.memory_space<vmem>>, vector<1x1x256xf32>
    %136 = vector.shape_cast %135 : vector<1x1x256xf32> to vector<256xf32>
    %c27 = arith.constant 27 : index
    %c0_111 = arith.constant 0 : index
    %137 = vector.load %arg11[%c27, %c0_111] : memref<36x256xf32, #tpu.memory_space<vmem>>, vector<1x256xf32>
    %138 = vector.shape_cast %137 : vector<1x256xf32> to vector<256xf32>
    %139 = vector.shape_cast %136 : vector<256xf32> to vector<1x256xf32>
    tpu.vector_store %arg11[%c27, %c0_111], %139 {strides = array<i32>} : memref<36x256xf32, #tpu.memory_space<vmem>>, vector<1x256xf32>,
    %c0_112 = arith.constant 0 : index
    %c0_113 = arith.constant 0 : index
    %c9_114 = arith.constant 9 : index
    %140 = vector.load %arg1[%c0_112, %c0_113, %c9_114] : memref<1x16x272xf32, #tpu.memory_space<vmem>>, vector<1x1x256xf32>
    %141 = vector.shape_cast %140 : vector<1x1x256xf32> to vector<256xf32>
    %c28 = arith.constant 28 : index
    %c0_115 = arith.constant 0 : index
    %142 = vector.load %arg11[%c28, %c0_115] : memref<36x256xf32, #tpu.memory_space<vmem>>, vector<1x256xf32>
    %143 = vector.shape_cast %142 : vector<1x256xf32> to vector<256xf32>
    %144 = vector.shape_cast %141 : vector<256xf32> to vector<1x256xf32>
    tpu.vector_store %arg11[%c28, %c0_115], %144 {strides = array<i32>} : memref<36x256xf32, #tpu.memory_space<vmem>>, vector<1x256xf32>,
    %c0_116 = arith.constant 0 : index
    %c1_117 = arith.constant 1 : index
    %c9_118 = arith.constant 9 : index
    %145 = vector.load %arg1[%c0_116, %c1_117, %c9_118] : memref<1x16x272xf32, #tpu.memory_space<vmem>>, vector<1x1x256xf32>
    %146 = vector.shape_cast %145 : vector<1x1x256xf32> to vector<256xf32>
    %c29 = arith.constant 29 : index
    %c0_119 = arith.constant 0 : index
    %147 = vector.load %arg11[%c29, %c0_119] : memref<36x256xf32, #tpu.memory_space<vmem>>, vector<1x256xf32>
    %148 = vector.shape_cast %147 : vector<1x256xf32> to vector<256xf32>
    %149 = vector.shape_cast %146 : vector<256xf32> to vector<1x256xf32>
    tpu.vector_store %arg11[%c29, %c0_119], %149 {strides = array<i32>} : memref<36x256xf32, #tpu.memory_space<vmem>>, vector<1x256xf32>,
    %c0_120 = arith.constant 0 : index
    %c4_121 = arith.constant 4 : index
    %c8_122 = arith.constant 8 : index
    %150 = vector.load %arg1[%c0_120, %c4_121, %c8_122] : memref<1x16x272xf32, #tpu.memory_space<vmem>>, vector<1x1x256xf32>
    %151 = vector.shape_cast %150 : vector<1x1x256xf32> to vector<256xf32>
    %c30 = arith.constant 30 : index
    %c0_123 = arith.constant 0 : index
    %152 = vector.load %arg11[%c30, %c0_123] : memref<36x256xf32, #tpu.memory_space<vmem>>, vector<1x256xf32>
    %153 = vector.shape_cast %152 : vector<1x256xf32> to vector<256xf32>
    %154 = vector.shape_cast %151 : vector<256xf32> to vector<1x256xf32>
    tpu.vector_store %arg11[%c30, %c0_123], %154 {strides = array<i32>} : memref<36x256xf32, #tpu.memory_space<vmem>>, vector<1x256xf32>,
    %c0_124 = arith.constant 0 : index
    %c5_125 = arith.constant 5 : index
    %c8_126 = arith.constant 8 : index
    %155 = vector.load %arg1[%c0_124, %c5_125, %c8_126] : memref<1x16x272xf32, #tpu.memory_space<vmem>>, vector<1x1x256xf32>
    %156 = vector.shape_cast %155 : vector<1x1x256xf32> to vector<256xf32>
    %c31 = arith.constant 31 : index
    %c0_127 = arith.constant 0 : index
    %157 = vector.load %arg11[%c31, %c0_127] : memref<36x256xf32, #tpu.memory_space<vmem>>, vector<1x256xf32>
    %158 = vector.shape_cast %157 : vector<1x256xf32> to vector<256xf32>
    %159 = vector.shape_cast %156 : vector<256xf32> to vector<1x256xf32>
    tpu.vector_store %arg11[%c31, %c0_127], %159 {strides = array<i32>} : memref<36x256xf32, #tpu.memory_space<vmem>>, vector<1x256xf32>,
    %c0_128 = arith.constant 0 : index
    %c6_129 = arith.constant 6 : index
    %c8_130 = arith.constant 8 : index
    %160 = vector.load %arg1[%c0_128, %c6_129, %c8_130] : memref<1x16x272xf32, #tpu.memory_space<vmem>>, vector<1x1x256xf32>
    %161 = vector.shape_cast %160 : vector<1x1x256xf32> to vector<256xf32>
    %c32 = arith.constant 32 : index
    %c0_131 = arith.constant 0 : index
    %162 = vector.load %arg11[%c32, %c0_131] : memref<36x256xf32, #tpu.memory_space<vmem>>, vector<1x256xf32>
    %163 = vector.shape_cast %162 : vector<1x256xf32> to vector<256xf32>
    %164 = vector.shape_cast %161 : vector<256xf32> to vector<1x256xf32>
    tpu.vector_store %arg11[%c32, %c0_131], %164 {strides = array<i32>} : memref<36x256xf32, #tpu.memory_space<vmem>>, vector<1x256xf32>,
    %c0_132 = arith.constant 0 : index
    %c7_133 = arith.constant 7 : index
    %c8_134 = arith.constant 8 : index
    %165 = vector.load %arg1[%c0_132, %c7_133, %c8_134] : memref<1x16x272xf32, #tpu.memory_space<vmem>>, vector<1x1x256xf32>
    %166 = vector.shape_cast %165 : vector<1x1x256xf32> to vector<256xf32>
    %c33 = arith.constant 33 : index
    %c0_135 = arith.constant 0 : index
    %167 = vector.load %arg11[%c33, %c0_135] : memref<36x256xf32, #tpu.memory_space<vmem>>, vector<1x256xf32>
    %168 = vector.shape_cast %167 : vector<1x256xf32> to vector<256xf32>
    %169 = vector.shape_cast %166 : vector<256xf32> to vector<1x256xf32>
    tpu.vector_store %arg11[%c33, %c0_135], %169 {strides = array<i32>} : memref<36x256xf32, #tpu.memory_space<vmem>>, vector<1x256xf32>,
    %c0_136 = arith.constant 0 : index
    %c4_137 = arith.constant 4 : index
    %c9_138 = arith.constant 9 : index
    %170 = vector.load %arg1[%c0_136, %c4_137, %c9_138] : memref<1x16x272xf32, #tpu.memory_space<vmem>>, vector<1x1x256xf32>
    %171 = vector.shape_cast %170 : vector<1x1x256xf32> to vector<256xf32>
    %c34 = arith.constant 34 : index
    %c0_139 = arith.constant 0 : index
    %172 = vector.load %arg11[%c34, %c0_139] : memref<36x256xf32, #tpu.memory_space<vmem>>, vector<1x256xf32>
    %173 = vector.shape_cast %172 : vector<1x256xf32> to vector<256xf32>
    %174 = vector.shape_cast %171 : vector<256xf32> to vector<1x256xf32>
    tpu.vector_store %arg11[%c34, %c0_139], %174 {strides = array<i32>} : memref<36x256xf32, #tpu.memory_space<vmem>>, vector<1x256xf32>,
    %c0_140 = arith.constant 0 : index
    %c5_141 = arith.constant 5 : index
    %c9_142 = arith.constant 9 : index
    %175 = vector.load %arg1[%c0_140, %c5_141, %c9_142] : memref<1x16x272xf32, #tpu.memory_space<vmem>>, vector<1x1x256xf32>
    %176 = vector.shape_cast %175 : vector<1x1x256xf32> to vector<256xf32>
    %c35 = arith.constant 35 : index
    %c0_143 = arith.constant 0 : index
    %177 = vector.load %arg11[%c35, %c0_143] : memref<36x256xf32, #tpu.memory_space<vmem>>, vector<1x256xf32>
    %178 = vector.shape_cast %177 : vector<1x256xf32> to vector<256xf32>
    %179 = vector.shape_cast %176 : vector<256xf32> to vector<1x256xf32>
    tpu.vector_store %arg11[%c35, %c0_143], %179 {strides = array<i32>} : memref<36x256xf32, #tpu.memory_space<vmem>>, vector<1x256xf32>,
    %c0_144 = arith.constant 0 : index
    %c0_145 = arith.constant 0 : index
    %180 = vector.load %arg2[%c0_144, %c0_145] : memref<256x36xf32, #tpu.memory_space<vmem>>, vector<256x36xf32>
    %c0_146 = arith.constant 0 : index
    %c0_147 = arith.constant 0 : index
    %181 = vector.load %arg11[%c0_146, %c0_147] : memref<36x256xf32, #tpu.memory_space<vmem>>, vector<36x256xf32>
    %cst = arith.constant dense<0.000000e+00> : vector<256x256xf32>
    %182 = tpu.matmul %180, %181, %cst {dimension_numbers = #tpu.dot_dimension_numbers<[1], [0], [0], [1], [0, 0, 1, 1], [], []>} : vector<256x36xf32>, vector<36x256xf32>, vector<256x256xf32> -> vector<256x256xf32>
    %c0_148 = arith.constant 0 : index
    %c0_149 = arith.constant 0 : index
    %183 = vector.load %arg3[%c0_148, %c0_149] : memref<256x1xf32, #tpu.memory_space<vmem>>, vector<256x1xf32>
    %184 = vector.broadcast %183 : vector<256x1xf32> to vector<256x256xf32>
    %185 = arith.addf %182, %184 : vector<256x256xf32>
    %cst_150 = arith.constant 0.000000e+00 : f32
    %186 = vector.broadcast %cst_150 : f32 to vector<256x256xf32>
    %187 = arith.maximumf %185, %186 : vector<256x256xf32>
    %c0_151 = arith.constant 0 : index
    %c0_152 = arith.constant 0 : index
    %188 = vector.load %arg4[%c0_151, %c0_152] : memref<256x1xf32, #tpu.memory_space<vmem>>, vector<256x1xf32>
    %189 = vector.broadcast %188 : vector<256x1xf32> to vector<256x256xf32>
    %190 = arith.mulf %187, %189 : vector<256x256xf32>
    %c0_153 = arith.constant 0 : index
    %c0_154 = arith.constant 0 : index
    %191 = vector.load %arg5[%c0_153, %c0_154] : memref<256x1xf32, #tpu.memory_space<vmem>>, vector<256x1xf32>
    %192 = vector.broadcast %191 : vector<256x1xf32> to vector<256x256xf32>
    %193 = arith.addf %190, %192 : vector<256x256xf32>
    %cst_155 = arith.constant 0.000000e+00 : f32
    %194 = vector.broadcast %cst_155 : f32 to vector<16x1040xf32>
    %c0_156 = arith.constant 0 : index
    %c0_157 = arith.constant 0 : index
    %195 = vector.load %arg12[%c0_156, %c0_157] : memref<16x1040xf32, #tpu.memory_space<vmem>>, vector<16x1040xf32>
    tpu.vector_store %arg12[%c0_156, %c0_157], %194 {strides = array<i32>} : memref<16x1040xf32, #tpu.memory_space<vmem>>, vector<16x1040xf32>,
    %196 = vector.extract_strided_slice %193 {offsets = [0, 0], sizes = [64, 256], strides = [1, 1]} : vector<256x256xf32> to vector<64x256xf32>
    %197 = vector.extract_strided_slice %196 {offsets = [0, 0], sizes = [16, 256], strides = [1, 1]} : vector<64x256xf32> to vector<16x256xf32>
    %198 = vector.extract_strided_slice %196 {offsets = [16, 0], sizes = [16, 256], strides = [1, 1]} : vector<64x256xf32> to vector<16x256xf32>
    %199 = arith.maximumf %197, %198 : vector<16x256xf32>
    %200 = vector.extract_strided_slice %196 {offsets = [32, 0], sizes = [16, 256], strides = [1, 1]} : vector<64x256xf32> to vector<16x256xf32>
    %201 = vector.extract_strided_slice %196 {offsets = [48, 0], sizes = [16, 256], strides = [1, 1]} : vector<64x256xf32> to vector<16x256xf32>
    %202 = arith.maximumf %200, %201 : vector<16x256xf32>
    %203 = arith.maximumf %199, %202 : vector<16x256xf32>
    %c0_158 = arith.constant 0 : index
    %c0_159 = arith.constant 0 : index
    %204 = vector.load %arg12[%c0_158, %c0_159] : memref<16x1040xf32, #tpu.memory_space<vmem>>, vector<16x256xf32>
    tpu.vector_store %arg12[%c0_158, %c0_159], %203 {strides = array<i32>} : memref<16x1040xf32, #tpu.memory_space<vmem>>, vector<16x256xf32>,
    %205 = vector.extract_strided_slice %193 {offsets = [64, 0], sizes = [64, 256], strides = [1, 1]} : vector<256x256xf32> to vector<64x256xf32>
    %206 = vector.extract_strided_slice %205 {offsets = [0, 0], sizes = [16, 256], strides = [1, 1]} : vector<64x256xf32> to vector<16x256xf32>
    %207 = vector.extract_strided_slice %205 {offsets = [16, 0], sizes = [16, 256], strides = [1, 1]} : vector<64x256xf32> to vector<16x256xf32>
    %208 = arith.maximumf %206, %207 : vector<16x256xf32>
    %209 = vector.extract_strided_slice %205 {offsets = [32, 0], sizes = [16, 256], strides = [1, 1]} : vector<64x256xf32> to vector<16x256xf32>
    %210 = vector.extract_strided_slice %205 {offsets = [48, 0], sizes = [16, 256], strides = [1, 1]} : vector<64x256xf32> to vector<16x256xf32>
    %211 = arith.maximumf %209, %210 : vector<16x256xf32>
    %212 = arith.maximumf %208, %211 : vector<16x256xf32>
    %c0_160 = arith.constant 0 : index
    %c256 = arith.constant 256 : index
    %213 = vector.load %arg12[%c0_160, %c256] : memref<16x1040xf32, #tpu.memory_space<vmem>>, vector<16x256xf32>
    tpu.vector_store %arg12[%c0_160, %c256], %212 {strides = array<i32>} : memref<16x1040xf32, #tpu.memory_space<vmem>>, vector<16x256xf32>,
    %214 = vector.extract_strided_slice %193 {offsets = [128, 0], sizes = [64, 256], strides = [1, 1]} : vector<256x256xf32> to vector<64x256xf32>
    %215 = vector.extract_strided_slice %214 {offsets = [0, 0], sizes = [16, 256], strides = [1, 1]} : vector<64x256xf32> to vector<16x256xf32>
    %216 = vector.extract_strided_slice %214 {offsets = [16, 0], sizes = [16, 256], strides = [1, 1]} : vector<64x256xf32> to vector<16x256xf32>
    %217 = arith.maximumf %215, %216 : vector<16x256xf32>
    %218 = vector.extract_strided_slice %214 {offsets = [32, 0], sizes = [16, 256], strides = [1, 1]} : vector<64x256xf32> to vector<16x256xf32>
    %219 = vector.extract_strided_slice %214 {offsets = [48, 0], sizes = [16, 256], strides = [1, 1]} : vector<64x256xf32> to vector<16x256xf32>
    %220 = arith.maximumf %218, %219 : vector<16x256xf32>
    %221 = arith.maximumf %217, %220 : vector<16x256xf32>
    %c0_161 = arith.constant 0 : index
    %c512 = arith.constant 512 : index
    %222 = vector.load %arg12[%c0_161, %c512] : memref<16x1040xf32, #tpu.memory_space<vmem>>, vector<16x256xf32>
    tpu.vector_store %arg12[%c0_161, %c512], %221 {strides = array<i32>} : memref<16x1040xf32, #tpu.memory_space<vmem>>, vector<16x256xf32>,
    %223 = vector.extract_strided_slice %193 {offsets = [192, 0], sizes = [64, 256], strides = [1, 1]} : vector<256x256xf32> to vector<64x256xf32>
    %224 = vector.extract_strided_slice %223 {offsets = [0, 0], sizes = [16, 256], strides = [1, 1]} : vector<64x256xf32> to vector<16x256xf32>
    %225 = vector.extract_strided_slice %223 {offsets = [16, 0], sizes = [16, 256], strides = [1, 1]} : vector<64x256xf32> to vector<16x256xf32>
    %226 = arith.maximumf %224, %225 : vector<16x256xf32>
    %227 = vector.extract_strided_slice %223 {offsets = [32, 0], sizes = [16, 256], strides = [1, 1]} : vector<64x256xf32> to vector<16x256xf32>
    %228 = vector.extract_strided_slice %223 {offsets = [48, 0], sizes = [16, 256], strides = [1, 1]} : vector<64x256xf32> to vector<16x256xf32>
    %229 = arith.maximumf %227, %228 : vector<16x256xf32>
    %230 = arith.maximumf %226, %229 : vector<16x256xf32>
    %c0_162 = arith.constant 0 : index
    %c768 = arith.constant 768 : index
    %231 = vector.load %arg12[%c0_162, %c768] : memref<16x1040xf32, #tpu.memory_space<vmem>>, vector<16x256xf32>
    tpu.vector_store %arg12[%c0_162, %c768], %230 {strides = array<i32>} : memref<16x1040xf32, #tpu.memory_space<vmem>>, vector<16x256xf32>,
    %c0_163 = arith.constant 0 : index
    %c0_164 = arith.constant 0 : index
    %232 = vector.load %arg12[%c0_163, %c0_164] : memref<16x1040xf32, #tpu.memory_space<vmem>>, vector<16x256xf32>
    %c0_165 = arith.constant 0 : index
    %c0_166 = arith.constant 0 : index
    %233 = vector.load %arg13[%c0_165, %c0_166] : memref<256x256xf32, #tpu.memory_space<vmem>>, vector<16x256xf32>
    tpu.vector_store %arg13[%c0_165, %c0_166], %232 {strides = array<i32>} : memref<256x256xf32, #tpu.memory_space<vmem>>, vector<16x256xf32>,
    %c0_167 = arith.constant 0 : index
    %c256_168 = arith.constant 256 : index
    %234 = vector.load %arg12[%c0_167, %c256_168] : memref<16x1040xf32, #tpu.memory_space<vmem>>, vector<16x256xf32>
    %c16_169 = arith.constant 16 : index
    %c0_170 = arith.constant 0 : index
    %235 = vector.load %arg13[%c16_169, %c0_170] : memref<256x256xf32, #tpu.memory_space<vmem>>, vector<16x256xf32>
    tpu.vector_store %arg13[%c16_169, %c0_170], %234 {strides = array<i32>} : memref<256x256xf32, #tpu.memory_space<vmem>>, vector<16x256xf32>,
    %c0_171 = arith.constant 0 : index
    %c1_172 = arith.constant 1 : index
    %236 = vector.load %arg12[%c0_171, %c1_172] : memref<16x1040xf32, #tpu.memory_space<vmem>>, vector<16x256xf32>
    %c32_173 = arith.constant 32 : index
    %c0_174 = arith.constant 0 : index
    %237 = vector.load %arg13[%c32_173, %c0_174] : memref<256x256xf32, #tpu.memory_space<vmem>>, vector<16x256xf32>
    tpu.vector_store %arg13[%c32_173, %c0_174], %236 {strides = array<i32>} : memref<256x256xf32, #tpu.memory_space<vmem>>, vector<16x256xf32>,
    %c0_175 = arith.constant 0 : index
    %c257 = arith.constant 257 : index
    %238 = vector.load %arg12[%c0_175, %c257] : memref<16x1040xf32, #tpu.memory_space<vmem>>, vector<16x256xf32>
    %c48 = arith.constant 48 : index
    %c0_176 = arith.constant 0 : index
    %239 = vector.load %arg13[%c48, %c0_176] : memref<256x256xf32, #tpu.memory_space<vmem>>, vector<16x256xf32>
    tpu.vector_store %arg13[%c48, %c0_176], %238 {strides = array<i32>} : memref<256x256xf32, #tpu.memory_space<vmem>>, vector<16x256xf32>,
    %c0_177 = arith.constant 0 : index
    %c512_178 = arith.constant 512 : index
    %240 = vector.load %arg12[%c0_177, %c512_178] : memref<16x1040xf32, #tpu.memory_space<vmem>>, vector<16x256xf32>
    %c64 = arith.constant 64 : index
    %c0_179 = arith.constant 0 : index
    %241 = vector.load %arg13[%c64, %c0_179] : memref<256x256xf32, #tpu.memory_space<vmem>>, vector<16x256xf32>
    tpu.vector_store %arg13[%c64, %c0_179], %240 {strides = array<i32>} : memref<256x256xf32, #tpu.memory_space<vmem>>, vector<16x256xf32>,
    %c0_180 = arith.constant 0 : index
    %c768_181 = arith.constant 768 : index
    %242 = vector.load %arg12[%c0_180, %c768_181] : memref<16x1040xf32, #tpu.memory_space<vmem>>, vector<16x256xf32>
    %c80 = arith.constant 80 : index
    %c0_182 = arith.constant 0 : index
    %243 = vector.load %arg13[%c80, %c0_182] : memref<256x256xf32, #tpu.memory_space<vmem>>, vector<16x256xf32>
    tpu.vector_store %arg13[%c80, %c0_182], %242 {strides = array<i32>} : memref<256x256xf32, #tpu.memory_space<vmem>>, vector<16x256xf32>,
    %c0_183 = arith.constant 0 : index
    %c513 = arith.constant 513 : index
    %244 = vector.load %arg12[%c0_183, %c513] : memref<16x1040xf32, #tpu.memory_space<vmem>>, vector<16x256xf32>
    %c96 = arith.constant 96 : index
    %c0_184 = arith.constant 0 : index
    %245 = vector.load %arg13[%c96, %c0_184] : memref<256x256xf32, #tpu.memory_space<vmem>>, vector<16x256xf32>
    tpu.vector_store %arg13[%c96, %c0_184], %244 {strides = array<i32>} : memref<256x256xf32, #tpu.memory_space<vmem>>, vector<16x256xf32>,
    %c0_185 = arith.constant 0 : index
    %c769 = arith.constant 769 : index
    %246 = vector.load %arg12[%c0_185, %c769] : memref<16x1040xf32, #tpu.memory_space<vmem>>, vector<16x256xf32>
    %c112 = arith.constant 112 : index
    %c0_186 = arith.constant 0 : index
    %247 = vector.load %arg13[%c112, %c0_186] : memref<256x256xf32, #tpu.memory_space<vmem>>, vector<16x256xf32>
    tpu.vector_store %arg13[%c112, %c0_186], %246 {strides = array<i32>} : memref<256x256xf32, #tpu.memory_space<vmem>>, vector<16x256xf32>,
    %c0_187 = arith.constant 0 : index
    %c8_188 = arith.constant 8 : index
    %248 = vector.load %arg12[%c0_187, %c8_188] : memref<16x1040xf32, #tpu.memory_space<vmem>>, vector<16x256xf32>
    %c128 = arith.constant 128 : index
    %c0_189 = arith.constant 0 : index
    %249 = vector.load %arg13[%c128, %c0_189] : memref<256x256xf32, #tpu.memory_space<vmem>>, vector<16x256xf32>
    tpu.vector_store %arg13[%c128, %c0_189], %248 {strides = array<i32>} : memref<256x256xf32, #tpu.memory_space<vmem>>, vector<16x256xf32>,
    %c0_190 = arith.constant 0 : index
    %c264 = arith.constant 264 : index
    %250 = vector.load %arg12[%c0_190, %c264] : memref<16x1040xf32, #tpu.memory_space<vmem>>, vector<16x256xf32>
    %c144 = arith.constant 144 : index
    %c0_191 = arith.constant 0 : index
    %251 = vector.load %arg13[%c144, %c0_191] : memref<256x256xf32, #tpu.memory_space<vmem>>, vector<16x256xf32>
    tpu.vector_store %arg13[%c144, %c0_191], %250 {strides = array<i32>} : memref<256x256xf32, #tpu.memory_space<vmem>>, vector<16x256xf32>,
    %c0_192 = arith.constant 0 : index
    %c9_193 = arith.constant 9 : index
    %252 = vector.load %arg12[%c0_192, %c9_193] : memref<16x1040xf32, #tpu.memory_space<vmem>>, vector<16x256xf32>
    %c160 = arith.constant 160 : index
    %c0_194 = arith.constant 0 : index
    %253 = vector.load %arg13[%c160, %c0_194] : memref<256x256xf32, #tpu.memory_space<vmem>>, vector<16x256xf32>
    tpu.vector_store %arg13[%c160, %c0_194], %252 {strides = array<i32>} : memref<256x256xf32, #tpu.memory_space<vmem>>, vector<16x256xf32>,
    %c0_195 = arith.constant 0 : index
    %c265 = arith.constant 265 : index
    %254 = vector.load %arg12[%c0_195, %c265] : memref<16x1040xf32, #tpu.memory_space<vmem>>, vector<16x256xf32>
    %c176 = arith.constant 176 : index
    %c0_196 = arith.constant 0 : index
    %255 = vector.load %arg13[%c176, %c0_196] : memref<256x256xf32, #tpu.memory_space<vmem>>, vector<16x256xf32>
    tpu.vector_store %arg13[%c176, %c0_196], %254 {strides = array<i32>} : memref<256x256xf32, #tpu.memory_space<vmem>>, vector<16x256xf32>,
    %c0_197 = arith.constant 0 : index
    %c520 = arith.constant 520 : index
    %256 = vector.load %arg12[%c0_197, %c520] : memref<16x1040xf32, #tpu.memory_space<vmem>>, vector<16x256xf32>
    %c192 = arith.constant 192 : index
    %c0_198 = arith.constant 0 : index
    %257 = vector.load %arg13[%c192, %c0_198] : memref<256x256xf32, #tpu.memory_space<vmem>>, vector<16x256xf32>
    tpu.vector_store %arg13[%c192, %c0_198], %256 {strides = array<i32>} : memref<256x256xf32, #tpu.memory_space<vmem>>, vector<16x256xf32>,
    %c0_199 = arith.constant 0 : index
    %c776 = arith.constant 776 : index
    %258 = vector.load %arg12[%c0_199, %c776] : memref<16x1040xf32, #tpu.memory_space<vmem>>, vector<16x256xf32>
    %c208 = arith.constant 208 : index
    %c0_200 = arith.constant 0 : index
    %259 = vector.load %arg13[%c208, %c0_200] : memref<256x256xf32, #tpu.memory_space<vmem>>, vector<16x256xf32>
    tpu.vector_store %arg13[%c208, %c0_200], %258 {strides = array<i32>} : memref<256x256xf32, #tpu.memory_space<vmem>>, vector<16x256xf32>,
    %c0_201 = arith.constant 0 : index
    %c521 = arith.constant 521 : index
    %260 = vector.load %arg12[%c0_201, %c521] : memref<16x1040xf32, #tpu.memory_space<vmem>>, vector<16x256xf32>
    %c224 = arith.constant 224 : index
    %c0_202 = arith.constant 0 : index
    %261 = vector.load %arg13[%c224, %c0_202] : memref<256x256xf32, #tpu.memory_space<vmem>>, vector<16x256xf32>
    tpu.vector_store %arg13[%c224, %c0_202], %260 {strides = array<i32>} : memref<256x256xf32, #tpu.memory_space<vmem>>, vector<16x256xf32>,
    %c0_203 = arith.constant 0 : index
    %c777 = arith.constant 777 : index
    %262 = vector.load %arg12[%c0_203, %c777] : memref<16x1040xf32, #tpu.memory_space<vmem>>, vector<16x256xf32>
    %c240 = arith.constant 240 : index
    %c0_204 = arith.constant 0 : index
    %263 = vector.load %arg13[%c240, %c0_204] : memref<256x256xf32, #tpu.memory_space<vmem>>, vector<16x256xf32>
    tpu.vector_store %arg13[%c240, %c0_204], %262 {strides = array<i32>} : memref<256x256xf32, #tpu.memory_space<vmem>>, vector<16x256xf32>,
    %c0_205 = arith.constant 0 : index
    %c0_206 = arith.constant 0 : index
    %264 = vector.load %arg6[%c0_205, %c0_206] : memref<128x256xf32, #tpu.memory_space<vmem>>, vector<128x256xf32>
    %c0_207 = arith.constant 0 : index
    %c0_208 = arith.constant 0 : index
    %265 = vector.load %arg13[%c0_207, %c0_208] : memref<256x256xf32, #tpu.memory_space<vmem>>, vector<256x256xf32>
    %cst_209 = arith.constant dense<0.000000e+00> : vector<128x256xf32>
    %266 = tpu.matmul %264, %265, %cst_209 {dimension_numbers = #tpu.dot_dimension_numbers<[1], [0], [0], [1], [0, 0, 1, 1], [], []>} : vector<128x256xf32>, vector<256x256xf32>, vector<128x256xf32> -> vector<128x256xf32>
    %c0_210 = arith.constant 0 : index
    %c0_211 = arith.constant 0 : index
    %267 = vector.load %arg7[%c0_210, %c0_211] : memref<128x1xf32, #tpu.memory_space<vmem>>, vector<128x1xf32>
    %268 = vector.broadcast %267 : vector<128x1xf32> to vector<128x256xf32>
    %269 = arith.addf %266, %268 : vector<128x256xf32>
    %cst_212 = arith.constant 0.000000e+00 : f32
    %270 = vector.broadcast %cst_212 : f32 to vector<128x256xf32>
    %271 = arith.maximumf %269, %270 : vector<128x256xf32>
    %c0_213 = arith.constant 0 : index
    %c0_214 = arith.constant 0 : index
    %272 = vector.load %arg8[%c0_213, %c0_214] : memref<128x1xf32, #tpu.memory_space<vmem>>, vector<128x1xf32>
    %273 = vector.broadcast %272 : vector<128x1xf32> to vector<128x256xf32>
    %274 = arith.mulf %271, %273 : vector<128x256xf32>
    %c0_215 = arith.constant 0 : index
    %c0_216 = arith.constant 0 : index
    %275 = vector.load %arg9[%c0_215, %c0_216] : memref<128x1xf32, #tpu.memory_space<vmem>>, vector<128x1xf32>
    %276 = vector.broadcast %275 : vector<128x1xf32> to vector<128x256xf32>
    %277 = arith.addf %274, %276 : vector<128x256xf32>
    %278 = vector.extract_strided_slice %277 {offsets = [0, 0], sizes = [32, 256], strides = [1, 1]} : vector<128x256xf32> to vector<32x256xf32>
    %279 = vector.extract_strided_slice %277 {offsets = [32, 0], sizes = [32, 256], strides = [1, 1]} : vector<128x256xf32> to vector<32x256xf32>
    %280 = arith.maximumf %278, %279 : vector<32x256xf32>
    %281 = vector.extract_strided_slice %277 {offsets = [64, 0], sizes = [32, 256], strides = [1, 1]} : vector<128x256xf32> to vector<32x256xf32>
    %282 = vector.extract_strided_slice %277 {offsets = [96, 0], sizes = [32, 256], strides = [1, 1]} : vector<128x256xf32> to vector<32x256xf32>
    %283 = arith.maximumf %281, %282 : vector<32x256xf32>
    %284 = arith.maximumf %280, %283 : vector<32x256xf32>
    %c0_217 = arith.constant 0 : index
    %c0_218 = arith.constant 0 : index
    %c0_219 = arith.constant 0 : index
    %285 = vector.load %arg10[%c0_217, %c0_218, %c0_219] : memref<1x32x256xf32, #tpu.memory_space<vmem>>, vector<1x32x256xf32>
    %286 = vector.shape_cast %285 : vector<1x32x256xf32> to vector<32x256xf32>
    %287 = vector.shape_cast %284 : vector<32x256xf32> to vector<1x32x256xf32>
    tpu.vector_store %arg10[%c0_217, %c0_218, %c0_219], %287 {strides = array<i32>} : memref<1x32x256xf32, #tpu.memory_space<vmem>>, vector<1x32x256xf32>,
    return
  }
  func.func @transform_0(%arg0: i32) -> (i32, i32, i32) {
    %c0_i32 = arith.constant 0 : i32
    %c0_i32_0 = arith.constant 0 : i32
    %c0_i32_1 = arith.constant 0 : i32
    return %arg0, %c0_i32, %c0_i32_0 : i32, i32, i32
  }
  func.func @transform_1(%arg0: i32) -> (i32, i32) {
    %c0_i32 = arith.constant 0 : i32
    %c0_i32_0 = arith.constant 0 : i32
    %c0_i32_1 = arith.constant 0 : i32
    return %c0_i32, %c0_i32_0 : i32, i32
  }
  func.func @transform_2(%arg0: i32) -> (i32, i32) {
    %c0_i32 = arith.constant 0 : i32
    %c0_i32_0 = arith.constant 0 : i32
    %c0_i32_1 = arith.constant 0 : i32
    return %c0_i32, %c0_i32_0 : i32, i32
  }
  func.func @transform_3(%arg0: i32) -> (i32, i32) {
    %c0_i32 = arith.constant 0 : i32
    %c0_i32_0 = arith.constant 0 : i32
    %c0_i32_1 = arith.constant 0 : i32
    return %c0_i32, %c0_i32_0 : i32, i32
  }
  func.func @transform_4(%arg0: i32) -> (i32, i32) {
    %c0_i32 = arith.constant 0 : i32
    %c0_i32_0 = arith.constant 0 : i32
    %c0_i32_1 = arith.constant 0 : i32
    return %c0_i32, %c0_i32_0 : i32, i32
  }
  func.func @transform_5(%arg0: i32) -> (i32, i32) {
    %c0_i32 = arith.constant 0 : i32
    %c0_i32_0 = arith.constant 0 : i32
    %c0_i32_1 = arith.constant 0 : i32
    return %c0_i32, %c0_i32_0 : i32, i32
  }
  func.func @transform_6(%arg0: i32) -> (i32, i32) {
    %c0_i32 = arith.constant 0 : i32
    %c0_i32_0 = arith.constant 0 : i32
    %c0_i32_1 = arith.constant 0 : i32
    return %c0_i32, %c0_i32_0 : i32, i32
  }
  func.func @transform_7(%arg0: i32) -> (i32, i32) {
    %c0_i32 = arith.constant 0 : i32
    %c0_i32_0 = arith.constant 0 : i32
    %c0_i32_1 = arith.constant 0 : i32
    return %c0_i32, %c0_i32_0 : i32, i32
  }
  func.func @transform_8(%arg0: i32) -> (i32, i32) {
    %c0_i32 = arith.constant 0 : i32
    %c0_i32_0 = arith.constant 0 : i32
    %c0_i32_1 = arith.constant 0 : i32
    return %c0_i32, %c0_i32_0 : i32, i32
  }
  func.func @transform_9(%arg0: i32) -> (i32, i32, i32) {
    %c0_i32 = arith.constant 0 : i32
    %c0_i32_0 = arith.constant 0 : i32
    %c0_i32_1 = arith.constant 0 : i32
    return %arg0, %c0_i32, %c0_i32_0 : i32, i32, i32
  }
}

</mosaic_0001>

<llo_original>
// kernel: cnn_regressor_forward.2
$region0: #{cnn_regressor_forward.2}
  #allocation0 [shape = 'u32[]', space=smem, size = 0x4, offset = 0x4, fixed_abs, tag = 'smem constant byte address 0x4 - core index']
  #allocation1 [shape = 'u32[144,128]{1,0:T(1,128)}', space=vmem, size = 0x12000, scoped, tag = 'internal scratch']
  #allocation2 [shape = 'f32[36,256]{1,0:T(8,128)}', space=vmem, size = 0xa000, scoped, tag = 'scratch operand']
  #allocation3 [shape = 'f32[16,1040]{1,0:T(8,128)}', space=vmem, size = 0x12000, scoped, tag = 'scratch operand']
  #allocation4 [shape = 'f32[256,256]{1,0:T(8,128)}', space=vmem, size = 0x40000, scoped, tag = 'scratch operand']
  %s0 = inlined_call_operand.vmem [shape: f32[2,16,272], index: 0, kind: input, shape index: {}]
  %s1 = inlined_call_operand.vmem [shape: f32[256,36], index: 1, kind: input, shape index: {}]
  %s2 = inlined_call_operand.vmem [shape: f32[256,1], index: 2, kind: input, shape index: {}]
  %s3 = inlined_call_operand.vmem [shape: f32[256,1], index: 3, kind: input, shape index: {}]
  %s4 = inlined_call_operand.vmem [shape: f32[256,1], index: 4, kind: input, shape index: {}]
  %s5 = inlined_call_operand.vmem [shape: f32[128,256], index: 5, kind: input, shape index: {}]
  %s6 = inlined_call_operand.vmem [shape: f32[128,1], index: 6, kind: input, shape index: {}]
  %s7 = inlined_call_operand.vmem [shape: f32[128,1], index: 7, kind: input, shape index: {}]
  %s8 = inlined_call_operand.vmem [shape: f32[128,1], index: 8, kind: input, shape index: {}]
  %s9 = inlined_call_operand.vmem [shape: f32[2,32,256], index: 9, kind: output, shape index: {}]
  %s10 = sld [smem:[#allocation0]]
  $region69: #{cnn_regressor_forward.2} parent=0
    _
  %s12 = ssub.s32 1, %s10
  %s13 = scalar_select 0, %s12, %s10
  loop: start=0, step=1, limit=4
  $region2: #{cnn_regressor_forward.2} parent=0 // loop_pre_header
    _
  $region3: #{cnn_regressor_forward.2} parent=0 // loop_header
    %s15 = sphi 0, %s19
    %p16 = scmp.ge.s32.totalorder %s15, 4
    %s25 = sphi 0, %s27
    %s28 = sphi 0, %s25
    %s29 = sphi 0, %s28
    %s45 = sphi 0, %s29
    %s49 = sphi 0, %s49
    %s51 = sphi 0, %s49
    %s52 = sphi 0, %s51
    %s66 = sphi 0, %s52
    %s70 = sphi 0, %s70
    %s72 = sphi 0, %s70
    %s73 = sphi 0, %s72
    %s87 = sphi 0, %s73
    %s91 = sphi 0, %s91
    %s93 = sphi 0, %s91
    %s94 = sphi 0, %s93
    %s108 = sphi 0, %s94
    %s112 = sphi 0, %s112
    %s114 = sphi 0, %s112
    %s115 = sphi 0, %s114
    %s129 = sphi 0, %s115
    %s133 = sphi 0, %s133
    %s135 = sphi 0, %s133
    %s136 = sphi 0, %s135
    %s150 = sphi 0, %s136
    %s154 = sphi 0, %s154
    %s156 = sphi 0, %s154
    %s157 = sphi 0, %s156
    %s171 = sphi 0, %s157
    %s175 = sphi 0, %s175
    %s177 = sphi 0, %s175
    %s178 = sphi 0, %s177
    %s192 = sphi 0, %s178
    %s196 = sphi 0, %s196
    %s198 = sphi 0, %s196
    %s199 = sphi 0, %s198
    %s213 = sphi 0, %s199
    %s219 = sphi 0, %s221
    %s222 = sphi 0, %s219
    %s223 = sphi 0, %s222
    %s239 = sphi 0, %s223
  $region4: #{cnn_regressor_forward.2} parent=0 // loop_header_branch
    %18 = sbr.rel (%p16) target = $region8
  $region5: #{cnn_regressor_forward.2} parent=0 // loop_body
    %s20 = ssub.s32 %s15, 1
    %s21 = ssub.s32 %s15, 2
    %s22 = sadd.s32 %s15, 1
    %s23 = ssub.s32 %s15, %s22
    %p24 = scmp.eq.s32.totalorder %s23, 0
    %s26 = sadd.s32 %s25, 1
    %s27 = scalar_select %p24, %s25, %s26
    %p30 = pneg %p24
    %p31 = scmp.eq.s32.totalorder %s15, 1
    %p32 = por %p30, %p31
    %p33 = scmp.ne.s32.totalorder %s25, %s28
    %p34 = scmp.eq.s32.totalorder %s15, 0
    %p35 = por %p33, %p34
    %p36 = scmp.ne.s32.totalorder %s25, %s28
    %p37 = scmp.eq.s32.totalorder %s20, 1
    %p38 = por %p36, %p37
    %p39 = scmp.ne.s32.totalorder %s28, %s29
    %p40 = scmp.eq.s32.totalorder %s20, 0
    %p41 = por %p39, %p40
    %p42 = scmp.ne.s32.totalorder %s28, %s29
    %p43 = scmp.eq.s32.totalorder %s21, 1
    %p44 = por %p42, %p43
    %p46 = scmp.ne.s32.totalorder %s29, %s45
    %p47 = scmp.eq.s32.totalorder %s21, 0
    %p48 = por %p46, %p47
    %s50 = sadd.s32 %s49, 1
    %p53 = scmp.eq.s32.totalorder %s15, 1
    %p54 = scmp.ne.s32.totalorder %s49, %s51
    %p55 = scmp.eq.s32.totalorder %s15, 0
    %p56 = por %p54, %p55
    %p57 = scmp.ne.s32.totalorder %s49, %s51
    %p58 = scmp.eq.s32.totalorder %s20, 1
    %p59 = por %p57, %p58
    %p60 = scmp.ne.s32.totalorder %s51, %s52
    %p61 = scmp.eq.s32.totalorder %s20, 0
    %p62 = por %p60, %p61
    %p63 = scmp.ne.s32.totalorder %s51, %s52
    %p64 = scmp.eq.s32.totalorder %s21, 1
    %p65 = por %p63, %p64
    %p67 = scmp.ne.s32.totalorder %s52, %s66
    %p68 = scmp.eq.s32.totalorder %s21, 0
    %p69 = por %p67, %p68
    %s71 = sadd.s32 %s70, 1
    %p74 = scmp.eq.s32.totalorder %s15, 1
    %p75 = scmp.ne.s32.totalorder %s70, %s72
    %p76 = scmp.eq.s32.totalorder %s15, 0
    %p77 = por %p75, %p76
    %p78 = scmp.ne.s32.totalorder %s70, %s72
    %p79 = scmp.eq.s32.totalorder %s20, 1
    %p80 = por %p78, %p79
    %p81 = scmp.ne.s32.totalorder %s72, %s73
    %p82 = scmp.eq.s32.totalorder %s20, 0
    %p83 = por %p81, %p82
    %p84 = scmp.ne.s32.totalorder %s72, %s73
    %p85 = scmp.eq.s32.totalorder %s21, 1
    %p86 = por %p84, %p85
    %p88 = scmp.ne.s32.totalorder %s73, %s87
    %p89 = scmp.eq.s32.totalorder %s21, 0
    %p90 = por %p88, %p89
    %s92 = sadd.s32 %s91, 1
    %p95 = scmp.eq.s32.totalorder %s15, 1
    %p96 = scmp.ne.s32.totalorder %s91, %s93
    %p97 = scmp.eq.s32.totalorder %s15, 0
    %p98 = por %p96, %p97
    %p99 = scmp.ne.s32.totalorder %s91, %s93
    %p100 = scmp.eq.s32.totalorder %s20, 1
    %p101 = por %p99, %p100
    %p102 = scmp.ne.s32.totalorder %s93, %s94
    %p103 = scmp.eq.s32.totalorder %s20, 0
    %p104 = por %p102, %p103
    %p105 = scmp.ne.s32.totalorder %s93, %s94
    %p106 = scmp.eq.s32.totalorder %s21, 1
    %p107 = por %p105, %p106
    %p109 = scmp.ne.s32.totalorder %s94, %s108
    %p110 = scmp.eq.s32.totalorder %s21, 0
    %p111 = por %p109, %p110
    %s113 = sadd.s32 %s112, 1
    %p116 = scmp.eq.s32.totalorder %s15, 1
    %p117 = scmp.ne.s32.totalorder %s112, %s114
    %p118 = scmp.eq.s32.totalorder %s15, 0
    %p119 = por %p117, %p118
    %p120 = scmp.ne.s32.totalorder %s112, %s114
    %p121 = scmp.eq.s32.totalorder %s20, 1
    %p122 = por %p120, %p121
    %p123 = scmp.ne.s32.totalorder %s114, %s115
    %p124 = scmp.eq.s32.totalorder %s20, 0
    %p125 = por %p123, %p124
    %p126 = scmp.ne.s32.totalorder %s114, %s115
    %p127 = scmp.eq.s32.totalorder %s21, 1
    %p128 = por %p126, %p127
    %p130 = scmp.ne.s32.totalorder %s115, %s129
    %p131 = scmp.eq.s32.totalorder %s21, 0
    %p132 = por %p130, %p131
    %s134 = sadd.s32 %s133, 1
    %p137 = scmp.eq.s32.totalorder %s15, 1
    %p138 = scmp.ne.s32.totalorder %s133, %s135
    %p139 = scmp.eq.s32.totalorder %s15, 0
    %p140 = por %p138, %p139
    %p141 = scmp.ne.s32.totalorder %s133, %s135
    %p142 = scmp.eq.s32.totalorder %s20, 1
    %p143 = por %p141, %p142
    %p144 = scmp.ne.s32.totalorder %s135, %s136
    %p145 = scmp.eq.s32.totalorder %s20, 0
    %p146 = por %p144, %p145
    %p147 = scmp.ne.s32.totalorder %s135, %s136
    %p148 = scmp.eq.s32.totalorder %s21, 1
    %p149 = por %p147, %p148
    %p151 = scmp.ne.s32.totalorder %s136, %s150
    %p152 = scmp.eq.s32.totalorder %s21, 0
    %p153 = por %p151, %p152
    %s155 = sadd.s32 %s154, 1
    %p158 = scmp.eq.s32.totalorder %s15, 1
    %p159 = scmp.ne.s32.totalorder %s154, %s156
    %p160 = scmp.eq.s32.totalorder %s15, 0
    %p161 = por %p159, %p160
    %p162 = scmp.ne.s32.totalorder %s154, %s156
    %p163 = scmp.eq.s32.totalorder %s20, 1
    %p164 = por %p162, %p163
    %p165 = scmp.ne.s32.totalorder %s156, %s157
    %p166 = scmp.eq.s32.totalorder %s20, 0
    %p167 = por %p165, %p166
    %p168 = scmp.ne.s32.totalorder %s156, %s157
    %p169 = scmp.eq.s32.totalorder %s21, 1
    %p170 = por %p168, %p169
    %p172 = scmp.ne.s32.totalorder %s157, %s171
    %p173 = scmp.eq.s32.totalorder %s21, 0
    %p174 = por %p172, %p173
    %s176 = sadd.s32 %s175, 1
    %p179 = scmp.eq.s32.totalorder %s15, 1
    %p180 = scmp.ne.s32.totalorder %s175, %s177
    %p181 = scmp.eq.s32.totalorder %s15, 0
    %p182 = por %p180, %p181
    %p183 = scmp.ne.s32.totalorder %s175, %s177
    %p184 = scmp.eq.s32.totalorder %s20, 1
    %p185 = por %p183, %p184
    %p186 = scmp.ne.s32.totalorder %s177, %s178
    %p187 = scmp.eq.s32.totalorder %s20, 0
    %p188 = por %p186, %p187
    %p189 = scmp.ne.s32.totalorder %s177, %s178
    %p190 = scmp.eq.s32.totalorder %s21, 1
    %p191 = por %p189, %p190
    %p193 = scmp.ne.s32.totalorder %s178, %s192
    %p194 = scmp.eq.s32.totalorder %s21, 0
    %p195 = por %p193, %p194
    %s197 = sadd.s32 %s196, 1
    %p200 = scmp.eq.s32.totalorder %s15, 1
    %p201 = scmp.ne.s32.totalorder %s196, %s198
    %p202 = scmp.eq.s32.totalorder %s15, 0
    %p203 = por %p201, %p202
    %p204 = scmp.ne.s32.totalorder %s196, %s198
    %p205 = scmp.eq.s32.totalorder %s20, 1
    %p206 = por %p204, %p205
    %p207 = scmp.ne.s32.totalorder %s198, %s199
    %p208 = scmp.eq.s32.totalorder %s20, 0
    %p209 = por %p207, %p208
    %p210 = scmp.ne.s32.totalorder %s198, %s199
    %p211 = scmp.eq.s32.totalorder %s21, 1
    %p212 = por %p210, %p211
    %p214 = scmp.ne.s32.totalorder %s199, %s213
    %p215 = scmp.eq.s32.totalorder %s21, 0
    %p216 = por %p214, %p215
    %s217 = ssub.s32 %s15, %s22
    %p218 = scmp.eq.s32.totalorder %s217, 0
    %s220 = sadd.s32 %s219, 1
    %s221 = scalar_select %p218, %s219, %s220
    %p224 = pneg %p218
    %p225 = scmp.eq.s32.totalorder %s15, 1
    %p226 = por %p224, %p225
    %p227 = scmp.ne.s32.totalorder %s219, %s222
    %p228 = scmp.eq.s32.totalorder %s15, 0
    %p229 = por %p227, %p228
    %p230 = scmp.ne.s32.totalorder %s219, %s222
    %p231 = scmp.eq.s32.totalorder %s20, 1
    %p232 = por %p230, %p231
    %p233 = scmp.ne.s32.totalorder %s222, %s223
    %p234 = scmp.eq.s32.totalorder %s20, 0
    %p235 = por %p233, %p234
    %p236 = scmp.ne.s32.totalorder %s222, %s223
    %p237 = scmp.eq.s32.totalorder %s21, 1
    %p238 = por %p236, %p237
    %p240 = scmp.ne.s32.totalorder %s223, %s239
    %p241 = scmp.eq.s32.totalorder %s21, 0
    %p242 = por %p240, %p241
    %p243 = scmp.le.s32.totalorder 1, %s15
    %p244 = scmp.lt.s32.totalorder %s15, 3
    %p245 = pnand %p243, %p244
    %p246 = pneg %p245
    // Predicated region
    $region9: #{cnn_regressor_forward.2} parent=5 // pred_check
      _
    $region10: #{cnn_regressor_forward.2} parent=5 // pred_check_branch
      %248 = sbr.rel (%p245) target = $region12
    $region11: #{cnn_regressor_forward.2} parent=5 // pred_region
      %s249 = ssub.s32 %s15, 1
      // Predicated region
      $region13: #{cnn_regressor_forward.2} parent=11 // pred_check
        %p250 = pneg %p62
      $region14: #{cnn_regressor_forward.2} parent=11 // pred_check_branch
        %252 = sbr.rel (%p250) target = $region16
      $region15: #{cnn_regressor_forward.2} parent=11 // pred_region
        _
      $region16: #{cnn_regressor_forward.2} parent=11 // pred_fallthru
        _
      // Predicated region
      $region17: #{cnn_regressor_forward.2} parent=11 // pred_check
        %p253 = pneg %p83
      $region18: #{cnn_regressor_forward.2} parent=11 // pred_check_branch
        %255 = sbr.rel (%p253) target = $region20
      $region19: #{cnn_regressor_forward.2} parent=11 // pred_region
        _
      $region20: #{cnn_regressor_forward.2} parent=11 // pred_fallthru
        _
      // Predicated region
      $region21: #{cnn_regressor_forward.2} parent=11 // pred_check
        %p256 = pneg %p104
      $region22: #{cnn_regressor_forward.2} parent=11 // pred_check_branch
        %258 = sbr.rel (%p256) target = $region24
      $region23: #{cnn_regressor_forward.2} parent=11 // pred_region
        _
      $region24: #{cnn_regressor_forward.2} parent=11 // pred_fallthru
        _
      // Predicated region
      $region25: #{cnn_regressor_forward.2} parent=11 // pred_check
        %p259 = pneg %p125
      $region26: #{cnn_regressor_forward.2} parent=11 // pred_check_branch
        %261 = sbr.rel (%p259) target = $region28
      $region27: #{cnn_regressor_forward.2} parent=11 // pred_region
        _
      $region28: #{cnn_regressor_forward.2} parent=11 // pred_fallthru
        _
      // Predicated region
      $region29: #{cnn_regressor_forward.2} parent=11 // pred_check
        %p262 = pneg %p146
      $region30: #{cnn_regressor_forward.2} parent=11 // pred_check_branch
        %264 = sbr.rel (%p262) target = $region32
      $region31: #{cnn_regressor_forward.2} parent=11 // pred_region
        _
      $region32: #{cnn_regressor_forward.2} parent=11 // pred_fallthru
        _
      // Predicated region
      $region33: #{cnn_regressor_forward.2} parent=11 // pred_check
        %p265 = pneg %p167
      $region34: #{cnn_regressor_forward.2} parent=11 // pred_check_branch
        %267 = sbr.rel (%p265) target = $region36
      $region35: #{cnn_regressor_forward.2} parent=11 // pred_region
        _
      $region36: #{cnn_regressor_forward.2} parent=11 // pred_fallthru
        _
      // Predicated region
      $region37: #{cnn_regressor_forward.2} parent=11 // pred_check
        %p268 = pneg %p188
      $region38: #{cnn_regressor_forward.2} parent=11 // pred_check_branch
        %270 = sbr.rel (%p268) target = $region40
      $region39: #{cnn_regressor_forward.2} parent=11 // pred_region
        _
      $region40: #{cnn_regressor_forward.2} parent=11 // pred_fallthru
        _
      // Predicated region
      $region41: #{cnn_regressor_forward.2} parent=11 // pred_check
        %p271 = pneg %p209
      $region42: #{cnn_regressor_forward.2} parent=11 // pred_check_branch
        %273 = sbr.rel (%p271) target = $region44
      $region43: #{cnn_regressor_forward.2} parent=11 // pred_region
        _
      $region44: #{cnn_regressor_forward.2} parent=11 // pred_fallthru
        _
    $region12: #{cnn_regressor_forward.2} parent=5 // pred_fallthru
      _
    %p274 = scmp.lt.s32.totalorder %s15, 2
    // Predicated region
    $region45: #{cnn_regressor_forward.2} parent=5 // pred_check
      %p275 = pneg %p274
    $region46: #{cnn_regressor_forward.2} parent=5 // pred_check_branch
      %277 = sbr.rel (%p275) target = $region48
    $region47: #{cnn_regressor_forward.2} parent=5 // pred_region
      // Predicated region
      $region49: #{cnn_regressor_forward.2} parent=47 // pred_check
        %p278 = pneg %p35
      $region50: #{cnn_regressor_forward.2} parent=47 // pred_check_branch
        %280 = sbr.rel (%p278) target = $region52
      $region51: #{cnn_regressor_forward.2} parent=47 // pred_region
        %p281 = scmp.lt.s32.totalorder %s15, 1
        %s282 = scalar_select %p281, %s15, 1
        %s283 = smul.addr %s282, 6
        %s284 = smul.addr %s283, 8
        %s285 = scalar_lea.vmem %s0, %s284
      $region52: #{cnn_regressor_forward.2} parent=47 // pred_fallthru
        _
    $region48: #{cnn_regressor_forward.2} parent=5 // pred_fallthru
      _
    %p286 = scmp.le.s32.totalorder 1, %s15
    %p287 = scmp.lt.s32.totalorder %s15, 3
    %p288 = pnand %p286, %p287
    %p289 = pneg %p288
    // Predicated region
    $region53: #{cnn_regressor_forward.2} parent=5 // pred_check
      _
    $region54: #{cnn_regressor_forward.2} parent=5 // pred_check_branch
      %291 = sbr.rel (%p288) target = $region56
    $region55: #{cnn_regressor_forward.2} parent=5 // pred_region
      %s292 = ssub.s32 %s15, 1
      %p293 = scmp.lt.s32.totalorder %s20, 1
      %s294 = scalar_select %p293, %s20, 1
      %s295 = smul.addr %s294, 6
      %s296 = smul.addr %s295, 8
      %s297 = scalar_lea.vmem %s0, %s296
      %p298 = pneg %p41
      %p299 = pneg %p38
      %p300 = pneg %p62
      %p301 = pneg %p59
      %p302 = pneg %p83
      %p303 = pneg %p80
      %p304 = pneg %p104
      %p305 = pneg %p101
      %p306 = pneg %p125
      %p307 = pneg %p122
      %p308 = pneg %p146
      %p309 = pneg %p143
      %p310 = pneg %p167
      %p311 = pneg %p164
      %p312 = pneg %p188
      %p313 = pneg %p185
      %p314 = pneg %p209
      %p315 = pneg %p206
      %p316 = pneg %p235
      %p317 = pneg %p232
      %p318 = scmp.lt.s32.totalorder %s20, 1
      %s319 = scalar_select %p318, %s20, 1
      %s320 = smul.addr %s319, 8
      %s321 = smul.addr %s320, 8
      %s322 = scalar_lea.vmem %s9, %s321
      %p323 = scmp.lt.s32.totalorder %s20, 1
      %s324 = scalar_select %p323, %s20, 1
      %s325 = smul.addr %s324, 6
      %s326 = smul.addr %s325, 8
      %s327 = scalar_lea.vmem %s0, %s326
      %p328 = scmp.lt.s32.totalorder %s20, 1
      %s329 = scalar_select %p328, %s20, 1
      %s330 = smul.addr %s329, 8
      %s331 = smul.addr %s330, 8
      %s332 = scalar_lea.vmem %s9, %s331
      %v333 = vld [vmem:[%s327] ss:$8 sm:$0x3]
      %v334 = vlaneseq
      %vm335 = vcmp.ge.s32.totalorder %v334, 0
      %vm336 = vcmp.lt.s32.totalorder %v334, 256
      %vm337 = vmand %vm335, %vm336
      %338 = vst.msk [vmem:[#allocation2] ss:$8 sm:$0x3] %vm337, %v333
      %339 = vst.msk [vmem:[#allocation2] ss:$8 sm:$0x0] %vm337, %v333
      %s340 = scalar_lea.vmem %s327, 1
      %v341 = vld [vmem:[%s340] ss:$8 sm:$0x3]
      %s342 = scalar_lea.vmem [#allocation2], 1
      %343 = vst.msk [vmem:[%s342] ss:$8 sm:$0x3] %vm337, %v341
      %344 = vst.msk [vmem:[%s342] ss:$8 sm:$0x0] %vm337, %v341
      %s345 = scalar_lea.vmem %s327, 2
      %v346 = vld [vmem:[%s345] ss:$8 sm:$0x3]
      %s347 = scalar_lea.vmem [#allocation2], 2
      %348 = vst.msk [vmem:[%s347] ss:$8 sm:$0x3] %vm337, %v346
      %349 = vst.msk [vmem:[%s347] ss:$8 sm:$0x0] %vm337, %v346
      %s350 = scalar_lea.vmem %s327, 3
      %v351 = vld [vmem:[%s350] ss:$8 sm:$0x3]
      %s352 = scalar_lea.vmem [#allocation2], 3
      %353 = vst.msk [vmem:[%s352] ss:$8 sm:$0x3] %vm337, %v351
      %354 = vst.msk [vmem:[%s352] ss:$8 sm:$0x0] %vm337, %v351
      %v355 = vld [vmem:[%s327] ss:$8 sm:$0x7]
      %357 = vrot.lane.b32.xlu0 %v355, 127
      %v358 = vpop.permute.xlu0 %357
      %v359 = vrot.slane %v358, 1
      %vm360 = vcmask 1039360
      %v361 = vsel %vm360, %v358, %v359
      %s363 = scalar_lea.vmem [#allocation2], 4
      %364 = vst.msk [vmem:[%s363] ss:$8 sm:$0x3] %vm337, %v361
      %365 = vst.msk [vmem:[%s363] ss:$8 sm:$0x0] %vm337, %v361
      %v366 = vld [vmem:[%s340] ss:$8 sm:$0x7]
      %368 = vrot.lane.b32.xlu0 %v366, 127
      %v369 = vpop.permute.xlu0 %368
      %v370 = vrot.slane %v369, 1
      %v371 = vsel %vm360, %v369, %v370
      %s373 = scalar_lea.vmem [#allocation2], 5
      %374 = vst.msk [vmem:[%s373] ss:$8 sm:$0x3] %vm337, %v371
      %375 = vst.msk [vmem:[%s373] ss:$8 sm:$0x0] %vm337, %v371
      %s376 = scalar_lea.vmem %s327, 4
      %v377 = vld [vmem:[%s376] ss:$8 sm:$0x3]
      %s378 = scalar_lea.vmem [#allocation2], 6
      %379 = vst.msk [vmem:[%s378] ss:$8 sm:$0x3] %vm337, %v377
      %380 = vst.msk [vmem:[%s378] ss:$8 sm:$0x0] %vm337, %v377
      %s381 = scalar_lea.vmem %s327, 5
      %v382 = vld [vmem:[%s381] ss:$8 sm:$0x3]
      %s383 = scalar_lea.vmem [#allocation2], 7
      %384 = vst.msk [vmem:[%s383] ss:$8 sm:$0x3] %vm337, %v382
      %385 = vst.msk [vmem:[%s383] ss:$8 sm:$0x0] %vm337, %v382
      %s386 = scalar_lea.vmem %s327, 6
      %v387 = vld [vmem:[%s386] ss:$8 sm:$0x3]
      %s388 = scalar_lea.vmem [#allocation2], 16
      %389 = vst.msk [vmem:[%s388] ss:$8 sm:$0x3] %vm337, %v387
      %390 = vst.msk [vmem:[%s388] ss:$8 sm:$0x0] %vm337, %v387
      %s391 = scalar_lea.vmem %s327, 7
      %v392 = vld [vmem:[%s391] ss:$8 sm:$0x3]
      %s393 = scalar_lea.vmem [#allocation2], 17
      %394 = vst.msk [vmem:[%s393] ss:$8 sm:$0x3] %vm337, %v392
      %395 = vst.msk [vmem:[%s393] ss:$8 sm:$0x0] %vm337, %v392
      %v396 = vld [vmem:[%s376] ss:$8 sm:$0x7]
      %398 = vrot.lane.b32.xlu0 %v396, 127
      %v399 = vpop.permute.xlu0 %398
      %v400 = vrot.slane %v399, 1
      %v401 = vsel %vm360, %v399, %v400
      %s403 = scalar_lea.vmem [#allocation2], 18
      %404 = vst.msk [vmem:[%s403] ss:$8 sm:$0x3] %vm337, %v401
      %405 = vst.msk [vmem:[%s403] ss:$8 sm:$0x0] %vm337, %v401
      %v406 = vld [vmem:[%s381] ss:$8 sm:$0x7]
      %408 = vrot.lane.b32.xlu0 %v406, 127
      %v409 = vpop.permute.xlu0 %408
      %v410 = vrot.slane %v409, 1
      %v411 = vsel %vm360, %v409, %v410
      %s413 = scalar_lea.vmem [#allocation2], 19
      %414 = vst.msk [vmem:[%s413] ss:$8 sm:$0x3] %vm337, %v411
      %415 = vst.msk [vmem:[%s413] ss:$8 sm:$0x0] %vm337, %v411
      %s416 = scalar_lea.vmem %s327, 24
      %v417 = vld [vmem:[%s416] ss:$8 sm:$0x3]
      %s418 = scalar_lea.vmem [#allocation2], 20
      %419 = vst.msk [vmem:[%s418] ss:$8 sm:$0x3] %vm337, %v417
      %420 = vst.msk [vmem:[%s418] ss:$8 sm:$0x0] %vm337, %v417
      %s421 = scalar_lea.vmem %s327, 25
      %v422 = vld [vmem:[%s421] ss:$8 sm:$0x3]
      %s423 = scalar_lea.vmem [#allocation2], 21
      %424 = vst.msk [vmem:[%s423] ss:$8 sm:$0x3] %vm337, %v422
      %425 = vst.msk [vmem:[%s423] ss:$8 sm:$0x0] %vm337, %v422
      %s426 = scalar_lea.vmem %s327, 26
      %v427 = vld [vmem:[%s426] ss:$8 sm:$0x3]
      %s428 = scalar_lea.vmem [#allocation2], 22
      %429 = vst.msk [vmem:[%s428] ss:$8 sm:$0x3] %vm337, %v427
      %430 = vst.msk [vmem:[%s428] ss:$8 sm:$0x0] %vm337, %v427
      %s431 = scalar_lea.vmem %s327, 27
      %v432 = vld [vmem:[%s431] ss:$8 sm:$0x3]
      %s433 = scalar_lea.vmem [#allocation2], 23
      %434 = vst.msk [vmem:[%s433] ss:$8 sm:$0x3] %vm337, %v432
      %435 = vst.msk [vmem:[%s433] ss:$8 sm:$0x0] %vm337, %v432
      %v436 = vld [vmem:[%s416] ss:$8 sm:$0x7]
      %438 = vrot.lane.b32.xlu0 %v436, 127
      %v439 = vpop.permute.xlu0 %438
      %v440 = vrot.slane %v439, 1
      %v441 = vsel %vm360, %v439, %v440
      %s443 = scalar_lea.vmem [#allocation2], 32
      %444 = vst.msk [vmem:[%s443] ss:$8 sm:$0x3] %vm337, %v441
      %445 = vst.msk [vmem:[%s443] ss:$8 sm:$0x0] %vm337, %v441
      %v446 = vld [vmem:[%s421] ss:$8 sm:$0x7]
      %448 = vrot.lane.b32.xlu0 %v446, 127
      %v449 = vpop.permute.xlu0 %448
      %v450 = vrot.slane %v449, 1
      %v451 = vsel %vm360, %v449, %v450
      %s453 = scalar_lea.vmem [#allocation2], 33
      %454 = vst.msk [vmem:[%s453] ss:$8 sm:$0x3] %vm337, %v451
      %455 = vst.msk [vmem:[%s453] ss:$8 sm:$0x0] %vm337, %v451
      %s456 = scalar_lea.vmem %s327, 28
      %v457 = vld [vmem:[%s456] ss:$8 sm:$0x3]
      %s458 = scalar_lea.vmem [#allocation2], 34
      %459 = vst.msk [vmem:[%s458] ss:$8 sm:$0x3] %vm337, %v457
      %460 = vst.msk [vmem:[%s458] ss:$8 sm:$0x0] %vm337, %v457
      %s461 = scalar_lea.vmem %s327, 29
      %v462 = vld [vmem:[%s461] ss:$8 sm:$0x3]
      %s463 = scalar_lea.vmem [#allocation2], 35
      %464 = vst.msk [vmem:[%s463] ss:$8 sm:$0x3] %vm337, %v462
      %465 = vst.msk [vmem:[%s463] ss:$8 sm:$0x0] %vm337, %v462
      %s466 = scalar_lea.vmem %s327, 30
      %v467 = vld [vmem:[%s466] ss:$8 sm:$0x3]
      %s468 = scalar_lea.vmem [#allocation2], 36
      %469 = vst.msk [vmem:[%s468] ss:$8 sm:$0x3] %vm337, %v467
      %470 = vst.msk [vmem:[%s468] ss:$8 sm:$0x0] %vm337, %v467
      %s471 = scalar_lea.vmem %s327, 31
      %v472 = vld [vmem:[%s471] ss:$8 sm:$0x3]
      %s473 = scalar_lea.vmem [#allocation2], 37
      %474 = vst.msk [vmem:[%s473] ss:$8 sm:$0x3] %vm337, %v472
      %475 = vst.msk [vmem:[%s473] ss:$8 sm:$0x0] %vm337, %v472
      %v476 = vld [vmem:[%s456] ss:$8 sm:$0x7]
      %478 = vrot.lane.b32.xlu0 %v476, 127
      %v479 = vpop.permute.xlu0 %478
      %v480 = vrot.slane %v479, 1
      %v481 = vsel %vm360, %v479, %v480
      %s483 = scalar_lea.vmem [#allocation2], 38
      %484 = vst.msk [vmem:[%s483] ss:$8 sm:$0x3] %vm337, %v481
      %485 = vst.msk [vmem:[%s483] ss:$8 sm:$0x0] %vm337, %v481
      %v486 = vld [vmem:[%s461] ss:$8 sm:$0x7]
      %488 = vrot.lane.b32.xlu0 %v486, 127
      %v489 = vpop.permute.xlu0 %488
      %v490 = vrot.slane %v489, 1
      %v491 = vsel %vm360, %v489, %v490
      %s493 = scalar_lea.vmem [#allocation2], 39
      %494 = vst.msk [vmem:[%s493] ss:$8 sm:$0x3] %vm337, %v491
      %495 = vst.msk [vmem:[%s493] ss:$8 sm:$0x0] %vm337, %v491
      %v496 = vld [vmem:[%s327] ss:$8 sm:$0x7]
      %498 = vrot.lane.b32.xlu0 %v496, 120
      %v499 = vpop.permute.xlu0 %498
      %v500 = vrot.slane %v499, 1
      %vm501 = vcmask 982016
      %v502 = vsel %vm501, %v499, %v500
      %s504 = scalar_lea.vmem [#allocation2], 48
      %505 = vst.msk [vmem:[%s504] ss:$8 sm:$0x3] %vm337, %v502
      %506 = vst.msk [vmem:[%s504] ss:$8 sm:$0x0] %vm337, %v502
      %v507 = vld [vmem:[%s340] ss:$8 sm:$0x7]
      %509 = vrot.lane.b32.xlu0 %v507, 120
      %v510 = vpop.permute.xlu0 %509
      %v511 = vrot.slane %v510, 1
      %v512 = vsel %vm501, %v510, %v511
      %s514 = scalar_lea.vmem [#allocation2], 49
      %515 = vst.msk [vmem:[%s514] ss:$8 sm:$0x3] %vm337, %v512
      %516 = vst.msk [vmem:[%s514] ss:$8 sm:$0x0] %vm337, %v512
      %v517 = vld [vmem:[%s345] ss:$8 sm:$0x7]
      %519 = vrot.lane.b32.xlu0 %v517, 120
      %v520 = vpop.permute.xlu0 %519
      %v521 = vrot.slane %v520, 1
      %v522 = vsel %vm501, %v520, %v521
      %s524 = scalar_lea.vmem [#allocation2], 50
      %525 = vst.msk [vmem:[%s524] ss:$8 sm:$0x3] %vm337, %v522
      %526 = vst.msk [vmem:[%s524] ss:$8 sm:$0x0] %vm337, %v522
      %v527 = vld [vmem:[%s350] ss:$8 sm:$0x7]
      %529 = vrot.lane.b32.xlu0 %v527, 120
      %v530 = vpop.permute.xlu0 %529
      %v531 = vrot.slane %v530, 1
      %v532 = vsel %vm501, %v530, %v531
      %s534 = scalar_lea.vmem [#allocation2], 51
      %535 = vst.msk [vmem:[%s534] ss:$8 sm:$0x3] %vm337, %v532
      %536 = vst.msk [vmem:[%s534] ss:$8 sm:$0x0] %vm337, %v532
      %v537 = vld [vmem:[%s327] ss:$8 sm:$0x7]
      %539 = vrot.lane.b32.xlu0 %v537, 119
      %v540 = vpop.permute.xlu0 %539
      %v541 = vrot.slane %v540, 1
      %vm542 = vcmask 973824
      %v543 = vsel %vm542, %v540, %v541
      %s545 = scalar_lea.vmem [#allocation2], 52
      %546 = vst.msk [vmem:[%s545] ss:$8 sm:$0x3] %vm337, %v543
      %547 = vst.msk [vmem:[%s545] ss:$8 sm:$0x0] %vm337, %v543
      %v548 = vld [vmem:[%s340] ss:$8 sm:$0x7]
      %550 = vrot.lane.b32.xlu0 %v548, 119
      %v551 = vpop.permute.xlu0 %550
      %v552 = vrot.slane %v551, 1
      %v553 = vsel %vm542, %v551, %v552
      %s555 = scalar_lea.vmem [#allocation2], 53
      %556 = vst.msk [vmem:[%s555] ss:$8 sm:$0x3] %vm337, %v553
      %557 = vst.msk [vmem:[%s555] ss:$8 sm:$0x0] %vm337, %v553
      %v558 = vld [vmem:[%s376] ss:$8 sm:$0x7]
      %560 = vrot.lane.b32.xlu0 %v558, 120
      %v561 = vpop.permute.xlu0 %560
      %v562 = vrot.slane %v561, 1
      %v563 = vsel %vm501, %v561, %v562
      %s565 = scalar_lea.vmem [#allocation2], 54
      %566 = vst.msk [vmem:[%s565] ss:$8 sm:$0x3] %vm337, %v563
      %567 = vst.msk [vmem:[%s565] ss:$8 sm:$0x0] %vm337, %v563
      %v568 = vld [vmem:[%s381] ss:$8 sm:$0x7]
      %570 = vrot.lane.b32.xlu0 %v568, 120
      %v571 = vpop.permute.xlu0 %570
      %v572 = vrot.slane %v571, 1
      %v573 = vsel %vm501, %v571, %v572
      %s575 = scalar_lea.vmem [#allocation2], 55
      %576 = vst.msk [vmem:[%s575] ss:$8 sm:$0x3] %vm337, %v573
      %577 = vst.msk [vmem:[%s575] ss:$8 sm:$0x0] %vm337, %v573
      %v578 = vld [vmem:[%s386] ss:$8 sm:$0x7]
      %580 = vrot.lane.b32.xlu0 %v578, 120
      %v581 = vpop.permute.xlu0 %580
      %v582 = vrot.slane %v581, 1
      %v583 = vsel %vm501, %v581, %v582
      %s585 = scalar_lea.vmem [#allocation2], 64
      %586 = vst.msk [vmem:[%s585] ss:$8 sm:$0x3] %vm337, %v583
      %587 = vst.msk [vmem:[%s585] ss:$8 sm:$0x0] %vm337, %v583
      %v588 = vld [vmem:[%s391] ss:$8 sm:$0x7]
      %590 = vrot.lane.b32.xlu0 %v588, 120
      %v591 = vpop.permute.xlu0 %590
      %v592 = vrot.slane %v591, 1
      %v593 = vsel %vm501, %v591, %v592
      %s595 = scalar_lea.vmem [#allocation2], 65
      %596 = vst.msk [vmem:[%s595] ss:$8 sm:$0x3] %vm337, %v593
      %597 = vst.msk [vmem:[%s595] ss:$8 sm:$0x0] %vm337, %v593
      %v598 = vld [vmem:[%s376] ss:$8 sm:$0x7]
      %600 = vrot.lane.b32.xlu0 %v598, 119
      %v601 = vpop.permute.xlu0 %600
      %v602 = vrot.slane %v601, 1
      %v603 = vsel %vm542, %v601, %v602
      %s605 = scalar_lea.vmem [#allocation2], 66
      %606 = vst.msk [vmem:[%s605] ss:$8 sm:$0x3] %vm337, %v603
      %607 = vst.msk [vmem:[%s605] ss:$8 sm:$0x0] %vm337, %v603
      %v608 = vld [vmem:[%s381] ss:$8 sm:$0x7]
      %610 = vrot.lane.b32.xlu0 %v608, 119
      %v611 = vpop.permute.xlu0 %610
      %v612 = vrot.slane %v611, 1
      %v613 = vsel %vm542, %v611, %v612
      %s615 = scalar_lea.vmem [#allocation2], 67
      %616 = vst.msk [vmem:[%s615] ss:$8 sm:$0x3] %vm337, %v613
      %617 = vst.msk [vmem:[%s615] ss:$8 sm:$0x0] %vm337, %v613
      %v618 = vld [vmem:[%s1] sm:$0xff]
      %v619 = vld [vmem:[%s1 + $0x8] sm:$0xff]
      %v620 = vld [vmem:[%s1 + $0x10] sm:$0xff]
      %v621 = vld [vmem:[%s1 + $0x18] sm:$0xff]
      %v622 = vld [vmem:[%s1 + $0x20] sm:$0xff]
      %v623 = vld [vmem:[%s1 + $0x28] sm:$0xff]
      %v624 = vld [vmem:[%s1 + $0x30] sm:$0xff]
      %v625 = vld [vmem:[%s1 + $0x38] sm:$0xff]
      %v626 = vld [vmem:[%s1 + $0x40] sm:$0xff]
      %v627 = vld [vmem:[%s1 + $0x48] sm:$0xff]
      %v628 = vld [vmem:[%s1 + $0x50] sm:$0xff]
      %v629 = vld [vmem:[%s1 + $0x58] sm:$0xff]
      %v630 = vld [vmem:[%s1 + $0x60] sm:$0xff]
      %v631 = vld [vmem:[%s1 + $0x68] sm:$0xff]
      %v632 = vld [vmem:[%s1 + $0x70] sm:$0xff]
      %v633 = vld [vmem:[%s1 + $0x78] sm:$0xff]
      %v634 = vld [vmem:[%s1 + $0x80] sm:$0xff]
      %v635 = vld [vmem:[%s1 + $0x88] sm:$0xff]
      %v636 = vld [vmem:[%s1 + $0x90] sm:$0xff]
      %v637 = vld [vmem:[%s1 + $0x98] sm:$0xff]
      %v638 = vld [vmem:[%s1 + $0xa0] sm:$0xff]
      %v639 = vld [vmem:[%s1 + $0xa8] sm:$0xff]
      %v640 = vld [vmem:[%s1 + $0xb0] sm:$0xff]
      %v641 = vld [vmem:[%s1 + $0xb8] sm:$0xff]
      %v642 = vld [vmem:[%s1 + $0xc0] sm:$0xff]
      %v643 = vld [vmem:[%s1 + $0xc8] sm:$0xff]
      %v644 = vld [vmem:[%s1 + $0xd0] sm:$0xff]
      %v645 = vld [vmem:[%s1 + $0xd8] sm:$0xff]
      %v646 = vld [vmem:[%s1 + $0xe0] sm:$0xff]
      %v647 = vld [vmem:[%s1 + $0xe8] sm:$0xff]
      %v648 = vld [vmem:[%s1 + $0xf0] sm:$0xff]
      %v649 = vld [vmem:[%s1 + $0xf8] sm:$0xff]
      %v650 = vld [vmem:[#allocation2] sm:$0xff]
      %v651 = vld [vmem:[#allocation2 + $0x8] sm:$0xff]
      %v652 = vld [vmem:[#allocation2 + $0x10] sm:$0xff]
      %v653 = vld [vmem:[#allocation2 + $0x18] sm:$0xff]
      %v654 = vld [vmem:[#allocation2 + $0x20] sm:$0xff]
      %v655 = vld [vmem:[#allocation2 + $0x28] sm:$0xff]
      %v656 = vld [vmem:[#allocation2 + $0x30] sm:$0xff]
      %v657 = vld [vmem:[#allocation2 + $0x38] sm:$0xff]
      %v658 = vld [vmem:[#allocation2 + $0x40] sm:$0xf]
      %v659 = vld [vmem:[#allocation2 + $0x48] sm:$0xf]
      %v660 = vld [vmem:[%s2] sm:$0xff]
      %v661 = vld [vmem:[%s2 + $0x8] sm:$0xff]
      %v662 = vld [vmem:[%s2 + $0x10] sm:$0xff]
      %v663 = vld [vmem:[%s2 + $0x18] sm:$0xff]
      %v664 = vld [vmem:[%s2 + $0x20] sm:$0xff]
      %v665 = vld [vmem:[%s2 + $0x28] sm:$0xff]
      %v666 = vld [vmem:[%s2 + $0x30] sm:$0xff]
      %v667 = vld [vmem:[%s2 + $0x38] sm:$0xff]
      %v668 = vld [vmem:[%s2 + $0x40] sm:$0xff]
      %v669 = vld [vmem:[%s2 + $0x48] sm:$0xff]
      %v670 = vld [vmem:[%s2 + $0x50] sm:$0xff]
      %v671 = vld [vmem:[%s2 + $0x58] sm:$0xff]
      %v672 = vld [vmem:[%s2 + $0x60] sm:$0xff]
      %v673 = vld [vmem:[%s2 + $0x68] sm:$0xff]
      %v674 = vld [vmem:[%s2 + $0x70] sm:$0xff]
      %v675 = vld [vmem:[%s2 + $0x78] sm:$0xff]
      %v676 = vld [vmem:[%s2 + $0x80] sm:$0xff]
      %v677 = vld [vmem:[%s2 + $0x88] sm:$0xff]
      %v678 = vld [vmem:[%s2 + $0x90] sm:$0xff]
      %v679 = vld [vmem:[%s2 + $0x98] sm:$0xff]
      %v680 = vld [vmem:[%s2 + $0xa0] sm:$0xff]
      %v681 = vld [vmem:[%s2 + $0xa8] sm:$0xff]
      %v682 = vld [vmem:[%s2 + $0xb0] sm:$0xff]
      %v683 = vld [vmem:[%s2 + $0xb8] sm:$0xff]
      %v684 = vld [vmem:[%s2 + $0xc0] sm:$0xff]
      %v685 = vld [vmem:[%s2 + $0xc8] sm:$0xff]
      %v686 = vld [vmem:[%s2 + $0xd0] sm:$0xff]
      %v687 = vld [vmem:[%s2 + $0xd8] sm:$0xff]
      %v688 = vld [vmem:[%s2 + $0xe0] sm:$0xff]
      %v689 = vld [vmem:[%s2 + $0xe8] sm:$0xff]
      %v690 = vld [vmem:[%s2 + $0xf0] sm:$0xff]
      %v691 = vld [vmem:[%s2 + $0xf8] sm:$0xff]
      %693 = vset.pattern.permute.xlu0 0
      %694 = vperm.xlu0 %693, %v660
      %v695 = vpop.permute.xlu0 %694
      %698 = vset.pattern.permute.xlu0 0
      %699 = vperm.xlu0 %698, %v661
      %v700 = vpop.permute.xlu0 %699
      %703 = vset.pattern.permute.xlu0 0
      %704 = vperm.xlu0 %703, %v662
      %v705 = vpop.permute.xlu0 %704
      %708 = vset.pattern.permute.xlu0 0
      %709 = vperm.xlu0 %708, %v663
      %v710 = vpop.permute.xlu0 %709
      %713 = vset.pattern.permute.xlu0 0
      %714 = vperm.xlu0 %713, %v664
      %v715 = vpop.permute.xlu0 %714
      %718 = vset.pattern.permute.xlu0 0
      %719 = vperm.xlu0 %718, %v665
      %v720 = vpop.permute.xlu0 %719
      %723 = vset.pattern.permute.xlu0 0
      %724 = vperm.xlu0 %723, %v666
      %v725 = vpop.permute.xlu0 %724
      %728 = vset.pattern.permute.xlu0 0
      %729 = vperm.xlu0 %728, %v667
      %v730 = vpop.permute.xlu0 %729
      %733 = vset.pattern.permute.xlu0 0
      %734 = vperm.xlu0 %733, %v668
      %v735 = vpop.permute.xlu0 %734
      %738 = vset.pattern.permute.xlu0 0
      %739 = vperm.xlu0 %738, %v669
      %v740 = vpop.permute.xlu0 %739
      %743 = vset.pattern.permute.xlu0 0
      %744 = vperm.xlu0 %743, %v670
      %v745 = vpop.permute.xlu0 %744
      %748 = vset.pattern.permute.xlu0 0
      %749 = vperm.xlu0 %748, %v671
      %v750 = vpop.permute.xlu0 %749
      %753 = vset.pattern.permute.xlu0 0
      %754 = vperm.xlu0 %753, %v672
      %v755 = vpop.permute.xlu0 %754
      %758 = vset.pattern.permute.xlu0 0
      %759 = vperm.xlu0 %758, %v673
      %v760 = vpop.permute.xlu0 %759
      %763 = vset.pattern.permute.xlu0 0
      %764 = vperm.xlu0 %763, %v674
      %v765 = vpop.permute.xlu0 %764
      %768 = vset.pattern.permute.xlu0 0
      %769 = vperm.xlu0 %768, %v675
      %v770 = vpop.permute.xlu0 %769
      %773 = vset.pattern.permute.xlu0 0
      %774 = vperm.xlu0 %773, %v676
      %v775 = vpop.permute.xlu0 %774
      %778 = vset.pattern.permute.xlu0 0
      %779 = vperm.xlu0 %778, %v677
      %v780 = vpop.permute.xlu0 %779
      %783 = vset.pattern.permute.xlu0 0
      %784 = vperm.xlu0 %783, %v678
      %v785 = vpop.permute.xlu0 %784
      %788 = vset.pattern.permute.xlu0 0
      %789 = vperm.xlu0 %788, %v679
      %v790 = vpop.permute.xlu0 %789
      %793 = vset.pattern.permute.xlu0 0
      %794 = vperm.xlu0 %793, %v680
      %v795 = vpop.permute.xlu0 %794
      %798 = vset.pattern.permute.xlu0 0
      %799 = vperm.xlu0 %798, %v681
      %v800 = vpop.permute.xlu0 %799
      %803 = vset.pattern.permute.xlu0 0
      %804 = vperm.xlu0 %803, %v682
      %v805 = vpop.permute.xlu0 %804
      %808 = vset.pattern.permute.xlu0 0
      %809 = vperm.xlu0 %808, %v683
      %v810 = vpop.permute.xlu0 %809
      %813 = vset.pattern.permute.xlu0 0
      %814 = vperm.xlu0 %813, %v684
      %v815 = vpop.permute.xlu0 %814
      %818 = vset.pattern.permute.xlu0 0
      %819 = vperm.xlu0 %818, %v685
      %v820 = vpop.permute.xlu0 %819
      %823 = vset.pattern.permute.xlu0 0
      %824 = vperm.xlu0 %823, %v686
      %v825 = vpop.permute.xlu0 %824
      %828 = vset.pattern.permute.xlu0 0
      %829 = vperm.xlu0 %828, %v687
      %v830 = vpop.permute.xlu0 %829
      %833 = vset.pattern.permute.xlu0 0
      %834 = vperm.xlu0 %833, %v688
      %v835 = vpop.permute.xlu0 %834
      %838 = vset.pattern.permute.xlu0 0
      %839 = vperm.xlu0 %838, %v689
      %v840 = vpop.permute.xlu0 %839
      %843 = vset.pattern.permute.xlu0 0
      %844 = vperm.xlu0 %843, %v690
      %v845 = vpop.permute.xlu0 %844
      %848 = vset.pattern.permute.xlu0 0
      %849 = vperm.xlu0 %848, %v691
      %v850 = vpop.permute.xlu0 %849
      %vm852 = vcmask 293888
      %v854 = vsel %vm852, %v618, 0
      %v857 = vsel %vm852, %v619, 0
      %v860 = vsel %vm852, %v620, 0
      %v863 = vsel %vm852, %v621, 0
      %v866 = vsel %vm852, %v622, 0
      %v869 = vsel %vm852, %v623, 0
      %v872 = vsel %vm852, %v624, 0
      %v875 = vsel %vm852, %v625, 0
      %v878 = vsel %vm852, %v626, 0
      %v881 = vsel %vm852, %v627, 0
      %v884 = vsel %vm852, %v628, 0
      %v887 = vsel %vm852, %v629, 0
      %v890 = vsel %vm852, %v630, 0
      %v893 = vsel %vm852, %v631, 0
      %v896 = vsel %vm852, %v632, 0
      %v899 = vsel %vm852, %v633, 0
      %v902 = vsel %vm852, %v634, 0
      %v905 = vsel %vm852, %v635, 0
      %v908 = vsel %vm852, %v636, 0
      %v911 = vsel %vm852, %v637, 0
      %v914 = vsel %vm852, %v638, 0
      %v917 = vsel %vm852, %v639, 0
      %v920 = vsel %vm852, %v640, 0
      %v923 = vsel %vm852, %v641, 0
      %v926 = vsel %vm852, %v642, 0
      %v929 = vsel %vm852, %v643, 0
      %v932 = vsel %vm852, %v644, 0
      %v935 = vsel %vm852, %v645, 0
      %v938 = vsel %vm852, %v646, 0
      %v941 = vsel %vm852, %v647, 0
      %v944 = vsel %vm852, %v648, 0
      %v947 = vsel %vm852, %v649, 0
      %vm949 = vcmask 1043456
      %v951 = vsel %vm949, %v658, 0
      %v954 = vsel %vm949, %v659, 0
      %956 = vmatprep.subr.mxu0 0.0
      %957 = vmatpush1.msra.mxu0 0.0
      %958 = vmatprep.subr.mxu0 0.0
      %959 = vmatpush1.msra.mxu0 0.0
      %960 = vmatprep.subr.mxu0 0.0
      %961 = vmatpush1.msra.mxu0 0.0
      %962 = vmatprep.subr.mxu0 0.0
      %963 = vmatpush1.msra.mxu0 0.0
      %964 = vmatprep.subr.mxu0 0.0
      %965 = vmatpush1.msra.mxu0 0.0
      %966 = vmatprep.subr.mxu0 0.0
      %967 = vmatpush1.msra.mxu0 0.0
      %968 = vmatprep.subr.mxu0 0.0
      %969 = vmatpush1.msra.mxu0 0.0
      %970 = vmatprep.subr.mxu0 0.0
      %971 = vmatpush1.msra.mxu0 0.0
      %972 = vmatprep.subr.mxu0 0.0
      %973 = vmatpush1.msra.mxu0 0.0
      %974 = vmatprep.subr.mxu0 0.0
      %975 = vmatpush1.msra.mxu0 0.0
      %976 = vmatprep.subr.mxu0 0.0
      %977 = vmatpush1.msra.mxu0 0.0
      %978 = vmatprep.subr.mxu0 %v954
      %979 = vmatpush1.msra.mxu0 %v951
      %980 = vmatprep.subr.mxu0 %v657
      %981 = vmatpush1.msra.mxu0 %v656
      %982 = vmatprep.subr.mxu0 %v655
      %983 = vmatpush1.msra.mxu0 %v654
      %984 = vmatprep.subr.mxu0 %v653
      %985 = vmatpush1.msra.mxu0 %v652
      %986 = vmatprep.subr.mxu0 %v651
      %987 = vmatpush1.msra.mxu0 %v650
      %988 = vmatprep.subr.mxu0 0.0
      %989 = vmatpush2.msra.mxu0 0.0
      %990 = vmatprep.subr.mxu0 0.0
      %991 = vmatpush2.msra.mxu0 0.0
      %992 = vmatprep.subr.mxu0 0.0
      %993 = vmatpush2.msra.mxu0 0.0
      %994 = vmatprep.subr.mxu0 0.0
      %995 = vmatpush2.msra.mxu0 0.0
      %996 = vmatprep.subr.mxu0 0.0
      %997 = vmatpush2.msra.mxu0 0.0
      %998 = vmatprep.subr.mxu0 0.0
      %999 = vmatpush2.msra.mxu0 0.0
      %1000 = vmatprep.subr.mxu0 0.0
      %1001 = vmatpush2.msra.mxu0 0.0
      %1002 = vmatprep.subr.mxu0 0.0
      %1003 = vmatpush2.msra.mxu0 0.0
      %1004 = vmatprep.subr.mxu0 0.0
      %1005 = vmatpush2.msra.mxu0 0.0
      %1006 = vmatprep.subr.mxu0 0.0
      %1007 = vmatpush2.msra.mxu0 0.0
      %1008 = vmatprep.subr.mxu0 0.0
      %1009 = vmatpush2.msra.mxu0 0.0
      %1010 = vmatprep.subr.mxu0 0.0
      %1011 = vmatpush2.msra.mxu0 0.0
      %1012 = vmatprep.subr.mxu0 0.0
      %1013 = vmatpush2.msra.mxu0 0.0
      %1014 = vmatprep.subr.mxu0 0.0
      %1015 = vmatpush2.msra.mxu0 0.0
      %1016 = vmatprep.subr.mxu0 0.0
      %1017 = vmatpush2.msra.mxu0 0.0
      %1018 = vmatprep.subr.mxu0 0.0
      %1019 = vmatpush2.msra.mxu0 0.0
      %1020 = vmatprep.mubr.f32.mxu0 0.0
      %1021 = vmatmul.mubr.f32.gmra.mxu0 %v854
      %v1022 = vpop.f32.mrf.mxu0
      %v1023 = vadd.f32 %v695, %v1022
      %v1024 = vpop.f32.mrf.mxu0
      %v1025 = vadd.f32 %v695, %v1024
      %1026 = vmatprep.mubr.f32.mxu0 0.0
      %1027 = vmatmul.mubr.f32.gmra.mxu0 %v857
      %v1028 = vpop.f32.mrf.mxu0
      %v1029 = vadd.f32 %v700, %v1028
      %v1030 = vpop.f32.mrf.mxu0
      %v1031 = vadd.f32 %v700, %v1030
      %1032 = vmatprep.mubr.f32.mxu0 0.0
      %1033 = vmatmul.mubr.f32.gmra.mxu0 %v860
      %v1034 = vpop.f32.mrf.mxu0
      %v1035 = vadd.f32 %v705, %v1034
      %v1036 = vpop.f32.mrf.mxu0
      %v1037 = vadd.f32 %v705, %v1036
      %1038 = vmatprep.mubr.f32.mxu0 0.0
      %1039 = vmatmul.mubr.f32.gmra.mxu0 %v863
      %v1040 = vpop.f32.mrf.mxu0
      %v1041 = vadd.f32 %v710, %v1040
      %v1042 = vpop.f32.mrf.mxu0
      %v1043 = vadd.f32 %v710, %v1042
      %1044 = vmatprep.mubr.f32.mxu0 0.0
      %1045 = vmatmul.mubr.f32.gmra.mxu0 %v866
      %v1046 = vpop.f32.mrf.mxu0
      %v1047 = vadd.f32 %v715, %v1046
      %v1048 = vpop.f32.mrf.mxu0
      %v1049 = vadd.f32 %v715, %v1048
      %1050 = vmatprep.mubr.f32.mxu0 0.0
      %1051 = vmatmul.mubr.f32.gmra.mxu0 %v869
      %v1052 = vpop.f32.mrf.mxu0
      %v1053 = vadd.f32 %v720, %v1052
      %v1054 = vpop.f32.mrf.mxu0
      %v1055 = vadd.f32 %v720, %v1054
      %1056 = vmatprep.mubr.f32.mxu0 0.0
      %1057 = vmatmul.mubr.f32.gmra.mxu0 %v872
      %v1058 = vpop.f32.mrf.mxu0
      %v1059 = vadd.f32 %v725, %v1058
      %v1060 = vpop.f32.mrf.mxu0
      %v1061 = vadd.f32 %v725, %v1060
      %1062 = vmatprep.mubr.f32.mxu0 0.0
      %1063 = vmatmul.mubr.f32.gmra.mxu0 %v875
      %v1064 = vpop.f32.mrf.mxu0
      %v1065 = vadd.f32 %v730, %v1064
      %v1066 = vpop.f32.mrf.mxu0
      %v1067 = vadd.f32 %v730, %v1066
      %1068 = vmatprep.mubr.f32.mxu0 0.0
      %1069 = vmatmul.mubr.f32.gmra.mxu0 %v878
      %v1070 = vpop.f32.mrf.mxu0
      %v1071 = vadd.f32 %v735, %v1070
      %v1072 = vpop.f32.mrf.mxu0
      %v1073 = vadd.f32 %v735, %v1072
      %1074 = vmatprep.mubr.f32.mxu0 0.0
      %1075 = vmatmul.mubr.f32.gmra.mxu0 %v881
      %v1076 = vpop.f32.mrf.mxu0
      %v1077 = vadd.f32 %v740, %v1076
      %v1078 = vpop.f32.mrf.mxu0
      %v1079 = vadd.f32 %v740, %v1078
      %1080 = vmatprep.mubr.f32.mxu0 0.0
      %1081 = vmatmul.mubr.f32.gmra.mxu0 %v884
      %v1082 = vpop.f32.mrf.mxu0
      %v1083 = vadd.f32 %v745, %v1082
      %v1084 = vpop.f32.mrf.mxu0
      %v1085 = vadd.f32 %v745, %v1084
      %1086 = vmatprep.mubr.f32.mxu0 0.0
      %1087 = vmatmul.mubr.f32.gmra.mxu0 %v887
      %v1088 = vpop.f32.mrf.mxu0
      %v1089 = vadd.f32 %v750, %v1088
      %v1090 = vpop.f32.mrf.mxu0
      %v1091 = vadd.f32 %v750, %v1090
      %1092 = vmatprep.mubr.f32.mxu0 0.0
      %1093 = vmatmul.mubr.f32.gmra.mxu0 %v890
      %v1094 = vpop.f32.mrf.mxu0
      %v1095 = vadd.f32 %v755, %v1094
      %v1096 = vpop.f32.mrf.mxu0
      %v1097 = vadd.f32 %v755, %v1096
      %1098 = vmatprep.mubr.f32.mxu0 0.0
      %1099 = vmatmul.mubr.f32.gmra.mxu0 %v893
      %v1100 = vpop.f32.mrf.mxu0
      %v1101 = vadd.f32 %v760, %v1100
      %v1102 = vpop.f32.mrf.mxu0
      %v1103 = vadd.f32 %v760, %v1102
      %1104 = vmatprep.mubr.f32.mxu0 0.0
      %1105 = vmatmul.mubr.f32.gmra.mxu0 %v896
      %v1106 = vpop.f32.mrf.mxu0
      %v1107 = vadd.f32 %v765, %v1106
      %v1108 = vpop.f32.mrf.mxu0
      %v1109 = vadd.f32 %v765, %v1108
      %1110 = vmatprep.mubr.f32.mxu0 0.0
      %1111 = vmatmul.mubr.f32.gmra.mxu0 %v899
      %v1112 = vpop.f32.mrf.mxu0
      %v1113 = vadd.f32 %v770, %v1112
      %v1114 = vpop.f32.mrf.mxu0
      %v1115 = vadd.f32 %v770, %v1114
      %1116 = vmatprep.mubr.f32.mxu0 0.0
      %1117 = vmatmul.mubr.f32.gmra.mxu0 %v902
      %v1118 = vpop.f32.mrf.mxu0
      %v1119 = vadd.f32 %v775, %v1118
      %v1120 = vpop.f32.mrf.mxu0
      %v1121 = vadd.f32 %v775, %v1120
      %1122 = vmatprep.mubr.f32.mxu0 0.0
      %1123 = vmatmul.mubr.f32.gmra.mxu0 %v905
      %v1124 = vpop.f32.mrf.mxu0
      %v1125 = vadd.f32 %v780, %v1124
      %v1126 = vpop.f32.mrf.mxu0
      %v1127 = vadd.f32 %v780, %v1126
      %1128 = vmatprep.mubr.f32.mxu0 0.0
      %1129 = vmatmul.mubr.f32.gmra.mxu0 %v908
      %v1130 = vpop.f32.mrf.mxu0
      %v1131 = vadd.f32 %v785, %v1130
      %v1132 = vpop.f32.mrf.mxu0
      %v1133 = vadd.f32 %v785, %v1132
      %1134 = vmatprep.mubr.f32.mxu0 0.0
      %1135 = vmatmul.mubr.f32.gmra.mxu0 %v911
      %v1136 = vpop.f32.mrf.mxu0
      %v1137 = vadd.f32 %v790, %v1136
      %v1138 = vpop.f32.mrf.mxu0
      %v1139 = vadd.f32 %v790, %v1138
      %1140 = vmatprep.mubr.f32.mxu0 0.0
      %1141 = vmatmul.mubr.f32.gmra.mxu0 %v914
      %v1142 = vpop.f32.mrf.mxu0
      %v1143 = vadd.f32 %v795, %v1142
      %v1144 = vpop.f32.mrf.mxu0
      %v1145 = vadd.f32 %v795, %v1144
      %1146 = vmatprep.mubr.f32.mxu0 0.0
      %1147 = vmatmul.mubr.f32.gmra.mxu0 %v917
      %v1148 = vpop.f32.mrf.mxu0
      %v1149 = vadd.f32 %v800, %v1148
      %v1150 = vpop.f32.mrf.mxu0
      %v1151 = vadd.f32 %v800, %v1150
      %1152 = vmatprep.mubr.f32.mxu0 0.0
      %1153 = vmatmul.mubr.f32.gmra.mxu0 %v920
      %v1154 = vpop.f32.mrf.mxu0
      %v1155 = vadd.f32 %v805, %v1154
      %v1156 = vpop.f32.mrf.mxu0
      %v1157 = vadd.f32 %v805, %v1156
      %1158 = vmatprep.mubr.f32.mxu0 0.0
      %1159 = vmatmul.mubr.f32.gmra.mxu0 %v923
      %v1160 = vpop.f32.mrf.mxu0
      %v1161 = vadd.f32 %v810, %v1160
      %v1162 = vpop.f32.mrf.mxu0
      %v1163 = vadd.f32 %v810, %v1162
      %1164 = vmatprep.mubr.f32.mxu0 0.0
      %1165 = vmatmul.mubr.f32.gmra.mxu0 %v926
      %v1166 = vpop.f32.mrf.mxu0
      %v1167 = vadd.f32 %v815, %v1166
      %v1168 = vpop.f32.mrf.mxu0
      %v1169 = vadd.f32 %v815, %v1168
      %1170 = vmatprep.mubr.f32.mxu0 0.0
      %1171 = vmatmul.mubr.f32.gmra.mxu0 %v929
      %v1172 = vpop.f32.mrf.mxu0
      %v1173 = vadd.f32 %v820, %v1172
      %v1174 = vpop.f32.mrf.mxu0
      %v1175 = vadd.f32 %v820, %v1174
      %1176 = vmatprep.mubr.f32.mxu0 0.0
      %1177 = vmatmul.mubr.f32.gmra.mxu0 %v932
      %v1178 = vpop.f32.mrf.mxu0
      %v1179 = vadd.f32 %v825, %v1178
      %v1180 = vpop.f32.mrf.mxu0
      %v1181 = vadd.f32 %v825, %v1180
      %1182 = vmatprep.mubr.f32.mxu0 0.0
      %1183 = vmatmul.mubr.f32.gmra.mxu0 %v935
      %v1184 = vpop.f32.mrf.mxu0
      %v1185 = vadd.f32 %v830, %v1184
      %v1186 = vpop.f32.mrf.mxu0
      %v1187 = vadd.f32 %v830, %v1186
      %1188 = vmatprep.mubr.f32.mxu0 0.0
      %1189 = vmatmul.mubr.f32.gmra.mxu0 %v938
      %v1190 = vpop.f32.mrf.mxu0
      %v1191 = vadd.f32 %v835, %v1190
      %v1192 = vpop.f32.mrf.mxu0
      %v1193 = vadd.f32 %v835, %v1192
      %1194 = vmatprep.mubr.f32.mxu0 0.0
      %1195 = vmatmul.mubr.f32.gmra.mxu0 %v941
      %v1196 = vpop.f32.mrf.mxu0
      %v1197 = vadd.f32 %v840, %v1196
      %v1198 = vpop.f32.mrf.mxu0
      %v1199 = vadd.f32 %v840, %v1198
      %1200 = vmatprep.mubr.f32.mxu0 0.0
      %1201 = vmatmul.mubr.f32.gmra.mxu0 %v944
      %v1202 = vpop.f32.mrf.mxu0
      %v1203 = vadd.f32 %v845, %v1202
      %v1204 = vpop.f32.mrf.mxu0
      %v1205 = vadd.f32 %v845, %v1204
      %1206 = vmatprep.mubr.f32.mxu0 0.0
      %1207 = vmatmul.mubr.f32.gmra.mxu0 %v947
      %v1208 = vpop.f32.mrf.mxu0
      %v1209 = vadd.f32 %v850, %v1208
      %v1210 = vpop.f32.mrf.mxu0
      %v1211 = vadd.f32 %v850, %v1210
      %1212 = vdwg.mxu0
      %v1213 = vmax.f32 %v1023, 0.0
      %v1214 = vmax.f32 %v1025, 0.0
      %v1215 = vmax.f32 %v1029, 0.0
      %v1216 = vmax.f32 %v1031, 0.0
      %v1217 = vmax.f32 %v1035, 0.0
      %v1218 = vmax.f32 %v1037, 0.0
      %v1219 = vmax.f32 %v1041, 0.0
      %v1220 = vmax.f32 %v1043, 0.0
      %v1221 = vmax.f32 %v1047, 0.0
      %v1222 = vmax.f32 %v1049, 0.0
      %v1223 = vmax.f32 %v1053, 0.0
      %v1224 = vmax.f32 %v1055, 0.0
      %v1225 = vmax.f32 %v1059, 0.0
      %v1226 = vmax.f32 %v1061, 0.0
      %v1227 = vmax.f32 %v1065, 0.0
      %v1228 = vmax.f32 %v1067, 0.0
      %v1229 = vmax.f32 %v1071, 0.0
      %v1230 = vmax.f32 %v1073, 0.0
      %v1231 = vmax.f32 %v1077, 0.0
      %v1232 = vmax.f32 %v1079, 0.0
      %v1233 = vmax.f32 %v1083, 0.0
      %v1234 = vmax.f32 %v1085, 0.0
      %v1235 = vmax.f32 %v1089, 0.0
      %v1236 = vmax.f32 %v1091, 0.0
      %v1237 = vmax.f32 %v1095, 0.0
      %v1238 = vmax.f32 %v1097, 0.0
      %v1239 = vmax.f32 %v1101, 0.0
      %v1240 = vmax.f32 %v1103, 0.0
      %v1241 = vmax.f32 %v1107, 0.0
      %v1242 = vmax.f32 %v1109, 0.0
      %v1243 = vmax.f32 %v1113, 0.0
      %v1244 = vmax.f32 %v1115, 0.0
      %v1245 = vmax.f32 %v1119, 0.0
      %v1246 = vmax.f32 %v1121, 0.0
      %v1247 = vmax.f32 %v1125, 0.0
      %v1248 = vmax.f32 %v1127, 0.0
      %v1249 = vmax.f32 %v1131, 0.0
      %v1250 = vmax.f32 %v1133, 0.0
      %v1251 = vmax.f32 %v1137, 0.0
      %v1252 = vmax.f32 %v1139, 0.0
      %v1253 = vmax.f32 %v1143, 0.0
      %v1254 = vmax.f32 %v1145, 0.0
      %v1255 = vmax.f32 %v1149, 0.0
      %v1256 = vmax.f32 %v1151, 0.0
      %v1257 = vmax.f32 %v1155, 0.0
      %v1258 = vmax.f32 %v1157, 0.0
      %v1259 = vmax.f32 %v1161, 0.0
      %v1260 = vmax.f32 %v1163, 0.0
      %v1261 = vmax.f32 %v1167, 0.0
      %v1262 = vmax.f32 %v1169, 0.0
      %v1263 = vmax.f32 %v1173, 0.0
      %v1264 = vmax.f32 %v1175, 0.0
      %v1265 = vmax.f32 %v1179, 0.0
      %v1266 = vmax.f32 %v1181, 0.0
      %v1267 = vmax.f32 %v1185, 0.0
      %v1268 = vmax.f32 %v1187, 0.0
      %v1269 = vmax.f32 %v1191, 0.0
      %v1270 = vmax.f32 %v1193, 0.0
      %v1271 = vmax.f32 %v1197, 0.0
      %v1272 = vmax.f32 %v1199, 0.0
      %v1273 = vmax.f32 %v1203, 0.0
      %v1274 = vmax.f32 %v1205, 0.0
      %v1275 = vmax.f32 %v1209, 0.0
      %v1276 = vmax.f32 %v1211, 0.0
      %v1277 = vld [vmem:[%s3] sm:$0xff]
      %v1278 = vld [vmem:[%s3 + $0x8] sm:$0xff]
      %v1279 = vld [vmem:[%s3 + $0x10] sm:$0xff]
      %v1280 = vld [vmem:[%s3 + $0x18] sm:$0xff]
      %v1281 = vld [vmem:[%s3 + $0x20] sm:$0xff]
      %v1282 = vld [vmem:[%s3 + $0x28] sm:$0xff]
      %v1283 = vld [vmem:[%s3 + $0x30] sm:$0xff]
      %v1284 = vld [vmem:[%s3 + $0x38] sm:$0xff]
      %v1285 = vld [vmem:[%s3 + $0x40] sm:$0xff]
      %v1286 = vld [vmem:[%s3 + $0x48] sm:$0xff]
      %v1287 = vld [vmem:[%s3 + $0x50] sm:$0xff]
      %v1288 = vld [vmem:[%s3 + $0x58] sm:$0xff]
      %v1289 = vld [vmem:[%s3 + $0x60] sm:$0xff]
      %v1290 = vld [vmem:[%s3 + $0x68] sm:$0xff]
      %v1291 = vld [vmem:[%s3 + $0x70] sm:$0xff]
      %v1292 = vld [vmem:[%s3 + $0x78] sm:$0xff]
      %v1293 = vld [vmem:[%s3 + $0x80] sm:$0xff]
      %v1294 = vld [vmem:[%s3 + $0x88] sm:$0xff]
      %v1295 = vld [vmem:[%s3 + $0x90] sm:$0xff]
      %v1296 = vld [vmem:[%s3 + $0x98] sm:$0xff]
      %v1297 = vld [vmem:[%s3 + $0xa0] sm:$0xff]
      %v1298 = vld [vmem:[%s3 + $0xa8] sm:$0xff]
      %v1299 = vld [vmem:[%s3 + $0xb0] sm:$0xff]
      %v1300 = vld [vmem:[%s3 + $0xb8] sm:$0xff]
      %v1301 = vld [vmem:[%s3 + $0xc0] sm:$0xff]
      %v1302 = vld [vmem:[%s3 + $0xc8] sm:$0xff]
      %v1303 = vld [vmem:[%s3 + $0xd0] sm:$0xff]
      %v1304 = vld [vmem:[%s3 + $0xd8] sm:$0xff]
      %v1305 = vld [vmem:[%s3 + $0xe0] sm:$0xff]
      %v1306 = vld [vmem:[%s3 + $0xe8] sm:$0xff]
      %v1307 = vld [vmem:[%s3 + $0xf0] sm:$0xff]
      %v1308 = vld [vmem:[%s3 + $0xf8] sm:$0xff]
      %1310 = vset.pattern.permute.xlu0 0
      %1311 = vperm.xlu0 %1310, %v1277
      %v1312 = vpop.permute.xlu0 %1311
      %1315 = vset.pattern.permute.xlu0 0
      %1316 = vperm.xlu0 %1315, %v1278
      %v1317 = vpop.permute.xlu0 %1316
      %1320 = vset.pattern.permute.xlu0 0
      %1321 = vperm.xlu0 %1320, %v1279
      %v1322 = vpop.permute.xlu0 %1321
      %1325 = vset.pattern.permute.xlu0 0
      %1326 = vperm.xlu0 %1325, %v1280
      %v1327 = vpop.permute.xlu0 %1326
      %1330 = vset.pattern.permute.xlu0 0
      %1331 = vperm.xlu0 %1330, %v1281
      %v1332 = vpop.permute.xlu0 %1331
      %1335 = vset.pattern.permute.xlu0 0
      %1336 = vperm.xlu0 %1335, %v1282
      %v1337 = vpop.permute.xlu0 %1336
      %1340 = vset.pattern.permute.xlu0 0
      %1341 = vperm.xlu0 %1340, %v1283
      %v1342 = vpop.permute.xlu0 %1341
      %1345 = vset.pattern.permute.xlu0 0
      %1346 = vperm.xlu0 %1345, %v1284
      %v1347 = vpop.permute.xlu0 %1346
      %1350 = vset.pattern.permute.xlu0 0
      %1351 = vperm.xlu0 %1350, %v1285
      %v1352 = vpop.permute.xlu0 %1351
      %1355 = vset.pattern.permute.xlu0 0
      %1356 = vperm.xlu0 %1355, %v1286
      %v1357 = vpop.permute.xlu0 %1356
      %1360 = vset.pattern.permute.xlu0 0
      %1361 = vperm.xlu0 %1360, %v1287
      %v1362 = vpop.permute.xlu0 %1361
      %1365 = vset.pattern.permute.xlu0 0
      %1366 = vperm.xlu0 %1365, %v1288
      %v1367 = vpop.permute.xlu0 %1366
      %1370 = vset.pattern.permute.xlu0 0
      %1371 = vperm.xlu0 %1370, %v1289
      %v1372 = vpop.permute.xlu0 %1371
      %1375 = vset.pattern.permute.xlu0 0
      %1376 = vperm.xlu0 %1375, %v1290
      %v1377 = vpop.permute.xlu0 %1376
      %1380 = vset.pattern.permute.xlu0 0
      %1381 = vperm.xlu0 %1380, %v1291
      %v1382 = vpop.permute.xlu0 %1381
      %1385 = vset.pattern.permute.xlu0 0
      %1386 = vperm.xlu0 %1385, %v1292
      %v1387 = vpop.permute.xlu0 %1386
      %1390 = vset.pattern.permute.xlu0 0
      %1391 = vperm.xlu0 %1390, %v1293
      %v1392 = vpop.permute.xlu0 %1391
      %1395 = vset.pattern.permute.xlu0 0
      %1396 = vperm.xlu0 %1395, %v1294
      %v1397 = vpop.permute.xlu0 %1396
      %1400 = vset.pattern.permute.xlu0 0
      %1401 = vperm.xlu0 %1400, %v1295
      %v1402 = vpop.permute.xlu0 %1401
      %1405 = vset.pattern.permute.xlu0 0
      %1406 = vperm.xlu0 %1405, %v1296
      %v1407 = vpop.permute.xlu0 %1406
      %1410 = vset.pattern.permute.xlu0 0
      %1411 = vperm.xlu0 %1410, %v1297
      %v1412 = vpop.permute.xlu0 %1411
      %1415 = vset.pattern.permute.xlu0 0
      %1416 = vperm.xlu0 %1415, %v1298
      %v1417 = vpop.permute.xlu0 %1416
      %1420 = vset.pattern.permute.xlu0 0
      %1421 = vperm.xlu0 %1420, %v1299
      %v1422 = vpop.permute.xlu0 %1421
      %1425 = vset.pattern.permute.xlu0 0
      %1426 = vperm.xlu0 %1425, %v1300
      %v1427 = vpop.permute.xlu0 %1426
      %1430 = vset.pattern.permute.xlu0 0
      %1431 = vperm.xlu0 %1430, %v1301
      %v1432 = vpop.permute.xlu0 %1431
      %1435 = vset.pattern.permute.xlu0 0
      %1436 = vperm.xlu0 %1435, %v1302
      %v1437 = vpop.permute.xlu0 %1436
      %1440 = vset.pattern.permute.xlu0 0
      %1441 = vperm.xlu0 %1440, %v1303
      %v1442 = vpop.permute.xlu0 %1441
      %1445 = vset.pattern.permute.xlu0 0
      %1446 = vperm.xlu0 %1445, %v1304
      %v1447 = vpop.permute.xlu0 %1446
      %1450 = vset.pattern.permute.xlu0 0
      %1451 = vperm.xlu0 %1450, %v1305
      %v1452 = vpop.permute.xlu0 %1451
      %1455 = vset.pattern.permute.xlu0 0
      %1456 = vperm.xlu0 %1455, %v1306
      %v1457 = vpop.permute.xlu0 %1456
      %1460 = vset.pattern.permute.xlu0 0
      %1461 = vperm.xlu0 %1460, %v1307
      %v1462 = vpop.permute.xlu0 %1461
      %1465 = vset.pattern.permute.xlu0 0
      %1466 = vperm.xlu0 %1465, %v1308
      %v1467 = vpop.permute.xlu0 %1466
      %v1469 = vmul.f32 %v1213, %v1312
      %v1470 = vmul.f32 %v1214, %v1312
      %v1471 = vmul.f32 %v1215, %v1317
      %v1472 = vmul.f32 %v1216, %v1317
      %v1473 = vmul.f32 %v1217, %v1322
      %v1474 = vmul.f32 %v1218, %v1322
      %v1475 = vmul.f32 %v1219, %v1327
      %v1476 = vmul.f32 %v1220, %v1327
      %v1477 = vmul.f32 %v1221, %v1332
      %v1478 = vmul.f32 %v1222, %v1332
      %v1479 = vmul.f32 %v1223, %v1337
      %v1480 = vmul.f32 %v1224, %v1337
      %v1481 = vmul.f32 %v1225, %v1342
      %v1482 = vmul.f32 %v1226, %v1342
      %v1483 = vmul.f32 %v1227, %v1347
      %v1484 = vmul.f32 %v1228, %v1347
      %v1485 = vmul.f32 %v1229, %v1352
      %v1486 = vmul.f32 %v1230, %v1352
      %v1487 = vmul.f32 %v1231, %v1357
      %v1488 = vmul.f32 %v1232, %v1357
      %v1489 = vmul.f32 %v1233, %v1362
      %v1490 = vmul.f32 %v1234, %v1362
      %v1491 = vmul.f32 %v1235, %v1367
      %v1492 = vmul.f32 %v1236, %v1367
      %v1493 = vmul.f32 %v1237, %v1372
      %v1494 = vmul.f32 %v1238, %v1372
      %v1495 = vmul.f32 %v1239, %v1377
      %v1496 = vmul.f32 %v1240, %v1377
      %v1497 = vmul.f32 %v1241, %v1382
      %v1498 = vmul.f32 %v1242, %v1382
      %v1499 = vmul.f32 %v1243, %v1387
      %v1500 = vmul.f32 %v1244, %v1387
      %v1501 = vmul.f32 %v1245, %v1392
      %v1502 = vmul.f32 %v1246, %v1392
      %v1503 = vmul.f32 %v1247, %v1397
      %v1504 = vmul.f32 %v1248, %v1397
      %v1505 = vmul.f32 %v1249, %v1402
      %v1506 = vmul.f32 %v1250, %v1402
      %v1507 = vmul.f32 %v1251, %v1407
      %v1508 = vmul.f32 %v1252, %v1407
      %v1509 = vmul.f32 %v1253, %v1412
      %v1510 = vmul.f32 %v1254, %v1412
      %v1511 = vmul.f32 %v1255, %v1417
      %v1512 = vmul.f32 %v1256, %v1417
      %v1513 = vmul.f32 %v1257, %v1422
      %v1514 = vmul.f32 %v1258, %v1422
      %v1515 = vmul.f32 %v1259, %v1427
      %v1516 = vmul.f32 %v1260, %v1427
      %v1517 = vmul.f32 %v1261, %v1432
      %v1518 = vmul.f32 %v1262, %v1432
      %v1519 = vmul.f32 %v1263, %v1437
      %v1520 = vmul.f32 %v1264, %v1437
      %v1521 = vmul.f32 %v1265, %v1442
      %v1522 = vmul.f32 %v1266, %v1442
      %v1523 = vmul.f32 %v1267, %v1447
      %v1524 = vmul.f32 %v1268, %v1447
      %v1525 = vmul.f32 %v1269, %v1452
      %v1526 = vmul.f32 %v1270, %v1452
      %v1527 = vmul.f32 %v1271, %v1457
      %v1528 = vmul.f32 %v1272, %v1457
      %v1529 = vmul.f32 %v1273, %v1462
      %v1530 = vmul.f32 %v1274, %v1462
      %v1531 = vmul.f32 %v1275, %v1467
      %v1532 = vmul.f32 %v1276, %v1467
      %v1533 = vld [vmem:[%s4] sm:$0xff]
      %v1534 = vld [vmem:[%s4 + $0x8] sm:$0xff]
      %v1535 = vld [vmem:[%s4 + $0x10] sm:$0xff]
      %v1536 = vld [vmem:[%s4 + $0x18] sm:$0xff]
      %v1537 = vld [vmem:[%s4 + $0x20] sm:$0xff]
      %v1538 = vld [vmem:[%s4 + $0x28] sm:$0xff]
      %v1539 = vld [vmem:[%s4 + $0x30] sm:$0xff]
      %v1540 = vld [vmem:[%s4 + $0x38] sm:$0xff]
      %v1541 = vld [vmem:[%s4 + $0x40] sm:$0xff]
      %v1542 = vld [vmem:[%s4 + $0x48] sm:$0xff]
      %v1543 = vld [vmem:[%s4 + $0x50] sm:$0xff]
      %v1544 = vld [vmem:[%s4 + $0x58] sm:$0xff]
      %v1545 = vld [vmem:[%s4 + $0x60] sm:$0xff]
      %v1546 = vld [vmem:[%s4 + $0x68] sm:$0xff]
      %v1547 = vld [vmem:[%s4 + $0x70] sm:$0xff]
      %v1548 = vld [vmem:[%s4 + $0x78] sm:$0xff]
      %v1549 = vld [vmem:[%s4 + $0x80] sm:$0xff]
      %v1550 = vld [vmem:[%s4 + $0x88] sm:$0xff]
      %v1551 = vld [vmem:[%s4 + $0x90] sm:$0xff]
      %v1552 = vld [vmem:[%s4 + $0x98] sm:$0xff]
      %v1553 = vld [vmem:[%s4 + $0xa0] sm:$0xff]
      %v1554 = vld [vmem:[%s4 + $0xa8] sm:$0xff]
      %v1555 = vld [vmem:[%s4 + $0xb0] sm:$0xff]
      %v1556 = vld [vmem:[%s4 + $0xb8] sm:$0xff]
      %v1557 = vld [vmem:[%s4 + $0xc0] sm:$0xff]
      %v1558 = vld [vmem:[%s4 + $0xc8] sm:$0xff]
      %v1559 = vld [vmem:[%s4 + $0xd0] sm:$0xff]
      %v1560 = vld [vmem:[%s4 + $0xd8] sm:$0xff]
      %v1561 = vld [vmem:[%s4 + $0xe0] sm:$0xff]
      %v1562 = vld [vmem:[%s4 + $0xe8] sm:$0xff]
      %v1563 = vld [vmem:[%s4 + $0xf0] sm:$0xff]
      %v1564 = vld [vmem:[%s4 + $0xf8] sm:$0xff]
      %1566 = vset.pattern.permute.xlu0 0
      %1567 = vperm.xlu0 %1566, %v1533
      %v1568 = vpop.permute.xlu0 %1567
      %1571 = vset.pattern.permute.xlu0 0
      %1572 = vperm.xlu0 %1571, %v1534
      %v1573 = vpop.permute.xlu0 %1572
      %1576 = vset.pattern.permute.xlu0 0
      %1577 = vperm.xlu0 %1576, %v1535
      %v1578 = vpop.permute.xlu0 %1577
      %1581 = vset.pattern.permute.xlu0 0
      %1582 = vperm.xlu0 %1581, %v1536
      %v1583 = vpop.permute.xlu0 %1582
      %1586 = vset.pattern.permute.xlu0 0
      %1587 = vperm.xlu0 %1586, %v1537
      %v1588 = vpop.permute.xlu0 %1587
      %1591 = vset.pattern.permute.xlu0 0
      %1592 = vperm.xlu0 %1591, %v1538
      %v1593 = vpop.permute.xlu0 %1592
      %1596 = vset.pattern.permute.xlu0 0
      %1597 = vperm.xlu0 %1596, %v1539
      %v1598 = vpop.permute.xlu0 %1597
      %1601 = vset.pattern.permute.xlu0 0
      %1602 = vperm.xlu0 %1601, %v1540
      %v1603 = vpop.permute.xlu0 %1602
      %1606 = vset.pattern.permute.xlu0 0
      %1607 = vperm.xlu0 %1606, %v1541
      %v1608 = vpop.permute.xlu0 %1607
      %1611 = vset.pattern.permute.xlu0 0
      %1612 = vperm.xlu0 %1611, %v1542
      %v1613 = vpop.permute.xlu0 %1612
      %1616 = vset.pattern.permute.xlu0 0
      %1617 = vperm.xlu0 %1616, %v1543
      %v1618 = vpop.permute.xlu0 %1617
      %1621 = vset.pattern.permute.xlu0 0
      %1622 = vperm.xlu0 %1621, %v1544
      %v1623 = vpop.permute.xlu0 %1622
      %1626 = vset.pattern.permute.xlu0 0
      %1627 = vperm.xlu0 %1626, %v1545
      %v1628 = vpop.permute.xlu0 %1627
      %1631 = vset.pattern.permute.xlu0 0
      %1632 = vperm.xlu0 %1631, %v1546
      %v1633 = vpop.permute.xlu0 %1632
      %1636 = vset.pattern.permute.xlu0 0
      %1637 = vperm.xlu0 %1636, %v1547
      %v1638 = vpop.permute.xlu0 %1637
      %1641 = vset.pattern.permute.xlu0 0
      %1642 = vperm.xlu0 %1641, %v1548
      %v1643 = vpop.permute.xlu0 %1642
      %1646 = vset.pattern.permute.xlu0 0
      %1647 = vperm.xlu0 %1646, %v1549
      %v1648 = vpop.permute.xlu0 %1647
      %1651 = vset.pattern.permute.xlu0 0
      %1652 = vperm.xlu0 %1651, %v1550
      %v1653 = vpop.permute.xlu0 %1652
      %1656 = vset.pattern.permute.xlu0 0
      %1657 = vperm.xlu0 %1656, %v1551
      %v1658 = vpop.permute.xlu0 %1657
      %1661 = vset.pattern.permute.xlu0 0
      %1662 = vperm.xlu0 %1661, %v1552
      %v1663 = vpop.permute.xlu0 %1662
      %1666 = vset.pattern.permute.xlu0 0
      %1667 = vperm.xlu0 %1666, %v1553
      %v1668 = vpop.permute.xlu0 %1667
      %1671 = vset.pattern.permute.xlu0 0
      %1672 = vperm.xlu0 %1671, %v1554
      %v1673 = vpop.permute.xlu0 %1672
      %1676 = vset.pattern.permute.xlu0 0
      %1677 = vperm.xlu0 %1676, %v1555
      %v1678 = vpop.permute.xlu0 %1677
      %1681 = vset.pattern.permute.xlu0 0
      %1682 = vperm.xlu0 %1681, %v1556
      %v1683 = vpop.permute.xlu0 %1682
      %1686 = vset.pattern.permute.xlu0 0
      %1687 = vperm.xlu0 %1686, %v1557
      %v1688 = vpop.permute.xlu0 %1687
      %1691 = vset.pattern.permute.xlu0 0
      %1692 = vperm.xlu0 %1691, %v1558
      %v1693 = vpop.permute.xlu0 %1692
      %1696 = vset.pattern.permute.xlu0 0
      %1697 = vperm.xlu0 %1696, %v1559
      %v1698 = vpop.permute.xlu0 %1697
      %1701 = vset.pattern.permute.xlu0 0
      %1702 = vperm.xlu0 %1701, %v1560
      %v1703 = vpop.permute.xlu0 %1702
      %1706 = vset.pattern.permute.xlu0 0
      %1707 = vperm.xlu0 %1706, %v1561
      %v1708 = vpop.permute.xlu0 %1707
      %1711 = vset.pattern.permute.xlu0 0
      %1712 = vperm.xlu0 %1711, %v1562
      %v1713 = vpop.permute.xlu0 %1712
      %1716 = vset.pattern.permute.xlu0 0
      %1717 = vperm.xlu0 %1716, %v1563
      %v1718 = vpop.permute.xlu0 %1717
      %1721 = vset.pattern.permute.xlu0 0
      %1722 = vperm.xlu0 %1721, %v1564
      %v1723 = vpop.permute.xlu0 %1722
      %v1725 = vadd.f32 %v1469, %v1568
      %v1726 = vadd.f32 %v1470, %v1568
      %v1727 = vadd.f32 %v1471, %v1573
      %v1728 = vadd.f32 %v1472, %v1573
      %v1729 = vadd.f32 %v1473, %v1578
      %v1730 = vadd.f32 %v1474, %v1578
      %v1731 = vadd.f32 %v1475, %v1583
      %v1732 = vadd.f32 %v1476, %v1583
      %v1733 = vadd.f32 %v1477, %v1588
      %v1734 = vadd.f32 %v1478, %v1588
      %v1735 = vadd.f32 %v1479, %v1593
      %v1736 = vadd.f32 %v1480, %v1593
      %v1737 = vadd.f32 %v1481, %v1598
      %v1738 = vadd.f32 %v1482, %v1598
      %v1739 = vadd.f32 %v1483, %v1603
      %v1740 = vadd.f32 %v1484, %v1603
      %v1741 = vadd.f32 %v1485, %v1608
      %v1742 = vadd.f32 %v1486, %v1608
      %v1743 = vadd.f32 %v1487, %v1613
      %v1744 = vadd.f32 %v1488, %v1613
      %v1745 = vadd.f32 %v1489, %v1618
      %v1746 = vadd.f32 %v1490, %v1618
      %v1747 = vadd.f32 %v1491, %v1623
      %v1748 = vadd.f32 %v1492, %v1623
      %v1749 = vadd.f32 %v1493, %v1628
      %v1750 = vadd.f32 %v1494, %v1628
      %v1751 = vadd.f32 %v1495, %v1633
      %v1752 = vadd.f32 %v1496, %v1633
      %v1753 = vadd.f32 %v1497, %v1638
      %v1754 = vadd.f32 %v1498, %v1638
      %v1755 = vadd.f32 %v1499, %v1643
      %v1756 = vadd.f32 %v1500, %v1643
      %v1757 = vadd.f32 %v1501, %v1648
      %v1758 = vadd.f32 %v1502, %v1648
      %v1759 = vadd.f32 %v1503, %v1653
      %v1760 = vadd.f32 %v1504, %v1653
      %v1761 = vadd.f32 %v1505, %v1658
      %v1762 = vadd.f32 %v1506, %v1658
      %v1763 = vadd.f32 %v1507, %v1663
      %v1764 = vadd.f32 %v1508, %v1663
      %v1765 = vadd.f32 %v1509, %v1668
      %v1766 = vadd.f32 %v1510, %v1668
      %v1767 = vadd.f32 %v1511, %v1673
      %v1768 = vadd.f32 %v1512, %v1673
      %v1769 = vadd.f32 %v1513, %v1678
      %v1770 = vadd.f32 %v1514, %v1678
      %v1771 = vadd.f32 %v1515, %v1683
      %v1772 = vadd.f32 %v1516, %v1683
      %v1773 = vadd.f32 %v1517, %v1688
      %v1774 = vadd.f32 %v1518, %v1688
      %v1775 = vadd.f32 %v1519, %v1693
      %v1776 = vadd.f32 %v1520, %v1693
      %v1777 = vadd.f32 %v1521, %v1698
      %v1778 = vadd.f32 %v1522, %v1698
      %v1779 = vadd.f32 %v1523, %v1703
      %v1780 = vadd.f32 %v1524, %v1703
      %v1781 = vadd.f32 %v1525, %v1708
      %v1782 = vadd.f32 %v1526, %v1708
      %v1783 = vadd.f32 %v1527, %v1713
      %v1784 = vadd.f32 %v1528, %v1713
      %v1785 = vadd.f32 %v1529, %v1718
      %v1786 = vadd.f32 %v1530, %v1718
      %v1787 = vadd.f32 %v1531, %v1723
      %v1788 = vadd.f32 %v1532, %v1723
      %1789 = vst [vmem:[#allocation3] sm:$0xff] 0.0
      %1790 = vst [vmem:[#allocation3 + $0x8] sm:$0xff] 0.0
      %1791 = vst [vmem:[#allocation3 + $0x10] sm:$0xff] 0.0
      %1792 = vst [vmem:[#allocation3 + $0x18] sm:$0xff] 0.0
      %1793 = vst [vmem:[#allocation3 + $0x20] sm:$0xff] 0.0
      %1794 = vst [vmem:[#allocation3 + $0x28] sm:$0xff] 0.0
      %1795 = vst [vmem:[#allocation3 + $0x30] sm:$0xff] 0.0
      %1796 = vst [vmem:[#allocation3 + $0x38] sm:$0xff] 0.0
      %vm1797 = vcmask 130048
      %1798 = vst.msk [vmem:[#allocation3 + $0x40] sm:$0xff] %vm1797, 0.0
      %1799 = vst [vmem:[#allocation3 + $0x48] sm:$0xff] 0.0
      %1800 = vst [vmem:[#allocation3 + $0x50] sm:$0xff] 0.0
      %1801 = vst [vmem:[#allocation3 + $0x58] sm:$0xff] 0.0
      %1802 = vst [vmem:[#allocation3 + $0x60] sm:$0xff] 0.0
      %1803 = vst [vmem:[#allocation3 + $0x68] sm:$0xff] 0.0
      %1804 = vst [vmem:[#allocation3 + $0x70] sm:$0xff] 0.0
      %1805 = vst [vmem:[#allocation3 + $0x78] sm:$0xff] 0.0
      %1806 = vst [vmem:[#allocation3 + $0x80] sm:$0xff] 0.0
      %1807 = vst.msk [vmem:[#allocation3 + $0x88] sm:$0xff] %vm1797, 0.0
      %v1808 = vmax.f32 %v1725, %v1729
      %v1809 = vmax.f32 %v1726, %v1730
      %v1810 = vmax.f32 %v1727, %v1731
      %v1811 = vmax.f32 %v1728, %v1732
      %v1812 = vmax.f32 %v1733, %v1737
      %v1813 = vmax.f32 %v1734, %v1738
      %v1814 = vmax.f32 %v1735, %v1739
      %v1815 = vmax.f32 %v1736, %v1740
      %v1816 = vmax.f32 %v1808, %v1812
      %v1817 = vmax.f32 %v1809, %v1813
      %v1818 = vmax.f32 %v1810, %v1814
      %v1819 = vmax.f32 %v1811, %v1815
      %1820 = vst [vmem:[#allocation3] sm:$0xff] %v1816
      %1821 = vst [vmem:[#allocation3 + $0x8] sm:$0xff] %v1817
      %1822 = vst [vmem:[#allocation3 + $0x48] sm:$0xff] %v1818
      %1823 = vst [vmem:[#allocation3 + $0x50] sm:$0xff] %v1819
      %v1824 = vmax.f32 %v1741, %v1745
      %v1825 = vmax.f32 %v1742, %v1746
      %v1826 = vmax.f32 %v1743, %v1747
      %v1827 = vmax.f32 %v1744, %v1748
      %v1828 = vmax.f32 %v1749, %v1753
      %v1829 = vmax.f32 %v1750, %v1754
      %v1830 = vmax.f32 %v1751, %v1755
      %v1831 = vmax.f32 %v1752, %v1756
      %v1832 = vmax.f32 %v1824, %v1828
      %v1833 = vmax.f32 %v1825, %v1829
      %v1834 = vmax.f32 %v1826, %v1830
      %v1835 = vmax.f32 %v1827, %v1831
      %1836 = vst [vmem:[#allocation3 + $0x10] sm:$0xff] %v1832
      %1837 = vst [vmem:[#allocation3 + $0x18] sm:$0xff] %v1833
      %1838 = vst [vmem:[#allocation3 + $0x58] sm:$0xff] %v1834
      %1839 = vst [vmem:[#allocation3 + $0x60] sm:$0xff] %v1835
      %v1840 = vmax.f32 %v1757, %v1761
      %v1841 = vmax.f32 %v1758, %v1762
      %v1842 = vmax.f32 %v1759, %v1763
      %v1843 = vmax.f32 %v1760, %v1764
      %v1844 = vmax.f32 %v1765, %v1769
      %v1845 = vmax.f32 %v1766, %v1770
      %v1846 = vmax.f32 %v1767, %v1771
      %v1847 = vmax.f32 %v1768, %v1772
      %v1848 = vmax.f32 %v1840, %v1844
      %v1849 = vmax.f32 %v1841, %v1845
      %v1850 = vmax.f32 %v1842, %v1846
      %v1851 = vmax.f32 %v1843, %v1847
      %1852 = vst [vmem:[#allocation3 + $0x20] sm:$0xff] %v1848
      %1853 = vst [vmem:[#allocation3 + $0x28] sm:$0xff] %v1849
      %1854 = vst [vmem:[#allocation3 + $0x68] sm:$0xff] %v1850
      %1855 = vst [vmem:[#allocation3 + $0x70] sm:$0xff] %v1851
      %v1856 = vmax.f32 %v1773, %v1777
      %v1857 = vmax.f32 %v1774, %v1778
      %v1858 = vmax.f32 %v1775, %v1779
      %v1859 = vmax.f32 %v1776, %v1780
      %v1860 = vmax.f32 %v1781, %v1785
      %v1861 = vmax.f32 %v1782, %v1786
      %v1862 = vmax.f32 %v1783, %v1787
      %v1863 = vmax.f32 %v1784, %v1788
      %v1864 = vmax.f32 %v1856, %v1860
      %v1865 = vmax.f32 %v1857, %v1861
      %v1866 = vmax.f32 %v1858, %v1862
      %v1867 = vmax.f32 %v1859, %v1863
      %1868 = vst [vmem:[#allocation3 + $0x30] sm:$0xff] %v1864
      %1869 = vst [vmem:[#allocation3 + $0x38] sm:$0xff] %v1865
      %1870 = vst [vmem:[#allocation3 + $0x78] sm:$0xff] %v1866
      %1871 = vst [vmem:[#allocation3 + $0x80] sm:$0xff] %v1867
      %v1872 = vld [vmem:[#allocation3] sm:$0xff]
      %v1873 = vld [vmem:[#allocation3 + $0x8] sm:$0xff]
      %v1874 = vld [vmem:[#allocation3 + $0x48] sm:$0xff]
      %v1875 = vld [vmem:[#allocation3 + $0x50] sm:$0xff]
      %1876 = vst [vmem:[#allocation4] sm:$0xff] %v1872
      %1877 = vst [vmem:[#allocation4 + $0x8] sm:$0xff] %v1873
      %1878 = vst [vmem:[#allocation4 + $0x10] sm:$0xff] %v1874
      %1879 = vst [vmem:[#allocation4 + $0x18] sm:$0xff] %v1875
      %v1880 = vld [vmem:[#allocation3 + $0x10] sm:$0xff]
      %v1881 = vld [vmem:[#allocation3 + $0x18] sm:$0xff]
      %v1882 = vld [vmem:[#allocation3 + $0x58] sm:$0xff]
      %v1883 = vld [vmem:[#allocation3 + $0x60] sm:$0xff]
      %1884 = vst [vmem:[#allocation4 + $0x20] sm:$0xff] %v1880
      %1885 = vst [vmem:[#allocation4 + $0x28] sm:$0xff] %v1881
      %1886 = vst [vmem:[#allocation4 + $0x30] sm:$0xff] %v1882
      %1887 = vst [vmem:[#allocation4 + $0x38] sm:$0xff] %v1883
      %v1888 = vld [vmem:[#allocation3] sm:$0xff]
      %v1889 = vld [vmem:[#allocation3 + $0x8] sm:$0xff]
      %v1890 = vld [vmem:[#allocation3 + $0x10] sm:$0xff]
      %v1891 = vld [vmem:[#allocation3 + $0x48] sm:$0xff]
      %v1892 = vld [vmem:[#allocation3 + $0x50] sm:$0xff]
      %v1893 = vld [vmem:[#allocation3 + $0x58] sm:$0xff]
      %1900 = vrot.lane.b32.xlu0 %v1888, 127
      %v1901 = vpop.permute.xlu0 %1900
      %1902 = vrot.lane.b32.xlu0 %v1889, 127
      %v1903 = vpop.permute.xlu0 %1902
      %1904 = vrot.lane.b32.xlu0 %v1890, 127
      %v1905 = vpop.permute.xlu0 %1904
      %1906 = vrot.lane.b32.xlu0 %v1891, 127
      %v1907 = vpop.permute.xlu0 %1906
      %1908 = vrot.lane.b32.xlu0 %v1892, 127
      %v1909 = vpop.permute.xlu0 %1908
      %1910 = vrot.lane.b32.xlu0 %v1893, 127
      %v1911 = vpop.permute.xlu0 %1910
      %v1912 = vsel %vm360, %v1901, %v1903
      %v1913 = vsel %vm360, %v1903, %v1905
      %v1914 = vsel %vm360, %v1907, %v1909
      %v1915 = vsel %vm360, %v1909, %v1911
      %1920 = vst [vmem:[#allocation4 + $0x40] sm:$0xff] %v1912
      %1921 = vst [vmem:[#allocation4 + $0x48] sm:$0xff] %v1913
      %1922 = vst [vmem:[#allocation4 + $0x50] sm:$0xff] %v1914
      %1923 = vst [vmem:[#allocation4 + $0x58] sm:$0xff] %v1915
      %v1924 = vld [vmem:[#allocation3 + $0x10] sm:$0xff]
      %v1925 = vld [vmem:[#allocation3 + $0x18] sm:$0xff]
      %v1926 = vld [vmem:[#allocation3 + $0x20] sm:$0xff]
      %v1927 = vld [vmem:[#allocation3 + $0x58] sm:$0xff]
      %v1928 = vld [vmem:[#allocation3 + $0x60] sm:$0xff]
      %v1929 = vld [vmem:[#allocation3 + $0x68] sm:$0xff]
      %1936 = vrot.lane.b32.xlu0 %v1924, 127
      %v1937 = vpop.permute.xlu0 %1936
      %1938 = vrot.lane.b32.xlu0 %v1925, 127
      %v1939 = vpop.permute.xlu0 %1938
      %1940 = vrot.lane.b32.xlu0 %v1926, 127
      %v1941 = vpop.permute.xlu0 %1940
      %1942 = vrot.lane.b32.xlu0 %v1927, 127
      %v1943 = vpop.permute.xlu0 %1942
      %1944 = vrot.lane.b32.xlu0 %v1928, 127
      %v1945 = vpop.permute.xlu0 %1944
      %1946 = vrot.lane.b32.xlu0 %v1929, 127
      %v1947 = vpop.permute.xlu0 %1946
      %v1948 = vsel %vm360, %v1937, %v1939
      %v1949 = vsel %vm360, %v1939, %v1941
      %v1950 = vsel %vm360, %v1943, %v1945
      %v1951 = vsel %vm360, %v1945, %v1947
      %1956 = vst [vmem:[#allocation4 + $0x60] sm:$0xff] %v1948
      %1957 = vst [vmem:[#allocation4 + $0x68] sm:$0xff] %v1949
      %1958 = vst [vmem:[#allocation4 + $0x70] sm:$0xff] %v1950
      %1959 = vst [vmem:[#allocation4 + $0x78] sm:$0xff] %v1951
      %v1960 = vld [vmem:[#allocation3 + $0x20] sm:$0xff]
      %v1961 = vld [vmem:[#allocation3 + $0x28] sm:$0xff]
      %v1962 = vld [vmem:[#allocation3 + $0x68] sm:$0xff]
      %v1963 = vld [vmem:[#allocation3 + $0x70] sm:$0xff]
      %1964 = vst [vmem:[#allocation4 + $0x80] sm:$0xff] %v1960
      %1965 = vst [vmem:[#allocation4 + $0x88] sm:$0xff] %v1961
      %1966 = vst [vmem:[#allocation4 + $0x90] sm:$0xff] %v1962
      %1967 = vst [vmem:[#allocation4 + $0x98] sm:$0xff] %v1963
      %v1968 = vld [vmem:[#allocation3 + $0x30] sm:$0xff]
      %v1969 = vld [vmem:[#allocation3 + $0x38] sm:$0xff]
      %v1970 = vld [vmem:[#allocation3 + $0x78] sm:$0xff]
      %v1971 = vld [vmem:[#allocation3 + $0x80] sm:$0xff]
      %1972 = vst [vmem:[#allocation4 + $0xa0] sm:$0xff] %v1968
      %1973 = vst [vmem:[#allocation4 + $0xa8] sm:$0xff] %v1969
      %1974 = vst [vmem:[#allocation4 + $0xb0] sm:$0xff] %v1970
      %1975 = vst [vmem:[#allocation4 + $0xb8] sm:$0xff] %v1971
      %v1976 = vld [vmem:[#allocation3 + $0x20] sm:$0xff]
      %v1977 = vld [vmem:[#allocation3 + $0x28] sm:$0xff]
      %v1978 = vld [vmem:[#allocation3 + $0x30] sm:$0xff]
      %v1979 = vld [vmem:[#allocation3 + $0x68] sm:$0xff]
      %v1980 = vld [vmem:[#allocation3 + $0x70] sm:$0xff]
      %v1981 = vld [vmem:[#allocation3 + $0x78] sm:$0xff]
      %1988 = vrot.lane.b32.xlu0 %v1976, 127
      %v1989 = vpop.permute.xlu0 %1988
      %1990 = vrot.lane.b32.xlu0 %v1977, 127
      %v1991 = vpop.permute.xlu0 %1990
      %1992 = vrot.lane.b32.xlu0 %v1978, 127
      %v1993 = vpop.permute.xlu0 %1992
      %1994 = vrot.lane.b32.xlu0 %v1979, 127
      %v1995 = vpop.permute.xlu0 %1994
      %1996 = vrot.lane.b32.xlu0 %v1980, 127
      %v1997 = vpop.permute.xlu0 %1996
      %1998 = vrot.lane.b32.xlu0 %v1981, 127
      %v1999 = vpop.permute.xlu0 %1998
      %v2000 = vsel %vm360, %v1989, %v1991
      %v2001 = vsel %vm360, %v1991, %v1993
      %v2002 = vsel %vm360, %v1995, %v1997
      %v2003 = vsel %vm360, %v1997, %v1999
      %2008 = vst [vmem:[#allocation4 + $0xc0] sm:$0xff] %v2000
      %2009 = vst [vmem:[#allocation4 + $0xc8] sm:$0xff] %v2001
      %2010 = vst [vmem:[#allocation4 + $0xd0] sm:$0xff] %v2002
      %2011 = vst [vmem:[#allocation4 + $0xd8] sm:$0xff] %v2003
      %v2012 = vld [vmem:[#allocation3 + $0x30] sm:$0xff]
      %v2013 = vld [vmem:[#allocation3 + $0x38] sm:$0xff]
      %v2014 = vld [vmem:[#allocation3 + $0x40] sm:$0xff]
      %v2015 = vld [vmem:[#allocation3 + $0x78] sm:$0xff]
      %v2016 = vld [vmem:[#allocation3 + $0x80] sm:$0xff]
      %v2017 = vld [vmem:[#allocation3 + $0x88] sm:$0xff]
      %2024 = vrot.lane.b32.xlu0 %v2012, 127
      %v2025 = vpop.permute.xlu0 %2024
      %2026 = vrot.lane.b32.xlu0 %v2013, 127
      %v2027 = vpop.permute.xlu0 %2026
      %2028 = vrot.lane.b32.xlu0 %v2014, 127
      %v2029 = vpop.permute.xlu0 %2028
      %2030 = vrot.lane.b32.xlu0 %v2015, 127
      %v2031 = vpop.permute.xlu0 %2030
      %2032 = vrot.lane.b32.xlu0 %v2016, 127
      %v2033 = vpop.permute.xlu0 %2032
      %2034 = vrot.lane.b32.xlu0 %v2017, 127
      %v2035 = vpop.permute.xlu0 %2034
      %v2036 = vsel %vm360, %v2025, %v2027
      %v2037 = vsel %vm360, %v2027, %v2029
      %v2038 = vsel %vm360, %v2031, %v2033
      %v2039 = vsel %vm360, %v2033, %v2035
      %2044 = vst [vmem:[#allocation4 + $0xe0] sm:$0xff] %v2036
      %2045 = vst [vmem:[#allocation4 + $0xe8] sm:$0xff] %v2037
      %2046 = vst [vmem:[#allocation4 + $0xf0] sm:$0xff] %v2038
      %2047 = vst [vmem:[#allocation4 + $0xf8] sm:$0xff] %v2039
      %v2048 = vld [vmem:[#allocation3] sm:$0xff]
      %v2049 = vld [vmem:[#allocation3 + $0x8] sm:$0xff]
      %v2050 = vld [vmem:[#allocation3 + $0x10] sm:$0xff]
      %v2051 = vld [vmem:[#allocation3 + $0x48] sm:$0xff]
      %v2052 = vld [vmem:[#allocation3 + $0x50] sm:$0xff]
      %v2053 = vld [vmem:[#allocation3 + $0x58] sm:$0xff]
      %2060 = vrot.lane.b32.xlu0 %v2048, 120
      %v2061 = vpop.permute.xlu0 %2060
      %2062 = vrot.lane.b32.xlu0 %v2049, 120
      %v2063 = vpop.permute.xlu0 %2062
      %2064 = vrot.lane.b32.xlu0 %v2050, 120
      %v2065 = vpop.permute.xlu0 %2064
      %2066 = vrot.lane.b32.xlu0 %v2051, 120
      %v2067 = vpop.permute.xlu0 %2066
      %2068 = vrot.lane.b32.xlu0 %v2052, 120
      %v2069 = vpop.permute.xlu0 %2068
      %2070 = vrot.lane.b32.xlu0 %v2053, 120
      %v2071 = vpop.permute.xlu0 %2070
      %v2072 = vsel %vm501, %v2061, %v2063
      %v2073 = vsel %vm501, %v2063, %v2065
      %v2074 = vsel %vm501, %v2067, %v2069
      %v2075 = vsel %vm501, %v2069, %v2071
      %2080 = vst [vmem:[#allocation4 + $0x100] sm:$0xff] %v2072
      %2081 = vst [vmem:[#allocation4 + $0x108] sm:$0xff] %v2073
      %2082 = vst [vmem:[#allocation4 + $0x110] sm:$0xff] %v2074
      %2083 = vst [vmem:[#allocation4 + $0x118] sm:$0xff] %v2075
      %v2084 = vld [vmem:[#allocation3 + $0x10] sm:$0xff]
      %v2085 = vld [vmem:[#allocation3 + $0x18] sm:$0xff]
      %v2086 = vld [vmem:[#allocation3 + $0x20] sm:$0xff]
      %v2087 = vld [vmem:[#allocation3 + $0x58] sm:$0xff]
      %v2088 = vld [vmem:[#allocation3 + $0x60] sm:$0xff]
      %v2089 = vld [vmem:[#allocation3 + $0x68] sm:$0xff]
      %2096 = vrot.lane.b32.xlu0 %v2084, 120
      %v2097 = vpop.permute.xlu0 %2096
      %2098 = vrot.lane.b32.xlu0 %v2085, 120
      %v2099 = vpop.permute.xlu0 %2098
      %2100 = vrot.lane.b32.xlu0 %v2086, 120
      %v2101 = vpop.permute.xlu0 %2100
      %2102 = vrot.lane.b32.xlu0 %v2087, 120
      %v2103 = vpop.permute.xlu0 %2102
      %2104 = vrot.lane.b32.xlu0 %v2088, 120
      %v2105 = vpop.permute.xlu0 %2104
      %2106 = vrot.lane.b32.xlu0 %v2089, 120
      %v2107 = vpop.permute.xlu0 %2106
      %v2108 = vsel %vm501, %v2097, %v2099
      %v2109 = vsel %vm501, %v2099, %v2101
      %v2110 = vsel %vm501, %v2103, %v2105
      %v2111 = vsel %vm501, %v2105, %v2107
      %2116 = vst [vmem:[#allocation4 + $0x120] sm:$0xff] %v2108
      %2117 = vst [vmem:[#allocation4 + $0x128] sm:$0xff] %v2109
      %2118 = vst [vmem:[#allocation4 + $0x130] sm:$0xff] %v2110
      %2119 = vst [vmem:[#allocation4 + $0x138] sm:$0xff] %v2111
      %v2120 = vld [vmem:[#allocation3] sm:$0xff]
      %v2121 = vld [vmem:[#allocation3 + $0x8] sm:$0xff]
      %v2122 = vld [vmem:[#allocation3 + $0x10] sm:$0xff]
      %v2123 = vld [vmem:[#allocation3 + $0x48] sm:$0xff]
      %v2124 = vld [vmem:[#allocation3 + $0x50] sm:$0xff]
      %v2125 = vld [vmem:[#allocation3 + $0x58] sm:$0xff]
      %2132 = vrot.lane.b32.xlu0 %v2120, 119
      %v2133 = vpop.permute.xlu0 %2132
      %2134 = vrot.lane.b32.xlu0 %v2121, 119
      %v2135 = vpop.permute.xlu0 %2134
      %2136 = vrot.lane.b32.xlu0 %v2122, 119
      %v2137 = vpop.permute.xlu0 %2136
      %2138 = vrot.lane.b32.xlu0 %v2123, 119
      %v2139 = vpop.permute.xlu0 %2138
      %2140 = vrot.lane.b32.xlu0 %v2124, 119
      %v2141 = vpop.permute.xlu0 %2140
      %2142 = vrot.lane.b32.xlu0 %v2125, 119
      %v2143 = vpop.permute.xlu0 %2142
      %v2144 = vsel %vm542, %v2133, %v2135
      %v2145 = vsel %vm542, %v2135, %v2137
      %v2146 = vsel %vm542, %v2139, %v2141
      %v2147 = vsel %vm542, %v2141, %v2143
      %2152 = vst [vmem:[#allocation4 + $0x140] sm:$0xff] %v2144
      %2153 = vst [vmem:[#allocation4 + $0x148] sm:$0xff] %v2145
      %2154 = vst [vmem:[#allocation4 + $0x150] sm:$0xff] %v2146
      %2155 = vst [vmem:[#allocation4 + $0x158] sm:$0xff] %v2147
      %v2156 = vld [vmem:[#allocation3 + $0x10] sm:$0xff]
      %v2157 = vld [vmem:[#allocation3 + $0x18] sm:$0xff]
      %v2158 = vld [vmem:[#allocation3 + $0x20] sm:$0xff]
      %v2159 = vld [vmem:[#allocation3 + $0x58] sm:$0xff]
      %v2160 = vld [vmem:[#allocation3 + $0x60] sm:$0xff]
      %v2161 = vld [vmem:[#allocation3 + $0x68] sm:$0xff]
      %2168 = vrot.lane.b32.xlu0 %v2156, 119
      %v2169 = vpop.permute.xlu0 %2168
      %2170 = vrot.lane.b32.xlu0 %v2157, 119
      %v2171 = vpop.permute.xlu0 %2170
      %2172 = vrot.lane.b32.xlu0 %v2158, 119
      %v2173 = vpop.permute.xlu0 %2172
      %2174 = vrot.lane.b32.xlu0 %v2159, 119
      %v2175 = vpop.permute.xlu0 %2174
      %2176 = vrot.lane.b32.xlu0 %v2160, 119
      %v2177 = vpop.permute.xlu0 %2176
      %2178 = vrot.lane.b32.xlu0 %v2161, 119
      %v2179 = vpop.permute.xlu0 %2178
      %v2180 = vsel %vm542, %v2169, %v2171
      %v2181 = vsel %vm542, %v2171, %v2173
      %v2182 = vsel %vm542, %v2175, %v2177
      %v2183 = vsel %vm542, %v2177, %v2179
      %2188 = vst [vmem:[#allocation4 + $0x160] sm:$0xff] %v2180
      %2189 = vst [vmem:[#allocation4 + $0x168] sm:$0xff] %v2181
      %2190 = vst [vmem:[#allocation4 + $0x170] sm:$0xff] %v2182
      %2191 = vst [vmem:[#allocation4 + $0x178] sm:$0xff] %v2183
      %v2192 = vld [vmem:[#allocation3 + $0x20] sm:$0xff]
      %v2193 = vld [vmem:[#allocation3 + $0x28] sm:$0xff]
      %v2194 = vld [vmem:[#allocation3 + $0x30] sm:$0xff]
      %v2195 = vld [vmem:[#allocation3 + $0x68] sm:$0xff]
      %v2196 = vld [vmem:[#allocation3 + $0x70] sm:$0xff]
      %v2197 = vld [vmem:[#allocation3 + $0x78] sm:$0xff]
      %2204 = vrot.lane.b32.xlu0 %v2192, 120
      %v2205 = vpop.permute.xlu0 %2204
      %2206 = vrot.lane.b32.xlu0 %v2193, 120
      %v2207 = vpop.permute.xlu0 %2206
      %2208 = vrot.lane.b32.xlu0 %v2194, 120
      %v2209 = vpop.permute.xlu0 %2208
      %2210 = vrot.lane.b32.xlu0 %v2195, 120
      %v2211 = vpop.permute.xlu0 %2210
      %2212 = vrot.lane.b32.xlu0 %v2196, 120
      %v2213 = vpop.permute.xlu0 %2212
      %2214 = vrot.lane.b32.xlu0 %v2197, 120
      %v2215 = vpop.permute.xlu0 %2214
      %v2216 = vsel %vm501, %v2205, %v2207
      %v2217 = vsel %vm501, %v2207, %v2209
      %v2218 = vsel %vm501, %v2211, %v2213
      %v2219 = vsel %vm501, %v2213, %v2215
      %2224 = vst [vmem:[#allocation4 + $0x180] sm:$0xff] %v2216
      %2225 = vst [vmem:[#allocation4 + $0x188] sm:$0xff] %v2217
      %2226 = vst [vmem:[#allocation4 + $0x190] sm:$0xff] %v2218
      %2227 = vst [vmem:[#allocation4 + $0x198] sm:$0xff] %v2219
      %v2228 = vld [vmem:[#allocation3 + $0x30] sm:$0xff]
      %v2229 = vld [vmem:[#allocation3 + $0x38] sm:$0xff]
      %v2230 = vld [vmem:[#allocation3 + $0x40] sm:$0xff]
      %v2231 = vld [vmem:[#allocation3 + $0x78] sm:$0xff]
      %v2232 = vld [vmem:[#allocation3 + $0x80] sm:$0xff]
      %v2233 = vld [vmem:[#allocation3 + $0x88] sm:$0xff]
      %2240 = vrot.lane.b32.xlu0 %v2228, 120
      %v2241 = vpop.permute.xlu0 %2240
      %2242 = vrot.lane.b32.xlu0 %v2229, 120
      %v2243 = vpop.permute.xlu0 %2242
      %2244 = vrot.lane.b32.xlu0 %v2230, 120
      %v2245 = vpop.permute.xlu0 %2244
      %2246 = vrot.lane.b32.xlu0 %v2231, 120
      %v2247 = vpop.permute.xlu0 %2246
      %2248 = vrot.lane.b32.xlu0 %v2232, 120
      %v2249 = vpop.permute.xlu0 %2248
      %2250 = vrot.lane.b32.xlu0 %v2233, 120
      %v2251 = vpop.permute.xlu0 %2250
      %v2252 = vsel %vm501, %v2241, %v2243
      %v2253 = vsel %vm501, %v2243, %v2245
      %v2254 = vsel %vm501, %v2247, %v2249
      %v2255 = vsel %vm501, %v2249, %v2251
      %2260 = vst [vmem:[#allocation4 + $0x1a0] sm:$0xff] %v2252
      %2261 = vst [vmem:[#allocation4 + $0x1a8] sm:$0xff] %v2253
      %2262 = vst [vmem:[#allocation4 + $0x1b0] sm:$0xff] %v2254
      %2263 = vst [vmem:[#allocation4 + $0x1b8] sm:$0xff] %v2255
      %v2264 = vld [vmem:[#allocation3 + $0x20] sm:$0xff]
      %v2265 = vld [vmem:[#allocation3 + $0x28] sm:$0xff]
      %v2266 = vld [vmem:[#allocation3 + $0x30] sm:$0xff]
      %v2267 = vld [vmem:[#allocation3 + $0x68] sm:$0xff]
      %v2268 = vld [vmem:[#allocation3 + $0x70] sm:$0xff]
      %v2269 = vld [vmem:[#allocation3 + $0x78] sm:$0xff]
      %2276 = vrot.lane.b32.xlu0 %v2264, 119
      %v2277 = vpop.permute.xlu0 %2276
      %2278 = vrot.lane.b32.xlu0 %v2265, 119
      %v2279 = vpop.permute.xlu0 %2278
      %2280 = vrot.lane.b32.xlu0 %v2266, 119
      %v2281 = vpop.permute.xlu0 %2280
      %2282 = vrot.lane.b32.xlu0 %v2267, 119
      %v2283 = vpop.permute.xlu0 %2282
      %2284 = vrot.lane.b32.xlu0 %v2268, 119
      %v2285 = vpop.permute.xlu0 %2284
      %2286 = vrot.lane.b32.xlu0 %v2269, 119
      %v2287 = vpop.permute.xlu0 %2286
      %v2288 = vsel %vm542, %v2277, %v2279
      %v2289 = vsel %vm542, %v2279, %v2281
      %v2290 = vsel %vm542, %v2283, %v2285
      %v2291 = vsel %vm542, %v2285, %v2287
      %2296 = vst [vmem:[#allocation4 + $0x1c0] sm:$0xff] %v2288
      %2297 = vst [vmem:[#allocation4 + $0x1c8] sm:$0xff] %v2289
      %2298 = vst [vmem:[#allocation4 + $0x1d0] sm:$0xff] %v2290
      %2299 = vst [vmem:[#allocation4 + $0x1d8] sm:$0xff] %v2291
      %v2300 = vld [vmem:[#allocation3 + $0x30] sm:$0xff]
      %v2301 = vld [vmem:[#allocation3 + $0x38] sm:$0xff]
      %v2302 = vld [vmem:[#allocation3 + $0x40] sm:$0xff]
      %v2303 = vld [vmem:[#allocation3 + $0x78] sm:$0xff]
      %v2304 = vld [vmem:[#allocation3 + $0x80] sm:$0xff]
      %v2305 = vld [vmem:[#allocation3 + $0x88] sm:$0xff]
      %2312 = vrot.lane.b32.xlu0 %v2300, 119
      %v2313 = vpop.permute.xlu0 %2312
      %2314 = vrot.lane.b32.xlu0 %v2301, 119
      %v2315 = vpop.permute.xlu0 %2314
      %2316 = vrot.lane.b32.xlu0 %v2302, 119
      %v2317 = vpop.permute.xlu0 %2316
      %2318 = vrot.lane.b32.xlu0 %v2303, 119
      %v2319 = vpop.permute.xlu0 %2318
      %2320 = vrot.lane.b32.xlu0 %v2304, 119
      %v2321 = vpop.permute.xlu0 %2320
      %2322 = vrot.lane.b32.xlu0 %v2305, 119
      %v2323 = vpop.permute.xlu0 %2322
      %v2324 = vsel %vm542, %v2313, %v2315
      %v2325 = vsel %vm542, %v2315, %v2317
      %v2326 = vsel %vm542, %v2319, %v2321
      %v2327 = vsel %vm542, %v2321, %v2323
      %2332 = vst [vmem:[#allocation4 + $0x1e0] sm:$0xff] %v2324
      %2333 = vst [vmem:[#allocation4 + $0x1e8] sm:$0xff] %v2325
      %2334 = vst [vmem:[#allocation4 + $0x1f0] sm:$0xff] %v2326
      %2335 = vst [vmem:[#allocation4 + $0x1f8] sm:$0xff] %v2327
      %v2336 = vld [vmem:[%s5] sm:$0xff]
      %v2337 = vld [vmem:[%s5 + $0x8] sm:$0xff]
      %v2338 = vld [vmem:[%s5 + $0x10] sm:$0xff]
      %v2339 = vld [vmem:[%s5 + $0x18] sm:$0xff]
      %v2340 = vld [vmem:[%s5 + $0x20] sm:$0xff]
      %v2341 = vld [vmem:[%s5 + $0x28] sm:$0xff]
      %v2342 = vld [vmem:[%s5 + $0x30] sm:$0xff]
      %v2343 = vld [vmem:[%s5 + $0x38] sm:$0xff]
      %v2344 = vld [vmem:[%s5 + $0x40] sm:$0xff]
      %v2345 = vld [vmem:[%s5 + $0x48] sm:$0xff]
      %v2346 = vld [vmem:[%s5 + $0x50] sm:$0xff]
      %v2347 = vld [vmem:[%s5 + $0x58] sm:$0xff]
      %v2348 = vld [vmem:[%s5 + $0x60] sm:$0xff]
      %v2349 = vld [vmem:[%s5 + $0x68] sm:$0xff]
      %v2350 = vld [vmem:[%s5 + $0x70] sm:$0xff]
      %v2351 = vld [vmem:[%s5 + $0x78] sm:$0xff]
      %v2352 = vld [vmem:[%s5 + $0x80] sm:$0xff]
      %v2353 = vld [vmem:[%s5 + $0x88] sm:$0xff]
      %v2354 = vld [vmem:[%s5 + $0x90] sm:$0xff]
      %v2355 = vld [vmem:[%s5 + $0x98] sm:$0xff]
      %v2356 = vld [vmem:[%s5 + $0xa0] sm:$0xff]
      %v2357 = vld [vmem:[%s5 + $0xa8] sm:$0xff]
      %v2358 = vld [vmem:[%s5 + $0xb0] sm:$0xff]
      %v2359 = vld [vmem:[%s5 + $0xb8] sm:$0xff]
      %v2360 = vld [vmem:[%s5 + $0xc0] sm:$0xff]
      %v2361 = vld [vmem:[%s5 + $0xc8] sm:$0xff]
      %v2362 = vld [vmem:[%s5 + $0xd0] sm:$0xff]
      %v2363 = vld [vmem:[%s5 + $0xd8] sm:$0xff]
      %v2364 = vld [vmem:[%s5 + $0xe0] sm:$0xff]
      %v2365 = vld [vmem:[%s5 + $0xe8] sm:$0xff]
      %v2366 = vld [vmem:[%s5 + $0xf0] sm:$0xff]
      %v2367 = vld [vmem:[%s5 + $0xf8] sm:$0xff]
      %v2368 = vld [vmem:[#allocation4] sm:$0xff]
      %v2369 = vld [vmem:[#allocation4 + $0x8] sm:$0xff]
      %v2370 = vld [vmem:[#allocation4 + $0x10] sm:$0xff]
      %v2371 = vld [vmem:[#allocation4 + $0x18] sm:$0xff]
      %v2372 = vld [vmem:[#allocation4 + $0x20] sm:$0xff]
      %v2373 = vld [vmem:[#allocation4 + $0x28] sm:$0xff]
      %v2374 = vld [vmem:[#allocation4 + $0x30] sm:$0xff]
      %v2375 = vld [vmem:[#allocation4 + $0x38] sm:$0xff]
      %v2376 = vld [vmem:[#allocation4 + $0x40] sm:$0xff]
      %v2377 = vld [vmem:[#allocation4 + $0x48] sm:$0xff]
      %v2378 = vld [vmem:[#allocation4 + $0x50] sm:$0xff]
      %v2379 = vld [vmem:[#allocation4 + $0x58] sm:$0xff]
      %v2380 = vld [vmem:[#allocation4 + $0x60] sm:$0xff]
      %v2381 = vld [vmem:[#allocation4 + $0x68] sm:$0xff]
      %v2382 = vld [vmem:[#allocation4 + $0x70] sm:$0xff]
      %v2383 = vld [vmem:[#allocation4 + $0x78] sm:$0xff]
      %v2384 = vld [vmem:[#allocation4 + $0x80] sm:$0xff]
      %v2385 = vld [vmem:[#allocation4 + $0x88] sm:$0xff]
      %v2386 = vld [vmem:[#allocation4 + $0x90] sm:$0xff]
      %v2387 = vld [vmem:[#allocation4 + $0x98] sm:$0xff]
      %v2388 = vld [vmem:[#allocation4 + $0xa0] sm:$0xff]
      %v2389 = vld [vmem:[#allocation4 + $0xa8] sm:$0xff]
      %v2390 = vld [vmem:[#allocation4 + $0xb0] sm:$0xff]
      %v2391 = vld [vmem:[#allocation4 + $0xb8] sm:$0xff]
      %v2392 = vld [vmem:[#allocation4 + $0xc0] sm:$0xff]
      %v2393 = vld [vmem:[#allocation4 + $0xc8] sm:$0xff]
      %v2394 = vld [vmem:[#allocation4 + $0xd0] sm:$0xff]
      %v2395 = vld [vmem:[#allocation4 + $0xd8] sm:$0xff]
      %v2396 = vld [vmem:[#allocation4 + $0xe0] sm:$0xff]
      %v2397 = vld [vmem:[#allocation4 + $0xe8] sm:$0xff]
      %v2398 = vld [vmem:[#allocation4 + $0xf0] sm:$0xff]
      %v2399 = vld [vmem:[#allocation4 + $0xf8] sm:$0xff]
      %v2400 = vld [vmem:[#allocation4 + $0x100] sm:$0xff]
      %v2401 = vld [vmem:[#allocation4 + $0x108] sm:$0xff]
      %v2402 = vld [vmem:[#allocation4 + $0x110] sm:$0xff]
      %v2403 = vld [vmem:[#allocation4 + $0x118] sm:$0xff]
      %v2404 = vld [vmem:[#allocation4 + $0x120] sm:$0xff]
      %v2405 = vld [vmem:[#allocation4 + $0x128] sm:$0xff]
      %v2406 = vld [vmem:[#allocation4 + $0x130] sm:$0xff]
      %v2407 = vld [vmem:[#allocation4 + $0x138] sm:$0xff]
      %v2408 = vld [vmem:[#allocation4 + $0x140] sm:$0xff]
      %v2409 = vld [vmem:[#allocation4 + $0x148] sm:$0xff]
      %v2410 = vld [vmem:[#allocation4 + $0x150] sm:$0xff]
      %v2411 = vld [vmem:[#allocation4 + $0x158] sm:$0xff]
      %v2412 = vld [vmem:[#allocation4 + $0x160] sm:$0xff]
      %v2413 = vld [vmem:[#allocation4 + $0x168] sm:$0xff]
      %v2414 = vld [vmem:[#allocation4 + $0x170] sm:$0xff]
      %v2415 = vld [vmem:[#allocation4 + $0x178] sm:$0xff]
      %v2416 = vld [vmem:[#allocation4 + $0x180] sm:$0xff]
      %v2417 = vld [vmem:[#allocation4 + $0x188] sm:$0xff]
      %v2418 = vld [vmem:[#allocation4 + $0x190] sm:$0xff]
      %v2419 = vld [vmem:[#allocation4 + $0x198] sm:$0xff]
      %v2420 = vld [vmem:[#allocation4 + $0x1a0] sm:$0xff]
      %v2421 = vld [vmem:[#allocation4 + $0x1a8] sm:$0xff]
      %v2422 = vld [vmem:[#allocation4 + $0x1b0] sm:$0xff]
      %v2423 = vld [vmem:[#allocation4 + $0x1b8] sm:$0xff]
      %v2424 = vld [vmem:[#allocation4 + $0x1c0] sm:$0xff]
      %v2425 = vld [vmem:[#allocation4 + $0x1c8] sm:$0xff]
      %v2426 = vld [vmem:[#allocation4 + $0x1d0] sm:$0xff]
      %v2427 = vld [vmem:[#allocation4 + $0x1d8] sm:$0xff]
      %v2428 = vld [vmem:[#allocation4 + $0x1e0] sm:$0xff]
      %v2429 = vld [vmem:[#allocation4 + $0x1e8] sm:$0xff]
      %v2430 = vld [vmem:[#allocation4 + $0x1f0] sm:$0xff]
      %v2431 = vld [vmem:[#allocation4 + $0x1f8] sm:$0xff]
      %v2432 = vld [vmem:[%s6] sm:$0xff]
      %v2433 = vld [vmem:[%s6 + $0x8] sm:$0xff]
      %v2434 = vld [vmem:[%s6 + $0x10] sm:$0xff]
      %v2435 = vld [vmem:[%s6 + $0x18] sm:$0xff]
      %v2436 = vld [vmem:[%s6 + $0x20] sm:$0xff]
      %v2437 = vld [vmem:[%s6 + $0x28] sm:$0xff]
      %v2438 = vld [vmem:[%s6 + $0x30] sm:$0xff]
      %v2439 = vld [vmem:[%s6 + $0x38] sm:$0xff]
      %v2440 = vld [vmem:[%s6 + $0x40] sm:$0xff]
      %v2441 = vld [vmem:[%s6 + $0x48] sm:$0xff]
      %v2442 = vld [vmem:[%s6 + $0x50] sm:$0xff]
      %v2443 = vld [vmem:[%s6 + $0x58] sm:$0xff]
      %v2444 = vld [vmem:[%s6 + $0x60] sm:$0xff]
      %v2445 = vld [vmem:[%s6 + $0x68] sm:$0xff]
      %v2446 = vld [vmem:[%s6 + $0x70] sm:$0xff]
      %v2447 = vld [vmem:[%s6 + $0x78] sm:$0xff]
      %2449 = vset.pattern.permute.xlu0 0
      %2450 = vperm.xlu0 %2449, %v2432
      %v2451 = vpop.permute.xlu0 %2450
      %2454 = vset.pattern.permute.xlu0 0
      %2455 = vperm.xlu0 %2454, %v2433
      %v2456 = vpop.permute.xlu0 %2455
      %2459 = vset.pattern.permute.xlu0 0
      %2460 = vperm.xlu0 %2459, %v2434
      %v2461 = vpop.permute.xlu0 %2460
      %2464 = vset.pattern.permute.xlu0 0
      %2465 = vperm.xlu0 %2464, %v2435
      %v2466 = vpop.permute.xlu0 %2465
      %2469 = vset.pattern.permute.xlu0 0
      %2470 = vperm.xlu0 %2469, %v2436
      %v2471 = vpop.permute.xlu0 %2470
      %2474 = vset.pattern.permute.xlu0 0
      %2475 = vperm.xlu0 %2474, %v2437
      %v2476 = vpop.permute.xlu0 %2475
      %2479 = vset.pattern.permute.xlu0 0
      %2480 = vperm.xlu0 %2479, %v2438
      %v2481 = vpop.permute.xlu0 %2480
      %2484 = vset.pattern.permute.xlu0 0
      %2485 = vperm.xlu0 %2484, %v2439
      %v2486 = vpop.permute.xlu0 %2485
      %2489 = vset.pattern.permute.xlu0 0
      %2490 = vperm.xlu0 %2489, %v2440
      %v2491 = vpop.permute.xlu0 %2490
      %2494 = vset.pattern.permute.xlu0 0
      %2495 = vperm.xlu0 %2494, %v2441
      %v2496 = vpop.permute.xlu0 %2495
      %2499 = vset.pattern.permute.xlu0 0
      %2500 = vperm.xlu0 %2499, %v2442
      %v2501 = vpop.permute.xlu0 %2500
      %2504 = vset.pattern.permute.xlu0 0
      %2505 = vperm.xlu0 %2504, %v2443
      %v2506 = vpop.permute.xlu0 %2505
      %2509 = vset.pattern.permute.xlu0 0
      %2510 = vperm.xlu0 %2509, %v2444
      %v2511 = vpop.permute.xlu0 %2510
      %2514 = vset.pattern.permute.xlu0 0
      %2515 = vperm.xlu0 %2514, %v2445
      %v2516 = vpop.permute.xlu0 %2515
      %2519 = vset.pattern.permute.xlu0 0
      %2520 = vperm.xlu0 %2519, %v2446
      %v2521 = vpop.permute.xlu0 %2520
      %2524 = vset.pattern.permute.xlu0 0
      %2525 = vperm.xlu0 %2524, %v2447
      %v2526 = vpop.permute.xlu0 %2525
      %2528 = vmatprep.subr.mxu0 %v2399
      %2529 = vmatpush1.msra.mxu0 %v2398
      %2530 = vmatprep.subr.mxu0 %v2397
      %2531 = vmatpush1.msra.mxu0 %v2396
      %2532 = vmatprep.subr.mxu0 %v2395
      %2533 = vmatpush1.msra.mxu0 %v2394
      %2534 = vmatprep.subr.mxu0 %v2393
      %2535 = vmatpush1.msra.mxu0 %v2392
      %2536 = vmatprep.subr.mxu0 %v2391
      %2537 = vmatpush1.msra.mxu0 %v2390
      %2538 = vmatprep.subr.mxu0 %v2389
      %2539 = vmatpush1.msra.mxu0 %v2388
      %2540 = vmatprep.subr.mxu0 %v2387
      %2541 = vmatpush1.msra.mxu0 %v2386
      %2542 = vmatprep.subr.mxu0 %v2385
      %2543 = vmatpush1.msra.mxu0 %v2384
      %2544 = vmatprep.subr.mxu0 %v2383
      %2545 = vmatpush1.msra.mxu0 %v2382
      %2546 = vmatprep.subr.mxu0 %v2381
      %2547 = vmatpush1.msra.mxu0 %v2380
      %2548 = vmatprep.subr.mxu0 %v2379
      %2549 = vmatpush1.msra.mxu0 %v2378
      %2550 = vmatprep.subr.mxu0 %v2377
      %2551 = vmatpush1.msra.mxu0 %v2376
      %2552 = vmatprep.subr.mxu0 %v2375
      %2553 = vmatpush1.msra.mxu0 %v2374
      %2554 = vmatprep.subr.mxu0 %v2373
      %2555 = vmatpush1.msra.mxu0 %v2372
      %2556 = vmatprep.subr.mxu0 %v2371
      %2557 = vmatpush1.msra.mxu0 %v2370
      %2558 = vmatprep.subr.mxu0 %v2369
      %2559 = vmatpush1.msra.mxu0 %v2368
      %2560 = vmatprep.subr.mxu0 %v2431
      %2561 = vmatpush2.msra.mxu0 %v2430
      %2562 = vmatprep.subr.mxu0 %v2429
      %2563 = vmatpush2.msra.mxu0 %v2428
      %2564 = vmatprep.subr.mxu0 %v2427
      %2565 = vmatpush2.msra.mxu0 %v2426
      %2566 = vmatprep.subr.mxu0 %v2425
      %2567 = vmatpush2.msra.mxu0 %v2424
      %2568 = vmatprep.subr.mxu0 %v2423
      %2569 = vmatpush2.msra.mxu0 %v2422
      %2570 = vmatprep.subr.mxu0 %v2421
      %2571 = vmatpush2.msra.mxu0 %v2420
      %2572 = vmatprep.subr.mxu0 %v2419
      %2573 = vmatpush2.msra.mxu0 %v2418
      %2574 = vmatprep.subr.mxu0 %v2417
      %2575 = vmatpush2.msra.mxu0 %v2416
      %2576 = vmatprep.subr.mxu0 %v2415
      %2577 = vmatpush2.msra.mxu0 %v2414
      %2578 = vmatprep.subr.mxu0 %v2413
      %2579 = vmatpush2.msra.mxu0 %v2412
      %2580 = vmatprep.subr.mxu0 %v2411
      %2581 = vmatpush2.msra.mxu0 %v2410
      %2582 = vmatprep.subr.mxu0 %v2409
      %2583 = vmatpush2.msra.mxu0 %v2408
      %2584 = vmatprep.subr.mxu0 %v2407
      %2585 = vmatpush2.msra.mxu0 %v2406
      %2586 = vmatprep.subr.mxu0 %v2405
      %2587 = vmatpush2.msra.mxu0 %v2404
      %2588 = vmatprep.subr.mxu0 %v2403
      %2589 = vmatpush2.msra.mxu0 %v2402
      %2590 = vmatprep.subr.mxu0 %v2401
      %2591 = vmatpush2.msra.mxu0 %v2400
      %2592 = vmatprep.mubr.f32.mxu0 %v2337
      %2593 = vmatmul.mubr.f32.gmra.mxu0 %v2336
      %v2594 = vpop.f32.mrf.mxu0
      %v2595 = vadd.f32 %v2451, %v2594
      %v2596 = vpop.f32.mrf.mxu0
      %v2597 = vadd.f32 %v2451, %v2596
      %2598 = vmatprep.mubr.f32.mxu0 %v2339
      %2599 = vmatmul.mubr.f32.gmra.mxu0 %v2338
      %v2600 = vpop.f32.mrf.mxu0
      %v2601 = vadd.f32 %v2456, %v2600
      %v2602 = vpop.f32.mrf.mxu0
      %v2603 = vadd.f32 %v2456, %v2602
      %2604 = vmatprep.mubr.f32.mxu0 %v2341
      %2605 = vmatmul.mubr.f32.gmra.mxu0 %v2340
      %v2606 = vpop.f32.mrf.mxu0
      %v2607 = vadd.f32 %v2461, %v2606
      %v2608 = vpop.f32.mrf.mxu0
      %v2609 = vadd.f32 %v2461, %v2608
      %2610 = vmatprep.mubr.f32.mxu0 %v2343
      %2611 = vmatmul.mubr.f32.gmra.mxu0 %v2342
      %v2612 = vpop.f32.mrf.mxu0
      %v2613 = vadd.f32 %v2466, %v2612
      %v2614 = vpop.f32.mrf.mxu0
      %v2615 = vadd.f32 %v2466, %v2614
      %2616 = vmatprep.mubr.f32.mxu0 %v2345
      %2617 = vmatmul.mubr.f32.gmra.mxu0 %v2344
      %v2618 = vpop.f32.mrf.mxu0
      %v2619 = vadd.f32 %v2471, %v2618
      %v2620 = vpop.f32.mrf.mxu0
      %v2621 = vadd.f32 %v2471, %v2620
      %2622 = vmatprep.mubr.f32.mxu0 %v2347
      %2623 = vmatmul.mubr.f32.gmra.mxu0 %v2346
      %v2624 = vpop.f32.mrf.mxu0
      %v2625 = vadd.f32 %v2476, %v2624
      %v2626 = vpop.f32.mrf.mxu0
      %v2627 = vadd.f32 %v2476, %v2626
      %2628 = vmatprep.mubr.f32.mxu0 %v2349
      %2629 = vmatmul.mubr.f32.gmra.mxu0 %v2348
      %v2630 = vpop.f32.mrf.mxu0
      %v2631 = vadd.f32 %v2481, %v2630
      %v2632 = vpop.f32.mrf.mxu0
      %v2633 = vadd.f32 %v2481, %v2632
      %2634 = vmatprep.mubr.f32.mxu0 %v2351
      %2635 = vmatmul.mubr.f32.gmra.mxu0 %v2350
      %v2636 = vpop.f32.mrf.mxu0
      %v2637 = vadd.f32 %v2486, %v2636
      %v2638 = vpop.f32.mrf.mxu0
      %v2639 = vadd.f32 %v2486, %v2638
      %2640 = vmatprep.mubr.f32.mxu0 %v2353
      %2641 = vmatmul.mubr.f32.gmra.mxu0 %v2352
      %v2642 = vpop.f32.mrf.mxu0
      %v2643 = vadd.f32 %v2491, %v2642
      %v2644 = vpop.f32.mrf.mxu0
      %v2645 = vadd.f32 %v2491, %v2644
      %2646 = vmatprep.mubr.f32.mxu0 %v2355
      %2647 = vmatmul.mubr.f32.gmra.mxu0 %v2354
      %v2648 = vpop.f32.mrf.mxu0
      %v2649 = vadd.f32 %v2496, %v2648
      %v2650 = vpop.f32.mrf.mxu0
      %v2651 = vadd.f32 %v2496, %v2650
      %2652 = vmatprep.mubr.f32.mxu0 %v2357
      %2653 = vmatmul.mubr.f32.gmra.mxu0 %v2356
      %v2654 = vpop.f32.mrf.mxu0
      %v2655 = vadd.f32 %v2501, %v2654
      %v2656 = vpop.f32.mrf.mxu0
      %v2657 = vadd.f32 %v2501, %v2656
      %2658 = vmatprep.mubr.f32.mxu0 %v2359
      %2659 = vmatmul.mubr.f32.gmra.mxu0 %v2358
      %v2660 = vpop.f32.mrf.mxu0
      %v2661 = vadd.f32 %v2506, %v2660
      %v2662 = vpop.f32.mrf.mxu0
      %v2663 = vadd.f32 %v2506, %v2662
      %2664 = vmatprep.mubr.f32.mxu0 %v2361
      %2665 = vmatmul.mubr.f32.gmra.mxu0 %v2360
      %v2666 = vpop.f32.mrf.mxu0
      %v2667 = vadd.f32 %v2511, %v2666
      %v2668 = vpop.f32.mrf.mxu0
      %v2669 = vadd.f32 %v2511, %v2668
      %2670 = vmatprep.mubr.f32.mxu0 %v2363
      %2671 = vmatmul.mubr.f32.gmra.mxu0 %v2362
      %v2672 = vpop.f32.mrf.mxu0
      %v2673 = vadd.f32 %v2516, %v2672
      %v2674 = vpop.f32.mrf.mxu0
      %v2675 = vadd.f32 %v2516, %v2674
      %2676 = vmatprep.mubr.f32.mxu0 %v2365
      %2677 = vmatmul.mubr.f32.gmra.mxu0 %v2364
      %v2678 = vpop.f32.mrf.mxu0
      %v2679 = vadd.f32 %v2521, %v2678
      %v2680 = vpop.f32.mrf.mxu0
      %v2681 = vadd.f32 %v2521, %v2680
      %2682 = vmatprep.mubr.f32.mxu0 %v2367
      %2683 = vmatmul.mubr.f32.gmra.mxu0 %v2366
      %v2684 = vpop.f32.mrf.mxu0
      %v2685 = vadd.f32 %v2526, %v2684
      %v2686 = vpop.f32.mrf.mxu0
      %v2687 = vadd.f32 %v2526, %v2686
      %2688 = vdwg.mxu0
      %v2689 = vmax.f32 %v2595, 0.0
      %v2690 = vmax.f32 %v2597, 0.0
      %v2691 = vmax.f32 %v2601, 0.0
      %v2692 = vmax.f32 %v2603, 0.0
      %v2693 = vmax.f32 %v2607, 0.0
      %v2694 = vmax.f32 %v2609, 0.0
      %v2695 = vmax.f32 %v2613, 0.0
      %v2696 = vmax.f32 %v2615, 0.0
      %v2697 = vmax.f32 %v2619, 0.0
      %v2698 = vmax.f32 %v2621, 0.0
      %v2699 = vmax.f32 %v2625, 0.0
      %v2700 = vmax.f32 %v2627, 0.0
      %v2701 = vmax.f32 %v2631, 0.0
      %v2702 = vmax.f32 %v2633, 0.0
      %v2703 = vmax.f32 %v2637, 0.0
      %v2704 = vmax.f32 %v2639, 0.0
      %v2705 = vmax.f32 %v2643, 0.0
      %v2706 = vmax.f32 %v2645, 0.0
      %v2707 = vmax.f32 %v2649, 0.0
      %v2708 = vmax.f32 %v2651, 0.0
      %v2709 = vmax.f32 %v2655, 0.0
      %v2710 = vmax.f32 %v2657, 0.0
      %v2711 = vmax.f32 %v2661, 0.0
      %v2712 = vmax.f32 %v2663, 0.0
      %v2713 = vmax.f32 %v2667, 0.0
      %v2714 = vmax.f32 %v2669, 0.0
      %v2715 = vmax.f32 %v2673, 0.0
      %v2716 = vmax.f32 %v2675, 0.0
      %v2717 = vmax.f32 %v2679, 0.0
      %v2718 = vmax.f32 %v2681, 0.0
      %v2719 = vmax.f32 %v2685, 0.0
      %v2720 = vmax.f32 %v2687, 0.0
      %v2721 = vld [vmem:[%s7] sm:$0xff]
      %v2722 = vld [vmem:[%s7 + $0x8] sm:$0xff]
      %v2723 = vld [vmem:[%s7 + $0x10] sm:$0xff]
      %v2724 = vld [vmem:[%s7 + $0x18] sm:$0xff]
      %v2725 = vld [vmem:[%s7 + $0x20] sm:$0xff]
      %v2726 = vld [vmem:[%s7 + $0x28] sm:$0xff]
      %v2727 = vld [vmem:[%s7 + $0x30] sm:$0xff]
      %v2728 = vld [vmem:[%s7 + $0x38] sm:$0xff]
      %v2729 = vld [vmem:[%s7 + $0x40] sm:$0xff]
      %v2730 = vld [vmem:[%s7 + $0x48] sm:$0xff]
      %v2731 = vld [vmem:[%s7 + $0x50] sm:$0xff]
      %v2732 = vld [vmem:[%s7 + $0x58] sm:$0xff]
      %v2733 = vld [vmem:[%s7 + $0x60] sm:$0xff]
      %v2734 = vld [vmem:[%s7 + $0x68] sm:$0xff]
      %v2735 = vld [vmem:[%s7 + $0x70] sm:$0xff]
      %v2736 = vld [vmem:[%s7 + $0x78] sm:$0xff]
      %2738 = vset.pattern.permute.xlu0 0
      %2739 = vperm.xlu0 %2738, %v2721
      %v2740 = vpop.permute.xlu0 %2739
      %2743 = vset.pattern.permute.xlu0 0
      %2744 = vperm.xlu0 %2743, %v2722
      %v2745 = vpop.permute.xlu0 %2744
      %2748 = vset.pattern.permute.xlu0 0
      %2749 = vperm.xlu0 %2748, %v2723
      %v2750 = vpop.permute.xlu0 %2749
      %2753 = vset.pattern.permute.xlu0 0
      %2754 = vperm.xlu0 %2753, %v2724
      %v2755 = vpop.permute.xlu0 %2754
      %2758 = vset.pattern.permute.xlu0 0
      %2759 = vperm.xlu0 %2758, %v2725
      %v2760 = vpop.permute.xlu0 %2759
      %2763 = vset.pattern.permute.xlu0 0
      %2764 = vperm.xlu0 %2763, %v2726
      %v2765 = vpop.permute.xlu0 %2764
      %2768 = vset.pattern.permute.xlu0 0
      %2769 = vperm.xlu0 %2768, %v2727
      %v2770 = vpop.permute.xlu0 %2769
      %2773 = vset.pattern.permute.xlu0 0
      %2774 = vperm.xlu0 %2773, %v2728
      %v2775 = vpop.permute.xlu0 %2774
      %2778 = vset.pattern.permute.xlu0 0
      %2779 = vperm.xlu0 %2778, %v2729
      %v2780 = vpop.permute.xlu0 %2779
      %2783 = vset.pattern.permute.xlu0 0
      %2784 = vperm.xlu0 %2783, %v2730
      %v2785 = vpop.permute.xlu0 %2784
      %2788 = vset.pattern.permute.xlu0 0
      %2789 = vperm.xlu0 %2788, %v2731
      %v2790 = vpop.permute.xlu0 %2789
      %2793 = vset.pattern.permute.xlu0 0
      %2794 = vperm.xlu0 %2793, %v2732
      %v2795 = vpop.permute.xlu0 %2794
      %2798 = vset.pattern.permute.xlu0 0
      %2799 = vperm.xlu0 %2798, %v2733
      %v2800 = vpop.permute.xlu0 %2799
      %2803 = vset.pattern.permute.xlu0 0
      %2804 = vperm.xlu0 %2803, %v2734
      %v2805 = vpop.permute.xlu0 %2804
      %2808 = vset.pattern.permute.xlu0 0
      %2809 = vperm.xlu0 %2808, %v2735
      %v2810 = vpop.permute.xlu0 %2809
      %2813 = vset.pattern.permute.xlu0 0
      %2814 = vperm.xlu0 %2813, %v2736
      %v2815 = vpop.permute.xlu0 %2814
      %v2817 = vmul.f32 %v2689, %v2740
      %v2818 = vmul.f32 %v2690, %v2740
      %v2819 = vmul.f32 %v2691, %v2745
      %v2820 = vmul.f32 %v2692, %v2745
      %v2821 = vmul.f32 %v2693, %v2750
      %v2822 = vmul.f32 %v2694, %v2750
      %v2823 = vmul.f32 %v2695, %v2755
      %v2824 = vmul.f32 %v2696, %v2755
      %v2825 = vmul.f32 %v2697, %v2760
      %v2826 = vmul.f32 %v2698, %v2760
      %v2827 = vmul.f32 %v2699, %v2765
      %v2828 = vmul.f32 %v2700, %v2765
      %v2829 = vmul.f32 %v2701, %v2770
      %v2830 = vmul.f32 %v2702, %v2770
      %v2831 = vmul.f32 %v2703, %v2775
      %v2832 = vmul.f32 %v2704, %v2775
      %v2833 = vmul.f32 %v2705, %v2780
      %v2834 = vmul.f32 %v2706, %v2780
      %v2835 = vmul.f32 %v2707, %v2785
      %v2836 = vmul.f32 %v2708, %v2785
      %v2837 = vmul.f32 %v2709, %v2790
      %v2838 = vmul.f32 %v2710, %v2790
      %v2839 = vmul.f32 %v2711, %v2795
      %v2840 = vmul.f32 %v2712, %v2795
      %v2841 = vmul.f32 %v2713, %v2800
      %v2842 = vmul.f32 %v2714, %v2800
      %v2843 = vmul.f32 %v2715, %v2805
      %v2844 = vmul.f32 %v2716, %v2805
      %v2845 = vmul.f32 %v2717, %v2810
      %v2846 = vmul.f32 %v2718, %v2810
      %v2847 = vmul.f32 %v2719, %v2815
      %v2848 = vmul.f32 %v2720, %v2815
      %v2849 = vld [vmem:[%s8] sm:$0xff]
      %v2850 = vld [vmem:[%s8 + $0x8] sm:$0xff]
      %v2851 = vld [vmem:[%s8 + $0x10] sm:$0xff]
      %v2852 = vld [vmem:[%s8 + $0x18] sm:$0xff]
      %v2853 = vld [vmem:[%s8 + $0x20] sm:$0xff]
      %v2854 = vld [vmem:[%s8 + $0x28] sm:$0xff]
      %v2855 = vld [vmem:[%s8 + $0x30] sm:$0xff]
      %v2856 = vld [vmem:[%s8 + $0x38] sm:$0xff]
      %v2857 = vld [vmem:[%s8 + $0x40] sm:$0xff]
      %v2858 = vld [vmem:[%s8 + $0x48] sm:$0xff]
      %v2859 = vld [vmem:[%s8 + $0x50] sm:$0xff]
      %v2860 = vld [vmem:[%s8 + $0x58] sm:$0xff]
      %v2861 = vld [vmem:[%s8 + $0x60] sm:$0xff]
      %v2862 = vld [vmem:[%s8 + $0x68] sm:$0xff]
      %v2863 = vld [vmem:[%s8 + $0x70] sm:$0xff]
      %v2864 = vld [vmem:[%s8 + $0x78] sm:$0xff]
      %2866 = vset.pattern.permute.xlu0 0
      %2867 = vperm.xlu0 %2866, %v2849
      %v2868 = vpop.permute.xlu0 %2867
      %2871 = vset.pattern.permute.xlu0 0
      %2872 = vperm.xlu0 %2871, %v2850
      %v2873 = vpop.permute.xlu0 %2872
      %2876 = vset.pattern.permute.xlu0 0
      %2877 = vperm.xlu0 %2876, %v2851
      %v2878 = vpop.permute.xlu0 %2877
      %2881 = vset.pattern.permute.xlu0 0
      %2882 = vperm.xlu0 %2881, %v2852
      %v2883 = vpop.permute.xlu0 %2882
      %2886 = vset.pattern.permute.xlu0 0
      %2887 = vperm.xlu0 %2886, %v2853
      %v2888 = vpop.permute.xlu0 %2887
      %2891 = vset.pattern.permute.xlu0 0
      %2892 = vperm.xlu0 %2891, %v2854
      %v2893 = vpop.permute.xlu0 %2892
      %2896 = vset.pattern.permute.xlu0 0
      %2897 = vperm.xlu0 %2896, %v2855
      %v2898 = vpop.permute.xlu0 %2897
      %2901 = vset.pattern.permute.xlu0 0
      %2902 = vperm.xlu0 %2901, %v2856
      %v2903 = vpop.permute.xlu0 %2902
      %2906 = vset.pattern.permute.xlu0 0
      %2907 = vperm.xlu0 %2906, %v2857
      %v2908 = vpop.permute.xlu0 %2907
      %2911 = vset.pattern.permute.xlu0 0
      %2912 = vperm.xlu0 %2911, %v2858
      %v2913 = vpop.permute.xlu0 %2912
      %2916 = vset.pattern.permute.xlu0 0
      %2917 = vperm.xlu0 %2916, %v2859
      %v2918 = vpop.permute.xlu0 %2917
      %2921 = vset.pattern.permute.xlu0 0
      %2922 = vperm.xlu0 %2921, %v2860
      %v2923 = vpop.permute.xlu0 %2922
      %2926 = vset.pattern.permute.xlu0 0
      %2927 = vperm.xlu0 %2926, %v2861
      %v2928 = vpop.permute.xlu0 %2927
      %2931 = vset.pattern.permute.xlu0 0
      %2932 = vperm.xlu0 %2931, %v2862
      %v2933 = vpop.permute.xlu0 %2932
      %2936 = vset.pattern.permute.xlu0 0
      %2937 = vperm.xlu0 %2936, %v2863
      %v2938 = vpop.permute.xlu0 %2937
      %2941 = vset.pattern.permute.xlu0 0
      %2942 = vperm.xlu0 %2941, %v2864
      %v2943 = vpop.permute.xlu0 %2942
      %v2945 = vadd.f32 %v2817, %v2868
      %v2946 = vadd.f32 %v2818, %v2868
      %v2947 = vadd.f32 %v2819, %v2873
      %v2948 = vadd.f32 %v2820, %v2873
      %v2949 = vadd.f32 %v2821, %v2878
      %v2950 = vadd.f32 %v2822, %v2878
      %v2951 = vadd.f32 %v2823, %v2883
      %v2952 = vadd.f32 %v2824, %v2883
      %v2953 = vadd.f32 %v2825, %v2888
      %v2954 = vadd.f32 %v2826, %v2888
      %v2955 = vadd.f32 %v2827, %v2893
      %v2956 = vadd.f32 %v2828, %v2893
      %v2957 = vadd.f32 %v2829, %v2898
      %v2958 = vadd.f32 %v2830, %v2898
      %v2959 = vadd.f32 %v2831, %v2903
      %v2960 = vadd.f32 %v2832, %v2903
      %v2961 = vadd.f32 %v2833, %v2908
      %v2962 = vadd.f32 %v2834, %v2908
      %v2963 = vadd.f32 %v2835, %v2913
      %v2964 = vadd.f32 %v2836, %v2913
      %v2965 = vadd.f32 %v2837, %v2918
      %v2966 = vadd.f32 %v2838, %v2918
      %v2967 = vadd.f32 %v2839, %v2923
      %v2968 = vadd.f32 %v2840, %v2923
      %v2969 = vadd.f32 %v2841, %v2928
      %v2970 = vadd.f32 %v2842, %v2928
      %v2971 = vadd.f32 %v2843, %v2933
      %v2972 = vadd.f32 %v2844, %v2933
      %v2973 = vadd.f32 %v2845, %v2938
      %v2974 = vadd.f32 %v2846, %v2938
      %v2975 = vadd.f32 %v2847, %v2943
      %v2976 = vadd.f32 %v2848, %v2943
      %v2977 = vmax.f32 %v2945, %v2953
      %v2978 = vmax.f32 %v2946, %v2954
      %v2979 = vmax.f32 %v2947, %v2955
      %v2980 = vmax.f32 %v2948, %v2956
      %v2981 = vmax.f32 %v2949, %v2957
      %v2982 = vmax.f32 %v2950, %v2958
      %v2983 = vmax.f32 %v2951, %v2959
      %v2984 = vmax.f32 %v2952, %v2960
      %v2985 = vmax.f32 %v2961, %v2969
      %v2986 = vmax.f32 %v2962, %v2970
      %v2987 = vmax.f32 %v2963, %v2971
      %v2988 = vmax.f32 %v2964, %v2972
      %v2989 = vmax.f32 %v2965, %v2973
      %v2990 = vmax.f32 %v2966, %v2974
      %v2991 = vmax.f32 %v2967, %v2975
      %v2992 = vmax.f32 %v2968, %v2976
      %v2993 = vmax.f32 %v2977, %v2985
      %v2994 = vmax.f32 %v2978, %v2986
      %v2995 = vmax.f32 %v2979, %v2987
      %v2996 = vmax.f32 %v2980, %v2988
      %v2997 = vmax.f32 %v2981, %v2989
      %v2998 = vmax.f32 %v2982, %v2990
      %v2999 = vmax.f32 %v2983, %v2991
      %v3000 = vmax.f32 %v2984, %v2992
      %3001 = vst [vmem:[%s332] sm:$0xff] %v2993
      %3002 = vst [vmem:[%s332 + $0x8] sm:$0xff] %v2994
      %3003 = vst [vmem:[%s332 + $0x10] sm:$0xff] %v2995
      %3004 = vst [vmem:[%s332 + $0x18] sm:$0xff] %v2996
      %3005 = vst [vmem:[%s332 + $0x20] sm:$0xff] %v2997
      %3006 = vst [vmem:[%s332 + $0x28] sm:$0xff] %v2998
      %3007 = vst [vmem:[%s332 + $0x30] sm:$0xff] %v2999
      %3008 = vst [vmem:[%s332 + $0x38] sm:$0xff] %v3000
      %p3009 = scmp.lt.s32.totalorder %s20, 1
      %s3010 = scalar_select %p3009, %s20, 1
      %s3011 = smul.addr %s3010, 8
      %s3012 = smul.addr %s3011, 8
      %s3013 = scalar_lea.vmem %s9, %s3012
      // Predicated region
      $region57: #{cnn_regressor_forward.2} parent=55 // pred_check
        %p3014 = pneg %p232
      $region58: #{cnn_regressor_forward.2} parent=55 // pred_check_branch
        %3016 = sbr.rel (%p3014) target = $region60
      $region59: #{cnn_regressor_forward.2} parent=55 // pred_region
        _
      $region60: #{cnn_regressor_forward.2} parent=55 // pred_fallthru
        _
    $region56: #{cnn_regressor_forward.2} parent=5 // pred_fallthru
      _
    %p3017 = scmp.le.s32.totalorder 2, %s15
    // Predicated region
    $region61: #{cnn_regressor_forward.2} parent=5 // pred_check
      %p3018 = pneg %p3017
    $region62: #{cnn_regressor_forward.2} parent=5 // pred_check_branch
      %3020 = sbr.rel (%p3018) target = $region64
    $region63: #{cnn_regressor_forward.2} parent=5 // pred_region
      %s3021 = ssub.s32 %s15, 2
      // Predicated region
      $region65: #{cnn_regressor_forward.2} parent=63 // pred_check
        %p3022 = pneg %p238
      $region66: #{cnn_regressor_forward.2} parent=63 // pred_check_branch
        %3024 = sbr.rel (%p3022) target = $region68
      $region67: #{cnn_regressor_forward.2} parent=63 // pred_region
        %p3025 = scmp.lt.s32.totalorder %s21, 1
        %s3026 = scalar_select %p3025, %s21, 1
        %s3027 = smul.addr %s3026, 8
        %s3028 = smul.addr %s3027, 8
        %s3029 = scalar_lea.vmem %s9, %s3028
      $region68: #{cnn_regressor_forward.2} parent=63 // pred_fallthru
        _
    $region64: #{cnn_regressor_forward.2} parent=5 // pred_fallthru
      _
  $region6: #{cnn_regressor_forward.2} parent=0 // loop_footer
    %s19 = sadd.s32 1, %s15
  $region7: #{cnn_regressor_forward.2} parent=0 // loop_footer_branch
    %14 = sbr.rel target = $region3
  $region8: #{cnn_regressor_forward.2} parent=0 // loop_exit
    _

// kernel: cnn_regressor_forward.3
$region0: #{cnn_regressor_forward.3}
  #allocation0 [shape = 'u32[]', space=smem, size = 0x4, offset = 0x4, fixed_abs, tag = 'smem constant byte address 0x4 - core index']
  #allocation1 [shape = 'u32[144,128]{1,0:T(1,128)}', space=vmem, size = 0x12000, scoped, tag = 'internal scratch']
  %s0 = inlined_call_operand.vmem [shape: f32[2,8192], index: 0, kind: input, shape index: {}]
  %s1 = inlined_call_operand.vmem [shape: f32[2,8], index: 1, kind: input, shape index: {}]
  %s2 = inlined_call_operand.vmem [shape: bf16[8192,128], index: 2, kind: input, shape index: {}]
  %s3 = inlined_call_operand.vmem [shape: bf16[8,128], index: 3, kind: input, shape index: {}]
  %s4 = inlined_call_operand.vmem [shape: f32[1,128], index: 4, kind: input, shape index: {}]
  %s5 = inlined_call_operand.vmem [shape: bf16[128,64], index: 5, kind: input, shape index: {}]
  %s6 = inlined_call_operand.vmem [shape: f32[1,64], index: 6, kind: input, shape index: {}]
  %s7 = inlined_call_operand.vmem [shape: bf16[64,2], index: 7, kind: input, shape index: {}]
  %s8 = inlined_call_operand.vmem [shape: f32[1,2], index: 8, kind: input, shape index: {}]
  %s9 = inlined_call_operand.hbm [shape: f32[2,2], index: 9, kind: output, shape index: {}]
  %s10 = sld [smem:[#allocation0]]
  $region46: #{cnn_regressor_forward.3} parent=0
    _
  %s12 = ssub.s32 1, %s10
  %s13 = scalar_select 0, %s12, %s10
  $region1: #{cnn_regressor_forward.3} parent=0
    #allocation2 [shape = 'u8[1024]{0}', space=vmem, size = 0x400, scoped, tag = 'output window, operand 0, single buffered']
    #allocation3 [shape = 's32[1]{0}', space=sflag, size = 0x4, scoped, tag = 'scoped memory for cnn_regressor_forward.3']
    %14 = vsyncpa [#allocation3], 0
    // Predicated region
    $region2: #{cnn_regressor_forward.3} parent=1 // pred_check
      _
    $region3: #{cnn_regressor_forward.3} parent=1 // pred_check_branch
      %16 = sbr.rel (0) target = $region5
    $region4: #{cnn_regressor_forward.3} parent=1 // pred_region
      _
    $region5: #{cnn_regressor_forward.3} parent=1 // pred_fallthru
      _
    // Predicated region
    $region6: #{cnn_regressor_forward.3} parent=1 // pred_check
      _
    $region7: #{cnn_regressor_forward.3} parent=1 // pred_check_branch
      %18 = sbr.rel (0) target = $region9
    $region8: #{cnn_regressor_forward.3} parent=1 // pred_region
      _
    $region9: #{cnn_regressor_forward.3} parent=1 // pred_fallthru
      _
    // Predicated region
    $region10: #{cnn_regressor_forward.3} parent=1 // pred_check
      _
    $region11: #{cnn_regressor_forward.3} parent=1 // pred_check_branch
      %20 = sbr.rel (0) target = $region13
    $region12: #{cnn_regressor_forward.3} parent=1 // pred_region
      _
    $region13: #{cnn_regressor_forward.3} parent=1 // pred_fallthru
      _
    // Predicated region
    $region14: #{cnn_regressor_forward.3} parent=1 // pred_check
      _
    $region15: #{cnn_regressor_forward.3} parent=1 // pred_check_branch
      %22 = sbr.rel (0) target = $region17
    $region16: #{cnn_regressor_forward.3} parent=1 // pred_region
      _
    $region17: #{cnn_regressor_forward.3} parent=1 // pred_fallthru
      _
    // Predicated region
    $region18: #{cnn_regressor_forward.3} parent=1 // pred_check
      _
    $region19: #{cnn_regressor_forward.3} parent=1 // pred_check_branch
      %24 = sbr.rel (0) target = $region21
    $region20: #{cnn_regressor_forward.3} parent=1 // pred_region
      _
    $region21: #{cnn_regressor_forward.3} parent=1 // pred_fallthru
      _
    // Predicated region
    $region22: #{cnn_regressor_forward.3} parent=1 // pred_check
      _
    $region23: #{cnn_regressor_forward.3} parent=1 // pred_check_branch
      %26 = sbr.rel (0) target = $region25
    $region24: #{cnn_regressor_forward.3} parent=1 // pred_region
      _
    $region25: #{cnn_regressor_forward.3} parent=1 // pred_fallthru
      _
    // Predicated region
    $region26: #{cnn_regressor_forward.3} parent=1 // pred_check
      _
    $region27: #{cnn_regressor_forward.3} parent=1 // pred_check_branch
      %28 = sbr.rel (0) target = $region29
    $region28: #{cnn_regressor_forward.3} parent=1 // pred_region
      _
    $region29: #{cnn_regressor_forward.3} parent=1 // pred_fallthru
      _
    // Predicated region
    $region30: #{cnn_regressor_forward.3} parent=1 // pred_check
      _
    $region31: #{cnn_regressor_forward.3} parent=1 // pred_check_branch
      %30 = sbr.rel (0) target = $region33
    $region32: #{cnn_regressor_forward.3} parent=1 // pred_region
      _
    $region33: #{cnn_regressor_forward.3} parent=1 // pred_fallthru
      _
    // Predicated region
    $region34: #{cnn_regressor_forward.3} parent=1 // pred_check
      _
    $region35: #{cnn_regressor_forward.3} parent=1 // pred_check_branch
      %32 = sbr.rel (0) target = $region37
    $region36: #{cnn_regressor_forward.3} parent=1 // pred_region
      _
    $region37: #{cnn_regressor_forward.3} parent=1 // pred_fallthru
      _
    %v34 = vld [vmem:[%s0] sm:$0xff]
    %v35 = vld [vmem:[%s0 + $0x8] sm:$0xff]
    %v36 = vld [vmem:[%s0 + $0x10] sm:$0xff]
    %v37 = vld [vmem:[%s0 + $0x18] sm:$0xff]
    %v38 = vld [vmem:[%s0 + $0x20] sm:$0xff]
    %v39 = vld [vmem:[%s0 + $0x28] sm:$0xff]
    %v40 = vld [vmem:[%s0 + $0x30] sm:$0xff]
    %v41 = vld [vmem:[%s0 + $0x38] sm:$0xff]
    %v42 = vld [vmem:[%s0 + $0x40] sm:$0xff]
    %v43 = vld [vmem:[%s0 + $0x48] sm:$0xff]
    %v44 = vld [vmem:[%s0 + $0x50] sm:$0xff]
    %v45 = vld [vmem:[%s0 + $0x58] sm:$0xff]
    %v46 = vld [vmem:[%s0 + $0x60] sm:$0xff]
    %v47 = vld [vmem:[%s0 + $0x68] sm:$0xff]
    %v48 = vld [vmem:[%s0 + $0x70] sm:$0xff]
    %v49 = vld [vmem:[%s0 + $0x78] sm:$0xff]
    %v66 = vcombine.high %v34, %v34
    %v68 = vunpack.c.l.s4 1983009808
    %v69 = vunpack.c.0.s8 %v68
    %v70 = vlaneseq
    %v71 = vshrl.u32 %v70, 7
    %v72 = vsub.s32 %v69, %v71
    %v73 = vrot.slane %v34, %v72
    %v75 = vunpack.c.l.s4 1983009808
    %v76 = vunpack.c.0.s8 %v75
    %v77 = vlaneseq
    %v78 = vshrl.u32 %v77, 7
    %v79 = vsub.s32 %v76, %v78
    %v80 = vrot.slane %v66, %v79
    %v81 = vcombine.high %v73, %v73
    %v82 = vcombine.high %v80, %v80
    %v83 = vcombine.high %v35, %v35
    %v85 = vunpack.c.l.s4 1983009808
    %v86 = vunpack.c.0.s8 %v85
    %v87 = vlaneseq
    %v88 = vshrl.u32 %v87, 7
    %v89 = vsub.s32 %v86, %v88
    %v90 = vrot.slane %v35, %v89
    %v92 = vunpack.c.l.s4 1983009808
    %v93 = vunpack.c.0.s8 %v92
    %v94 = vlaneseq
    %v95 = vshrl.u32 %v94, 7
    %v96 = vsub.s32 %v93, %v95
    %v97 = vrot.slane %v83, %v96
    %v98 = vcombine.high %v90, %v90
    %v99 = vcombine.high %v97, %v97
    %v100 = vcombine.high %v36, %v36
    %v102 = vunpack.c.l.s4 1983009808
    %v103 = vunpack.c.0.s8 %v102
    %v104 = vlaneseq
    %v105 = vshrl.u32 %v104, 7
    %v106 = vsub.s32 %v103, %v105
    %v107 = vrot.slane %v36, %v106
    %v109 = vunpack.c.l.s4 1983009808
    %v110 = vunpack.c.0.s8 %v109
    %v111 = vlaneseq
    %v112 = vshrl.u32 %v111, 7
    %v113 = vsub.s32 %v110, %v112
    %v114 = vrot.slane %v100, %v113
    %v115 = vcombine.high %v107, %v107
    %v116 = vcombine.high %v114, %v114
    %v117 = vcombine.high %v37, %v37
    %v119 = vunpack.c.l.s4 1983009808
    %v120 = vunpack.c.0.s8 %v119
    %v121 = vlaneseq
    %v122 = vshrl.u32 %v121, 7
    %v123 = vsub.s32 %v120, %v122
    %v124 = vrot.slane %v37, %v123
    %v126 = vunpack.c.l.s4 1983009808
    %v127 = vunpack.c.0.s8 %v126
    %v128 = vlaneseq
    %v129 = vshrl.u32 %v128, 7
    %v130 = vsub.s32 %v127, %v129
    %v131 = vrot.slane %v117, %v130
    %v132 = vcombine.high %v124, %v124
    %v133 = vcombine.high %v131, %v131
    %v134 = vcombine.high %v38, %v38
    %v136 = vunpack.c.l.s4 1983009808
    %v137 = vunpack.c.0.s8 %v136
    %v138 = vlaneseq
    %v139 = vshrl.u32 %v138, 7
    %v140 = vsub.s32 %v137, %v139
    %v141 = vrot.slane %v38, %v140
    %v143 = vunpack.c.l.s4 1983009808
    %v144 = vunpack.c.0.s8 %v143
    %v145 = vlaneseq
    %v146 = vshrl.u32 %v145, 7
    %v147 = vsub.s32 %v144, %v146
    %v148 = vrot.slane %v134, %v147
    %v149 = vcombine.high %v141, %v141
    %v150 = vcombine.high %v148, %v148
    %v151 = vcombine.high %v39, %v39
    %v153 = vunpack.c.l.s4 1983009808
    %v154 = vunpack.c.0.s8 %v153
    %v155 = vlaneseq
    %v156 = vshrl.u32 %v155, 7
    %v157 = vsub.s32 %v154, %v156
    %v158 = vrot.slane %v39, %v157
    %v160 = vunpack.c.l.s4 1983009808
    %v161 = vunpack.c.0.s8 %v160
    %v162 = vlaneseq
    %v163 = vshrl.u32 %v162, 7
    %v164 = vsub.s32 %v161, %v163
    %v165 = vrot.slane %v151, %v164
    %v166 = vcombine.high %v158, %v158
    %v167 = vcombine.high %v165, %v165
    %v168 = vcombine.high %v40, %v40
    %v170 = vunpack.c.l.s4 1983009808
    %v171 = vunpack.c.0.s8 %v170
    %v172 = vlaneseq
    %v173 = vshrl.u32 %v172, 7
    %v174 = vsub.s32 %v171, %v173
    %v175 = vrot.slane %v40, %v174
    %v177 = vunpack.c.l.s4 1983009808
    %v178 = vunpack.c.0.s8 %v177
    %v179 = vlaneseq
    %v180 = vshrl.u32 %v179, 7
    %v181 = vsub.s32 %v178, %v180
    %v182 = vrot.slane %v168, %v181
    %v183 = vcombine.high %v175, %v175
    %v184 = vcombine.high %v182, %v182
    %v185 = vcombine.high %v41, %v41
    %v187 = vunpack.c.l.s4 1983009808
    %v188 = vunpack.c.0.s8 %v187
    %v189 = vlaneseq
    %v190 = vshrl.u32 %v189, 7
    %v191 = vsub.s32 %v188, %v190
    %v192 = vrot.slane %v41, %v191
    %v194 = vunpack.c.l.s4 1983009808
    %v195 = vunpack.c.0.s8 %v194
    %v196 = vlaneseq
    %v197 = vshrl.u32 %v196, 7
    %v198 = vsub.s32 %v195, %v197
    %v199 = vrot.slane %v185, %v198
    %v200 = vcombine.high %v192, %v192
    %v201 = vcombine.high %v199, %v199
    %v202 = vcombine.high %v42, %v42
    %v204 = vunpack.c.l.s4 1983009808
    %v205 = vunpack.c.0.s8 %v204
    %v206 = vlaneseq
    %v207 = vshrl.u32 %v206, 7
    %v208 = vsub.s32 %v205, %v207
    %v209 = vrot.slane %v42, %v208
    %v211 = vunpack.c.l.s4 1983009808
    %v212 = vunpack.c.0.s8 %v211
    %v213 = vlaneseq
    %v214 = vshrl.u32 %v213, 7
    %v215 = vsub.s32 %v212, %v214
    %v216 = vrot.slane %v202, %v215
    %v217 = vcombine.high %v209, %v209
    %v218 = vcombine.high %v216, %v216
    %v219 = vcombine.high %v43, %v43
    %v221 = vunpack.c.l.s4 1983009808
    %v222 = vunpack.c.0.s8 %v221
    %v223 = vlaneseq
    %v224 = vshrl.u32 %v223, 7
    %v225 = vsub.s32 %v222, %v224
    %v226 = vrot.slane %v43, %v225
    %v228 = vunpack.c.l.s4 1983009808
    %v229 = vunpack.c.0.s8 %v228
    %v230 = vlaneseq
    %v231 = vshrl.u32 %v230, 7
    %v232 = vsub.s32 %v229, %v231
    %v233 = vrot.slane %v219, %v232
    %v234 = vcombine.high %v226, %v226
    %v235 = vcombine.high %v233, %v233
    %v236 = vcombine.high %v44, %v44
    %v238 = vunpack.c.l.s4 1983009808
    %v239 = vunpack.c.0.s8 %v238
    %v240 = vlaneseq
    %v241 = vshrl.u32 %v240, 7
    %v242 = vsub.s32 %v239, %v241
    %v243 = vrot.slane %v44, %v242
    %v245 = vunpack.c.l.s4 1983009808
    %v246 = vunpack.c.0.s8 %v245
    %v247 = vlaneseq
    %v248 = vshrl.u32 %v247, 7
    %v249 = vsub.s32 %v246, %v248
    %v250 = vrot.slane %v236, %v249
    %v251 = vcombine.high %v243, %v243
    %v252 = vcombine.high %v250, %v250
    %v253 = vcombine.high %v45, %v45
    %v255 = vunpack.c.l.s4 1983009808
    %v256 = vunpack.c.0.s8 %v255
    %v257 = vlaneseq
    %v258 = vshrl.u32 %v257, 7
    %v259 = vsub.s32 %v256, %v258
    %v260 = vrot.slane %v45, %v259
    %v262 = vunpack.c.l.s4 1983009808
    %v263 = vunpack.c.0.s8 %v262
    %v264 = vlaneseq
    %v265 = vshrl.u32 %v264, 7
    %v266 = vsub.s32 %v263, %v265
    %v267 = vrot.slane %v253, %v266
    %v268 = vcombine.high %v260, %v260
    %v269 = vcombine.high %v267, %v267
    %v270 = vcombine.high %v46, %v46
    %v272 = vunpack.c.l.s4 1983009808
    %v273 = vunpack.c.0.s8 %v272
    %v274 = vlaneseq
    %v275 = vshrl.u32 %v274, 7
    %v276 = vsub.s32 %v273, %v275
    %v277 = vrot.slane %v46, %v276
    %v279 = vunpack.c.l.s4 1983009808
    %v280 = vunpack.c.0.s8 %v279
    %v281 = vlaneseq
    %v282 = vshrl.u32 %v281, 7
    %v283 = vsub.s32 %v280, %v282
    %v284 = vrot.slane %v270, %v283
    %v285 = vcombine.high %v277, %v277
    %v286 = vcombine.high %v284, %v284
    %v287 = vcombine.high %v47, %v47
    %v289 = vunpack.c.l.s4 1983009808
    %v290 = vunpack.c.0.s8 %v289
    %v291 = vlaneseq
    %v292 = vshrl.u32 %v291, 7
    %v293 = vsub.s32 %v290, %v292
    %v294 = vrot.slane %v47, %v293
    %v296 = vunpack.c.l.s4 1983009808
    %v297 = vunpack.c.0.s8 %v296
    %v298 = vlaneseq
    %v299 = vshrl.u32 %v298, 7
    %v300 = vsub.s32 %v297, %v299
    %v301 = vrot.slane %v287, %v300
    %v302 = vcombine.high %v294, %v294
    %v303 = vcombine.high %v301, %v301
    %v304 = vcombine.high %v48, %v48
    %v306 = vunpack.c.l.s4 1983009808
    %v307 = vunpack.c.0.s8 %v306
    %v308 = vlaneseq
    %v309 = vshrl.u32 %v308, 7
    %v310 = vsub.s32 %v307, %v309
    %v311 = vrot.slane %v48, %v310
    %v313 = vunpack.c.l.s4 1983009808
    %v314 = vunpack.c.0.s8 %v313
    %v315 = vlaneseq
    %v316 = vshrl.u32 %v315, 7
    %v317 = vsub.s32 %v314, %v316
    %v318 = vrot.slane %v304, %v317
    %v319 = vcombine.high %v311, %v311
    %v320 = vcombine.high %v318, %v318
    %v321 = vcombine.high %v49, %v49
    %v323 = vunpack.c.l.s4 1983009808
    %v324 = vunpack.c.0.s8 %v323
    %v325 = vlaneseq
    %v326 = vshrl.u32 %v325, 7
    %v327 = vsub.s32 %v324, %v326
    %v328 = vrot.slane %v49, %v327
    %v330 = vunpack.c.l.s4 1983009808
    %v331 = vunpack.c.0.s8 %v330
    %v332 = vlaneseq
    %v333 = vshrl.u32 %v332, 7
    %v334 = vsub.s32 %v331, %v333
    %v335 = vrot.slane %v321, %v334
    %v336 = vcombine.high %v328, %v328
    %v337 = vcombine.high %v335, %v335
    %v402 = vpack.c.bf16 %v73, %v73
    %v403 = vpack.c.bf16 %v81, %v81
    %v404 = vpack.c.bf16 %v80, %v80
    %v405 = vpack.c.bf16 %v82, %v82
    %v406 = vpack.c.bf16 %v90, %v90
    %v407 = vpack.c.bf16 %v98, %v98
    %v408 = vpack.c.bf16 %v97, %v97
    %v409 = vpack.c.bf16 %v99, %v99
    %v410 = vpack.c.bf16 %v107, %v107
    %v411 = vpack.c.bf16 %v115, %v115
    %v412 = vpack.c.bf16 %v114, %v114
    %v413 = vpack.c.bf16 %v116, %v116
    %v414 = vpack.c.bf16 %v124, %v124
    %v415 = vpack.c.bf16 %v132, %v132
    %v416 = vpack.c.bf16 %v131, %v131
    %v417 = vpack.c.bf16 %v133, %v133
    %v418 = vpack.c.bf16 %v141, %v141
    %v419 = vpack.c.bf16 %v149, %v149
    %v420 = vpack.c.bf16 %v148, %v148
    %v421 = vpack.c.bf16 %v150, %v150
    %v422 = vpack.c.bf16 %v158, %v158
    %v423 = vpack.c.bf16 %v166, %v166
    %v424 = vpack.c.bf16 %v165, %v165
    %v425 = vpack.c.bf16 %v167, %v167
    %v426 = vpack.c.bf16 %v175, %v175
    %v427 = vpack.c.bf16 %v183, %v183
    %v428 = vpack.c.bf16 %v182, %v182
    %v429 = vpack.c.bf16 %v184, %v184
    %v430 = vpack.c.bf16 %v192, %v192
    %v431 = vpack.c.bf16 %v200, %v200
    %v432 = vpack.c.bf16 %v199, %v199
    %v433 = vpack.c.bf16 %v201, %v201
    %v434 = vpack.c.bf16 %v209, %v209
    %v435 = vpack.c.bf16 %v217, %v217
    %v436 = vpack.c.bf16 %v216, %v216
    %v437 = vpack.c.bf16 %v218, %v218
    %v438 = vpack.c.bf16 %v226, %v226
    %v439 = vpack.c.bf16 %v234, %v234
    %v440 = vpack.c.bf16 %v233, %v233
    %v441 = vpack.c.bf16 %v235, %v235
    %v442 = vpack.c.bf16 %v243, %v243
    %v443 = vpack.c.bf16 %v251, %v251
    %v444 = vpack.c.bf16 %v250, %v250
    %v445 = vpack.c.bf16 %v252, %v252
    %v446 = vpack.c.bf16 %v260, %v260
    %v447 = vpack.c.bf16 %v268, %v268
    %v448 = vpack.c.bf16 %v267, %v267
    %v449 = vpack.c.bf16 %v269, %v269
    %v450 = vpack.c.bf16 %v277, %v277
    %v451 = vpack.c.bf16 %v285, %v285
    %v452 = vpack.c.bf16 %v284, %v284
    %v453 = vpack.c.bf16 %v286, %v286
    %v454 = vpack.c.bf16 %v294, %v294
    %v455 = vpack.c.bf16 %v302, %v302
    %v456 = vpack.c.bf16 %v301, %v301
    %v457 = vpack.c.bf16 %v303, %v303
    %v458 = vpack.c.bf16 %v311, %v311
    %v459 = vpack.c.bf16 %v319, %v319
    %v460 = vpack.c.bf16 %v318, %v318
    %v461 = vpack.c.bf16 %v320, %v320
    %v462 = vpack.c.bf16 %v328, %v328
    %v463 = vpack.c.bf16 %v336, %v336
    %v464 = vpack.c.bf16 %v335, %v335
    %v465 = vpack.c.bf16 %v337, %v337
    %v466 = vld [vmem:[%s1] sm:$0x3]
    %v467 = vpack.c.bf16 %v466, %v466
    %v468 = vld [vmem:[%s2] sm:$0xf]
    %v469 = vld [vmem:[%s2 + $0x4] sm:$0xf]
    %v470 = vld [vmem:[%s2 + $0x8] sm:$0xf]
    %v471 = vld [vmem:[%s2 + $0xc] sm:$0xf]
    %v472 = vld [vmem:[%s2 + $0x10] sm:$0xf]
    %v473 = vld [vmem:[%s2 + $0x14] sm:$0xf]
    %v474 = vld [vmem:[%s2 + $0x18] sm:$0xf]
    %v475 = vld [vmem:[%s2 + $0x1c] sm:$0xf]
    %v476 = vld [vmem:[%s2 + $0x20] sm:$0xf]
    %v477 = vld [vmem:[%s2 + $0x24] sm:$0xf]
    %v478 = vld [vmem:[%s2 + $0x28] sm:$0xf]
    %v479 = vld [vmem:[%s2 + $0x2c] sm:$0xf]
    %v480 = vld [vmem:[%s2 + $0x30] sm:$0xf]
    %v481 = vld [vmem:[%s2 + $0x34] sm:$0xf]
    %v482 = vld [vmem:[%s2 + $0x38] sm:$0xf]
    %v483 = vld [vmem:[%s2 + $0x3c] sm:$0xf]
    %v484 = vld [vmem:[%s2 + $0x40] sm:$0xf]
    %v485 = vld [vmem:[%s2 + $0x44] sm:$0xf]
    %v486 = vld [vmem:[%s2 + $0x48] sm:$0xf]
    %v487 = vld [vmem:[%s2 + $0x4c] sm:$0xf]
    %v488 = vld [vmem:[%s2 + $0x50] sm:$0xf]
    %v489 = vld [vmem:[%s2 + $0x54] sm:$0xf]
    %v490 = vld [vmem:[%s2 + $0x58] sm:$0xf]
    %v491 = vld [vmem:[%s2 + $0x5c] sm:$0xf]
    %v492 = vld [vmem:[%s2 + $0x60] sm:$0xf]
    %v493 = vld [vmem:[%s2 + $0x64] sm:$0xf]
    %v494 = vld [vmem:[%s2 + $0x68] sm:$0xf]
    %v495 = vld [vmem:[%s2 + $0x6c] sm:$0xf]
    %v496 = vld [vmem:[%s2 + $0x70] sm:$0xf]
    %v497 = vld [vmem:[%s2 + $0x74] sm:$0xf]
    %v498 = vld [vmem:[%s2 + $0x78] sm:$0xf]
    %v499 = vld [vmem:[%s2 + $0x7c] sm:$0xf]
    %v500 = vld [vmem:[%s2 + $0x80] sm:$0xf]
    %v501 = vld [vmem:[%s2 + $0x84] sm:$0xf]
    %v502 = vld [vmem:[%s2 + $0x88] sm:$0xf]
    %v503 = vld [vmem:[%s2 + $0x8c] sm:$0xf]
    %v504 = vld [vmem:[%s2 + $0x90] sm:$0xf]
    %v505 = vld [vmem:[%s2 + $0x94] sm:$0xf]
    %v506 = vld [vmem:[%s2 + $0x98] sm:$0xf]
    %v507 = vld [vmem:[%s2 + $0x9c] sm:$0xf]
    %v508 = vld [vmem:[%s2 + $0xa0] sm:$0xf]
    %v509 = vld [vmem:[%s2 + $0xa4] sm:$0xf]
    %v510 = vld [vmem:[%s2 + $0xa8] sm:$0xf]
    %v511 = vld [vmem:[%s2 + $0xac] sm:$0xf]
    %v512 = vld [vmem:[%s2 + $0xb0] sm:$0xf]
    %v513 = vld [vmem:[%s2 + $0xb4] sm:$0xf]
    %v514 = vld [vmem:[%s2 + $0xb8] sm:$0xf]
    %v515 = vld [vmem:[%s2 + $0xbc] sm:$0xf]
    %v516 = vld [vmem:[%s2 + $0xc0] sm:$0xf]
    %v517 = vld [vmem:[%s2 + $0xc4] sm:$0xf]
    %v518 = vld [vmem:[%s2 + $0xc8] sm:$0xf]
    %v519 = vld [vmem:[%s2 + $0xcc] sm:$0xf]
    %v520 = vld [vmem:[%s2 + $0xd0] sm:$0xf]
    %v521 = vld [vmem:[%s2 + $0xd4] sm:$0xf]
    %v522 = vld [vmem:[%s2 + $0xd8] sm:$0xf]
    %v523 = vld [vmem:[%s2 + $0xdc] sm:$0xf]
    %v524 = vld [vmem:[%s2 + $0xe0] sm:$0xf]
    %v525 = vld [vmem:[%s2 + $0xe4] sm:$0xf]
    %v526 = vld [vmem:[%s2 + $0xe8] sm:$0xf]
    %v527 = vld [vmem:[%s2 + $0xec] sm:$0xf]
    %v528 = vld [vmem:[%s2 + $0xf0] sm:$0xf]
    %v529 = vld [vmem:[%s2 + $0xf4] sm:$0xf]
    %v530 = vld [vmem:[%s2 + $0xf8] sm:$0xf]
    %v531 = vld [vmem:[%s2 + $0xfc] sm:$0xf]
    %v532 = vld [vmem:[%s2 + $0x100] sm:$0xf]
    %v533 = vld [vmem:[%s2 + $0x104] sm:$0xf]
    %v534 = vld [vmem:[%s2 + $0x108] sm:$0xf]
    %v535 = vld [vmem:[%s2 + $0x10c] sm:$0xf]
    %v536 = vld [vmem:[%s2 + $0x110] sm:$0xf]
    %v537 = vld [vmem:[%s2 + $0x114] sm:$0xf]
    %v538 = vld [vmem:[%s2 + $0x118] sm:$0xf]
    %v539 = vld [vmem:[%s2 + $0x11c] sm:$0xf]
    %v540 = vld [vmem:[%s2 + $0x120] sm:$0xf]
    %v541 = vld [vmem:[%s2 + $0x124] sm:$0xf]
    %v542 = vld [vmem:[%s2 + $0x128] sm:$0xf]
    %v543 = vld [vmem:[%s2 + $0x12c] sm:$0xf]
    %v544 = vld [vmem:[%s2 + $0x130] sm:$0xf]
    %v545 = vld [vmem:[%s2 + $0x134] sm:$0xf]
    %v546 = vld [vmem:[%s2 + $0x138] sm:$0xf]
    %v547 = vld [vmem:[%s2 + $0x13c] sm:$0xf]
    %v548 = vld [vmem:[%s2 + $0x140] sm:$0xf]
    %v549 = vld [vmem:[%s2 + $0x144] sm:$0xf]
    %v550 = vld [vmem:[%s2 + $0x148] sm:$0xf]
    %v551 = vld [vmem:[%s2 + $0x14c] sm:$0xf]
    %v552 = vld [vmem:[%s2 + $0x150] sm:$0xf]
    %v553 = vld [vmem:[%s2 + $0x154] sm:$0xf]
    %v554 = vld [vmem:[%s2 + $0x158] sm:$0xf]
    %v555 = vld [vmem:[%s2 + $0x15c] sm:$0xf]
    %v556 = vld [vmem:[%s2 + $0x160] sm:$0xf]
    %v557 = vld [vmem:[%s2 + $0x164] sm:$0xf]
    %v558 = vld [vmem:[%s2 + $0x168] sm:$0xf]
    %v559 = vld [vmem:[%s2 + $0x16c] sm:$0xf]
    %v560 = vld [vmem:[%s2 + $0x170] sm:$0xf]
    %v561 = vld [vmem:[%s2 + $0x174] sm:$0xf]
    %v562 = vld [vmem:[%s2 + $0x178] sm:$0xf]
    %v563 = vld [vmem:[%s2 + $0x17c] sm:$0xf]
    %v564 = vld [vmem:[%s2 + $0x180] sm:$0xf]
    %v565 = vld [vmem:[%s2 + $0x184] sm:$0xf]
    %v566 = vld [vmem:[%s2 + $0x188] sm:$0xf]
    %v567 = vld [vmem:[%s2 + $0x18c] sm:$0xf]
    %v568 = vld [vmem:[%s2 + $0x190] sm:$0xf]
    %v569 = vld [vmem:[%s2 + $0x194] sm:$0xf]
    %v570 = vld [vmem:[%s2 + $0x198] sm:$0xf]
    %v571 = vld [vmem:[%s2 + $0x19c] sm:$0xf]
    %v572 = vld [vmem:[%s2 + $0x1a0] sm:$0xf]
    %v573 = vld [vmem:[%s2 + $0x1a4] sm:$0xf]
    %v574 = vld [vmem:[%s2 + $0x1a8] sm:$0xf]
    %v575 = vld [vmem:[%s2 + $0x1ac] sm:$0xf]
    %v576 = vld [vmem:[%s2 + $0x1b0] sm:$0xf]
    %v577 = vld [vmem:[%s2 + $0x1b4] sm:$0xf]
    %v578 = vld [vmem:[%s2 + $0x1b8] sm:$0xf]
    %v579 = vld [vmem:[%s2 + $0x1bc] sm:$0xf]
    %v580 = vld [vmem:[%s2 + $0x1c0] sm:$0xf]
    %v581 = vld [vmem:[%s2 + $0x1c4] sm:$0xf]
    %v582 = vld [vmem:[%s2 + $0x1c8] sm:$0xf]
    %v583 = vld [vmem:[%s2 + $0x1cc] sm:$0xf]
    %v584 = vld [vmem:[%s2 + $0x1d0] sm:$0xf]
    %v585 = vld [vmem:[%s2 + $0x1d4] sm:$0xf]
    %v586 = vld [vmem:[%s2 + $0x1d8] sm:$0xf]
    %v587 = vld [vmem:[%s2 + $0x1dc] sm:$0xf]
    %v588 = vld [vmem:[%s2 + $0x1e0] sm:$0xf]
    %v589 = vld [vmem:[%s2 + $0x1e4] sm:$0xf]
    %v590 = vld [vmem:[%s2 + $0x1e8] sm:$0xf]
    %v591 = vld [vmem:[%s2 + $0x1ec] sm:$0xf]
    %v592 = vld [vmem:[%s2 + $0x1f0] sm:$0xf]
    %v593 = vld [vmem:[%s2 + $0x1f4] sm:$0xf]
    %v594 = vld [vmem:[%s2 + $0x1f8] sm:$0xf]
    %v595 = vld [vmem:[%s2 + $0x1fc] sm:$0xf]
    %v596 = vld [vmem:[%s2 + $0x200] sm:$0xf]
    %v597 = vld [vmem:[%s2 + $0x204] sm:$0xf]
    %v598 = vld [vmem:[%s2 + $0x208] sm:$0xf]
    %v599 = vld [vmem:[%s2 + $0x20c] sm:$0xf]
    %v600 = vld [vmem:[%s2 + $0x210] sm:$0xf]
    %v601 = vld [vmem:[%s2 + $0x214] sm:$0xf]
    %v602 = vld [vmem:[%s2 + $0x218] sm:$0xf]
    %v603 = vld [vmem:[%s2 + $0x21c] sm:$0xf]
    %v604 = vld [vmem:[%s2 + $0x220] sm:$0xf]
    %v605 = vld [vmem:[%s2 + $0x224] sm:$0xf]
    %v606 = vld [vmem:[%s2 + $0x228] sm:$0xf]
    %v607 = vld [vmem:[%s2 + $0x22c] sm:$0xf]
    %v608 = vld [vmem:[%s2 + $0x230] sm:$0xf]
    %v609 = vld [vmem:[%s2 + $0x234] sm:$0xf]
    %v610 = vld [vmem:[%s2 + $0x238] sm:$0xf]
    %v611 = vld [vmem:[%s2 + $0x23c] sm:$0xf]
    %v612 = vld [vmem:[%s2 + $0x240] sm:$0xf]
    %v613 = vld [vmem:[%s2 + $0x244] sm:$0xf]
    %v614 = vld [vmem:[%s2 + $0x248] sm:$0xf]
    %v615 = vld [vmem:[%s2 + $0x24c] sm:$0xf]
    %v616 = vld [vmem:[%s2 + $0x250] sm:$0xf]
    %v617 = vld [vmem:[%s2 + $0x254] sm:$0xf]
    %v618 = vld [vmem:[%s2 + $0x258] sm:$0xf]
    %v619 = vld [vmem:[%s2 + $0x25c] sm:$0xf]
    %v620 = vld [vmem:[%s2 + $0x260] sm:$0xf]
    %v621 = vld [vmem:[%s2 + $0x264] sm:$0xf]
    %v622 = vld [vmem:[%s2 + $0x268] sm:$0xf]
    %v623 = vld [vmem:[%s2 + $0x26c] sm:$0xf]
    %v624 = vld [vmem:[%s2 + $0x270] sm:$0xf]
    %v625 = vld [vmem:[%s2 + $0x274] sm:$0xf]
    %v626 = vld [vmem:[%s2 + $0x278] sm:$0xf]
    %v627 = vld [vmem:[%s2 + $0x27c] sm:$0xf]
    %v628 = vld [vmem:[%s2 + $0x280] sm:$0xf]
    %v629 = vld [vmem:[%s2 + $0x284] sm:$0xf]
    %v630 = vld [vmem:[%s2 + $0x288] sm:$0xf]
    %v631 = vld [vmem:[%s2 + $0x28c] sm:$0xf]
    %v632 = vld [vmem:[%s2 + $0x290] sm:$0xf]
    %v633 = vld [vmem:[%s2 + $0x294] sm:$0xf]
    %v634 = vld [vmem:[%s2 + $0x298] sm:$0xf]
    %v635 = vld [vmem:[%s2 + $0x29c] sm:$0xf]
    %v636 = vld [vmem:[%s2 + $0x2a0] sm:$0xf]
    %v637 = vld [vmem:[%s2 + $0x2a4] sm:$0xf]
    %v638 = vld [vmem:[%s2 + $0x2a8] sm:$0xf]
    %v639 = vld [vmem:[%s2 + $0x2ac] sm:$0xf]
    %v640 = vld [vmem:[%s2 + $0x2b0] sm:$0xf]
    %v641 = vld [vmem:[%s2 + $0x2b4] sm:$0xf]
    %v642 = vld [vmem:[%s2 + $0x2b8] sm:$0xf]
    %v643 = vld [vmem:[%s2 + $0x2bc] sm:$0xf]
    %v644 = vld [vmem:[%s2 + $0x2c0] sm:$0xf]
    %v645 = vld [vmem:[%s2 + $0x2c4] sm:$0xf]
    %v646 = vld [vmem:[%s2 + $0x2c8] sm:$0xf]
    %v647 = vld [vmem:[%s2 + $0x2cc] sm:$0xf]
    %v648 = vld [vmem:[%s2 + $0x2d0] sm:$0xf]
    %v649 = vld [vmem:[%s2 + $0x2d4] sm:$0xf]
    %v650 = vld [vmem:[%s2 + $0x2d8] sm:$0xf]
    %v651 = vld [vmem:[%s2 + $0x2dc] sm:$0xf]
    %v652 = vld [vmem:[%s2 + $0x2e0] sm:$0xf]
    %v653 = vld [vmem:[%s2 + $0x2e4] sm:$0xf]
    %v654 = vld [vmem:[%s2 + $0x2e8] sm:$0xf]
    %v655 = vld [vmem:[%s2 + $0x2ec] sm:$0xf]
    %v656 = vld [vmem:[%s2 + $0x2f0] sm:$0xf]
    %v657 = vld [vmem:[%s2 + $0x2f4] sm:$0xf]
    %v658 = vld [vmem:[%s2 + $0x2f8] sm:$0xf]
    %v659 = vld [vmem:[%s2 + $0x2fc] sm:$0xf]
    %v660 = vld [vmem:[%s2 + $0x300] sm:$0xf]
    %v661 = vld [vmem:[%s2 + $0x304] sm:$0xf]
    %v662 = vld [vmem:[%s2 + $0x308] sm:$0xf]
    %v663 = vld [vmem:[%s2 + $0x30c] sm:$0xf]
    %v664 = vld [vmem:[%s2 + $0x310] sm:$0xf]
    %v665 = vld [vmem:[%s2 + $0x314] sm:$0xf]
    %v666 = vld [vmem:[%s2 + $0x318] sm:$0xf]
    %v667 = vld [vmem:[%s2 + $0x31c] sm:$0xf]
    %v668 = vld [vmem:[%s2 + $0x320] sm:$0xf]
    %v669 = vld [vmem:[%s2 + $0x324] sm:$0xf]
    %v670 = vld [vmem:[%s2 + $0x328] sm:$0xf]
    %v671 = vld [vmem:[%s2 + $0x32c] sm:$0xf]
    %v672 = vld [vmem:[%s2 + $0x330] sm:$0xf]
    %v673 = vld [vmem:[%s2 + $0x334] sm:$0xf]
    %v674 = vld [vmem:[%s2 + $0x338] sm:$0xf]
    %v675 = vld [vmem:[%s2 + $0x33c] sm:$0xf]
    %v676 = vld [vmem:[%s2 + $0x340] sm:$0xf]
    %v677 = vld [vmem:[%s2 + $0x344] sm:$0xf]
    %v678 = vld [vmem:[%s2 + $0x348] sm:$0xf]
    %v679 = vld [vmem:[%s2 + $0x34c] sm:$0xf]
    %v680 = vld [vmem:[%s2 + $0x350] sm:$0xf]
    %v681 = vld [vmem:[%s2 + $0x354] sm:$0xf]
    %v682 = vld [vmem:[%s2 + $0x358] sm:$0xf]
    %v683 = vld [vmem:[%s2 + $0x35c] sm:$0xf]
    %v684 = vld [vmem:[%s2 + $0x360] sm:$0xf]
    %v685 = vld [vmem:[%s2 + $0x364] sm:$0xf]
    %v686 = vld [vmem:[%s2 + $0x368] sm:$0xf]
    %v687 = vld [vmem:[%s2 + $0x36c] sm:$0xf]
    %v688 = vld [vmem:[%s2 + $0x370] sm:$0xf]
    %v689 = vld [vmem:[%s2 + $0x374] sm:$0xf]
    %v690 = vld [vmem:[%s2 + $0x378] sm:$0xf]
    %v691 = vld [vmem:[%s2 + $0x37c] sm:$0xf]
    %v692 = vld [vmem:[%s2 + $0x380] sm:$0xf]
    %v693 = vld [vmem:[%s2 + $0x384] sm:$0xf]
    %v694 = vld [vmem:[%s2 + $0x388] sm:$0xf]
    %v695 = vld [vmem:[%s2 + $0x38c] sm:$0xf]
    %v696 = vld [vmem:[%s2 + $0x390] sm:$0xf]
    %v697 = vld [vmem:[%s2 + $0x394] sm:$0xf]
    %v698 = vld [vmem:[%s2 + $0x398] sm:$0xf]
    %v699 = vld [vmem:[%s2 + $0x39c] sm:$0xf]
    %v700 = vld [vmem:[%s2 + $0x3a0] sm:$0xf]
    %v701 = vld [vmem:[%s2 + $0x3a4] sm:$0xf]
    %v702 = vld [vmem:[%s2 + $0x3a8] sm:$0xf]
    %v703 = vld [vmem:[%s2 + $0x3ac] sm:$0xf]
    %v704 = vld [vmem:[%s2 + $0x3b0] sm:$0xf]
    %v705 = vld [vmem:[%s2 + $0x3b4] sm:$0xf]
    %v706 = vld [vmem:[%s2 + $0x3b8] sm:$0xf]
    %v707 = vld [vmem:[%s2 + $0x3bc] sm:$0xf]
    %v708 = vld [vmem:[%s2 + $0x3c0] sm:$0xf]
    %v709 = vld [vmem:[%s2 + $0x3c4] sm:$0xf]
    %v710 = vld [vmem:[%s2 + $0x3c8] sm:$0xf]
    %v711 = vld [vmem:[%s2 + $0x3cc] sm:$0xf]
    %v712 = vld [vmem:[%s2 + $0x3d0] sm:$0xf]
    %v713 = vld [vmem:[%s2 + $0x3d4] sm:$0xf]
    %v714 = vld [vmem:[%s2 + $0x3d8] sm:$0xf]
    %v715 = vld [vmem:[%s2 + $0x3dc] sm:$0xf]
    %v716 = vld [vmem:[%s2 + $0x3e0] sm:$0xf]
    %v717 = vld [vmem:[%s2 + $0x3e4] sm:$0xf]
    %v718 = vld [vmem:[%s2 + $0x3e8] sm:$0xf]
    %v719 = vld [vmem:[%s2 + $0x3ec] sm:$0xf]
    %v720 = vld [vmem:[%s2 + $0x3f0] sm:$0xf]
    %v721 = vld [vmem:[%s2 + $0x3f4] sm:$0xf]
    %v722 = vld [vmem:[%s2 + $0x3f8] sm:$0xf]
    %v723 = vld [vmem:[%s2 + $0x3fc] sm:$0xf]
    %v724 = vld [vmem:[%s2 + $0x400] sm:$0xf]
    %v725 = vld [vmem:[%s2 + $0x404] sm:$0xf]
    %v726 = vld [vmem:[%s2 + $0x408] sm:$0xf]
    %v727 = vld [vmem:[%s2 + $0x40c] sm:$0xf]
    %v728 = vld [vmem:[%s2 + $0x410] sm:$0xf]
    %v729 = vld [vmem:[%s2 + $0x414] sm:$0xf]
    %v730 = vld [vmem:[%s2 + $0x418] sm:$0xf]
    %v731 = vld [vmem:[%s2 + $0x41c] sm:$0xf]
    %v732 = vld [vmem:[%s2 + $0x420] sm:$0xf]
    %v733 = vld [vmem:[%s2 + $0x424] sm:$0xf]
    %v734 = vld [vmem:[%s2 + $0x428] sm:$0xf]
    %v735 = vld [vmem:[%s2 + $0x42c] sm:$0xf]
    %v736 = vld [vmem:[%s2 + $0x430] sm:$0xf]
    %v737 = vld [vmem:[%s2 + $0x434] sm:$0xf]
    %v738 = vld [vmem:[%s2 + $0x438] sm:$0xf]
    %v739 = vld [vmem:[%s2 + $0x43c] sm:$0xf]
    %v740 = vld [vmem:[%s2 + $0x440] sm:$0xf]
    %v741 = vld [vmem:[%s2 + $0x444] sm:$0xf]
    %v742 = vld [vmem:[%s2 + $0x448] sm:$0xf]
    %v743 = vld [vmem:[%s2 + $0x44c] sm:$0xf]
    %v744 = vld [vmem:[%s2 + $0x450] sm:$0xf]
    %v745 = vld [vmem:[%s2 + $0x454] sm:$0xf]
    %v746 = vld [vmem:[%s2 + $0x458] sm:$0xf]
    %v747 = vld [vmem:[%s2 + $0x45c] sm:$0xf]
    %v748 = vld [vmem:[%s2 + $0x460] sm:$0xf]
    %v749 = vld [vmem:[%s2 + $0x464] sm:$0xf]
    %v750 = vld [vmem:[%s2 + $0x468] sm:$0xf]
    %v751 = vld [vmem:[%s2 + $0x46c] sm:$0xf]
    %v752 = vld [vmem:[%s2 + $0x470] sm:$0xf]
    %v753 = vld [vmem:[%s2 + $0x474] sm:$0xf]
    %v754 = vld [vmem:[%s2 + $0x478] sm:$0xf]
    %v755 = vld [vmem:[%s2 + $0x47c] sm:$0xf]
    %v756 = vld [vmem:[%s2 + $0x480] sm:$0xf]
    %v757 = vld [vmem:[%s2 + $0x484] sm:$0xf]
    %v758 = vld [vmem:[%s2 + $0x488] sm:$0xf]
    %v759 = vld [vmem:[%s2 + $0x48c] sm:$0xf]
    %v760 = vld [vmem:[%s2 + $0x490] sm:$0xf]
    %v761 = vld [vmem:[%s2 + $0x494] sm:$0xf]
    %v762 = vld [vmem:[%s2 + $0x498] sm:$0xf]
    %v763 = vld [vmem:[%s2 + $0x49c] sm:$0xf]
    %v764 = vld [vmem:[%s2 + $0x4a0] sm:$0xf]
    %v765 = vld [vmem:[%s2 + $0x4a4] sm:$0xf]
    %v766 = vld [vmem:[%s2 + $0x4a8] sm:$0xf]
    %v767 = vld [vmem:[%s2 + $0x4ac] sm:$0xf]
    %v768 = vld [vmem:[%s2 + $0x4b0] sm:$0xf]
    %v769 = vld [vmem:[%s2 + $0x4b4] sm:$0xf]
    %v770 = vld [vmem:[%s2 + $0x4b8] sm:$0xf]
    %v771 = vld [vmem:[%s2 + $0x4bc] sm:$0xf]
    %v772 = vld [vmem:[%s2 + $0x4c0] sm:$0xf]
    %v773 = vld [vmem:[%s2 + $0x4c4] sm:$0xf]
    %v774 = vld [vmem:[%s2 + $0x4c8] sm:$0xf]
    %v775 = vld [vmem:[%s2 + $0x4cc] sm:$0xf]
    %v776 = vld [vmem:[%s2 + $0x4d0] sm:$0xf]
    %v777 = vld [vmem:[%s2 + $0x4d4] sm:$0xf]
    %v778 = vld [vmem:[%s2 + $0x4d8] sm:$0xf]
    %v779 = vld [vmem:[%s2 + $0x4dc] sm:$0xf]
    %v780 = vld [vmem:[%s2 + $0x4e0] sm:$0xf]
    %v781 = vld [vmem:[%s2 + $0x4e4] sm:$0xf]
    %v782 = vld [vmem:[%s2 + $0x4e8] sm:$0xf]
    %v783 = vld [vmem:[%s2 + $0x4ec] sm:$0xf]
    %v784 = vld [vmem:[%s2 + $0x4f0] sm:$0xf]
    %v785 = vld [vmem:[%s2 + $0x4f4] sm:$0xf]
    %v786 = vld [vmem:[%s2 + $0x4f8] sm:$0xf]
    %v787 = vld [vmem:[%s2 + $0x4fc] sm:$0xf]
    %v788 = vld [vmem:[%s2 + $0x500] sm:$0xf]
    %v789 = vld [vmem:[%s2 + $0x504] sm:$0xf]
    %v790 = vld [vmem:[%s2 + $0x508] sm:$0xf]
    %v791 = vld [vmem:[%s2 + $0x50c] sm:$0xf]
    %v792 = vld [vmem:[%s2 + $0x510] sm:$0xf]
    %v793 = vld [vmem:[%s2 + $0x514] sm:$0xf]
    %v794 = vld [vmem:[%s2 + $0x518] sm:$0xf]
    %v795 = vld [vmem:[%s2 + $0x51c] sm:$0xf]
    %v796 = vld [vmem:[%s2 + $0x520] sm:$0xf]
    %v797 = vld [vmem:[%s2 + $0x524] sm:$0xf]
    %v798 = vld [vmem:[%s2 + $0x528] sm:$0xf]
    %v799 = vld [vmem:[%s2 + $0x52c] sm:$0xf]
    %v800 = vld [vmem:[%s2 + $0x530] sm:$0xf]
    %v801 = vld [vmem:[%s2 + $0x534] sm:$0xf]
    %v802 = vld [vmem:[%s2 + $0x538] sm:$0xf]
    %v803 = vld [vmem:[%s2 + $0x53c] sm:$0xf]
    %v804 = vld [vmem:[%s2 + $0x540] sm:$0xf]
    %v805 = vld [vmem:[%s2 + $0x544] sm:$0xf]
    %v806 = vld [vmem:[%s2 + $0x548] sm:$0xf]
    %v807 = vld [vmem:[%s2 + $0x54c] sm:$0xf]
    %v808 = vld [vmem:[%s2 + $0x550] sm:$0xf]
    %v809 = vld [vmem:[%s2 + $0x554] sm:$0xf]
    %v810 = vld [vmem:[%s2 + $0x558] sm:$0xf]
    %v811 = vld [vmem:[%s2 + $0x55c] sm:$0xf]
    %v812 = vld [vmem:[%s2 + $0x560] sm:$0xf]
    %v813 = vld [vmem:[%s2 + $0x564] sm:$0xf]
    %v814 = vld [vmem:[%s2 + $0x568] sm:$0xf]
    %v815 = vld [vmem:[%s2 + $0x56c] sm:$0xf]
    %v816 = vld [vmem:[%s2 + $0x570] sm:$0xf]
    %v817 = vld [vmem:[%s2 + $0x574] sm:$0xf]
    %v818 = vld [vmem:[%s2 + $0x578] sm:$0xf]
    %v819 = vld [vmem:[%s2 + $0x57c] sm:$0xf]
    %v820 = vld [vmem:[%s2 + $0x580] sm:$0xf]
    %v821 = vld [vmem:[%s2 + $0x584] sm:$0xf]
    %v822 = vld [vmem:[%s2 + $0x588] sm:$0xf]
    %v823 = vld [vmem:[%s2 + $0x58c] sm:$0xf]
    %v824 = vld [vmem:[%s2 + $0x590] sm:$0xf]
    %v825 = vld [vmem:[%s2 + $0x594] sm:$0xf]
    %v826 = vld [vmem:[%s2 + $0x598] sm:$0xf]
    %v827 = vld [vmem:[%s2 + $0x59c] sm:$0xf]
    %v828 = vld [vmem:[%s2 + $0x5a0] sm:$0xf]
    %v829 = vld [vmem:[%s2 + $0x5a4] sm:$0xf]
    %v830 = vld [vmem:[%s2 + $0x5a8] sm:$0xf]
    %v831 = vld [vmem:[%s2 + $0x5ac] sm:$0xf]
    %v832 = vld [vmem:[%s2 + $0x5b0] sm:$0xf]
    %v833 = vld [vmem:[%s2 + $0x5b4] sm:$0xf]
    %v834 = vld [vmem:[%s2 + $0x5b8] sm:$0xf]
    %v835 = vld [vmem:[%s2 + $0x5bc] sm:$0xf]
    %v836 = vld [vmem:[%s2 + $0x5c0] sm:$0xf]
    %v837 = vld [vmem:[%s2 + $0x5c4] sm:$0xf]
    %v838 = vld [vmem:[%s2 + $0x5c8] sm:$0xf]
    %v839 = vld [vmem:[%s2 + $0x5cc] sm:$0xf]
    %v840 = vld [vmem:[%s2 + $0x5d0] sm:$0xf]
    %v841 = vld [vmem:[%s2 + $0x5d4] sm:$0xf]
    %v842 = vld [vmem:[%s2 + $0x5d8] sm:$0xf]
    %v843 = vld [vmem:[%s2 + $0x5dc] sm:$0xf]
    %v844 = vld [vmem:[%s2 + $0x5e0] sm:$0xf]
    %v845 = vld [vmem:[%s2 + $0x5e4] sm:$0xf]
    %v846 = vld [vmem:[%s2 + $0x5e8] sm:$0xf]
    %v847 = vld [vmem:[%s2 + $0x5ec] sm:$0xf]
    %v848 = vld [vmem:[%s2 + $0x5f0] sm:$0xf]
    %v849 = vld [vmem:[%s2 + $0x5f4] sm:$0xf]
    %v850 = vld [vmem:[%s2 + $0x5f8] sm:$0xf]
    %v851 = vld [vmem:[%s2 + $0x5fc] sm:$0xf]
    %v852 = vld [vmem:[%s2 + $0x600] sm:$0xf]
    %v853 = vld [vmem:[%s2 + $0x604] sm:$0xf]
    %v854 = vld [vmem:[%s2 + $0x608] sm:$0xf]
    %v855 = vld [vmem:[%s2 + $0x60c] sm:$0xf]
    %v856 = vld [vmem:[%s2 + $0x610] sm:$0xf]
    %v857 = vld [vmem:[%s2 + $0x614] sm:$0xf]
    %v858 = vld [vmem:[%s2 + $0x618] sm:$0xf]
    %v859 = vld [vmem:[%s2 + $0x61c] sm:$0xf]
    %v860 = vld [vmem:[%s2 + $0x620] sm:$0xf]
    %v861 = vld [vmem:[%s2 + $0x624] sm:$0xf]
    %v862 = vld [vmem:[%s2 + $0x628] sm:$0xf]
    %v863 = vld [vmem:[%s2 + $0x62c] sm:$0xf]
    %v864 = vld [vmem:[%s2 + $0x630] sm:$0xf]
    %v865 = vld [vmem:[%s2 + $0x634] sm:$0xf]
    %v866 = vld [vmem:[%s2 + $0x638] sm:$0xf]
    %v867 = vld [vmem:[%s2 + $0x63c] sm:$0xf]
    %v868 = vld [vmem:[%s2 + $0x640] sm:$0xf]
    %v869 = vld [vmem:[%s2 + $0x644] sm:$0xf]
    %v870 = vld [vmem:[%s2 + $0x648] sm:$0xf]
    %v871 = vld [vmem:[%s2 + $0x64c] sm:$0xf]
    %v872 = vld [vmem:[%s2 + $0x650] sm:$0xf]
    %v873 = vld [vmem:[%s2 + $0x654] sm:$0xf]
    %v874 = vld [vmem:[%s2 + $0x658] sm:$0xf]
    %v875 = vld [vmem:[%s2 + $0x65c] sm:$0xf]
    %v876 = vld [vmem:[%s2 + $0x660] sm:$0xf]
    %v877 = vld [vmem:[%s2 + $0x664] sm:$0xf]
    %v878 = vld [vmem:[%s2 + $0x668] sm:$0xf]
    %v879 = vld [vmem:[%s2 + $0x66c] sm:$0xf]
    %v880 = vld [vmem:[%s2 + $0x670] sm:$0xf]
    %v881 = vld [vmem:[%s2 + $0x674] sm:$0xf]
    %v882 = vld [vmem:[%s2 + $0x678] sm:$0xf]
    %v883 = vld [vmem:[%s2 + $0x67c] sm:$0xf]
    %v884 = vld [vmem:[%s2 + $0x680] sm:$0xf]
    %v885 = vld [vmem:[%s2 + $0x684] sm:$0xf]
    %v886 = vld [vmem:[%s2 + $0x688] sm:$0xf]
    %v887 = vld [vmem:[%s2 + $0x68c] sm:$0xf]
    %v888 = vld [vmem:[%s2 + $0x690] sm:$0xf]
    %v889 = vld [vmem:[%s2 + $0x694] sm:$0xf]
    %v890 = vld [vmem:[%s2 + $0x698] sm:$0xf]
    %v891 = vld [vmem:[%s2 + $0x69c] sm:$0xf]
    %v892 = vld [vmem:[%s2 + $0x6a0] sm:$0xf]
    %v893 = vld [vmem:[%s2 + $0x6a4] sm:$0xf]
    %v894 = vld [vmem:[%s2 + $0x6a8] sm:$0xf]
    %v895 = vld [vmem:[%s2 + $0x6ac] sm:$0xf]
    %v896 = vld [vmem:[%s2 + $0x6b0] sm:$0xf]
    %v897 = vld [vmem:[%s2 + $0x6b4] sm:$0xf]
    %v898 = vld [vmem:[%s2 + $0x6b8] sm:$0xf]
    %v899 = vld [vmem:[%s2 + $0x6bc] sm:$0xf]
    %v900 = vld [vmem:[%s2 + $0x6c0] sm:$0xf]
    %v901 = vld [vmem:[%s2 + $0x6c4] sm:$0xf]
    %v902 = vld [vmem:[%s2 + $0x6c8] sm:$0xf]
    %v903 = vld [vmem:[%s2 + $0x6cc] sm:$0xf]
    %v904 = vld [vmem:[%s2 + $0x6d0] sm:$0xf]
    %v905 = vld [vmem:[%s2 + $0x6d4] sm:$0xf]
    %v906 = vld [vmem:[%s2 + $0x6d8] sm:$0xf]
    %v907 = vld [vmem:[%s2 + $0x6dc] sm:$0xf]
    %v908 = vld [vmem:[%s2 + $0x6e0] sm:$0xf]
    %v909 = vld [vmem:[%s2 + $0x6e4] sm:$0xf]
    %v910 = vld [vmem:[%s2 + $0x6e8] sm:$0xf]
    %v911 = vld [vmem:[%s2 + $0x6ec] sm:$0xf]
    %v912 = vld [vmem:[%s2 + $0x6f0] sm:$0xf]
    %v913 = vld [vmem:[%s2 + $0x6f4] sm:$0xf]
    %v914 = vld [vmem:[%s2 + $0x6f8] sm:$0xf]
    %v915 = vld [vmem:[%s2 + $0x6fc] sm:$0xf]
    %v916 = vld [vmem:[%s2 + $0x700] sm:$0xf]
    %v917 = vld [vmem:[%s2 + $0x704] sm:$0xf]
    %v918 = vld [vmem:[%s2 + $0x708] sm:$0xf]
    %v919 = vld [vmem:[%s2 + $0x70c] sm:$0xf]
    %v920 = vld [vmem:[%s2 + $0x710] sm:$0xf]
    %v921 = vld [vmem:[%s2 + $0x714] sm:$0xf]
    %v922 = vld [vmem:[%s2 + $0x718] sm:$0xf]
    %v923 = vld [vmem:[%s2 + $0x71c] sm:$0xf]
    %v924 = vld [vmem:[%s2 + $0x720] sm:$0xf]
    %v925 = vld [vmem:[%s2 + $0x724] sm:$0xf]
    %v926 = vld [vmem:[%s2 + $0x728] sm:$0xf]
    %v927 = vld [vmem:[%s2 + $0x72c] sm:$0xf]
    %v928 = vld [vmem:[%s2 + $0x730] sm:$0xf]
    %v929 = vld [vmem:[%s2 + $0x734] sm:$0xf]
    %v930 = vld [vmem:[%s2 + $0x738] sm:$0xf]
    %v931 = vld [vmem:[%s2 + $0x73c] sm:$0xf]
    %v932 = vld [vmem:[%s2 + $0x740] sm:$0xf]
    %v933 = vld [vmem:[%s2 + $0x744] sm:$0xf]
    %v934 = vld [vmem:[%s2 + $0x748] sm:$0xf]
    %v935 = vld [vmem:[%s2 + $0x74c] sm:$0xf]
    %v936 = vld [vmem:[%s2 + $0x750] sm:$0xf]
    %v937 = vld [vmem:[%s2 + $0x754] sm:$0xf]
    %v938 = vld [vmem:[%s2 + $0x758] sm:$0xf]
    %v939 = vld [vmem:[%s2 + $0x75c] sm:$0xf]
    %v940 = vld [vmem:[%s2 + $0x760] sm:$0xf]
    %v941 = vld [vmem:[%s2 + $0x764] sm:$0xf]
    %v942 = vld [vmem:[%s2 + $0x768] sm:$0xf]
    %v943 = vld [vmem:[%s2 + $0x76c] sm:$0xf]
    %v944 = vld [vmem:[%s2 + $0x770] sm:$0xf]
    %v945 = vld [vmem:[%s2 + $0x774] sm:$0xf]
    %v946 = vld [vmem:[%s2 + $0x778] sm:$0xf]
    %v947 = vld [vmem:[%s2 + $0x77c] sm:$0xf]
    %v948 = vld [vmem:[%s2 + $0x780] sm:$0xf]
    %v949 = vld [vmem:[%s2 + $0x784] sm:$0xf]
    %v950 = vld [vmem:[%s2 + $0x788] sm:$0xf]
    %v951 = vld [vmem:[%s2 + $0x78c] sm:$0xf]
    %v952 = vld [vmem:[%s2 + $0x790] sm:$0xf]
    %v953 = vld [vmem:[%s2 + $0x794] sm:$0xf]
    %v954 = vld [vmem:[%s2 + $0x798] sm:$0xf]
    %v955 = vld [vmem:[%s2 + $0x79c] sm:$0xf]
    %v956 = vld [vmem:[%s2 + $0x7a0] sm:$0xf]
    %v957 = vld [vmem:[%s2 + $0x7a4] sm:$0xf]
    %v958 = vld [vmem:[%s2 + $0x7a8] sm:$0xf]
    %v959 = vld [vmem:[%s2 + $0x7ac] sm:$0xf]
    %v960 = vld [vmem:[%s2 + $0x7b0] sm:$0xf]
    %v961 = vld [vmem:[%s2 + $0x7b4] sm:$0xf]
    %v962 = vld [vmem:[%s2 + $0x7b8] sm:$0xf]
    %v963 = vld [vmem:[%s2 + $0x7bc] sm:$0xf]
    %v964 = vld [vmem:[%s2 + $0x7c0] sm:$0xf]
    %v965 = vld [vmem:[%s2 + $0x7c4] sm:$0xf]
    %v966 = vld [vmem:[%s2 + $0x7c8] sm:$0xf]
    %v967 = vld [vmem:[%s2 + $0x7cc] sm:$0xf]
    %v968 = vld [vmem:[%s2 + $0x7d0] sm:$0xf]
    %v969 = vld [vmem:[%s2 + $0x7d4] sm:$0xf]
    %v970 = vld [vmem:[%s2 + $0x7d8] sm:$0xf]
    %v971 = vld [vmem:[%s2 + $0x7dc] sm:$0xf]
    %v972 = vld [vmem:[%s2 + $0x7e0] sm:$0xf]
    %v973 = vld [vmem:[%s2 + $0x7e4] sm:$0xf]
    %v974 = vld [vmem:[%s2 + $0x7e8] sm:$0xf]
    %v975 = vld [vmem:[%s2 + $0x7ec] sm:$0xf]
    %v976 = vld [vmem:[%s2 + $0x7f0] sm:$0xf]
    %v977 = vld [vmem:[%s2 + $0x7f4] sm:$0xf]
    %v978 = vld [vmem:[%s2 + $0x7f8] sm:$0xf]
    %v979 = vld [vmem:[%s2 + $0x7fc] sm:$0xf]
    %v980 = vld [vmem:[%s2 + $0x800] sm:$0xf]
    %v981 = vld [vmem:[%s2 + $0x804] sm:$0xf]
    %v982 = vld [vmem:[%s2 + $0x808] sm:$0xf]
    %v983 = vld [vmem:[%s2 + $0x80c] sm:$0xf]
    %v984 = vld [vmem:[%s2 + $0x810] sm:$0xf]
    %v985 = vld [vmem:[%s2 + $0x814] sm:$0xf]
    %v986 = vld [vmem:[%s2 + $0x818] sm:$0xf]
    %v987 = vld [vmem:[%s2 + $0x81c] sm:$0xf]
    %v988 = vld [vmem:[%s2 + $0x820] sm:$0xf]
    %v989 = vld [vmem:[%s2 + $0x824] sm:$0xf]
    %v990 = vld [vmem:[%s2 + $0x828] sm:$0xf]
    %v991 = vld [vmem:[%s2 + $0x82c] sm:$0xf]
    %v992 = vld [vmem:[%s2 + $0x830] sm:$0xf]
    %v993 = vld [vmem:[%s2 + $0x834] sm:$0xf]
    %v994 = vld [vmem:[%s2 + $0x838] sm:$0xf]
    %v995 = vld [vmem:[%s2 + $0x83c] sm:$0xf]
    %v996 = vld [vmem:[%s2 + $0x840] sm:$0xf]
    %v997 = vld [vmem:[%s2 + $0x844] sm:$0xf]
    %v998 = vld [vmem:[%s2 + $0x848] sm:$0xf]
    %v999 = vld [vmem:[%s2 + $0x84c] sm:$0xf]
    %v1000 = vld [vmem:[%s2 + $0x850] sm:$0xf]
    %v1001 = vld [vmem:[%s2 + $0x854] sm:$0xf]
    %v1002 = vld [vmem:[%s2 + $0x858] sm:$0xf]
    %v1003 = vld [vmem:[%s2 + $0x85c] sm:$0xf]
    %v1004 = vld [vmem:[%s2 + $0x860] sm:$0xf]
    %v1005 = vld [vmem:[%s2 + $0x864] sm:$0xf]
    %v1006 = vld [vmem:[%s2 + $0x868] sm:$0xf]
    %v1007 = vld [vmem:[%s2 + $0x86c] sm:$0xf]
    %v1008 = vld [vmem:[%s2 + $0x870] sm:$0xf]
    %v1009 = vld [vmem:[%s2 + $0x874] sm:$0xf]
    %v1010 = vld [vmem:[%s2 + $0x878] sm:$0xf]
    %v1011 = vld [vmem:[%s2 + $0x87c] sm:$0xf]
    %v1012 = vld [vmem:[%s2 + $0x880] sm:$0xf]
    %v1013 = vld [vmem:[%s2 + $0x884] sm:$0xf]
    %v1014 = vld [vmem:[%s2 + $0x888] sm:$0xf]
    %v1015 = vld [vmem:[%s2 + $0x88c] sm:$0xf]
    %v1016 = vld [vmem:[%s2 + $0x890] sm:$0xf]
    %v1017 = vld [vmem:[%s2 + $0x894] sm:$0xf]
    %v1018 = vld [vmem:[%s2 + $0x898] sm:$0xf]
    %v1019 = vld [vmem:[%s2 + $0x89c] sm:$0xf]
    %v1020 = vld [vmem:[%s2 + $0x8a0] sm:$0xf]
    %v1021 = vld [vmem:[%s2 + $0x8a4] sm:$0xf]
    %v1022 = vld [vmem:[%s2 + $0x8a8] sm:$0xf]
    %v1023 = vld [vmem:[%s2 + $0x8ac] sm:$0xf]
    %v1024 = vld [vmem:[%s2 + $0x8b0] sm:$0xf]
    %v1025 = vld [vmem:[%s2 + $0x8b4] sm:$0xf]
    %v1026 = vld [vmem:[%s2 + $0x8b8] sm:$0xf]
    %v1027 = vld [vmem:[%s2 + $0x8bc] sm:$0xf]
    %v1028 = vld [vmem:[%s2 + $0x8c0] sm:$0xf]
    %v1029 = vld [vmem:[%s2 + $0x8c4] sm:$0xf]
    %v1030 = vld [vmem:[%s2 + $0x8c8] sm:$0xf]
    %v1031 = vld [vmem:[%s2 + $0x8cc] sm:$0xf]
    %v1032 = vld [vmem:[%s2 + $0x8d0] sm:$0xf]
    %v1033 = vld [vmem:[%s2 + $0x8d4] sm:$0xf]
    %v1034 = vld [vmem:[%s2 + $0x8d8] sm:$0xf]
    %v1035 = vld [vmem:[%s2 + $0x8dc] sm:$0xf]
    %v1036 = vld [vmem:[%s2 + $0x8e0] sm:$0xf]
    %v1037 = vld [vmem:[%s2 + $0x8e4] sm:$0xf]
    %v1038 = vld [vmem:[%s2 + $0x8e8] sm:$0xf]
    %v1039 = vld [vmem:[%s2 + $0x8ec] sm:$0xf]
    %v1040 = vld [vmem:[%s2 + $0x8f0] sm:$0xf]
    %v1041 = vld [vmem:[%s2 + $0x8f4] sm:$0xf]
    %v1042 = vld [vmem:[%s2 + $0x8f8] sm:$0xf]
    %v1043 = vld [vmem:[%s2 + $0x8fc] sm:$0xf]
    %v1044 = vld [vmem:[%s2 + $0x900] sm:$0xf]
    %v1045 = vld [vmem:[%s2 + $0x904] sm:$0xf]
    %v1046 = vld [vmem:[%s2 + $0x908] sm:$0xf]
    %v1047 = vld [vmem:[%s2 + $0x90c] sm:$0xf]
    %v1048 = vld [vmem:[%s2 + $0x910] sm:$0xf]
    %v1049 = vld [vmem:[%s2 + $0x914] sm:$0xf]
    %v1050 = vld [vmem:[%s2 + $0x918] sm:$0xf]
    %v1051 = vld [vmem:[%s2 + $0x91c] sm:$0xf]
    %v1052 = vld [vmem:[%s2 + $0x920] sm:$0xf]
    %v1053 = vld [vmem:[%s2 + $0x924] sm:$0xf]
    %v1054 = vld [vmem:[%s2 + $0x928] sm:$0xf]
    %v1055 = vld [vmem:[%s2 + $0x92c] sm:$0xf]
    %v1056 = vld [vmem:[%s2 + $0x930] sm:$0xf]
    %v1057 = vld [vmem:[%s2 + $0x934] sm:$0xf]
    %v1058 = vld [vmem:[%s2 + $0x938] sm:$0xf]
    %v1059 = vld [vmem:[%s2 + $0x93c] sm:$0xf]
    %v1060 = vld [vmem:[%s2 + $0x940] sm:$0xf]
    %v1061 = vld [vmem:[%s2 + $0x944] sm:$0xf]
    %v1062 = vld [vmem:[%s2 + $0x948] sm:$0xf]
    %v1063 = vld [vmem:[%s2 + $0x94c] sm:$0xf]
    %v1064 = vld [vmem:[%s2 + $0x950] sm:$0xf]
    %v1065 = vld [vmem:[%s2 + $0x954] sm:$0xf]
    %v1066 = vld [vmem:[%s2 + $0x958] sm:$0xf]
    %v1067 = vld [vmem:[%s2 + $0x95c] sm:$0xf]
    %v1068 = vld [vmem:[%s2 + $0x960] sm:$0xf]
    %v1069 = vld [vmem:[%s2 + $0x964] sm:$0xf]
    %v1070 = vld [vmem:[%s2 + $0x968] sm:$0xf]
    %v1071 = vld [vmem:[%s2 + $0x96c] sm:$0xf]
    %v1072 = vld [vmem:[%s2 + $0x970] sm:$0xf]
    %v1073 = vld [vmem:[%s2 + $0x974] sm:$0xf]
    %v1074 = vld [vmem:[%s2 + $0x978] sm:$0xf]
    %v1075 = vld [vmem:[%s2 + $0x97c] sm:$0xf]
    %v1076 = vld [vmem:[%s2 + $0x980] sm:$0xf]
    %v1077 = vld [vmem:[%s2 + $0x984] sm:$0xf]
    %v1078 = vld [vmem:[%s2 + $0x988] sm:$0xf]
    %v1079 = vld [vmem:[%s2 + $0x98c] sm:$0xf]
    %v1080 = vld [vmem:[%s2 + $0x990] sm:$0xf]
    %v1081 = vld [vmem:[%s2 + $0x994] sm:$0xf]
    %v1082 = vld [vmem:[%s2 + $0x998] sm:$0xf]
    %v1083 = vld [vmem:[%s2 + $0x99c] sm:$0xf]
    %v1084 = vld [vmem:[%s2 + $0x9a0] sm:$0xf]
    %v1085 = vld [vmem:[%s2 + $0x9a4] sm:$0xf]
    %v1086 = vld [vmem:[%s2 + $0x9a8] sm:$0xf]
    %v1087 = vld [vmem:[%s2 + $0x9ac] sm:$0xf]
    %v1088 = vld [vmem:[%s2 + $0x9b0] sm:$0xf]
    %v1089 = vld [vmem:[%s2 + $0x9b4] sm:$0xf]
    %v1090 = vld [vmem:[%s2 + $0x9b8] sm:$0xf]
    %v1091 = vld [vmem:[%s2 + $0x9bc] sm:$0xf]
    %v1092 = vld [vmem:[%s2 + $0x9c0] sm:$0xf]
    %v1093 = vld [vmem:[%s2 + $0x9c4] sm:$0xf]
    %v1094 = vld [vmem:[%s2 + $0x9c8] sm:$0xf]
    %v1095 = vld [vmem:[%s2 + $0x9cc] sm:$0xf]
    %v1096 = vld [vmem:[%s2 + $0x9d0] sm:$0xf]
    %v1097 = vld [vmem:[%s2 + $0x9d4] sm:$0xf]
    %v1098 = vld [vmem:[%s2 + $0x9d8] sm:$0xf]
    %v1099 = vld [vmem:[%s2 + $0x9dc] sm:$0xf]
    %v1100 = vld [vmem:[%s2 + $0x9e0] sm:$0xf]
    %v1101 = vld [vmem:[%s2 + $0x9e4] sm:$0xf]
    %v1102 = vld [vmem:[%s2 + $0x9e8] sm:$0xf]
    %v1103 = vld [vmem:[%s2 + $0x9ec] sm:$0xf]
    %v1104 = vld [vmem:[%s2 + $0x9f0] sm:$0xf]
    %v1105 = vld [vmem:[%s2 + $0x9f4] sm:$0xf]
    %v1106 = vld [vmem:[%s2 + $0x9f8] sm:$0xf]
    %v1107 = vld [vmem:[%s2 + $0x9fc] sm:$0xf]
    %v1108 = vld [vmem:[%s2 + $0xa00] sm:$0xf]
    %v1109 = vld [vmem:[%s2 + $0xa04] sm:$0xf]
    %v1110 = vld [vmem:[%s2 + $0xa08] sm:$0xf]
    %v1111 = vld [vmem:[%s2 + $0xa0c] sm:$0xf]
    %v1112 = vld [vmem:[%s2 + $0xa10] sm:$0xf]
    %v1113 = vld [vmem:[%s2 + $0xa14] sm:$0xf]
    %v1114 = vld [vmem:[%s2 + $0xa18] sm:$0xf]
    %v1115 = vld [vmem:[%s2 + $0xa1c] sm:$0xf]
    %v1116 = vld [vmem:[%s2 + $0xa20] sm:$0xf]
    %v1117 = vld [vmem:[%s2 + $0xa24] sm:$0xf]
    %v1118 = vld [vmem:[%s2 + $0xa28] sm:$0xf]
    %v1119 = vld [vmem:[%s2 + $0xa2c] sm:$0xf]
    %v1120 = vld [vmem:[%s2 + $0xa30] sm:$0xf]
    %v1121 = vld [vmem:[%s2 + $0xa34] sm:$0xf]
    %v1122 = vld [vmem:[%s2 + $0xa38] sm:$0xf]
    %v1123 = vld [vmem:[%s2 + $0xa3c] sm:$0xf]
    %v1124 = vld [vmem:[%s2 + $0xa40] sm:$0xf]
    %v1125 = vld [vmem:[%s2 + $0xa44] sm:$0xf]
    %v1126 = vld [vmem:[%s2 + $0xa48] sm:$0xf]
    %v1127 = vld [vmem:[%s2 + $0xa4c] sm:$0xf]
    %v1128 = vld [vmem:[%s2 + $0xa50] sm:$0xf]
    %v1129 = vld [vmem:[%s2 + $0xa54] sm:$0xf]
    %v1130 = vld [vmem:[%s2 + $0xa58] sm:$0xf]
    %v1131 = vld [vmem:[%s2 + $0xa5c] sm:$0xf]
    %v1132 = vld [vmem:[%s2 + $0xa60] sm:$0xf]
    %v1133 = vld [vmem:[%s2 + $0xa64] sm:$0xf]
    %v1134 = vld [vmem:[%s2 + $0xa68] sm:$0xf]
    %v1135 = vld [vmem:[%s2 + $0xa6c] sm:$0xf]
    %v1136 = vld [vmem:[%s2 + $0xa70] sm:$0xf]
    %v1137 = vld [vmem:[%s2 + $0xa74] sm:$0xf]
    %v1138 = vld [vmem:[%s2 + $0xa78] sm:$0xf]
    %v1139 = vld [vmem:[%s2 + $0xa7c] sm:$0xf]
    %v1140 = vld [vmem:[%s2 + $0xa80] sm:$0xf]
    %v1141 = vld [vmem:[%s2 + $0xa84] sm:$0xf]
    %v1142 = vld [vmem:[%s2 + $0xa88] sm:$0xf]
    %v1143 = vld [vmem:[%s2 + $0xa8c] sm:$0xf]
    %v1144 = vld [vmem:[%s2 + $0xa90] sm:$0xf]
    %v1145 = vld [vmem:[%s2 + $0xa94] sm:$0xf]
    %v1146 = vld [vmem:[%s2 + $0xa98] sm:$0xf]
    %v1147 = vld [vmem:[%s2 + $0xa9c] sm:$0xf]
    %v1148 = vld [vmem:[%s2 + $0xaa0] sm:$0xf]
    %v1149 = vld [vmem:[%s2 + $0xaa4] sm:$0xf]
    %v1150 = vld [vmem:[%s2 + $0xaa8] sm:$0xf]
    %v1151 = vld [vmem:[%s2 + $0xaac] sm:$0xf]
    %v1152 = vld [vmem:[%s2 + $0xab0] sm:$0xf]
    %v1153 = vld [vmem:[%s2 + $0xab4] sm:$0xf]
    %v1154 = vld [vmem:[%s2 + $0xab8] sm:$0xf]
    %v1155 = vld [vmem:[%s2 + $0xabc] sm:$0xf]
    %v1156 = vld [vmem:[%s2 + $0xac0] sm:$0xf]
    %v1157 = vld [vmem:[%s2 + $0xac4] sm:$0xf]
    %v1158 = vld [vmem:[%s2 + $0xac8] sm:$0xf]
    %v1159 = vld [vmem:[%s2 + $0xacc] sm:$0xf]
    %v1160 = vld [vmem:[%s2 + $0xad0] sm:$0xf]
    %v1161 = vld [vmem:[%s2 + $0xad4] sm:$0xf]
    %v1162 = vld [vmem:[%s2 + $0xad8] sm:$0xf]
    %v1163 = vld [vmem:[%s2 + $0xadc] sm:$0xf]
    %v1164 = vld [vmem:[%s2 + $0xae0] sm:$0xf]
    %v1165 = vld [vmem:[%s2 + $0xae4] sm:$0xf]
    %v1166 = vld [vmem:[%s2 + $0xae8] sm:$0xf]
    %v1167 = vld [vmem:[%s2 + $0xaec] sm:$0xf]
    %v1168 = vld [vmem:[%s2 + $0xaf0] sm:$0xf]
    %v1169 = vld [vmem:[%s2 + $0xaf4] sm:$0xf]
    %v1170 = vld [vmem:[%s2 + $0xaf8] sm:$0xf]
    %v1171 = vld [vmem:[%s2 + $0xafc] sm:$0xf]
    %v1172 = vld [vmem:[%s2 + $0xb00] sm:$0xf]
    %v1173 = vld [vmem:[%s2 + $0xb04] sm:$0xf]
    %v1174 = vld [vmem:[%s2 + $0xb08] sm:$0xf]
    %v1175 = vld [vmem:[%s2 + $0xb0c] sm:$0xf]
    %v1176 = vld [vmem:[%s2 + $0xb10] sm:$0xf]
    %v1177 = vld [vmem:[%s2 + $0xb14] sm:$0xf]
    %v1178 = vld [vmem:[%s2 + $0xb18] sm:$0xf]
    %v1179 = vld [vmem:[%s2 + $0xb1c] sm:$0xf]
    %v1180 = vld [vmem:[%s2 + $0xb20] sm:$0xf]
    %v1181 = vld [vmem:[%s2 + $0xb24] sm:$0xf]
    %v1182 = vld [vmem:[%s2 + $0xb28] sm:$0xf]
    %v1183 = vld [vmem:[%s2 + $0xb2c] sm:$0xf]
    %v1184 = vld [vmem:[%s2 + $0xb30] sm:$0xf]
    %v1185 = vld [vmem:[%s2 + $0xb34] sm:$0xf]
    %v1186 = vld [vmem:[%s2 + $0xb38] sm:$0xf]
    %v1187 = vld [vmem:[%s2 + $0xb3c] sm:$0xf]
    %v1188 = vld [vmem:[%s2 + $0xb40] sm:$0xf]
    %v1189 = vld [vmem:[%s2 + $0xb44] sm:$0xf]
    %v1190 = vld [vmem:[%s2 + $0xb48] sm:$0xf]
    %v1191 = vld [vmem:[%s2 + $0xb4c] sm:$0xf]
    %v1192 = vld [vmem:[%s2 + $0xb50] sm:$0xf]
    %v1193 = vld [vmem:[%s2 + $0xb54] sm:$0xf]
    %v1194 = vld [vmem:[%s2 + $0xb58] sm:$0xf]
    %v1195 = vld [vmem:[%s2 + $0xb5c] sm:$0xf]
    %v1196 = vld [vmem:[%s2 + $0xb60] sm:$0xf]
    %v1197 = vld [vmem:[%s2 + $0xb64] sm:$0xf]
    %v1198 = vld [vmem:[%s2 + $0xb68] sm:$0xf]
    %v1199 = vld [vmem:[%s2 + $0xb6c] sm:$0xf]
    %v1200 = vld [vmem:[%s2 + $0xb70] sm:$0xf]
    %v1201 = vld [vmem:[%s2 + $0xb74] sm:$0xf]
    %v1202 = vld [vmem:[%s2 + $0xb78] sm:$0xf]
    %v1203 = vld [vmem:[%s2 + $0xb7c] sm:$0xf]
    %v1204 = vld [vmem:[%s2 + $0xb80] sm:$0xf]
    %v1205 = vld [vmem:[%s2 + $0xb84] sm:$0xf]
    %v1206 = vld [vmem:[%s2 + $0xb88] sm:$0xf]
    %v1207 = vld [vmem:[%s2 + $0xb8c] sm:$0xf]
    %v1208 = vld [vmem:[%s2 + $0xb90] sm:$0xf]
    %v1209 = vld [vmem:[%s2 + $0xb94] sm:$0xf]
    %v1210 = vld [vmem:[%s2 + $0xb98] sm:$0xf]
    %v1211 = vld [vmem:[%s2 + $0xb9c] sm:$0xf]
    %v1212 = vld [vmem:[%s2 + $0xba0] sm:$0xf]
    %v1213 = vld [vmem:[%s2 + $0xba4] sm:$0xf]
    %v1214 = vld [vmem:[%s2 + $0xba8] sm:$0xf]
    %v1215 = vld [vmem:[%s2 + $0xbac] sm:$0xf]
    %v1216 = vld [vmem:[%s2 + $0xbb0] sm:$0xf]
    %v1217 = vld [vmem:[%s2 + $0xbb4] sm:$0xf]
    %v1218 = vld [vmem:[%s2 + $0xbb8] sm:$0xf]
    %v1219 = vld [vmem:[%s2 + $0xbbc] sm:$0xf]
    %v1220 = vld [vmem:[%s2 + $0xbc0] sm:$0xf]
    %v1221 = vld [vmem:[%s2 + $0xbc4] sm:$0xf]
    %v1222 = vld [vmem:[%s2 + $0xbc8] sm:$0xf]
    %v1223 = vld [vmem:[%s2 + $0xbcc] sm:$0xf]
    %v1224 = vld [vmem:[%s2 + $0xbd0] sm:$0xf]
    %v1225 = vld [vmem:[%s2 + $0xbd4] sm:$0xf]
    %v1226 = vld [vmem:[%s2 + $0xbd8] sm:$0xf]
    %v1227 = vld [vmem:[%s2 + $0xbdc] sm:$0xf]
    %v1228 = vld [vmem:[%s2 + $0xbe0] sm:$0xf]
    %v1229 = vld [vmem:[%s2 + $0xbe4] sm:$0xf]
    %v1230 = vld [vmem:[%s2 + $0xbe8] sm:$0xf]
    %v1231 = vld [vmem:[%s2 + $0xbec] sm:$0xf]
    %v1232 = vld [vmem:[%s2 + $0xbf0] sm:$0xf]
    %v1233 = vld [vmem:[%s2 + $0xbf4] sm:$0xf]
    %v1234 = vld [vmem:[%s2 + $0xbf8] sm:$0xf]
    %v1235 = vld [vmem:[%s2 + $0xbfc] sm:$0xf]
    %v1236 = vld [vmem:[%s2 + $0xc00] sm:$0xf]
    %v1237 = vld [vmem:[%s2 + $0xc04] sm:$0xf]
    %v1238 = vld [vmem:[%s2 + $0xc08] sm:$0xf]
    %v1239 = vld [vmem:[%s2 + $0xc0c] sm:$0xf]
    %v1240 = vld [vmem:[%s2 + $0xc10] sm:$0xf]
    %v1241 = vld [vmem:[%s2 + $0xc14] sm:$0xf]
    %v1242 = vld [vmem:[%s2 + $0xc18] sm:$0xf]
    %v1243 = vld [vmem:[%s2 + $0xc1c] sm:$0xf]
    %v1244 = vld [vmem:[%s2 + $0xc20] sm:$0xf]
    %v1245 = vld [vmem:[%s2 + $0xc24] sm:$0xf]
    %v1246 = vld [vmem:[%s2 + $0xc28] sm:$0xf]
    %v1247 = vld [vmem:[%s2 + $0xc2c] sm:$0xf]
    %v1248 = vld [vmem:[%s2 + $0xc30] sm:$0xf]
    %v1249 = vld [vmem:[%s2 + $0xc34] sm:$0xf]
    %v1250 = vld [vmem:[%s2 + $0xc38] sm:$0xf]
    %v1251 = vld [vmem:[%s2 + $0xc3c] sm:$0xf]
    %v1252 = vld [vmem:[%s2 + $0xc40] sm:$0xf]
    %v1253 = vld [vmem:[%s2 + $0xc44] sm:$0xf]
    %v1254 = vld [vmem:[%s2 + $0xc48] sm:$0xf]
    %v1255 = vld [vmem:[%s2 + $0xc4c] sm:$0xf]
    %v1256 = vld [vmem:[%s2 + $0xc50] sm:$0xf]
    %v1257 = vld [vmem:[%s2 + $0xc54] sm:$0xf]
    %v1258 = vld [vmem:[%s2 + $0xc58] sm:$0xf]
    %v1259 = vld [vmem:[%s2 + $0xc5c] sm:$0xf]
    %v1260 = vld [vmem:[%s2 + $0xc60] sm:$0xf]
    %v1261 = vld [vmem:[%s2 + $0xc64] sm:$0xf]
    %v1262 = vld [vmem:[%s2 + $0xc68] sm:$0xf]
    %v1263 = vld [vmem:[%s2 + $0xc6c] sm:$0xf]
    %v1264 = vld [vmem:[%s2 + $0xc70] sm:$0xf]
    %v1265 = vld [vmem:[%s2 + $0xc74] sm:$0xf]
    %v1266 = vld [vmem:[%s2 + $0xc78] sm:$0xf]
    %v1267 = vld [vmem:[%s2 + $0xc7c] sm:$0xf]
    %v1268 = vld [vmem:[%s2 + $0xc80] sm:$0xf]
    %v1269 = vld [vmem:[%s2 + $0xc84] sm:$0xf]
    %v1270 = vld [vmem:[%s2 + $0xc88] sm:$0xf]
    %v1271 = vld [vmem:[%s2 + $0xc8c] sm:$0xf]
    %v1272 = vld [vmem:[%s2 + $0xc90] sm:$0xf]
    %v1273 = vld [vmem:[%s2 + $0xc94] sm:$0xf]
    %v1274 = vld [vmem:[%s2 + $0xc98] sm:$0xf]
    %v1275 = vld [vmem:[%s2 + $0xc9c] sm:$0xf]
    %v1276 = vld [vmem:[%s2 + $0xca0] sm:$0xf]
    %v1277 = vld [vmem:[%s2 + $0xca4] sm:$0xf]
    %v1278 = vld [vmem:[%s2 + $0xca8] sm:$0xf]
    %v1279 = vld [vmem:[%s2 + $0xcac] sm:$0xf]
    %v1280 = vld [vmem:[%s2 + $0xcb0] sm:$0xf]
    %v1281 = vld [vmem:[%s2 + $0xcb4] sm:$0xf]
    %v1282 = vld [vmem:[%s2 + $0xcb8] sm:$0xf]
    %v1283 = vld [vmem:[%s2 + $0xcbc] sm:$0xf]
    %v1284 = vld [vmem:[%s2 + $0xcc0] sm:$0xf]
    %v1285 = vld [vmem:[%s2 + $0xcc4] sm:$0xf]
    %v1286 = vld [vmem:[%s2 + $0xcc8] sm:$0xf]
    %v1287 = vld [vmem:[%s2 + $0xccc] sm:$0xf]
    %v1288 = vld [vmem:[%s2 + $0xcd0] sm:$0xf]
    %v1289 = vld [vmem:[%s2 + $0xcd4] sm:$0xf]
    %v1290 = vld [vmem:[%s2 + $0xcd8] sm:$0xf]
    %v1291 = vld [vmem:[%s2 + $0xcdc] sm:$0xf]
    %v1292 = vld [vmem:[%s2 + $0xce0] sm:$0xf]
    %v1293 = vld [vmem:[%s2 + $0xce4] sm:$0xf]
    %v1294 = vld [vmem:[%s2 + $0xce8] sm:$0xf]
    %v1295 = vld [vmem:[%s2 + $0xcec] sm:$0xf]
    %v1296 = vld [vmem:[%s2 + $0xcf0] sm:$0xf]
    %v1297 = vld [vmem:[%s2 + $0xcf4] sm:$0xf]
    %v1298 = vld [vmem:[%s2 + $0xcf8] sm:$0xf]
    %v1299 = vld [vmem:[%s2 + $0xcfc] sm:$0xf]
    %v1300 = vld [vmem:[%s2 + $0xd00] sm:$0xf]
    %v1301 = vld [vmem:[%s2 + $0xd04] sm:$0xf]
    %v1302 = vld [vmem:[%s2 + $0xd08] sm:$0xf]
    %v1303 = vld [vmem:[%s2 + $0xd0c] sm:$0xf]
    %v1304 = vld [vmem:[%s2 + $0xd10] sm:$0xf]
    %v1305 = vld [vmem:[%s2 + $0xd14] sm:$0xf]
    %v1306 = vld [vmem:[%s2 + $0xd18] sm:$0xf]
    %v1307 = vld [vmem:[%s2 + $0xd1c] sm:$0xf]
    %v1308 = vld [vmem:[%s2 + $0xd20] sm:$0xf]
    %v1309 = vld [vmem:[%s2 + $0xd24] sm:$0xf]
    %v1310 = vld [vmem:[%s2 + $0xd28] sm:$0xf]
    %v1311 = vld [vmem:[%s2 + $0xd2c] sm:$0xf]
    %v1312 = vld [vmem:[%s2 + $0xd30] sm:$0xf]
    %v1313 = vld [vmem:[%s2 + $0xd34] sm:$0xf]
    %v1314 = vld [vmem:[%s2 + $0xd38] sm:$0xf]
    %v1315 = vld [vmem:[%s2 + $0xd3c] sm:$0xf]
    %v1316 = vld [vmem:[%s2 + $0xd40] sm:$0xf]
    %v1317 = vld [vmem:[%s2 + $0xd44] sm:$0xf]
    %v1318 = vld [vmem:[%s2 + $0xd48] sm:$0xf]
    %v1319 = vld [vmem:[%s2 + $0xd4c] sm:$0xf]
    %v1320 = vld [vmem:[%s2 + $0xd50] sm:$0xf]
    %v1321 = vld [vmem:[%s2 + $0xd54] sm:$0xf]
    %v1322 = vld [vmem:[%s2 + $0xd58] sm:$0xf]
    %v1323 = vld [vmem:[%s2 + $0xd5c] sm:$0xf]
    %v1324 = vld [vmem:[%s2 + $0xd60] sm:$0xf]
    %v1325 = vld [vmem:[%s2 + $0xd64] sm:$0xf]
    %v1326 = vld [vmem:[%s2 + $0xd68] sm:$0xf]
    %v1327 = vld [vmem:[%s2 + $0xd6c] sm:$0xf]
    %v1328 = vld [vmem:[%s2 + $0xd70] sm:$0xf]
    %v1329 = vld [vmem:[%s2 + $0xd74] sm:$0xf]
    %v1330 = vld [vmem:[%s2 + $0xd78] sm:$0xf]
    %v1331 = vld [vmem:[%s2 + $0xd7c] sm:$0xf]
    %v1332 = vld [vmem:[%s2 + $0xd80] sm:$0xf]
    %v1333 = vld [vmem:[%s2 + $0xd84] sm:$0xf]
    %v1334 = vld [vmem:[%s2 + $0xd88] sm:$0xf]
    %v1335 = vld [vmem:[%s2 + $0xd8c] sm:$0xf]
    %v1336 = vld [vmem:[%s2 + $0xd90] sm:$0xf]
    %v1337 = vld [vmem:[%s2 + $0xd94] sm:$0xf]
    %v1338 = vld [vmem:[%s2 + $0xd98] sm:$0xf]
    %v1339 = vld [vmem:[%s2 + $0xd9c] sm:$0xf]
    %v1340 = vld [vmem:[%s2 + $0xda0] sm:$0xf]
    %v1341 = vld [vmem:[%s2 + $0xda4] sm:$0xf]
    %v1342 = vld [vmem:[%s2 + $0xda8] sm:$0xf]
    %v1343 = vld [vmem:[%s2 + $0xdac] sm:$0xf]
    %v1344 = vld [vmem:[%s2 + $0xdb0] sm:$0xf]
    %v1345 = vld [vmem:[%s2 + $0xdb4] sm:$0xf]
    %v1346 = vld [vmem:[%s2 + $0xdb8] sm:$0xf]
    %v1347 = vld [vmem:[%s2 + $0xdbc] sm:$0xf]
    %v1348 = vld [vmem:[%s2 + $0xdc0] sm:$0xf]
    %v1349 = vld [vmem:[%s2 + $0xdc4] sm:$0xf]
    %v1350 = vld [vmem:[%s2 + $0xdc8] sm:$0xf]
    %v1351 = vld [vmem:[%s2 + $0xdcc] sm:$0xf]
    %v1352 = vld [vmem:[%s2 + $0xdd0] sm:$0xf]
    %v1353 = vld [vmem:[%s2 + $0xdd4] sm:$0xf]
    %v1354 = vld [vmem:[%s2 + $0xdd8] sm:$0xf]
    %v1355 = vld [vmem:[%s2 + $0xddc] sm:$0xf]
    %v1356 = vld [vmem:[%s2 + $0xde0] sm:$0xf]
    %v1357 = vld [vmem:[%s2 + $0xde4] sm:$0xf]
    %v1358 = vld [vmem:[%s2 + $0xde8] sm:$0xf]
    %v1359 = vld [vmem:[%s2 + $0xdec] sm:$0xf]
    %v1360 = vld [vmem:[%s2 + $0xdf0] sm:$0xf]
    %v1361 = vld [vmem:[%s2 + $0xdf4] sm:$0xf]
    %v1362 = vld [vmem:[%s2 + $0xdf8] sm:$0xf]
    %v1363 = vld [vmem:[%s2 + $0xdfc] sm:$0xf]
    %v1364 = vld [vmem:[%s2 + $0xe00] sm:$0xf]
    %v1365 = vld [vmem:[%s2 + $0xe04] sm:$0xf]
    %v1366 = vld [vmem:[%s2 + $0xe08] sm:$0xf]
    %v1367 = vld [vmem:[%s2 + $0xe0c] sm:$0xf]
    %v1368 = vld [vmem:[%s2 + $0xe10] sm:$0xf]
    %v1369 = vld [vmem:[%s2 + $0xe14] sm:$0xf]
    %v1370 = vld [vmem:[%s2 + $0xe18] sm:$0xf]
    %v1371 = vld [vmem:[%s2 + $0xe1c] sm:$0xf]
    %v1372 = vld [vmem:[%s2 + $0xe20] sm:$0xf]
    %v1373 = vld [vmem:[%s2 + $0xe24] sm:$0xf]
    %v1374 = vld [vmem:[%s2 + $0xe28] sm:$0xf]
    %v1375 = vld [vmem:[%s2 + $0xe2c] sm:$0xf]
    %v1376 = vld [vmem:[%s2 + $0xe30] sm:$0xf]
    %v1377 = vld [vmem:[%s2 + $0xe34] sm:$0xf]
    %v1378 = vld [vmem:[%s2 + $0xe38] sm:$0xf]
    %v1379 = vld [vmem:[%s2 + $0xe3c] sm:$0xf]
    %v1380 = vld [vmem:[%s2 + $0xe40] sm:$0xf]
    %v1381 = vld [vmem:[%s2 + $0xe44] sm:$0xf]
    %v1382 = vld [vmem:[%s2 + $0xe48] sm:$0xf]
    %v1383 = vld [vmem:[%s2 + $0xe4c] sm:$0xf]
    %v1384 = vld [vmem:[%s2 + $0xe50] sm:$0xf]
    %v1385 = vld [vmem:[%s2 + $0xe54] sm:$0xf]
    %v1386 = vld [vmem:[%s2 + $0xe58] sm:$0xf]
    %v1387 = vld [vmem:[%s2 + $0xe5c] sm:$0xf]
    %v1388 = vld [vmem:[%s2 + $0xe60] sm:$0xf]
    %v1389 = vld [vmem:[%s2 + $0xe64] sm:$0xf]
    %v1390 = vld [vmem:[%s2 + $0xe68] sm:$0xf]
    %v1391 = vld [vmem:[%s2 + $0xe6c] sm:$0xf]
    %v1392 = vld [vmem:[%s2 + $0xe70] sm:$0xf]
    %v1393 = vld [vmem:[%s2 + $0xe74] sm:$0xf]
    %v1394 = vld [vmem:[%s2 + $0xe78] sm:$0xf]
    %v1395 = vld [vmem:[%s2 + $0xe7c] sm:$0xf]
    %v1396 = vld [vmem:[%s2 + $0xe80] sm:$0xf]
    %v1397 = vld [vmem:[%s2 + $0xe84] sm:$0xf]
    %v1398 = vld [vmem:[%s2 + $0xe88] sm:$0xf]
    %v1399 = vld [vmem:[%s2 + $0xe8c] sm:$0xf]
    %v1400 = vld [vmem:[%s2 + $0xe90] sm:$0xf]
    %v1401 = vld [vmem:[%s2 + $0xe94] sm:$0xf]
    %v1402 = vld [vmem:[%s2 + $0xe98] sm:$0xf]
    %v1403 = vld [vmem:[%s2 + $0xe9c] sm:$0xf]
    %v1404 = vld [vmem:[%s2 + $0xea0] sm:$0xf]
    %v1405 = vld [vmem:[%s2 + $0xea4] sm:$0xf]
    %v1406 = vld [vmem:[%s2 + $0xea8] sm:$0xf]
    %v1407 = vld [vmem:[%s2 + $0xeac] sm:$0xf]
    %v1408 = vld [vmem:[%s2 + $0xeb0] sm:$0xf]
    %v1409 = vld [vmem:[%s2 + $0xeb4] sm:$0xf]
    %v1410 = vld [vmem:[%s2 + $0xeb8] sm:$0xf]
    %v1411 = vld [vmem:[%s2 + $0xebc] sm:$0xf]
    %v1412 = vld [vmem:[%s2 + $0xec0] sm:$0xf]
    %v1413 = vld [vmem:[%s2 + $0xec4] sm:$0xf]
    %v1414 = vld [vmem:[%s2 + $0xec8] sm:$0xf]
    %v1415 = vld [vmem:[%s2 + $0xecc] sm:$0xf]
    %v1416 = vld [vmem:[%s2 + $0xed0] sm:$0xf]
    %v1417 = vld [vmem:[%s2 + $0xed4] sm:$0xf]
    %v1418 = vld [vmem:[%s2 + $0xed8] sm:$0xf]
    %v1419 = vld [vmem:[%s2 + $0xedc] sm:$0xf]
    %v1420 = vld [vmem:[%s2 + $0xee0] sm:$0xf]
    %v1421 = vld [vmem:[%s2 + $0xee4] sm:$0xf]
    %v1422 = vld [vmem:[%s2 + $0xee8] sm:$0xf]
    %v1423 = vld [vmem:[%s2 + $0xeec] sm:$0xf]
    %v1424 = vld [vmem:[%s2 + $0xef0] sm:$0xf]
    %v1425 = vld [vmem:[%s2 + $0xef4] sm:$0xf]
    %v1426 = vld [vmem:[%s2 + $0xef8] sm:$0xf]
    %v1427 = vld [vmem:[%s2 + $0xefc] sm:$0xf]
    %v1428 = vld [vmem:[%s2 + $0xf00] sm:$0xf]
    %v1429 = vld [vmem:[%s2 + $0xf04] sm:$0xf]
    %v1430 = vld [vmem:[%s2 + $0xf08] sm:$0xf]
    %v1431 = vld [vmem:[%s2 + $0xf0c] sm:$0xf]
    %v1432 = vld [vmem:[%s2 + $0xf10] sm:$0xf]
    %v1433 = vld [vmem:[%s2 + $0xf14] sm:$0xf]
    %v1434 = vld [vmem:[%s2 + $0xf18] sm:$0xf]
    %v1435 = vld [vmem:[%s2 + $0xf1c] sm:$0xf]
    %v1436 = vld [vmem:[%s2 + $0xf20] sm:$0xf]
    %v1437 = vld [vmem:[%s2 + $0xf24] sm:$0xf]
    %v1438 = vld [vmem:[%s2 + $0xf28] sm:$0xf]
    %v1439 = vld [vmem:[%s2 + $0xf2c] sm:$0xf]
    %v1440 = vld [vmem:[%s2 + $0xf30] sm:$0xf]
    %v1441 = vld [vmem:[%s2 + $0xf34] sm:$0xf]
    %v1442 = vld [vmem:[%s2 + $0xf38] sm:$0xf]
    %v1443 = vld [vmem:[%s2 + $0xf3c] sm:$0xf]
    %v1444 = vld [vmem:[%s2 + $0xf40] sm:$0xf]
    %v1445 = vld [vmem:[%s2 + $0xf44] sm:$0xf]
    %v1446 = vld [vmem:[%s2 + $0xf48] sm:$0xf]
    %v1447 = vld [vmem:[%s2 + $0xf4c] sm:$0xf]
    %v1448 = vld [vmem:[%s2 + $0xf50] sm:$0xf]
    %v1449 = vld [vmem:[%s2 + $0xf54] sm:$0xf]
    %v1450 = vld [vmem:[%s2 + $0xf58] sm:$0xf]
    %v1451 = vld [vmem:[%s2 + $0xf5c] sm:$0xf]
    %v1452 = vld [vmem:[%s2 + $0xf60] sm:$0xf]
    %v1453 = vld [vmem:[%s2 + $0xf64] sm:$0xf]
    %v1454 = vld [vmem:[%s2 + $0xf68] sm:$0xf]
    %v1455 = vld [vmem:[%s2 + $0xf6c] sm:$0xf]
    %v1456 = vld [vmem:[%s2 + $0xf70] sm:$0xf]
    %v1457 = vld [vmem:[%s2 + $0xf74] sm:$0xf]
    %v1458 = vld [vmem:[%s2 + $0xf78] sm:$0xf]
    %v1459 = vld [vmem:[%s2 + $0xf7c] sm:$0xf]
    %v1460 = vld [vmem:[%s2 + $0xf80] sm:$0xf]
    %v1461 = vld [vmem:[%s2 + $0xf84] sm:$0xf]
    %v1462 = vld [vmem:[%s2 + $0xf88] sm:$0xf]
    %v1463 = vld [vmem:[%s2 + $0xf8c] sm:$0xf]
    %v1464 = vld [vmem:[%s2 + $0xf90] sm:$0xf]
    %v1465 = vld [vmem:[%s2 + $0xf94] sm:$0xf]
    %v1466 = vld [vmem:[%s2 + $0xf98] sm:$0xf]
    %v1467 = vld [vmem:[%s2 + $0xf9c] sm:$0xf]
    %v1468 = vld [vmem:[%s2 + $0xfa0] sm:$0xf]
    %v1469 = vld [vmem:[%s2 + $0xfa4] sm:$0xf]
    %v1470 = vld [vmem:[%s2 + $0xfa8] sm:$0xf]
    %v1471 = vld [vmem:[%s2 + $0xfac] sm:$0xf]
    %v1472 = vld [vmem:[%s2 + $0xfb0] sm:$0xf]
    %v1473 = vld [vmem:[%s2 + $0xfb4] sm:$0xf]
    %v1474 = vld [vmem:[%s2 + $0xfb8] sm:$0xf]
    %v1475 = vld [vmem:[%s2 + $0xfbc] sm:$0xf]
    %v1476 = vld [vmem:[%s2 + $0xfc0] sm:$0xf]
    %v1477 = vld [vmem:[%s2 + $0xfc4] sm:$0xf]
    %v1478 = vld [vmem:[%s2 + $0xfc8] sm:$0xf]
    %v1479 = vld [vmem:[%s2 + $0xfcc] sm:$0xf]
    %v1480 = vld [vmem:[%s2 + $0xfd0] sm:$0xf]
    %v1481 = vld [vmem:[%s2 + $0xfd4] sm:$0xf]
    %v1482 = vld [vmem:[%s2 + $0xfd8] sm:$0xf]
    %v1483 = vld [vmem:[%s2 + $0xfdc] sm:$0xf]
    %v1484 = vld [vmem:[%s2 + $0xfe0] sm:$0xf]
    %v1485 = vld [vmem:[%s2 + $0xfe4] sm:$0xf]
    %v1486 = vld [vmem:[%s2 + $0xfe8] sm:$0xf]
    %v1487 = vld [vmem:[%s2 + $0xfec] sm:$0xf]
    %v1488 = vld [vmem:[%s2 + $0xff0] sm:$0xf]
    %v1489 = vld [vmem:[%s2 + $0xff4] sm:$0xf]
    %v1490 = vld [vmem:[%s2 + $0xff8] sm:$0xf]
    %v1491 = vld [vmem:[%s2 + $0xffc] sm:$0xf]
    %v1492 = vld [vmem:[%s3] sm:$0xf]
    %vm1493 = vcmask 64512
    %v1495 = vsel %vm1493, %v467, 0
    %vm1497 = vcmask 1043456
    %v1499 = vsel %vm1497, %v1492, 0
    %1501 = vmatprep.subr.bf16.mxu0 0
    %1502 = vmatpush1.bf16.msra.mxu0 0
    %1503 = vmatprep.subr.bf16.mxu0 0
    %1504 = vmatpush1.bf16.msra.mxu0 0
    %1505 = vmatprep.subr.bf16.mxu0 0
    %1506 = vmatpush1.bf16.msra.mxu0 0
    %1507 = vmatprep.subr.bf16.mxu0 0
    %1508 = vmatpush1.bf16.msra.mxu0 0
    %1509 = vmatprep.subr.bf16.mxu0 0
    %1510 = vmatpush1.bf16.msra.mxu0 0
    %1511 = vmatprep.subr.bf16.mxu0 0
    %1512 = vmatpush1.bf16.msra.mxu0 0
    %1513 = vmatprep.subr.bf16.mxu0 0
    %1514 = vmatpush1.bf16.msra.mxu0 0
    %1515 = vmatprep.subr.bf16.mxu0 0
    %1516 = vmatpush1.bf16.msra.mxu0 %v1499
    %1517 = vmatprep.subr.bf16.mxu0 0
    %1518 = vmatpush2.bf16.msra.mxu0 0
    %1519 = vmatprep.subr.bf16.mxu0 0
    %1520 = vmatpush2.bf16.msra.mxu0 0
    %1521 = vmatprep.subr.bf16.mxu0 0
    %1522 = vmatpush2.bf16.msra.mxu0 0
    %1523 = vmatprep.subr.bf16.mxu0 0
    %1524 = vmatpush2.bf16.msra.mxu0 0
    %1525 = vmatprep.subr.bf16.mxu0 0
    %1526 = vmatpush2.bf16.msra.mxu0 0
    %1527 = vmatprep.subr.bf16.mxu0 0
    %1528 = vmatpush2.bf16.msra.mxu0 0
    %1529 = vmatprep.subr.bf16.mxu0 0
    %1530 = vmatpush2.bf16.msra.mxu0 0
    %1531 = vmatprep.subr.bf16.mxu0 0
    %1532 = vmatpush2.bf16.msra.mxu0 0
    %1533 = vmatprep.mubr.bf16.mxu0 0
    %1534 = vmatmul.mubr.bf16.gmra.mxu0 %v1495
    %v1535 = vpop.f32.mrf.mxu0
    %v1536 = vadd.f32 0.0, %v1535
    %v1537 = vpop.f32.mrf.mxu0
    %v1538 = vpop.f32.mrf.mxu0
    %v1539 = vpop.f32.mrf.mxu0
    %1540 = vdwg.mxu0
    %v2565 = vunpack.c.l.b16 %v468
    %v2566 = vunpack.c.l.b16 %v469
    %v2567 = vunpack.c.l.b16 %v470
    %v2568 = vunpack.c.l.b16 %v471
    %v2569 = vunpack.c.l.b16 %v472
    %v2570 = vunpack.c.l.b16 %v473
    %v2571 = vunpack.c.l.b16 %v474
    %v2572 = vunpack.c.l.b16 %v475
    %v2573 = vunpack.c.l.b16 %v476
    %v2574 = vunpack.c.l.b16 %v477
    %v2575 = vunpack.c.l.b16 %v478
    %v2576 = vunpack.c.l.b16 %v479
    %v2577 = vunpack.c.l.b16 %v480
    %v2578 = vunpack.c.l.b16 %v481
    %v2579 = vunpack.c.l.b16 %v482
    %v2580 = vunpack.c.l.b16 %v483
    %v2581 = vunpack.c.l.b16 %v484
    %v2582 = vunpack.c.l.b16 %v485
    %v2583 = vunpack.c.l.b16 %v486
    %v2584 = vunpack.c.l.b16 %v487
    %v2585 = vunpack.c.l.b16 %v488
    %v2586 = vunpack.c.l.b16 %v489
    %v2587 = vunpack.c.l.b16 %v490
    %v2588 = vunpack.c.l.b16 %v491
    %v2589 = vunpack.c.l.b16 %v492
    %v2590 = vunpack.c.l.b16 %v493
    %v2591 = vunpack.c.l.b16 %v494
    %v2592 = vunpack.c.l.b16 %v495
    %v2593 = vunpack.c.l.b16 %v496
    %v2594 = vunpack.c.l.b16 %v497
    %v2595 = vunpack.c.l.b16 %v498
    %v2596 = vunpack.c.l.b16 %v499
    %v2597 = vunpack.c.l.b16 %v500
    %v2598 = vunpack.c.l.b16 %v501
    %v2599 = vunpack.c.l.b16 %v502
    %v2600 = vunpack.c.l.b16 %v503
    %v2601 = vunpack.c.l.b16 %v504
    %v2602 = vunpack.c.l.b16 %v505
    %v2603 = vunpack.c.l.b16 %v506
    %v2604 = vunpack.c.l.b16 %v507
    %v2605 = vunpack.c.l.b16 %v508
    %v2606 = vunpack.c.l.b16 %v509
    %v2607 = vunpack.c.l.b16 %v510
    %v2608 = vunpack.c.l.b16 %v511
    %v2609 = vunpack.c.l.b16 %v512
    %v2610 = vunpack.c.l.b16 %v513
    %v2611 = vunpack.c.l.b16 %v514
    %v2612 = vunpack.c.l.b16 %v515
    %v2613 = vunpack.c.l.b16 %v516
    %v2614 = vunpack.c.l.b16 %v517
    %v2615 = vunpack.c.l.b16 %v518
    %v2616 = vunpack.c.l.b16 %v519
    %v2617 = vunpack.c.l.b16 %v520
    %v2618 = vunpack.c.l.b16 %v521
    %v2619 = vunpack.c.l.b16 %v522
    %v2620 = vunpack.c.l.b16 %v523
    %v2621 = vunpack.c.l.b16 %v524
    %v2622 = vunpack.c.l.b16 %v525
    %v2623 = vunpack.c.l.b16 %v526
    %v2624 = vunpack.c.l.b16 %v527
    %v2625 = vunpack.c.l.b16 %v528
    %v2626 = vunpack.c.l.b16 %v529
    %v2627 = vunpack.c.l.b16 %v530
    %v2628 = vunpack.c.l.b16 %v531
    %v2629 = vunpack.c.l.b16 %v532
    %v2630 = vunpack.c.l.b16 %v533
    %v2631 = vunpack.c.l.b16 %v534
    %v2632 = vunpack.c.l.b16 %v535
    %v2633 = vunpack.c.l.b16 %v536
    %v2634 = vunpack.c.l.b16 %v537
    %v2635 = vunpack.c.l.b16 %v538
    %v2636 = vunpack.c.l.b16 %v539
    %v2637 = vunpack.c.l.b16 %v540
    %v2638 = vunpack.c.l.b16 %v541
    %v2639 = vunpack.c.l.b16 %v542
    %v2640 = vunpack.c.l.b16 %v543
    %v2641 = vunpack.c.l.b16 %v544
    %v2642 = vunpack.c.l.b16 %v545
    %v2643 = vunpack.c.l.b16 %v546
    %v2644 = vunpack.c.l.b16 %v547
    %v2645 = vunpack.c.l.b16 %v548
    %v2646 = vunpack.c.l.b16 %v549
    %v2647 = vunpack.c.l.b16 %v550
    %v2648 = vunpack.c.l.b16 %v551
    %v2649 = vunpack.c.l.b16 %v552
    %v2650 = vunpack.c.l.b16 %v553
    %v2651 = vunpack.c.l.b16 %v554
    %v2652 = vunpack.c.l.b16 %v555
    %v2653 = vunpack.c.l.b16 %v556
    %v2654 = vunpack.c.l.b16 %v557
    %v2655 = vunpack.c.l.b16 %v558
    %v2656 = vunpack.c.l.b16 %v559
    %v2657 = vunpack.c.l.b16 %v560
    %v2658 = vunpack.c.l.b16 %v561
    %v2659 = vunpack.c.l.b16 %v562
    %v2660 = vunpack.c.l.b16 %v563
    %v2661 = vunpack.c.l.b16 %v564
    %v2662 = vunpack.c.l.b16 %v565
    %v2663 = vunpack.c.l.b16 %v566
    %v2664 = vunpack.c.l.b16 %v567
    %v2665 = vunpack.c.l.b16 %v568
    %v2666 = vunpack.c.l.b16 %v569
    %v2667 = vunpack.c.l.b16 %v570
    %v2668 = vunpack.c.l.b16 %v571
    %v2669 = vunpack.c.l.b16 %v572
    %v2670 = vunpack.c.l.b16 %v573
    %v2671 = vunpack.c.l.b16 %v574
    %v2672 = vunpack.c.l.b16 %v575
    %v2673 = vunpack.c.l.b16 %v576
    %v2674 = vunpack.c.l.b16 %v577
    %v2675 = vunpack.c.l.b16 %v578
    %v2676 = vunpack.c.l.b16 %v579
    %v2677 = vunpack.c.l.b16 %v580
    %v2678 = vunpack.c.l.b16 %v581
    %v2679 = vunpack.c.l.b16 %v582
    %v2680 = vunpack.c.l.b16 %v583
    %v2681 = vunpack.c.l.b16 %v584
    %v2682 = vunpack.c.l.b16 %v585
    %v2683 = vunpack.c.l.b16 %v586
    %v2684 = vunpack.c.l.b16 %v587
    %v2685 = vunpack.c.l.b16 %v588
    %v2686 = vunpack.c.l.b16 %v589
    %v2687 = vunpack.c.l.b16 %v590
    %v2688 = vunpack.c.l.b16 %v591
    %v2689 = vunpack.c.l.b16 %v592
    %v2690 = vunpack.c.l.b16 %v593
    %v2691 = vunpack.c.l.b16 %v594
    %v2692 = vunpack.c.l.b16 %v595
    %v2693 = vunpack.c.l.b16 %v596
    %v2694 = vunpack.c.l.b16 %v597
    %v2695 = vunpack.c.l.b16 %v598
    %v2696 = vunpack.c.l.b16 %v599
    %v2697 = vunpack.c.l.b16 %v600
    %v2698 = vunpack.c.l.b16 %v601
    %v2699 = vunpack.c.l.b16 %v602
    %v2700 = vunpack.c.l.b16 %v603
    %v2701 = vunpack.c.l.b16 %v604
    %v2702 = vunpack.c.l.b16 %v605
    %v2703 = vunpack.c.l.b16 %v606
    %v2704 = vunpack.c.l.b16 %v607
    %v2705 = vunpack.c.l.b16 %v608
    %v2706 = vunpack.c.l.b16 %v609
    %v2707 = vunpack.c.l.b16 %v610
    %v2708 = vunpack.c.l.b16 %v611
    %v2709 = vunpack.c.l.b16 %v612
    %v2710 = vunpack.c.l.b16 %v613
    %v2711 = vunpack.c.l.b16 %v614
    %v2712 = vunpack.c.l.b16 %v615
    %v2713 = vunpack.c.l.b16 %v616
    %v2714 = vunpack.c.l.b16 %v617
    %v2715 = vunpack.c.l.b16 %v618
    %v2716 = vunpack.c.l.b16 %v619
    %v2717 = vunpack.c.l.b16 %v620
    %v2718 = vunpack.c.l.b16 %v621
    %v2719 = vunpack.c.l.b16 %v622
    %v2720 = vunpack.c.l.b16 %v623
    %v2721 = vunpack.c.l.b16 %v624
    %v2722 = vunpack.c.l.b16 %v625
    %v2723 = vunpack.c.l.b16 %v626
    %v2724 = vunpack.c.l.b16 %v627
    %v2725 = vunpack.c.l.b16 %v628
    %v2726 = vunpack.c.l.b16 %v629
    %v2727 = vunpack.c.l.b16 %v630
    %v2728 = vunpack.c.l.b16 %v631
    %v2729 = vunpack.c.l.b16 %v632
    %v2730 = vunpack.c.l.b16 %v633
    %v2731 = vunpack.c.l.b16 %v634
    %v2732 = vunpack.c.l.b16 %v635
    %v2733 = vunpack.c.l.b16 %v636
    %v2734 = vunpack.c.l.b16 %v637
    %v2735 = vunpack.c.l.b16 %v638
    %v2736 = vunpack.c.l.b16 %v639
    %v2737 = vunpack.c.l.b16 %v640
    %v2738 = vunpack.c.l.b16 %v641
    %v2739 = vunpack.c.l.b16 %v642
    %v2740 = vunpack.c.l.b16 %v643
    %v2741 = vunpack.c.l.b16 %v644
    %v2742 = vunpack.c.l.b16 %v645
    %v2743 = vunpack.c.l.b16 %v646
    %v2744 = vunpack.c.l.b16 %v647
    %v2745 = vunpack.c.l.b16 %v648
    %v2746 = vunpack.c.l.b16 %v649
    %v2747 = vunpack.c.l.b16 %v650
    %v2748 = vunpack.c.l.b16 %v651
    %v2749 = vunpack.c.l.b16 %v652
    %v2750 = vunpack.c.l.b16 %v653
    %v2751 = vunpack.c.l.b16 %v654
    %v2752 = vunpack.c.l.b16 %v655
    %v2753 = vunpack.c.l.b16 %v656
    %v2754 = vunpack.c.l.b16 %v657
    %v2755 = vunpack.c.l.b16 %v658
    %v2756 = vunpack.c.l.b16 %v659
    %v2757 = vunpack.c.l.b16 %v660
    %v2758 = vunpack.c.l.b16 %v661
    %v2759 = vunpack.c.l.b16 %v662
    %v2760 = vunpack.c.l.b16 %v663
    %v2761 = vunpack.c.l.b16 %v664
    %v2762 = vunpack.c.l.b16 %v665
    %v2763 = vunpack.c.l.b16 %v666
    %v2764 = vunpack.c.l.b16 %v667
    %v2765 = vunpack.c.l.b16 %v668
    %v2766 = vunpack.c.l.b16 %v669
    %v2767 = vunpack.c.l.b16 %v670
    %v2768 = vunpack.c.l.b16 %v671
    %v2769 = vunpack.c.l.b16 %v672
    %v2770 = vunpack.c.l.b16 %v673
    %v2771 = vunpack.c.l.b16 %v674
    %v2772 = vunpack.c.l.b16 %v675
    %v2773 = vunpack.c.l.b16 %v676
    %v2774 = vunpack.c.l.b16 %v677
    %v2775 = vunpack.c.l.b16 %v678
    %v2776 = vunpack.c.l.b16 %v679
    %v2777 = vunpack.c.l.b16 %v680
    %v2778 = vunpack.c.l.b16 %v681
    %v2779 = vunpack.c.l.b16 %v682
    %v2780 = vunpack.c.l.b16 %v683
    %v2781 = vunpack.c.l.b16 %v684
    %v2782 = vunpack.c.l.b16 %v685
    %v2783 = vunpack.c.l.b16 %v686
    %v2784 = vunpack.c.l.b16 %v687
    %v2785 = vunpack.c.l.b16 %v688
    %v2786 = vunpack.c.l.b16 %v689
    %v2787 = vunpack.c.l.b16 %v690
    %v2788 = vunpack.c.l.b16 %v691
    %v2789 = vunpack.c.l.b16 %v692
    %v2790 = vunpack.c.l.b16 %v693
    %v2791 = vunpack.c.l.b16 %v694
    %v2792 = vunpack.c.l.b16 %v695
    %v2793 = vunpack.c.l.b16 %v696
    %v2794 = vunpack.c.l.b16 %v697
    %v2795 = vunpack.c.l.b16 %v698
    %v2796 = vunpack.c.l.b16 %v699
    %v2797 = vunpack.c.l.b16 %v700
    %v2798 = vunpack.c.l.b16 %v701
    %v2799 = vunpack.c.l.b16 %v702
    %v2800 = vunpack.c.l.b16 %v703
    %v2801 = vunpack.c.l.b16 %v704
    %v2802 = vunpack.c.l.b16 %v705
    %v2803 = vunpack.c.l.b16 %v706
    %v2804 = vunpack.c.l.b16 %v707
    %v2805 = vunpack.c.l.b16 %v708
    %v2806 = vunpack.c.l.b16 %v709
    %v2807 = vunpack.c.l.b16 %v710
    %v2808 = vunpack.c.l.b16 %v711
    %v2809 = vunpack.c.l.b16 %v712
    %v2810 = vunpack.c.l.b16 %v713
    %v2811 = vunpack.c.l.b16 %v714
    %v2812 = vunpack.c.l.b16 %v715
    %v2813 = vunpack.c.l.b16 %v716
    %v2814 = vunpack.c.l.b16 %v717
    %v2815 = vunpack.c.l.b16 %v718
    %v2816 = vunpack.c.l.b16 %v719
    %v2817 = vunpack.c.l.b16 %v720
    %v2818 = vunpack.c.l.b16 %v721
    %v2819 = vunpack.c.l.b16 %v722
    %v2820 = vunpack.c.l.b16 %v723
    %v2821 = vunpack.c.l.b16 %v724
    %v2822 = vunpack.c.l.b16 %v725
    %v2823 = vunpack.c.l.b16 %v726
    %v2824 = vunpack.c.l.b16 %v727
    %v2825 = vunpack.c.l.b16 %v728
    %v2826 = vunpack.c.l.b16 %v729
    %v2827 = vunpack.c.l.b16 %v730
    %v2828 = vunpack.c.l.b16 %v731
    %v2829 = vunpack.c.l.b16 %v732
    %v2830 = vunpack.c.l.b16 %v733
    %v2831 = vunpack.c.l.b16 %v734
    %v2832 = vunpack.c.l.b16 %v735
    %v2833 = vunpack.c.l.b16 %v736
    %v2834 = vunpack.c.l.b16 %v737
    %v2835 = vunpack.c.l.b16 %v738
    %v2836 = vunpack.c.l.b16 %v739
    %v2837 = vunpack.c.l.b16 %v740
    %v2838 = vunpack.c.l.b16 %v741
    %v2839 = vunpack.c.l.b16 %v742
    %v2840 = vunpack.c.l.b16 %v743
    %v2841 = vunpack.c.l.b16 %v744
    %v2842 = vunpack.c.l.b16 %v745
    %v2843 = vunpack.c.l.b16 %v746
    %v2844 = vunpack.c.l.b16 %v747
    %v2845 = vunpack.c.l.b16 %v748
    %v2846 = vunpack.c.l.b16 %v749
    %v2847 = vunpack.c.l.b16 %v750
    %v2848 = vunpack.c.l.b16 %v751
    %v2849 = vunpack.c.l.b16 %v752
    %v2850 = vunpack.c.l.b16 %v753
    %v2851 = vunpack.c.l.b16 %v754
    %v2852 = vunpack.c.l.b16 %v755
    %v2853 = vunpack.c.l.b16 %v756
    %v2854 = vunpack.c.l.b16 %v757
    %v2855 = vunpack.c.l.b16 %v758
    %v2856 = vunpack.c.l.b16 %v759
    %v2857 = vunpack.c.l.b16 %v760
    %v2858 = vunpack.c.l.b16 %v761
    %v2859 = vunpack.c.l.b16 %v762
    %v2860 = vunpack.c.l.b16 %v763
    %v2861 = vunpack.c.l.b16 %v764
    %v2862 = vunpack.c.l.b16 %v765
    %v2863 = vunpack.c.l.b16 %v766
    %v2864 = vunpack.c.l.b16 %v767
    %v2865 = vunpack.c.l.b16 %v768
    %v2866 = vunpack.c.l.b16 %v769
    %v2867 = vunpack.c.l.b16 %v770
    %v2868 = vunpack.c.l.b16 %v771
    %v2869 = vunpack.c.l.b16 %v772
    %v2870 = vunpack.c.l.b16 %v773
    %v2871 = vunpack.c.l.b16 %v774
    %v2872 = vunpack.c.l.b16 %v775
    %v2873 = vunpack.c.l.b16 %v776
    %v2874 = vunpack.c.l.b16 %v777
    %v2875 = vunpack.c.l.b16 %v778
    %v2876 = vunpack.c.l.b16 %v779
    %v2877 = vunpack.c.l.b16 %v780
    %v2878 = vunpack.c.l.b16 %v781
    %v2879 = vunpack.c.l.b16 %v782
    %v2880 = vunpack.c.l.b16 %v783
    %v2881 = vunpack.c.l.b16 %v784
    %v2882 = vunpack.c.l.b16 %v785
    %v2883 = vunpack.c.l.b16 %v786
    %v2884 = vunpack.c.l.b16 %v787
    %v2885 = vunpack.c.l.b16 %v788
    %v2886 = vunpack.c.l.b16 %v789
    %v2887 = vunpack.c.l.b16 %v790
    %v2888 = vunpack.c.l.b16 %v791
    %v2889 = vunpack.c.l.b16 %v792
    %v2890 = vunpack.c.l.b16 %v793
    %v2891 = vunpack.c.l.b16 %v794
    %v2892 = vunpack.c.l.b16 %v795
    %v2893 = vunpack.c.l.b16 %v796
    %v2894 = vunpack.c.l.b16 %v797
    %v2895 = vunpack.c.l.b16 %v798
    %v2896 = vunpack.c.l.b16 %v799
    %v2897 = vunpack.c.l.b16 %v800
    %v2898 = vunpack.c.l.b16 %v801
    %v2899 = vunpack.c.l.b16 %v802
    %v2900 = vunpack.c.l.b16 %v803
    %v2901 = vunpack.c.l.b16 %v804
    %v2902 = vunpack.c.l.b16 %v805
    %v2903 = vunpack.c.l.b16 %v806
    %v2904 = vunpack.c.l.b16 %v807
    %v2905 = vunpack.c.l.b16 %v808
    %v2906 = vunpack.c.l.b16 %v809
    %v2907 = vunpack.c.l.b16 %v810
    %v2908 = vunpack.c.l.b16 %v811
    %v2909 = vunpack.c.l.b16 %v812
    %v2910 = vunpack.c.l.b16 %v813
    %v2911 = vunpack.c.l.b16 %v814
    %v2912 = vunpack.c.l.b16 %v815
    %v2913 = vunpack.c.l.b16 %v816
    %v2914 = vunpack.c.l.b16 %v817
    %v2915 = vunpack.c.l.b16 %v818
    %v2916 = vunpack.c.l.b16 %v819
    %v2917 = vunpack.c.l.b16 %v820
    %v2918 = vunpack.c.l.b16 %v821
    %v2919 = vunpack.c.l.b16 %v822
    %v2920 = vunpack.c.l.b16 %v823
    %v2921 = vunpack.c.l.b16 %v824
    %v2922 = vunpack.c.l.b16 %v825
    %v2923 = vunpack.c.l.b16 %v826
    %v2924 = vunpack.c.l.b16 %v827
    %v2925 = vunpack.c.l.b16 %v828
    %v2926 = vunpack.c.l.b16 %v829
    %v2927 = vunpack.c.l.b16 %v830
    %v2928 = vunpack.c.l.b16 %v831
    %v2929 = vunpack.c.l.b16 %v832
    %v2930 = vunpack.c.l.b16 %v833
    %v2931 = vunpack.c.l.b16 %v834
    %v2932 = vunpack.c.l.b16 %v835
    %v2933 = vunpack.c.l.b16 %v836
    %v2934 = vunpack.c.l.b16 %v837
    %v2935 = vunpack.c.l.b16 %v838
    %v2936 = vunpack.c.l.b16 %v839
    %v2937 = vunpack.c.l.b16 %v840
    %v2938 = vunpack.c.l.b16 %v841
    %v2939 = vunpack.c.l.b16 %v842
    %v2940 = vunpack.c.l.b16 %v843
    %v2941 = vunpack.c.l.b16 %v844
    %v2942 = vunpack.c.l.b16 %v845
    %v2943 = vunpack.c.l.b16 %v846
    %v2944 = vunpack.c.l.b16 %v847
    %v2945 = vunpack.c.l.b16 %v848
    %v2946 = vunpack.c.l.b16 %v849
    %v2947 = vunpack.c.l.b16 %v850
    %v2948 = vunpack.c.l.b16 %v851
    %v2949 = vunpack.c.l.b16 %v852
    %v2950 = vunpack.c.l.b16 %v853
    %v2951 = vunpack.c.l.b16 %v854
    %v2952 = vunpack.c.l.b16 %v855
    %v2953 = vunpack.c.l.b16 %v856
    %v2954 = vunpack.c.l.b16 %v857
    %v2955 = vunpack.c.l.b16 %v858
    %v2956 = vunpack.c.l.b16 %v859
    %v2957 = vunpack.c.l.b16 %v860
    %v2958 = vunpack.c.l.b16 %v861
    %v2959 = vunpack.c.l.b16 %v862
    %v2960 = vunpack.c.l.b16 %v863
    %v2961 = vunpack.c.l.b16 %v864
    %v2962 = vunpack.c.l.b16 %v865
    %v2963 = vunpack.c.l.b16 %v866
    %v2964 = vunpack.c.l.b16 %v867
    %v2965 = vunpack.c.l.b16 %v868
    %v2966 = vunpack.c.l.b16 %v869
    %v2967 = vunpack.c.l.b16 %v870
    %v2968 = vunpack.c.l.b16 %v871
    %v2969 = vunpack.c.l.b16 %v872
    %v2970 = vunpack.c.l.b16 %v873
    %v2971 = vunpack.c.l.b16 %v874
    %v2972 = vunpack.c.l.b16 %v875
    %v2973 = vunpack.c.l.b16 %v876
    %v2974 = vunpack.c.l.b16 %v877
    %v2975 = vunpack.c.l.b16 %v878
    %v2976 = vunpack.c.l.b16 %v879
    %v2977 = vunpack.c.l.b16 %v880
    %v2978 = vunpack.c.l.b16 %v881
    %v2979 = vunpack.c.l.b16 %v882
    %v2980 = vunpack.c.l.b16 %v883
    %v2981 = vunpack.c.l.b16 %v884
    %v2982 = vunpack.c.l.b16 %v885
    %v2983 = vunpack.c.l.b16 %v886
    %v2984 = vunpack.c.l.b16 %v887
    %v2985 = vunpack.c.l.b16 %v888
    %v2986 = vunpack.c.l.b16 %v889
    %v2987 = vunpack.c.l.b16 %v890
    %v2988 = vunpack.c.l.b16 %v891
    %v2989 = vunpack.c.l.b16 %v892
    %v2990 = vunpack.c.l.b16 %v893
    %v2991 = vunpack.c.l.b16 %v894
    %v2992 = vunpack.c.l.b16 %v895
    %v2993 = vunpack.c.l.b16 %v896
    %v2994 = vunpack.c.l.b16 %v897
    %v2995 = vunpack.c.l.b16 %v898
    %v2996 = vunpack.c.l.b16 %v899
    %v2997 = vunpack.c.l.b16 %v900
    %v2998 = vunpack.c.l.b16 %v901
    %v2999 = vunpack.c.l.b16 %v902
    %v3000 = vunpack.c.l.b16 %v903
    %v3001 = vunpack.c.l.b16 %v904
    %v3002 = vunpack.c.l.b16 %v905
    %v3003 = vunpack.c.l.b16 %v906
    %v3004 = vunpack.c.l.b16 %v907
    %v3005 = vunpack.c.l.b16 %v908
    %v3006 = vunpack.c.l.b16 %v909
    %v3007 = vunpack.c.l.b16 %v910
    %v3008 = vunpack.c.l.b16 %v911
    %v3009 = vunpack.c.l.b16 %v912
    %v3010 = vunpack.c.l.b16 %v913
    %v3011 = vunpack.c.l.b16 %v914
    %v3012 = vunpack.c.l.b16 %v915
    %v3013 = vunpack.c.l.b16 %v916
    %v3014 = vunpack.c.l.b16 %v917
    %v3015 = vunpack.c.l.b16 %v918
    %v3016 = vunpack.c.l.b16 %v919
    %v3017 = vunpack.c.l.b16 %v920
    %v3018 = vunpack.c.l.b16 %v921
    %v3019 = vunpack.c.l.b16 %v922
    %v3020 = vunpack.c.l.b16 %v923
    %v3021 = vunpack.c.l.b16 %v924
    %v3022 = vunpack.c.l.b16 %v925
    %v3023 = vunpack.c.l.b16 %v926
    %v3024 = vunpack.c.l.b16 %v927
    %v3025 = vunpack.c.l.b16 %v928
    %v3026 = vunpack.c.l.b16 %v929
    %v3027 = vunpack.c.l.b16 %v930
    %v3028 = vunpack.c.l.b16 %v931
    %v3029 = vunpack.c.l.b16 %v932
    %v3030 = vunpack.c.l.b16 %v933
    %v3031 = vunpack.c.l.b16 %v934
    %v3032 = vunpack.c.l.b16 %v935
    %v3033 = vunpack.c.l.b16 %v936
    %v3034 = vunpack.c.l.b16 %v937
    %v3035 = vunpack.c.l.b16 %v938
    %v3036 = vunpack.c.l.b16 %v939
    %v3037 = vunpack.c.l.b16 %v940
    %v3038 = vunpack.c.l.b16 %v941
    %v3039 = vunpack.c.l.b16 %v942
    %v3040 = vunpack.c.l.b16 %v943
    %v3041 = vunpack.c.l.b16 %v944
    %v3042 = vunpack.c.l.b16 %v945
    %v3043 = vunpack.c.l.b16 %v946
    %v3044 = vunpack.c.l.b16 %v947
    %v3045 = vunpack.c.l.b16 %v948
    %v3046 = vunpack.c.l.b16 %v949
    %v3047 = vunpack.c.l.b16 %v950
    %v3048 = vunpack.c.l.b16 %v951
    %v3049 = vunpack.c.l.b16 %v952
    %v3050 = vunpack.c.l.b16 %v953
    %v3051 = vunpack.c.l.b16 %v954
    %v3052 = vunpack.c.l.b16 %v955
    %v3053 = vunpack.c.l.b16 %v956
    %v3054 = vunpack.c.l.b16 %v957
    %v3055 = vunpack.c.l.b16 %v958
    %v3056 = vunpack.c.l.b16 %v959
    %v3057 = vunpack.c.l.b16 %v960
    %v3058 = vunpack.c.l.b16 %v961
    %v3059 = vunpack.c.l.b16 %v962
    %v3060 = vunpack.c.l.b16 %v963
    %v3061 = vunpack.c.l.b16 %v964
    %v3062 = vunpack.c.l.b16 %v965
    %v3063 = vunpack.c.l.b16 %v966
    %v3064 = vunpack.c.l.b16 %v967
    %v3065 = vunpack.c.l.b16 %v968
    %v3066 = vunpack.c.l.b16 %v969
    %v3067 = vunpack.c.l.b16 %v970
    %v3068 = vunpack.c.l.b16 %v971
    %v3069 = vunpack.c.l.b16 %v972
    %v3070 = vunpack.c.l.b16 %v973
    %v3071 = vunpack.c.l.b16 %v974
    %v3072 = vunpack.c.l.b16 %v975
    %v3073 = vunpack.c.l.b16 %v976
    %v3074 = vunpack.c.l.b16 %v977
    %v3075 = vunpack.c.l.b16 %v978
    %v3076 = vunpack.c.l.b16 %v979
    %v3077 = vunpack.c.l.b16 %v980
    %v3078 = vunpack.c.l.b16 %v981
    %v3079 = vunpack.c.l.b16 %v982
    %v3080 = vunpack.c.l.b16 %v983
    %v3081 = vunpack.c.l.b16 %v984
    %v3082 = vunpack.c.l.b16 %v985
    %v3083 = vunpack.c.l.b16 %v986
    %v3084 = vunpack.c.l.b16 %v987
    %v3085 = vunpack.c.l.b16 %v988
    %v3086 = vunpack.c.l.b16 %v989
    %v3087 = vunpack.c.l.b16 %v990
    %v3088 = vunpack.c.l.b16 %v991
    %v3089 = vunpack.c.l.b16 %v992
    %v3090 = vunpack.c.l.b16 %v993
    %v3091 = vunpack.c.l.b16 %v994
    %v3092 = vunpack.c.l.b16 %v995
    %v3093 = vunpack.c.l.b16 %v996
    %v3094 = vunpack.c.l.b16 %v997
    %v3095 = vunpack.c.l.b16 %v998
    %v3096 = vunpack.c.l.b16 %v999
    %v3097 = vunpack.c.l.b16 %v1000
    %v3098 = vunpack.c.l.b16 %v1001
    %v3099 = vunpack.c.l.b16 %v1002
    %v3100 = vunpack.c.l.b16 %v1003
    %v3101 = vunpack.c.l.b16 %v1004
    %v3102 = vunpack.c.l.b16 %v1005
    %v3103 = vunpack.c.l.b16 %v1006
    %v3104 = vunpack.c.l.b16 %v1007
    %v3105 = vunpack.c.l.b16 %v1008
    %v3106 = vunpack.c.l.b16 %v1009
    %v3107 = vunpack.c.l.b16 %v1010
    %v3108 = vunpack.c.l.b16 %v1011
    %v3109 = vunpack.c.l.b16 %v1012
    %v3110 = vunpack.c.l.b16 %v1013
    %v3111 = vunpack.c.l.b16 %v1014
    %v3112 = vunpack.c.l.b16 %v1015
    %v3113 = vunpack.c.l.b16 %v1016
    %v3114 = vunpack.c.l.b16 %v1017
    %v3115 = vunpack.c.l.b16 %v1018
    %v3116 = vunpack.c.l.b16 %v1019
    %v3117 = vunpack.c.l.b16 %v1020
    %v3118 = vunpack.c.l.b16 %v1021
    %v3119 = vunpack.c.l.b16 %v1022
    %v3120 = vunpack.c.l.b16 %v1023
    %v3121 = vunpack.c.l.b16 %v1024
    %v3122 = vunpack.c.l.b16 %v1025
    %v3123 = vunpack.c.l.b16 %v1026
    %v3124 = vunpack.c.l.b16 %v1027
    %v3125 = vunpack.c.l.b16 %v1028
    %v3126 = vunpack.c.l.b16 %v1029
    %v3127 = vunpack.c.l.b16 %v1030
    %v3128 = vunpack.c.l.b16 %v1031
    %v3129 = vunpack.c.l.b16 %v1032
    %v3130 = vunpack.c.l.b16 %v1033
    %v3131 = vunpack.c.l.b16 %v1034
    %v3132 = vunpack.c.l.b16 %v1035
    %v3133 = vunpack.c.l.b16 %v1036
    %v3134 = vunpack.c.l.b16 %v1037
    %v3135 = vunpack.c.l.b16 %v1038
    %v3136 = vunpack.c.l.b16 %v1039
    %v3137 = vunpack.c.l.b16 %v1040
    %v3138 = vunpack.c.l.b16 %v1041
    %v3139 = vunpack.c.l.b16 %v1042
    %v3140 = vunpack.c.l.b16 %v1043
    %v3141 = vunpack.c.l.b16 %v1044
    %v3142 = vunpack.c.l.b16 %v1045
    %v3143 = vunpack.c.l.b16 %v1046
    %v3144 = vunpack.c.l.b16 %v1047
    %v3145 = vunpack.c.l.b16 %v1048
    %v3146 = vunpack.c.l.b16 %v1049
    %v3147 = vunpack.c.l.b16 %v1050
    %v3148 = vunpack.c.l.b16 %v1051
    %v3149 = vunpack.c.l.b16 %v1052
    %v3150 = vunpack.c.l.b16 %v1053
    %v3151 = vunpack.c.l.b16 %v1054
    %v3152 = vunpack.c.l.b16 %v1055
    %v3153 = vunpack.c.l.b16 %v1056
    %v3154 = vunpack.c.l.b16 %v1057
    %v3155 = vunpack.c.l.b16 %v1058
    %v3156 = vunpack.c.l.b16 %v1059
    %v3157 = vunpack.c.l.b16 %v1060
    %v3158 = vunpack.c.l.b16 %v1061
    %v3159 = vunpack.c.l.b16 %v1062
    %v3160 = vunpack.c.l.b16 %v1063
    %v3161 = vunpack.c.l.b16 %v1064
    %v3162 = vunpack.c.l.b16 %v1065
    %v3163 = vunpack.c.l.b16 %v1066
    %v3164 = vunpack.c.l.b16 %v1067
    %v3165 = vunpack.c.l.b16 %v1068
    %v3166 = vunpack.c.l.b16 %v1069
    %v3167 = vunpack.c.l.b16 %v1070
    %v3168 = vunpack.c.l.b16 %v1071
    %v3169 = vunpack.c.l.b16 %v1072
    %v3170 = vunpack.c.l.b16 %v1073
    %v3171 = vunpack.c.l.b16 %v1074
    %v3172 = vunpack.c.l.b16 %v1075
    %v3173 = vunpack.c.l.b16 %v1076
    %v3174 = vunpack.c.l.b16 %v1077
    %v3175 = vunpack.c.l.b16 %v1078
    %v3176 = vunpack.c.l.b16 %v1079
    %v3177 = vunpack.c.l.b16 %v1080
    %v3178 = vunpack.c.l.b16 %v1081
    %v3179 = vunpack.c.l.b16 %v1082
    %v3180 = vunpack.c.l.b16 %v1083
    %v3181 = vunpack.c.l.b16 %v1084
    %v3182 = vunpack.c.l.b16 %v1085
    %v3183 = vunpack.c.l.b16 %v1086
    %v3184 = vunpack.c.l.b16 %v1087
    %v3185 = vunpack.c.l.b16 %v1088
    %v3186 = vunpack.c.l.b16 %v1089
    %v3187 = vunpack.c.l.b16 %v1090
    %v3188 = vunpack.c.l.b16 %v1091
    %v3189 = vunpack.c.l.b16 %v1092
    %v3190 = vunpack.c.l.b16 %v1093
    %v3191 = vunpack.c.l.b16 %v1094
    %v3192 = vunpack.c.l.b16 %v1095
    %v3193 = vunpack.c.l.b16 %v1096
    %v3194 = vunpack.c.l.b16 %v1097
    %v3195 = vunpack.c.l.b16 %v1098
    %v3196 = vunpack.c.l.b16 %v1099
    %v3197 = vunpack.c.l.b16 %v1100
    %v3198 = vunpack.c.l.b16 %v1101
    %v3199 = vunpack.c.l.b16 %v1102
    %v3200 = vunpack.c.l.b16 %v1103
    %v3201 = vunpack.c.l.b16 %v1104
    %v3202 = vunpack.c.l.b16 %v1105
    %v3203 = vunpack.c.l.b16 %v1106
    %v3204 = vunpack.c.l.b16 %v1107
    %v3205 = vunpack.c.l.b16 %v1108
    %v3206 = vunpack.c.l.b16 %v1109
    %v3207 = vunpack.c.l.b16 %v1110
    %v3208 = vunpack.c.l.b16 %v1111
    %v3209 = vunpack.c.l.b16 %v1112
    %v3210 = vunpack.c.l.b16 %v1113
    %v3211 = vunpack.c.l.b16 %v1114
    %v3212 = vunpack.c.l.b16 %v1115
    %v3213 = vunpack.c.l.b16 %v1116
    %v3214 = vunpack.c.l.b16 %v1117
    %v3215 = vunpack.c.l.b16 %v1118
    %v3216 = vunpack.c.l.b16 %v1119
    %v3217 = vunpack.c.l.b16 %v1120
    %v3218 = vunpack.c.l.b16 %v1121
    %v3219 = vunpack.c.l.b16 %v1122
    %v3220 = vunpack.c.l.b16 %v1123
    %v3221 = vunpack.c.l.b16 %v1124
    %v3222 = vunpack.c.l.b16 %v1125
    %v3223 = vunpack.c.l.b16 %v1126
    %v3224 = vunpack.c.l.b16 %v1127
    %v3225 = vunpack.c.l.b16 %v1128
    %v3226 = vunpack.c.l.b16 %v1129
    %v3227 = vunpack.c.l.b16 %v1130
    %v3228 = vunpack.c.l.b16 %v1131
    %v3229 = vunpack.c.l.b16 %v1132
    %v3230 = vunpack.c.l.b16 %v1133
    %v3231 = vunpack.c.l.b16 %v1134
    %v3232 = vunpack.c.l.b16 %v1135
    %v3233 = vunpack.c.l.b16 %v1136
    %v3234 = vunpack.c.l.b16 %v1137
    %v3235 = vunpack.c.l.b16 %v1138
    %v3236 = vunpack.c.l.b16 %v1139
    %v3237 = vunpack.c.l.b16 %v1140
    %v3238 = vunpack.c.l.b16 %v1141
    %v3239 = vunpack.c.l.b16 %v1142
    %v3240 = vunpack.c.l.b16 %v1143
    %v3241 = vunpack.c.l.b16 %v1144
    %v3242 = vunpack.c.l.b16 %v1145
    %v3243 = vunpack.c.l.b16 %v1146
    %v3244 = vunpack.c.l.b16 %v1147
    %v3245 = vunpack.c.l.b16 %v1148
    %v3246 = vunpack.c.l.b16 %v1149
    %v3247 = vunpack.c.l.b16 %v1150
    %v3248 = vunpack.c.l.b16 %v1151
    %v3249 = vunpack.c.l.b16 %v1152
    %v3250 = vunpack.c.l.b16 %v1153
    %v3251 = vunpack.c.l.b16 %v1154
    %v3252 = vunpack.c.l.b16 %v1155
    %v3253 = vunpack.c.l.b16 %v1156
    %v3254 = vunpack.c.l.b16 %v1157
    %v3255 = vunpack.c.l.b16 %v1158
    %v3256 = vunpack.c.l.b16 %v1159
    %v3257 = vunpack.c.l.b16 %v1160
    %v3258 = vunpack.c.l.b16 %v1161
    %v3259 = vunpack.c.l.b16 %v1162
    %v3260 = vunpack.c.l.b16 %v1163
    %v3261 = vunpack.c.l.b16 %v1164
    %v3262 = vunpack.c.l.b16 %v1165
    %v3263 = vunpack.c.l.b16 %v1166
    %v3264 = vunpack.c.l.b16 %v1167
    %v3265 = vunpack.c.l.b16 %v1168
    %v3266 = vunpack.c.l.b16 %v1169
    %v3267 = vunpack.c.l.b16 %v1170
    %v3268 = vunpack.c.l.b16 %v1171
    %v3269 = vunpack.c.l.b16 %v1172
    %v3270 = vunpack.c.l.b16 %v1173
    %v3271 = vunpack.c.l.b16 %v1174
    %v3272 = vunpack.c.l.b16 %v1175
    %v3273 = vunpack.c.l.b16 %v1176
    %v3274 = vunpack.c.l.b16 %v1177
    %v3275 = vunpack.c.l.b16 %v1178
    %v3276 = vunpack.c.l.b16 %v1179
    %v3277 = vunpack.c.l.b16 %v1180
    %v3278 = vunpack.c.l.b16 %v1181
    %v3279 = vunpack.c.l.b16 %v1182
    %v3280 = vunpack.c.l.b16 %v1183
    %v3281 = vunpack.c.l.b16 %v1184
    %v3282 = vunpack.c.l.b16 %v1185
    %v3283 = vunpack.c.l.b16 %v1186
    %v3284 = vunpack.c.l.b16 %v1187
    %v3285 = vunpack.c.l.b16 %v1188
    %v3286 = vunpack.c.l.b16 %v1189
    %v3287 = vunpack.c.l.b16 %v1190
    %v3288 = vunpack.c.l.b16 %v1191
    %v3289 = vunpack.c.l.b16 %v1192
    %v3290 = vunpack.c.l.b16 %v1193
    %v3291 = vunpack.c.l.b16 %v1194
    %v3292 = vunpack.c.l.b16 %v1195
    %v3293 = vunpack.c.l.b16 %v1196
    %v3294 = vunpack.c.l.b16 %v1197
    %v3295 = vunpack.c.l.b16 %v1198
    %v3296 = vunpack.c.l.b16 %v1199
    %v3297 = vunpack.c.l.b16 %v1200
    %v3298 = vunpack.c.l.b16 %v1201
    %v3299 = vunpack.c.l.b16 %v1202
    %v3300 = vunpack.c.l.b16 %v1203
    %v3301 = vunpack.c.l.b16 %v1204
    %v3302 = vunpack.c.l.b16 %v1205
    %v3303 = vunpack.c.l.b16 %v1206
    %v3304 = vunpack.c.l.b16 %v1207
    %v3305 = vunpack.c.l.b16 %v1208
    %v3306 = vunpack.c.l.b16 %v1209
    %v3307 = vunpack.c.l.b16 %v1210
    %v3308 = vunpack.c.l.b16 %v1211
    %v3309 = vunpack.c.l.b16 %v1212
    %v3310 = vunpack.c.l.b16 %v1213
    %v3311 = vunpack.c.l.b16 %v1214
    %v3312 = vunpack.c.l.b16 %v1215
    %v3313 = vunpack.c.l.b16 %v1216
    %v3314 = vunpack.c.l.b16 %v1217
    %v3315 = vunpack.c.l.b16 %v1218
    %v3316 = vunpack.c.l.b16 %v1219
    %v3317 = vunpack.c.l.b16 %v1220
    %v3318 = vunpack.c.l.b16 %v1221
    %v3319 = vunpack.c.l.b16 %v1222
    %v3320 = vunpack.c.l.b16 %v1223
    %v3321 = vunpack.c.l.b16 %v1224
    %v3322 = vunpack.c.l.b16 %v1225
    %v3323 = vunpack.c.l.b16 %v1226
    %v3324 = vunpack.c.l.b16 %v1227
    %v3325 = vunpack.c.l.b16 %v1228
    %v3326 = vunpack.c.l.b16 %v1229
    %v3327 = vunpack.c.l.b16 %v1230
    %v3328 = vunpack.c.l.b16 %v1231
    %v3329 = vunpack.c.l.b16 %v1232
    %v3330 = vunpack.c.l.b16 %v1233
    %v3331 = vunpack.c.l.b16 %v1234
    %v3332 = vunpack.c.l.b16 %v1235
    %v3333 = vunpack.c.l.b16 %v1236
    %v3334 = vunpack.c.l.b16 %v1237
    %v3335 = vunpack.c.l.b16 %v1238
    %v3336 = vunpack.c.l.b16 %v1239
    %v3337 = vunpack.c.l.b16 %v1240
    %v3338 = vunpack.c.l.b16 %v1241
    %v3339 = vunpack.c.l.b16 %v1242
    %v3340 = vunpack.c.l.b16 %v1243
    %v3341 = vunpack.c.l.b16 %v1244
    %v3342 = vunpack.c.l.b16 %v1245
    %v3343 = vunpack.c.l.b16 %v1246
    %v3344 = vunpack.c.l.b16 %v1247
    %v3345 = vunpack.c.l.b16 %v1248
    %v3346 = vunpack.c.l.b16 %v1249
    %v3347 = vunpack.c.l.b16 %v1250
    %v3348 = vunpack.c.l.b16 %v1251
    %v3349 = vunpack.c.l.b16 %v1252
    %v3350 = vunpack.c.l.b16 %v1253
    %v3351 = vunpack.c.l.b16 %v1254
    %v3352 = vunpack.c.l.b16 %v1255
    %v3353 = vunpack.c.l.b16 %v1256
    %v3354 = vunpack.c.l.b16 %v1257
    %v3355 = vunpack.c.l.b16 %v1258
    %v3356 = vunpack.c.l.b16 %v1259
    %v3357 = vunpack.c.l.b16 %v1260
    %v3358 = vunpack.c.l.b16 %v1261
    %v3359 = vunpack.c.l.b16 %v1262
    %v3360 = vunpack.c.l.b16 %v1263
    %v3361 = vunpack.c.l.b16 %v1264
    %v3362 = vunpack.c.l.b16 %v1265
    %v3363 = vunpack.c.l.b16 %v1266
    %v3364 = vunpack.c.l.b16 %v1267
    %v3365 = vunpack.c.l.b16 %v1268
    %v3366 = vunpack.c.l.b16 %v1269
    %v3367 = vunpack.c.l.b16 %v1270
    %v3368 = vunpack.c.l.b16 %v1271
    %v3369 = vunpack.c.l.b16 %v1272
    %v3370 = vunpack.c.l.b16 %v1273
    %v3371 = vunpack.c.l.b16 %v1274
    %v3372 = vunpack.c.l.b16 %v1275
    %v3373 = vunpack.c.l.b16 %v1276
    %v3374 = vunpack.c.l.b16 %v1277
    %v3375 = vunpack.c.l.b16 %v1278
    %v3376 = vunpack.c.l.b16 %v1279
    %v3377 = vunpack.c.l.b16 %v1280
    %v3378 = vunpack.c.l.b16 %v1281
    %v3379 = vunpack.c.l.b16 %v1282
    %v3380 = vunpack.c.l.b16 %v1283
    %v3381 = vunpack.c.l.b16 %v1284
    %v3382 = vunpack.c.l.b16 %v1285
    %v3383 = vunpack.c.l.b16 %v1286
    %v3384 = vunpack.c.l.b16 %v1287
    %v3385 = vunpack.c.l.b16 %v1288
    %v3386 = vunpack.c.l.b16 %v1289
    %v3387 = vunpack.c.l.b16 %v1290
    %v3388 = vunpack.c.l.b16 %v1291
    %v3389 = vunpack.c.l.b16 %v1292
    %v3390 = vunpack.c.l.b16 %v1293
    %v3391 = vunpack.c.l.b16 %v1294
    %v3392 = vunpack.c.l.b16 %v1295
    %v3393 = vunpack.c.l.b16 %v1296
    %v3394 = vunpack.c.l.b16 %v1297
    %v3395 = vunpack.c.l.b16 %v1298
    %v3396 = vunpack.c.l.b16 %v1299
    %v3397 = vunpack.c.l.b16 %v1300
    %v3398 = vunpack.c.l.b16 %v1301
    %v3399 = vunpack.c.l.b16 %v1302
    %v3400 = vunpack.c.l.b16 %v1303
    %v3401 = vunpack.c.l.b16 %v1304
    %v3402 = vunpack.c.l.b16 %v1305
    %v3403 = vunpack.c.l.b16 %v1306
    %v3404 = vunpack.c.l.b16 %v1307
    %v3405 = vunpack.c.l.b16 %v1308
    %v3406 = vunpack.c.l.b16 %v1309
    %v3407 = vunpack.c.l.b16 %v1310
    %v3408 = vunpack.c.l.b16 %v1311
    %v3409 = vunpack.c.l.b16 %v1312
    %v3410 = vunpack.c.l.b16 %v1313
    %v3411 = vunpack.c.l.b16 %v1314
    %v3412 = vunpack.c.l.b16 %v1315
    %v3413 = vunpack.c.l.b16 %v1316
    %v3414 = vunpack.c.l.b16 %v1317
    %v3415 = vunpack.c.l.b16 %v1318
    %v3416 = vunpack.c.l.b16 %v1319
    %v3417 = vunpack.c.l.b16 %v1320
    %v3418 = vunpack.c.l.b16 %v1321
    %v3419 = vunpack.c.l.b16 %v1322
    %v3420 = vunpack.c.l.b16 %v1323
    %v3421 = vunpack.c.l.b16 %v1324
    %v3422 = vunpack.c.l.b16 %v1325
    %v3423 = vunpack.c.l.b16 %v1326
    %v3424 = vunpack.c.l.b16 %v1327
    %v3425 = vunpack.c.l.b16 %v1328
    %v3426 = vunpack.c.l.b16 %v1329
    %v3427 = vunpack.c.l.b16 %v1330
    %v3428 = vunpack.c.l.b16 %v1331
    %v3429 = vunpack.c.l.b16 %v1332
    %v3430 = vunpack.c.l.b16 %v1333
    %v3431 = vunpack.c.l.b16 %v1334
    %v3432 = vunpack.c.l.b16 %v1335
    %v3433 = vunpack.c.l.b16 %v1336
    %v3434 = vunpack.c.l.b16 %v1337
    %v3435 = vunpack.c.l.b16 %v1338
    %v3436 = vunpack.c.l.b16 %v1339
    %v3437 = vunpack.c.l.b16 %v1340
    %v3438 = vunpack.c.l.b16 %v1341
    %v3439 = vunpack.c.l.b16 %v1342
    %v3440 = vunpack.c.l.b16 %v1343
    %v3441 = vunpack.c.l.b16 %v1344
    %v3442 = vunpack.c.l.b16 %v1345
    %v3443 = vunpack.c.l.b16 %v1346
    %v3444 = vunpack.c.l.b16 %v1347
    %v3445 = vunpack.c.l.b16 %v1348
    %v3446 = vunpack.c.l.b16 %v1349
    %v3447 = vunpack.c.l.b16 %v1350
    %v3448 = vunpack.c.l.b16 %v1351
    %v3449 = vunpack.c.l.b16 %v1352
    %v3450 = vunpack.c.l.b16 %v1353
    %v3451 = vunpack.c.l.b16 %v1354
    %v3452 = vunpack.c.l.b16 %v1355
    %v3453 = vunpack.c.l.b16 %v1356
    %v3454 = vunpack.c.l.b16 %v1357
    %v3455 = vunpack.c.l.b16 %v1358
    %v3456 = vunpack.c.l.b16 %v1359
    %v3457 = vunpack.c.l.b16 %v1360
    %v3458 = vunpack.c.l.b16 %v1361
    %v3459 = vunpack.c.l.b16 %v1362
    %v3460 = vunpack.c.l.b16 %v1363
    %v3461 = vunpack.c.l.b16 %v1364
    %v3462 = vunpack.c.l.b16 %v1365
    %v3463 = vunpack.c.l.b16 %v1366
    %v3464 = vunpack.c.l.b16 %v1367
    %v3465 = vunpack.c.l.b16 %v1368
    %v3466 = vunpack.c.l.b16 %v1369
    %v3467 = vunpack.c.l.b16 %v1370
    %v3468 = vunpack.c.l.b16 %v1371
    %v3469 = vunpack.c.l.b16 %v1372
    %v3470 = vunpack.c.l.b16 %v1373
    %v3471 = vunpack.c.l.b16 %v1374
    %v3472 = vunpack.c.l.b16 %v1375
    %v3473 = vunpack.c.l.b16 %v1376
    %v3474 = vunpack.c.l.b16 %v1377
    %v3475 = vunpack.c.l.b16 %v1378
    %v3476 = vunpack.c.l.b16 %v1379
    %v3477 = vunpack.c.l.b16 %v1380
    %v3478 = vunpack.c.l.b16 %v1381
    %v3479 = vunpack.c.l.b16 %v1382
    %v3480 = vunpack.c.l.b16 %v1383
    %v3481 = vunpack.c.l.b16 %v1384
    %v3482 = vunpack.c.l.b16 %v1385
    %v3483 = vunpack.c.l.b16 %v1386
    %v3484 = vunpack.c.l.b16 %v1387
    %v3485 = vunpack.c.l.b16 %v1388
    %v3486 = vunpack.c.l.b16 %v1389
    %v3487 = vunpack.c.l.b16 %v1390
    %v3488 = vunpack.c.l.b16 %v1391
    %v3489 = vunpack.c.l.b16 %v1392
    %v3490 = vunpack.c.l.b16 %v1393
    %v3491 = vunpack.c.l.b16 %v1394
    %v3492 = vunpack.c.l.b16 %v1395
    %v3493 = vunpack.c.l.b16 %v1396
    %v3494 = vunpack.c.l.b16 %v1397
    %v3495 = vunpack.c.l.b16 %v1398
    %v3496 = vunpack.c.l.b16 %v1399
    %v3497 = vunpack.c.l.b16 %v1400
    %v3498 = vunpack.c.l.b16 %v1401
    %v3499 = vunpack.c.l.b16 %v1402
    %v3500 = vunpack.c.l.b16 %v1403
    %v3501 = vunpack.c.l.b16 %v1404
    %v3502 = vunpack.c.l.b16 %v1405
    %v3503 = vunpack.c.l.b16 %v1406
    %v3504 = vunpack.c.l.b16 %v1407
    %v3505 = vunpack.c.l.b16 %v1408
    %v3506 = vunpack.c.l.b16 %v1409
    %v3507 = vunpack.c.l.b16 %v1410
    %v3508 = vunpack.c.l.b16 %v1411
    %v3509 = vunpack.c.l.b16 %v1412
    %v3510 = vunpack.c.l.b16 %v1413
    %v3511 = vunpack.c.l.b16 %v1414
    %v3512 = vunpack.c.l.b16 %v1415
    %v3513 = vunpack.c.l.b16 %v1416
    %v3514 = vunpack.c.l.b16 %v1417
    %v3515 = vunpack.c.l.b16 %v1418
    %v3516 = vunpack.c.l.b16 %v1419
    %v3517 = vunpack.c.l.b16 %v1420
    %v3518 = vunpack.c.l.b16 %v1421
    %v3519 = vunpack.c.l.b16 %v1422
    %v3520 = vunpack.c.l.b16 %v1423
    %v3521 = vunpack.c.l.b16 %v1424
    %v3522 = vunpack.c.l.b16 %v1425
    %v3523 = vunpack.c.l.b16 %v1426
    %v3524 = vunpack.c.l.b16 %v1427
    %v3525 = vunpack.c.l.b16 %v1428
    %v3526 = vunpack.c.l.b16 %v1429
    %v3527 = vunpack.c.l.b16 %v1430
    %v3528 = vunpack.c.l.b16 %v1431
    %v3529 = vunpack.c.l.b16 %v1432
    %v3530 = vunpack.c.l.b16 %v1433
    %v3531 = vunpack.c.l.b16 %v1434
    %v3532 = vunpack.c.l.b16 %v1435
    %v3533 = vunpack.c.l.b16 %v1436
    %v3534 = vunpack.c.l.b16 %v1437
    %v3535 = vunpack.c.l.b16 %v1438
    %v3536 = vunpack.c.l.b16 %v1439
    %v3537 = vunpack.c.l.b16 %v1440
    %v3538 = vunpack.c.l.b16 %v1441
    %v3539 = vunpack.c.l.b16 %v1442
    %v3540 = vunpack.c.l.b16 %v1443
    %v3541 = vunpack.c.l.b16 %v1444
    %v3542 = vunpack.c.l.b16 %v1445
    %v3543 = vunpack.c.l.b16 %v1446
    %v3544 = vunpack.c.l.b16 %v1447
    %v3545 = vunpack.c.l.b16 %v1448
    %v3546 = vunpack.c.l.b16 %v1449
    %v3547 = vunpack.c.l.b16 %v1450
    %v3548 = vunpack.c.l.b16 %v1451
    %v3549 = vunpack.c.l.b16 %v1452
    %v3550 = vunpack.c.l.b16 %v1453
    %v3551 = vunpack.c.l.b16 %v1454
    %v3552 = vunpack.c.l.b16 %v1455
    %v3553 = vunpack.c.l.b16 %v1456
    %v3554 = vunpack.c.l.b16 %v1457
    %v3555 = vunpack.c.l.b16 %v1458
    %v3556 = vunpack.c.l.b16 %v1459
    %v3557 = vunpack.c.l.b16 %v1460
    %v3558 = vunpack.c.l.b16 %v1461
    %v3559 = vunpack.c.l.b16 %v1462
    %v3560 = vunpack.c.l.b16 %v1463
    %v3561 = vunpack.c.l.b16 %v1464
    %v3562 = vunpack.c.l.b16 %v1465
    %v3563 = vunpack.c.l.b16 %v1466
    %v3564 = vunpack.c.l.b16 %v1467
    %v3565 = vunpack.c.l.b16 %v1468
    %v3566 = vunpack.c.l.b16 %v1469
    %v3567 = vunpack.c.l.b16 %v1470
    %v3568 = vunpack.c.l.b16 %v1471
    %v3569 = vunpack.c.l.b16 %v1472
    %v3570 = vunpack.c.l.b16 %v1473
    %v3571 = vunpack.c.l.b16 %v1474
    %v3572 = vunpack.c.l.b16 %v1475
    %v3573 = vunpack.c.l.b16 %v1476
    %v3574 = vunpack.c.l.b16 %v1477
    %v3575 = vunpack.c.l.b16 %v1478
    %v3576 = vunpack.c.l.b16 %v1479
    %v3577 = vunpack.c.l.b16 %v1480
    %v3578 = vunpack.c.l.b16 %v1481
    %v3579 = vunpack.c.l.b16 %v1482
    %v3580 = vunpack.c.l.b16 %v1483
    %v3581 = vunpack.c.l.b16 %v1484
    %v3582 = vunpack.c.l.b16 %v1485
    %v3583 = vunpack.c.l.b16 %v1486
    %v3584 = vunpack.c.l.b16 %v1487
    %v3585 = vunpack.c.l.b16 %v1488
    %v3586 = vunpack.c.l.b16 %v1489
    %v3587 = vunpack.c.l.b16 %v1490
    %v3588 = vunpack.c.l.b16 %v1491
    %v3589 = vpack.c.b16 %v2566, %v2565
    %v3590 = vpack.c.b16 %v2568, %v2567
    %v3591 = vpack.c.b16 %v2570, %v2569
    %v3592 = vpack.c.b16 %v2572, %v2571
    %v3593 = vpack.c.b16 %v2574, %v2573
    %v3594 = vpack.c.b16 %v2576, %v2575
    %v3595 = vpack.c.b16 %v2578, %v2577
    %v3596 = vpack.c.b16 %v2580, %v2579
    %v3597 = vpack.c.b16 %v2582, %v2581
    %v3598 = vpack.c.b16 %v2584, %v2583
    %v3599 = vpack.c.b16 %v2586, %v2585
    %v3600 = vpack.c.b16 %v2588, %v2587
    %v3601 = vpack.c.b16 %v2590, %v2589
    %v3602 = vpack.c.b16 %v2592, %v2591
    %v3603 = vpack.c.b16 %v2594, %v2593
    %v3604 = vpack.c.b16 %v2596, %v2595
    %v3605 = vpack.c.b16 %v2598, %v2597
    %v3606 = vpack.c.b16 %v2600, %v2599
    %v3607 = vpack.c.b16 %v2602, %v2601
    %v3608 = vpack.c.b16 %v2604, %v2603
    %v3609 = vpack.c.b16 %v2606, %v2605
    %v3610 = vpack.c.b16 %v2608, %v2607
    %v3611 = vpack.c.b16 %v2610, %v2609
    %v3612 = vpack.c.b16 %v2612, %v2611
    %v3613 = vpack.c.b16 %v2614, %v2613
    %v3614 = vpack.c.b16 %v2616, %v2615
    %v3615 = vpack.c.b16 %v2618, %v2617
    %v3616 = vpack.c.b16 %v2620, %v2619
    %v3617 = vpack.c.b16 %v2622, %v2621
    %v3618 = vpack.c.b16 %v2624, %v2623
    %v3619 = vpack.c.b16 %v2626, %v2625
    %v3620 = vpack.c.b16 %v2628, %v2627
    %v3621 = vpack.c.b16 %v2630, %v2629
    %v3622 = vpack.c.b16 %v2632, %v2631
    %v3623 = vpack.c.b16 %v2634, %v2633
    %v3624 = vpack.c.b16 %v2636, %v2635
    %v3625 = vpack.c.b16 %v2638, %v2637
    %v3626 = vpack.c.b16 %v2640, %v2639
    %v3627 = vpack.c.b16 %v2642, %v2641
    %v3628 = vpack.c.b16 %v2644, %v2643
    %v3629 = vpack.c.b16 %v2646, %v2645
    %v3630 = vpack.c.b16 %v2648, %v2647
    %v3631 = vpack.c.b16 %v2650, %v2649
    %v3632 = vpack.c.b16 %v2652, %v2651
    %v3633 = vpack.c.b16 %v2654, %v2653
    %v3634 = vpack.c.b16 %v2656, %v2655
    %v3635 = vpack.c.b16 %v2658, %v2657
    %v3636 = vpack.c.b16 %v2660, %v2659
    %v3637 = vpack.c.b16 %v2662, %v2661
    %v3638 = vpack.c.b16 %v2664, %v2663
    %v3639 = vpack.c.b16 %v2666, %v2665
    %v3640 = vpack.c.b16 %v2668, %v2667
    %v3641 = vpack.c.b16 %v2670, %v2669
    %v3642 = vpack.c.b16 %v2672, %v2671
    %v3643 = vpack.c.b16 %v2674, %v2673
    %v3644 = vpack.c.b16 %v2676, %v2675
    %v3645 = vpack.c.b16 %v2678, %v2677
    %v3646 = vpack.c.b16 %v2680, %v2679
    %v3647 = vpack.c.b16 %v2682, %v2681
    %v3648 = vpack.c.b16 %v2684, %v2683
    %v3649 = vpack.c.b16 %v2686, %v2685
    %v3650 = vpack.c.b16 %v2688, %v2687
    %v3651 = vpack.c.b16 %v2690, %v2689
    %v3652 = vpack.c.b16 %v2692, %v2691
    %v3653 = vpack.c.b16 %v2694, %v2693
    %v3654 = vpack.c.b16 %v2696, %v2695
    %v3655 = vpack.c.b16 %v2698, %v2697
    %v3656 = vpack.c.b16 %v2700, %v2699
    %v3657 = vpack.c.b16 %v2702, %v2701
    %v3658 = vpack.c.b16 %v2704, %v2703
    %v3659 = vpack.c.b16 %v2706, %v2705
    %v3660 = vpack.c.b16 %v2708, %v2707
    %v3661 = vpack.c.b16 %v2710, %v2709
    %v3662 = vpack.c.b16 %v2712, %v2711
    %v3663 = vpack.c.b16 %v2714, %v2713
    %v3664 = vpack.c.b16 %v2716, %v2715
    %v3665 = vpack.c.b16 %v2718, %v2717
    %v3666 = vpack.c.b16 %v2720, %v2719
    %v3667 = vpack.c.b16 %v2722, %v2721
    %v3668 = vpack.c.b16 %v2724, %v2723
    %v3669 = vpack.c.b16 %v2726, %v2725
    %v3670 = vpack.c.b16 %v2728, %v2727
    %v3671 = vpack.c.b16 %v2730, %v2729
    %v3672 = vpack.c.b16 %v2732, %v2731
    %v3673 = vpack.c.b16 %v2734, %v2733
    %v3674 = vpack.c.b16 %v2736, %v2735
    %v3675 = vpack.c.b16 %v2738, %v2737
    %v3676 = vpack.c.b16 %v2740, %v2739
    %v3677 = vpack.c.b16 %v2742, %v2741
    %v3678 = vpack.c.b16 %v2744, %v2743
    %v3679 = vpack.c.b16 %v2746, %v2745
    %v3680 = vpack.c.b16 %v2748, %v2747
    %v3681 = vpack.c.b16 %v2750, %v2749
    %v3682 = vpack.c.b16 %v2752, %v2751
    %v3683 = vpack.c.b16 %v2754, %v2753
    %v3684 = vpack.c.b16 %v2756, %v2755
    %v3685 = vpack.c.b16 %v2758, %v2757
    %v3686 = vpack.c.b16 %v2760, %v2759
    %v3687 = vpack.c.b16 %v2762, %v2761
    %v3688 = vpack.c.b16 %v2764, %v2763
    %v3689 = vpack.c.b16 %v2766, %v2765
    %v3690 = vpack.c.b16 %v2768, %v2767
    %v3691 = vpack.c.b16 %v2770, %v2769
    %v3692 = vpack.c.b16 %v2772, %v2771
    %v3693 = vpack.c.b16 %v2774, %v2773
    %v3694 = vpack.c.b16 %v2776, %v2775
    %v3695 = vpack.c.b16 %v2778, %v2777
    %v3696 = vpack.c.b16 %v2780, %v2779
    %v3697 = vpack.c.b16 %v2782, %v2781
    %v3698 = vpack.c.b16 %v2784, %v2783
    %v3699 = vpack.c.b16 %v2786, %v2785
    %v3700 = vpack.c.b16 %v2788, %v2787
    %v3701 = vpack.c.b16 %v2790, %v2789
    %v3702 = vpack.c.b16 %v2792, %v2791
    %v3703 = vpack.c.b16 %v2794, %v2793
    %v3704 = vpack.c.b16 %v2796, %v2795
    %v3705 = vpack.c.b16 %v2798, %v2797
    %v3706 = vpack.c.b16 %v2800, %v2799
    %v3707 = vpack.c.b16 %v2802, %v2801
    %v3708 = vpack.c.b16 %v2804, %v2803
    %v3709 = vpack.c.b16 %v2806, %v2805
    %v3710 = vpack.c.b16 %v2808, %v2807
    %v3711 = vpack.c.b16 %v2810, %v2809
    %v3712 = vpack.c.b16 %v2812, %v2811
    %v3713 = vpack.c.b16 %v2814, %v2813
    %v3714 = vpack.c.b16 %v2816, %v2815
    %v3715 = vpack.c.b16 %v2818, %v2817
    %v3716 = vpack.c.b16 %v2820, %v2819
    %v3717 = vpack.c.b16 %v2822, %v2821
    %v3718 = vpack.c.b16 %v2824, %v2823
    %v3719 = vpack.c.b16 %v2826, %v2825
    %v3720 = vpack.c.b16 %v2828, %v2827
    %v3721 = vpack.c.b16 %v2830, %v2829
    %v3722 = vpack.c.b16 %v2832, %v2831
    %v3723 = vpack.c.b16 %v2834, %v2833
    %v3724 = vpack.c.b16 %v2836, %v2835
    %v3725 = vpack.c.b16 %v2838, %v2837
    %v3726 = vpack.c.b16 %v2840, %v2839
    %v3727 = vpack.c.b16 %v2842, %v2841
    %v3728 = vpack.c.b16 %v2844, %v2843
    %v3729 = vpack.c.b16 %v2846, %v2845
    %v3730 = vpack.c.b16 %v2848, %v2847
    %v3731 = vpack.c.b16 %v2850, %v2849
    %v3732 = vpack.c.b16 %v2852, %v2851
    %v3733 = vpack.c.b16 %v2854, %v2853
    %v3734 = vpack.c.b16 %v2856, %v2855
    %v3735 = vpack.c.b16 %v2858, %v2857
    %v3736 = vpack.c.b16 %v2860, %v2859
    %v3737 = vpack.c.b16 %v2862, %v2861
    %v3738 = vpack.c.b16 %v2864, %v2863
    %v3739 = vpack.c.b16 %v2866, %v2865
    %v3740 = vpack.c.b16 %v2868, %v2867
    %v3741 = vpack.c.b16 %v2870, %v2869
    %v3742 = vpack.c.b16 %v2872, %v2871
    %v3743 = vpack.c.b16 %v2874, %v2873
    %v3744 = vpack.c.b16 %v2876, %v2875
    %v3745 = vpack.c.b16 %v2878, %v2877
    %v3746 = vpack.c.b16 %v2880, %v2879
    %v3747 = vpack.c.b16 %v2882, %v2881
    %v3748 = vpack.c.b16 %v2884, %v2883
    %v3749 = vpack.c.b16 %v2886, %v2885
    %v3750 = vpack.c.b16 %v2888, %v2887
    %v3751 = vpack.c.b16 %v2890, %v2889
    %v3752 = vpack.c.b16 %v2892, %v2891
    %v3753 = vpack.c.b16 %v2894, %v2893
    %v3754 = vpack.c.b16 %v2896, %v2895
    %v3755 = vpack.c.b16 %v2898, %v2897
    %v3756 = vpack.c.b16 %v2900, %v2899
    %v3757 = vpack.c.b16 %v2902, %v2901
    %v3758 = vpack.c.b16 %v2904, %v2903
    %v3759 = vpack.c.b16 %v2906, %v2905
    %v3760 = vpack.c.b16 %v2908, %v2907
    %v3761 = vpack.c.b16 %v2910, %v2909
    %v3762 = vpack.c.b16 %v2912, %v2911
    %v3763 = vpack.c.b16 %v2914, %v2913
    %v3764 = vpack.c.b16 %v2916, %v2915
    %v3765 = vpack.c.b16 %v2918, %v2917
    %v3766 = vpack.c.b16 %v2920, %v2919
    %v3767 = vpack.c.b16 %v2922, %v2921
    %v3768 = vpack.c.b16 %v2924, %v2923
    %v3769 = vpack.c.b16 %v2926, %v2925
    %v3770 = vpack.c.b16 %v2928, %v2927
    %v3771 = vpack.c.b16 %v2930, %v2929
    %v3772 = vpack.c.b16 %v2932, %v2931
    %v3773 = vpack.c.b16 %v2934, %v2933
    %v3774 = vpack.c.b16 %v2936, %v2935
    %v3775 = vpack.c.b16 %v2938, %v2937
    %v3776 = vpack.c.b16 %v2940, %v2939
    %v3777 = vpack.c.b16 %v2942, %v2941
    %v3778 = vpack.c.b16 %v2944, %v2943
    %v3779 = vpack.c.b16 %v2946, %v2945
    %v3780 = vpack.c.b16 %v2948, %v2947
    %v3781 = vpack.c.b16 %v2950, %v2949
    %v3782 = vpack.c.b16 %v2952, %v2951
    %v3783 = vpack.c.b16 %v2954, %v2953
    %v3784 = vpack.c.b16 %v2956, %v2955
    %v3785 = vpack.c.b16 %v2958, %v2957
    %v3786 = vpack.c.b16 %v2960, %v2959
    %v3787 = vpack.c.b16 %v2962, %v2961
    %v3788 = vpack.c.b16 %v2964, %v2963
    %v3789 = vpack.c.b16 %v2966, %v2965
    %v3790 = vpack.c.b16 %v2968, %v2967
    %v3791 = vpack.c.b16 %v2970, %v2969
    %v3792 = vpack.c.b16 %v2972, %v2971
    %v3793 = vpack.c.b16 %v2974, %v2973
    %v3794 = vpack.c.b16 %v2976, %v2975
    %v3795 = vpack.c.b16 %v2978, %v2977
    %v3796 = vpack.c.b16 %v2980, %v2979
    %v3797 = vpack.c.b16 %v2982, %v2981
    %v3798 = vpack.c.b16 %v2984, %v2983
    %v3799 = vpack.c.b16 %v2986, %v2985
    %v3800 = vpack.c.b16 %v2988, %v2987
    %v3801 = vpack.c.b16 %v2990, %v2989
    %v3802 = vpack.c.b16 %v2992, %v2991
    %v3803 = vpack.c.b16 %v2994, %v2993
    %v3804 = vpack.c.b16 %v2996, %v2995
    %v3805 = vpack.c.b16 %v2998, %v2997
    %v3806 = vpack.c.b16 %v3000, %v2999
    %v3807 = vpack.c.b16 %v3002, %v3001
    %v3808 = vpack.c.b16 %v3004, %v3003
    %v3809 = vpack.c.b16 %v3006, %v3005
    %v3810 = vpack.c.b16 %v3008, %v3007
    %v3811 = vpack.c.b16 %v3010, %v3009
    %v3812 = vpack.c.b16 %v3012, %v3011
    %v3813 = vpack.c.b16 %v3014, %v3013
    %v3814 = vpack.c.b16 %v3016, %v3015
    %v3815 = vpack.c.b16 %v3018, %v3017
    %v3816 = vpack.c.b16 %v3020, %v3019
    %v3817 = vpack.c.b16 %v3022, %v3021
    %v3818 = vpack.c.b16 %v3024, %v3023
    %v3819 = vpack.c.b16 %v3026, %v3025
    %v3820 = vpack.c.b16 %v3028, %v3027
    %v3821 = vpack.c.b16 %v3030, %v3029
    %v3822 = vpack.c.b16 %v3032, %v3031
    %v3823 = vpack.c.b16 %v3034, %v3033
    %v3824 = vpack.c.b16 %v3036, %v3035
    %v3825 = vpack.c.b16 %v3038, %v3037
    %v3826 = vpack.c.b16 %v3040, %v3039
    %v3827 = vpack.c.b16 %v3042, %v3041
    %v3828 = vpack.c.b16 %v3044, %v3043
    %v3829 = vpack.c.b16 %v3046, %v3045
    %v3830 = vpack.c.b16 %v3048, %v3047
    %v3831 = vpack.c.b16 %v3050, %v3049
    %v3832 = vpack.c.b16 %v3052, %v3051
    %v3833 = vpack.c.b16 %v3054, %v3053
    %v3834 = vpack.c.b16 %v3056, %v3055
    %v3835 = vpack.c.b16 %v3058, %v3057
    %v3836 = vpack.c.b16 %v3060, %v3059
    %v3837 = vpack.c.b16 %v3062, %v3061
    %v3838 = vpack.c.b16 %v3064, %v3063
    %v3839 = vpack.c.b16 %v3066, %v3065
    %v3840 = vpack.c.b16 %v3068, %v3067
    %v3841 = vpack.c.b16 %v3070, %v3069
    %v3842 = vpack.c.b16 %v3072, %v3071
    %v3843 = vpack.c.b16 %v3074, %v3073
    %v3844 = vpack.c.b16 %v3076, %v3075
    %v3845 = vpack.c.b16 %v3078, %v3077
    %v3846 = vpack.c.b16 %v3080, %v3079
    %v3847 = vpack.c.b16 %v3082, %v3081
    %v3848 = vpack.c.b16 %v3084, %v3083
    %v3849 = vpack.c.b16 %v3086, %v3085
    %v3850 = vpack.c.b16 %v3088, %v3087
    %v3851 = vpack.c.b16 %v3090, %v3089
    %v3852 = vpack.c.b16 %v3092, %v3091
    %v3853 = vpack.c.b16 %v3094, %v3093
    %v3854 = vpack.c.b16 %v3096, %v3095
    %v3855 = vpack.c.b16 %v3098, %v3097
    %v3856 = vpack.c.b16 %v3100, %v3099
    %v3857 = vpack.c.b16 %v3102, %v3101
    %v3858 = vpack.c.b16 %v3104, %v3103
    %v3859 = vpack.c.b16 %v3106, %v3105
    %v3860 = vpack.c.b16 %v3108, %v3107
    %v3861 = vpack.c.b16 %v3110, %v3109
    %v3862 = vpack.c.b16 %v3112, %v3111
    %v3863 = vpack.c.b16 %v3114, %v3113
    %v3864 = vpack.c.b16 %v3116, %v3115
    %v3865 = vpack.c.b16 %v3118, %v3117
    %v3866 = vpack.c.b16 %v3120, %v3119
    %v3867 = vpack.c.b16 %v3122, %v3121
    %v3868 = vpack.c.b16 %v3124, %v3123
    %v3869 = vpack.c.b16 %v3126, %v3125
    %v3870 = vpack.c.b16 %v3128, %v3127
    %v3871 = vpack.c.b16 %v3130, %v3129
    %v3872 = vpack.c.b16 %v3132, %v3131
    %v3873 = vpack.c.b16 %v3134, %v3133
    %v3874 = vpack.c.b16 %v3136, %v3135
    %v3875 = vpack.c.b16 %v3138, %v3137
    %v3876 = vpack.c.b16 %v3140, %v3139
    %v3877 = vpack.c.b16 %v3142, %v3141
    %v3878 = vpack.c.b16 %v3144, %v3143
    %v3879 = vpack.c.b16 %v3146, %v3145
    %v3880 = vpack.c.b16 %v3148, %v3147
    %v3881 = vpack.c.b16 %v3150, %v3149
    %v3882 = vpack.c.b16 %v3152, %v3151
    %v3883 = vpack.c.b16 %v3154, %v3153
    %v3884 = vpack.c.b16 %v3156, %v3155
    %v3885 = vpack.c.b16 %v3158, %v3157
    %v3886 = vpack.c.b16 %v3160, %v3159
    %v3887 = vpack.c.b16 %v3162, %v3161
    %v3888 = vpack.c.b16 %v3164, %v3163
    %v3889 = vpack.c.b16 %v3166, %v3165
    %v3890 = vpack.c.b16 %v3168, %v3167
    %v3891 = vpack.c.b16 %v3170, %v3169
    %v3892 = vpack.c.b16 %v3172, %v3171
    %v3893 = vpack.c.b16 %v3174, %v3173
    %v3894 = vpack.c.b16 %v3176, %v3175
    %v3895 = vpack.c.b16 %v3178, %v3177
    %v3896 = vpack.c.b16 %v3180, %v3179
    %v3897 = vpack.c.b16 %v3182, %v3181
    %v3898 = vpack.c.b16 %v3184, %v3183
    %v3899 = vpack.c.b16 %v3186, %v3185
    %v3900 = vpack.c.b16 %v3188, %v3187
    %v3901 = vpack.c.b16 %v3190, %v3189
    %v3902 = vpack.c.b16 %v3192, %v3191
    %v3903 = vpack.c.b16 %v3194, %v3193
    %v3904 = vpack.c.b16 %v3196, %v3195
    %v3905 = vpack.c.b16 %v3198, %v3197
    %v3906 = vpack.c.b16 %v3200, %v3199
    %v3907 = vpack.c.b16 %v3202, %v3201
    %v3908 = vpack.c.b16 %v3204, %v3203
    %v3909 = vpack.c.b16 %v3206, %v3205
    %v3910 = vpack.c.b16 %v3208, %v3207
    %v3911 = vpack.c.b16 %v3210, %v3209
    %v3912 = vpack.c.b16 %v3212, %v3211
    %v3913 = vpack.c.b16 %v3214, %v3213
    %v3914 = vpack.c.b16 %v3216, %v3215
    %v3915 = vpack.c.b16 %v3218, %v3217
    %v3916 = vpack.c.b16 %v3220, %v3219
    %v3917 = vpack.c.b16 %v3222, %v3221
    %v3918 = vpack.c.b16 %v3224, %v3223
    %v3919 = vpack.c.b16 %v3226, %v3225
    %v3920 = vpack.c.b16 %v3228, %v3227
    %v3921 = vpack.c.b16 %v3230, %v3229
    %v3922 = vpack.c.b16 %v3232, %v3231
    %v3923 = vpack.c.b16 %v3234, %v3233
    %v3924 = vpack.c.b16 %v3236, %v3235
    %v3925 = vpack.c.b16 %v3238, %v3237
    %v3926 = vpack.c.b16 %v3240, %v3239
    %v3927 = vpack.c.b16 %v3242, %v3241
    %v3928 = vpack.c.b16 %v3244, %v3243
    %v3929 = vpack.c.b16 %v3246, %v3245
    %v3930 = vpack.c.b16 %v3248, %v3247
    %v3931 = vpack.c.b16 %v3250, %v3249
    %v3932 = vpack.c.b16 %v3252, %v3251
    %v3933 = vpack.c.b16 %v3254, %v3253
    %v3934 = vpack.c.b16 %v3256, %v3255
    %v3935 = vpack.c.b16 %v3258, %v3257
    %v3936 = vpack.c.b16 %v3260, %v3259
    %v3937 = vpack.c.b16 %v3262, %v3261
    %v3938 = vpack.c.b16 %v3264, %v3263
    %v3939 = vpack.c.b16 %v3266, %v3265
    %v3940 = vpack.c.b16 %v3268, %v3267
    %v3941 = vpack.c.b16 %v3270, %v3269
    %v3942 = vpack.c.b16 %v3272, %v3271
    %v3943 = vpack.c.b16 %v3274, %v3273
    %v3944 = vpack.c.b16 %v3276, %v3275
    %v3945 = vpack.c.b16 %v3278, %v3277
    %v3946 = vpack.c.b16 %v3280, %v3279
    %v3947 = vpack.c.b16 %v3282, %v3281
    %v3948 = vpack.c.b16 %v3284, %v3283
    %v3949 = vpack.c.b16 %v3286, %v3285
    %v3950 = vpack.c.b16 %v3288, %v3287
    %v3951 = vpack.c.b16 %v3290, %v3289
    %v3952 = vpack.c.b16 %v3292, %v3291
    %v3953 = vpack.c.b16 %v3294, %v3293
    %v3954 = vpack.c.b16 %v3296, %v3295
    %v3955 = vpack.c.b16 %v3298, %v3297
    %v3956 = vpack.c.b16 %v3300, %v3299
    %v3957 = vpack.c.b16 %v3302, %v3301
    %v3958 = vpack.c.b16 %v3304, %v3303
    %v3959 = vpack.c.b16 %v3306, %v3305
    %v3960 = vpack.c.b16 %v3308, %v3307
    %v3961 = vpack.c.b16 %v3310, %v3309
    %v3962 = vpack.c.b16 %v3312, %v3311
    %v3963 = vpack.c.b16 %v3314, %v3313
    %v3964 = vpack.c.b16 %v3316, %v3315
    %v3965 = vpack.c.b16 %v3318, %v3317
    %v3966 = vpack.c.b16 %v3320, %v3319
    %v3967 = vpack.c.b16 %v3322, %v3321
    %v3968 = vpack.c.b16 %v3324, %v3323
    %v3969 = vpack.c.b16 %v3326, %v3325
    %v3970 = vpack.c.b16 %v3328, %v3327
    %v3971 = vpack.c.b16 %v3330, %v3329
    %v3972 = vpack.c.b16 %v3332, %v3331
    %v3973 = vpack.c.b16 %v3334, %v3333
    %v3974 = vpack.c.b16 %v3336, %v3335
    %v3975 = vpack.c.b16 %v3338, %v3337
    %v3976 = vpack.c.b16 %v3340, %v3339
    %v3977 = vpack.c.b16 %v3342, %v3341
    %v3978 = vpack.c.b16 %v3344, %v3343
    %v3979 = vpack.c.b16 %v3346, %v3345
    %v3980 = vpack.c.b16 %v3348, %v3347
    %v3981 = vpack.c.b16 %v3350, %v3349
    %v3982 = vpack.c.b16 %v3352, %v3351
    %v3983 = vpack.c.b16 %v3354, %v3353
    %v3984 = vpack.c.b16 %v3356, %v3355
    %v3985 = vpack.c.b16 %v3358, %v3357
    %v3986 = vpack.c.b16 %v3360, %v3359
    %v3987 = vpack.c.b16 %v3362, %v3361
    %v3988 = vpack.c.b16 %v3364, %v3363
    %v3989 = vpack.c.b16 %v3366, %v3365
    %v3990 = vpack.c.b16 %v3368, %v3367
    %v3991 = vpack.c.b16 %v3370, %v3369
    %v3992 = vpack.c.b16 %v3372, %v3371
    %v3993 = vpack.c.b16 %v3374, %v3373
    %v3994 = vpack.c.b16 %v3376, %v3375
    %v3995 = vpack.c.b16 %v3378, %v3377
    %v3996 = vpack.c.b16 %v3380, %v3379
    %v3997 = vpack.c.b16 %v3382, %v3381
    %v3998 = vpack.c.b16 %v3384, %v3383
    %v3999 = vpack.c.b16 %v3386, %v3385
    %v4000 = vpack.c.b16 %v3388, %v3387
    %v4001 = vpack.c.b16 %v3390, %v3389
    %v4002 = vpack.c.b16 %v3392, %v3391
    %v4003 = vpack.c.b16 %v3394, %v3393
    %v4004 = vpack.c.b16 %v3396, %v3395
    %v4005 = vpack.c.b16 %v3398, %v3397
    %v4006 = vpack.c.b16 %v3400, %v3399
    %v4007 = vpack.c.b16 %v3402, %v3401
    %v4008 = vpack.c.b16 %v3404, %v3403
    %v4009 = vpack.c.b16 %v3406, %v3405
    %v4010 = vpack.c.b16 %v3408, %v3407
    %v4011 = vpack.c.b16 %v3410, %v3409
    %v4012 = vpack.c.b16 %v3412, %v3411
    %v4013 = vpack.c.b16 %v3414, %v3413
    %v4014 = vpack.c.b16 %v3416, %v3415
    %v4015 = vpack.c.b16 %v3418, %v3417
    %v4016 = vpack.c.b16 %v3420, %v3419
    %v4017 = vpack.c.b16 %v3422, %v3421
    %v4018 = vpack.c.b16 %v3424, %v3423
    %v4019 = vpack.c.b16 %v3426, %v3425
    %v4020 = vpack.c.b16 %v3428, %v3427
    %v4021 = vpack.c.b16 %v3430, %v3429
    %v4022 = vpack.c.b16 %v3432, %v3431
    %v4023 = vpack.c.b16 %v3434, %v3433
    %v4024 = vpack.c.b16 %v3436, %v3435
    %v4025 = vpack.c.b16 %v3438, %v3437
    %v4026 = vpack.c.b16 %v3440, %v3439
    %v4027 = vpack.c.b16 %v3442, %v3441
    %v4028 = vpack.c.b16 %v3444, %v3443
    %v4029 = vpack.c.b16 %v3446, %v3445
    %v4030 = vpack.c.b16 %v3448, %v3447
    %v4031 = vpack.c.b16 %v3450, %v3449
    %v4032 = vpack.c.b16 %v3452, %v3451
    %v4033 = vpack.c.b16 %v3454, %v3453
    %v4034 = vpack.c.b16 %v3456, %v3455
    %v4035 = vpack.c.b16 %v3458, %v3457
    %v4036 = vpack.c.b16 %v3460, %v3459
    %v4037 = vpack.c.b16 %v3462, %v3461
    %v4038 = vpack.c.b16 %v3464, %v3463
    %v4039 = vpack.c.b16 %v3466, %v3465
    %v4040 = vpack.c.b16 %v3468, %v3467
    %v4041 = vpack.c.b16 %v3470, %v3469
    %v4042 = vpack.c.b16 %v3472, %v3471
    %v4043 = vpack.c.b16 %v3474, %v3473
    %v4044 = vpack.c.b16 %v3476, %v3475
    %v4045 = vpack.c.b16 %v3478, %v3477
    %v4046 = vpack.c.b16 %v3480, %v3479
    %v4047 = vpack.c.b16 %v3482, %v3481
    %v4048 = vpack.c.b16 %v3484, %v3483
    %v4049 = vpack.c.b16 %v3486, %v3485
    %v4050 = vpack.c.b16 %v3488, %v3487
    %v4051 = vpack.c.b16 %v3490, %v3489
    %v4052 = vpack.c.b16 %v3492, %v3491
    %v4053 = vpack.c.b16 %v3494, %v3493
    %v4054 = vpack.c.b16 %v3496, %v3495
    %v4055 = vpack.c.b16 %v3498, %v3497
    %v4056 = vpack.c.b16 %v3500, %v3499
    %v4057 = vpack.c.b16 %v3502, %v3501
    %v4058 = vpack.c.b16 %v3504, %v3503
    %v4059 = vpack.c.b16 %v3506, %v3505
    %v4060 = vpack.c.b16 %v3508, %v3507
    %v4061 = vpack.c.b16 %v3510, %v3509
    %v4062 = vpack.c.b16 %v3512, %v3511
    %v4063 = vpack.c.b16 %v3514, %v3513
    %v4064 = vpack.c.b16 %v3516, %v3515
    %v4065 = vpack.c.b16 %v3518, %v3517
    %v4066 = vpack.c.b16 %v3520, %v3519
    %v4067 = vpack.c.b16 %v3522, %v3521
    %v4068 = vpack.c.b16 %v3524, %v3523
    %v4069 = vpack.c.b16 %v3526, %v3525
    %v4070 = vpack.c.b16 %v3528, %v3527
    %v4071 = vpack.c.b16 %v3530, %v3529
    %v4072 = vpack.c.b16 %v3532, %v3531
    %v4073 = vpack.c.b16 %v3534, %v3533
    %v4074 = vpack.c.b16 %v3536, %v3535
    %v4075 = vpack.c.b16 %v3538, %v3537
    %v4076 = vpack.c.b16 %v3540, %v3539
    %v4077 = vpack.c.b16 %v3542, %v3541
    %v4078 = vpack.c.b16 %v3544, %v3543
    %v4079 = vpack.c.b16 %v3546, %v3545
    %v4080 = vpack.c.b16 %v3548, %v3547
    %v4081 = vpack.c.b16 %v3550, %v3549
    %v4082 = vpack.c.b16 %v3552, %v3551
    %v4083 = vpack.c.b16 %v3554, %v3553
    %v4084 = vpack.c.b16 %v3556, %v3555
    %v4085 = vpack.c.b16 %v3558, %v3557
    %v4086 = vpack.c.b16 %v3560, %v3559
    %v4087 = vpack.c.b16 %v3562, %v3561
    %v4088 = vpack.c.b16 %v3564, %v3563
    %v4089 = vpack.c.b16 %v3566, %v3565
    %v4090 = vpack.c.b16 %v3568, %v3567
    %v4091 = vpack.c.b16 %v3570, %v3569
    %v4092 = vpack.c.b16 %v3572, %v3571
    %v4093 = vpack.c.b16 %v3574, %v3573
    %v4094 = vpack.c.b16 %v3576, %v3575
    %v4095 = vpack.c.b16 %v3578, %v3577
    %v4096 = vpack.c.b16 %v3580, %v3579
    %v4097 = vpack.c.b16 %v3582, %v3581
    %v4098 = vpack.c.b16 %v3584, %v3583
    %v4099 = vpack.c.b16 %v3586, %v3585
    %v4100 = vpack.c.b16 %v3588, %v3587
    %4613 = vmatprep.subr.bf16.mxu0 0
    %4614 = vmatpush1.bf16.msra.mxu0 %v3596
    %4615 = vmatprep.subr.bf16.mxu0 0
    %4616 = vmatpush1.bf16.msra.mxu0 %v3595
    %4617 = vmatprep.subr.bf16.mxu0 0
    %4618 = vmatpush1.bf16.msra.mxu0 %v3594
    %4619 = vmatprep.subr.bf16.mxu0 0
    %4620 = vmatpush1.bf16.msra.mxu0 %v3593
    %4621 = vmatprep.subr.bf16.mxu0 0
    %4622 = vmatpush1.bf16.msra.mxu0 %v3592
    %4623 = vmatprep.subr.bf16.mxu0 0
    %4624 = vmatpush1.bf16.msra.mxu0 %v3591
    %4625 = vmatprep.subr.bf16.mxu0 0
    %4626 = vmatpush1.bf16.msra.mxu0 %v3590
    %4627 = vmatprep.subr.bf16.mxu0 0
    %4628 = vmatpush1.bf16.msra.mxu0 %v3589
    %4629 = vmatprep.subr.bf16.mxu0 0
    %4630 = vmatpush2.bf16.msra.mxu0 %v3604
    %4631 = vmatprep.subr.bf16.mxu0 0
    %4632 = vmatpush2.bf16.msra.mxu0 %v3603
    %4633 = vmatprep.subr.bf16.mxu0 0
    %4634 = vmatpush2.bf16.msra.mxu0 %v3602
    %4635 = vmatprep.subr.bf16.mxu0 0
    %4636 = vmatpush2.bf16.msra.mxu0 %v3601
    %4637 = vmatprep.subr.bf16.mxu0 0
    %4638 = vmatpush2.bf16.msra.mxu0 %v3600
    %4639 = vmatprep.subr.bf16.mxu0 0
    %4640 = vmatpush2.bf16.msra.mxu0 %v3599
    %4641 = vmatprep.subr.bf16.mxu0 0
    %4642 = vmatpush2.bf16.msra.mxu0 %v3598
    %4643 = vmatprep.subr.bf16.mxu0 0
    %4644 = vmatpush2.bf16.msra.mxu0 %v3597
    %4645 = vmatprep.mubr.bf16.mxu0 %v403
    %4646 = vmatmul.mubr.bf16.gmra.mxu0 %v402
    %v4647 = vpop.f32.mrf.mxu0
    %v4648 = vadd.f32 %v1536, %v4647
    %v4649 = vpop.f32.mrf.mxu0
    %v4650 = vpop.f32.mrf.mxu0
    %v4651 = vpop.f32.mrf.mxu0
    %4652 = vdwg.mxu0
    %4653 = vmatprep.subr.bf16.mxu0 0
    %4654 = vmatpush1.bf16.msra.mxu0 %v3612
    %4655 = vmatprep.subr.bf16.mxu0 0
    %4656 = vmatpush1.bf16.msra.mxu0 %v3611
    %4657 = vmatprep.subr.bf16.mxu0 0
    %4658 = vmatpush1.bf16.msra.mxu0 %v3610
    %4659 = vmatprep.subr.bf16.mxu0 0
    %4660 = vmatpush1.bf16.msra.mxu0 %v3609
    %4661 = vmatprep.subr.bf16.mxu0 0
    %4662 = vmatpush1.bf16.msra.mxu0 %v3608
    %4663 = vmatprep.subr.bf16.mxu0 0
    %4664 = vmatpush1.bf16.msra.mxu0 %v3607
    %4665 = vmatprep.subr.bf16.mxu0 0
    %4666 = vmatpush1.bf16.msra.mxu0 %v3606
    %4667 = vmatprep.subr.bf16.mxu0 0
    %4668 = vmatpush1.bf16.msra.mxu0 %v3605
    %4669 = vmatprep.subr.bf16.mxu0 0
    %4670 = vmatpush2.bf16.msra.mxu0 %v3620
    %4671 = vmatprep.subr.bf16.mxu0 0
    %4672 = vmatpush2.bf16.msra.mxu0 %v3619
    %4673 = vmatprep.subr.bf16.mxu0 0
    %4674 = vmatpush2.bf16.msra.mxu0 %v3618
    %4675 = vmatprep.subr.bf16.mxu0 0
    %4676 = vmatpush2.bf16.msra.mxu0 %v3617
    %4677 = vmatprep.subr.bf16.mxu0 0
    %4678 = vmatpush2.bf16.msra.mxu0 %v3616
    %4679 = vmatprep.subr.bf16.mxu0 0
    %4680 = vmatpush2.bf16.msra.mxu0 %v3615
    %4681 = vmatprep.subr.bf16.mxu0 0
    %4682 = vmatpush2.bf16.msra.mxu0 %v3614
    %4683 = vmatprep.subr.bf16.mxu0 0
    %4684 = vmatpush2.bf16.msra.mxu0 %v3613
    %4685 = vmatprep.mubr.bf16.mxu0 %v405
    %4686 = vmatmul.mubr.bf16.gmra.mxu0 %v404
    %v4687 = vpop.f32.mrf.mxu0
    %v4688 = vadd.f32 %v4648, %v4687
    %v4689 = vpop.f32.mrf.mxu0
    %v4690 = vpop.f32.mrf.mxu0
    %v4691 = vpop.f32.mrf.mxu0
    %4692 = vdwg.mxu0
    %4693 = vmatprep.subr.bf16.mxu0 0
    %4694 = vmatpush1.bf16.msra.mxu0 %v3628
    %4695 = vmatprep.subr.bf16.mxu0 0
    %4696 = vmatpush1.bf16.msra.mxu0 %v3627
    %4697 = vmatprep.subr.bf16.mxu0 0
    %4698 = vmatpush1.bf16.msra.mxu0 %v3626
    %4699 = vmatprep.subr.bf16.mxu0 0
    %4700 = vmatpush1.bf16.msra.mxu0 %v3625
    %4701 = vmatprep.subr.bf16.mxu0 0
    %4702 = vmatpush1.bf16.msra.mxu0 %v3624
    %4703 = vmatprep.subr.bf16.mxu0 0
    %4704 = vmatpush1.bf16.msra.mxu0 %v3623
    %4705 = vmatprep.subr.bf16.mxu0 0
    %4706 = vmatpush1.bf16.msra.mxu0 %v3622
    %4707 = vmatprep.subr.bf16.mxu0 0
    %4708 = vmatpush1.bf16.msra.mxu0 %v3621
    %4709 = vmatprep.subr.bf16.mxu0 0
    %4710 = vmatpush2.bf16.msra.mxu0 %v3636
    %4711 = vmatprep.subr.bf16.mxu0 0
    %4712 = vmatpush2.bf16.msra.mxu0 %v3635
    %4713 = vmatprep.subr.bf16.mxu0 0
    %4714 = vmatpush2.bf16.msra.mxu0 %v3634
    %4715 = vmatprep.subr.bf16.mxu0 0
    %4716 = vmatpush2.bf16.msra.mxu0 %v3633
    %4717 = vmatprep.subr.bf16.mxu0 0
    %4718 = vmatpush2.bf16.msra.mxu0 %v3632
    %4719 = vmatprep.subr.bf16.mxu0 0
    %4720 = vmatpush2.bf16.msra.mxu0 %v3631
    %4721 = vmatprep.subr.bf16.mxu0 0
    %4722 = vmatpush2.bf16.msra.mxu0 %v3630
    %4723 = vmatprep.subr.bf16.mxu0 0
    %4724 = vmatpush2.bf16.msra.mxu0 %v3629
    %4725 = vmatprep.mubr.bf16.mxu0 %v407
    %4726 = vmatmul.mubr.bf16.gmra.mxu0 %v406
    %v4727 = vpop.f32.mrf.mxu0
    %v4728 = vadd.f32 %v4688, %v4727
    %v4729 = vpop.f32.mrf.mxu0
    %v4730 = vpop.f32.mrf.mxu0
    %v4731 = vpop.f32.mrf.mxu0
    %4732 = vdwg.mxu0
    %4733 = vmatprep.subr.bf16.mxu0 0
    %4734 = vmatpush1.bf16.msra.mxu0 %v3644
    %4735 = vmatprep.subr.bf16.mxu0 0
    %4736 = vmatpush1.bf16.msra.mxu0 %v3643
    %4737 = vmatprep.subr.bf16.mxu0 0
    %4738 = vmatpush1.bf16.msra.mxu0 %v3642
    %4739 = vmatprep.subr.bf16.mxu0 0
    %4740 = vmatpush1.bf16.msra.mxu0 %v3641
    %4741 = vmatprep.subr.bf16.mxu0 0
    %4742 = vmatpush1.bf16.msra.mxu0 %v3640
    %4743 = vmatprep.subr.bf16.mxu0 0
    %4744 = vmatpush1.bf16.msra.mxu0 %v3639
    %4745 = vmatprep.subr.bf16.mxu0 0
    %4746 = vmatpush1.bf16.msra.mxu0 %v3638
    %4747 = vmatprep.subr.bf16.mxu0 0
    %4748 = vmatpush1.bf16.msra.mxu0 %v3637
    %4749 = vmatprep.subr.bf16.mxu0 0
    %4750 = vmatpush2.bf16.msra.mxu0 %v3652
    %4751 = vmatprep.subr.bf16.mxu0 0
    %4752 = vmatpush2.bf16.msra.mxu0 %v3651
    %4753 = vmatprep.subr.bf16.mxu0 0
    %4754 = vmatpush2.bf16.msra.mxu0 %v3650
    %4755 = vmatprep.subr.bf16.mxu0 0
    %4756 = vmatpush2.bf16.msra.mxu0 %v3649
    %4757 = vmatprep.subr.bf16.mxu0 0
    %4758 = vmatpush2.bf16.msra.mxu0 %v3648
    %4759 = vmatprep.subr.bf16.mxu0 0
    %4760 = vmatpush2.bf16.msra.mxu0 %v3647
    %4761 = vmatprep.subr.bf16.mxu0 0
    %4762 = vmatpush2.bf16.msra.mxu0 %v3646
    %4763 = vmatprep.subr.bf16.mxu0 0
    %4764 = vmatpush2.bf16.msra.mxu0 %v3645
    %4765 = vmatprep.mubr.bf16.mxu0 %v409
    %4766 = vmatmul.mubr.bf16.gmra.mxu0 %v408
    %v4767 = vpop.f32.mrf.mxu0
    %v4768 = vadd.f32 %v4728, %v4767
    %v4769 = vpop.f32.mrf.mxu0
    %v4770 = vpop.f32.mrf.mxu0
    %v4771 = vpop.f32.mrf.mxu0
    %4772 = vdwg.mxu0
    %4773 = vmatprep.subr.bf16.mxu0 0
    %4774 = vmatpush1.bf16.msra.mxu0 %v3660
    %4775 = vmatprep.subr.bf16.mxu0 0
    %4776 = vmatpush1.bf16.msra.mxu0 %v3659
    %4777 = vmatprep.subr.bf16.mxu0 0
    %4778 = vmatpush1.bf16.msra.mxu0 %v3658
    %4779 = vmatprep.subr.bf16.mxu0 0
    %4780 = vmatpush1.bf16.msra.mxu0 %v3657
    %4781 = vmatprep.subr.bf16.mxu0 0
    %4782 = vmatpush1.bf16.msra.mxu0 %v3656
    %4783 = vmatprep.subr.bf16.mxu0 0
    %4784 = vmatpush1.bf16.msra.mxu0 %v3655
    %4785 = vmatprep.subr.bf16.mxu0 0
    %4786 = vmatpush1.bf16.msra.mxu0 %v3654
    %4787 = vmatprep.subr.bf16.mxu0 0
    %4788 = vmatpush1.bf16.msra.mxu0 %v3653
    %4789 = vmatprep.subr.bf16.mxu0 0
    %4790 = vmatpush2.bf16.msra.mxu0 %v3668
    %4791 = vmatprep.subr.bf16.mxu0 0
    %4792 = vmatpush2.bf16.msra.mxu0 %v3667
    %4793 = vmatprep.subr.bf16.mxu0 0
    %4794 = vmatpush2.bf16.msra.mxu0 %v3666
    %4795 = vmatprep.subr.bf16.mxu0 0
    %4796 = vmatpush2.bf16.msra.mxu0 %v3665
    %4797 = vmatprep.subr.bf16.mxu0 0
    %4798 = vmatpush2.bf16.msra.mxu0 %v3664
    %4799 = vmatprep.subr.bf16.mxu0 0
    %4800 = vmatpush2.bf16.msra.mxu0 %v3663
    %4801 = vmatprep.subr.bf16.mxu0 0
    %4802 = vmatpush2.bf16.msra.mxu0 %v3662
    %4803 = vmatprep.subr.bf16.mxu0 0
    %4804 = vmatpush2.bf16.msra.mxu0 %v3661
    %4805 = vmatprep.mubr.bf16.mxu0 %v411
    %4806 = vmatmul.mubr.bf16.gmra.mxu0 %v410
    %v4807 = vpop.f32.mrf.mxu0
    %v4808 = vadd.f32 %v4768, %v4807
    %v4809 = vpop.f32.mrf.mxu0
    %v4810 = vpop.f32.mrf.mxu0
    %v4811 = vpop.f32.mrf.mxu0
    %4812 = vdwg.mxu0
    %4813 = vmatprep.subr.bf16.mxu0 0
    %4814 = vmatpush1.bf16.msra.mxu0 %v3676
    %4815 = vmatprep.subr.bf16.mxu0 0
    %4816 = vmatpush1.bf16.msra.mxu0 %v3675
    %4817 = vmatprep.subr.bf16.mxu0 0
    %4818 = vmatpush1.bf16.msra.mxu0 %v3674
    %4819 = vmatprep.subr.bf16.mxu0 0
    %4820 = vmatpush1.bf16.msra.mxu0 %v3673
    %4821 = vmatprep.subr.bf16.mxu0 0
    %4822 = vmatpush1.bf16.msra.mxu0 %v3672
    %4823 = vmatprep.subr.bf16.mxu0 0
    %4824 = vmatpush1.bf16.msra.mxu0 %v3671
    %4825 = vmatprep.subr.bf16.mxu0 0
    %4826 = vmatpush1.bf16.msra.mxu0 %v3670
    %4827 = vmatprep.subr.bf16.mxu0 0
    %4828 = vmatpush1.bf16.msra.mxu0 %v3669
    %4829 = vmatprep.subr.bf16.mxu0 0
    %4830 = vmatpush2.bf16.msra.mxu0 %v3684
    %4831 = vmatprep.subr.bf16.mxu0 0
    %4832 = vmatpush2.bf16.msra.mxu0 %v3683
    %4833 = vmatprep.subr.bf16.mxu0 0
    %4834 = vmatpush2.bf16.msra.mxu0 %v3682
    %4835 = vmatprep.subr.bf16.mxu0 0
    %4836 = vmatpush2.bf16.msra.mxu0 %v3681
    %4837 = vmatprep.subr.bf16.mxu0 0
    %4838 = vmatpush2.bf16.msra.mxu0 %v3680
    %4839 = vmatprep.subr.bf16.mxu0 0
    %4840 = vmatpush2.bf16.msra.mxu0 %v3679
    %4841 = vmatprep.subr.bf16.mxu0 0
    %4842 = vmatpush2.bf16.msra.mxu0 %v3678
    %4843 = vmatprep.subr.bf16.mxu0 0
    %4844 = vmatpush2.bf16.msra.mxu0 %v3677
    %4845 = vmatprep.mubr.bf16.mxu0 %v413
    %4846 = vmatmul.mubr.bf16.gmra.mxu0 %v412
    %v4847 = vpop.f32.mrf.mxu0
    %v4848 = vadd.f32 %v4808, %v4847
    %v4849 = vpop.f32.mrf.mxu0
    %v4850 = vpop.f32.mrf.mxu0
    %v4851 = vpop.f32.mrf.mxu0
    %4852 = vdwg.mxu0
    %4853 = vmatprep.subr.bf16.mxu0 0
    %4854 = vmatpush1.bf16.msra.mxu0 %v3692
    %4855 = vmatprep.subr.bf16.mxu0 0
    %4856 = vmatpush1.bf16.msra.mxu0 %v3691
    %4857 = vmatprep.subr.bf16.mxu0 0
    %4858 = vmatpush1.bf16.msra.mxu0 %v3690
    %4859 = vmatprep.subr.bf16.mxu0 0
    %4860 = vmatpush1.bf16.msra.mxu0 %v3689
    %4861 = vmatprep.subr.bf16.mxu0 0
    %4862 = vmatpush1.bf16.msra.mxu0 %v3688
    %4863 = vmatprep.subr.bf16.mxu0 0
    %4864 = vmatpush1.bf16.msra.mxu0 %v3687
    %4865 = vmatprep.subr.bf16.mxu0 0
    %4866 = vmatpush1.bf16.msra.mxu0 %v3686
    %4867 = vmatprep.subr.bf16.mxu0 0
    %4868 = vmatpush1.bf16.msra.mxu0 %v3685
    %4869 = vmatprep.subr.bf16.mxu0 0
    %4870 = vmatpush2.bf16.msra.mxu0 %v3700
    %4871 = vmatprep.subr.bf16.mxu0 0
    %4872 = vmatpush2.bf16.msra.mxu0 %v3699
    %4873 = vmatprep.subr.bf16.mxu0 0
    %4874 = vmatpush2.bf16.msra.mxu0 %v3698
    %4875 = vmatprep.subr.bf16.mxu0 0
    %4876 = vmatpush2.bf16.msra.mxu0 %v3697
    %4877 = vmatprep.subr.bf16.mxu0 0
    %4878 = vmatpush2.bf16.msra.mxu0 %v3696
    %4879 = vmatprep.subr.bf16.mxu0 0
    %4880 = vmatpush2.bf16.msra.mxu0 %v3695
    %4881 = vmatprep.subr.bf16.mxu0 0
    %4882 = vmatpush2.bf16.msra.mxu0 %v3694
    %4883 = vmatprep.subr.bf16.mxu0 0
    %4884 = vmatpush2.bf16.msra.mxu0 %v3693
    %4885 = vmatprep.mubr.bf16.mxu0 %v415
    %4886 = vmatmul.mubr.bf16.gmra.mxu0 %v414
    %v4887 = vpop.f32.mrf.mxu0
    %v4888 = vadd.f32 %v4848, %v4887
    %v4889 = vpop.f32.mrf.mxu0
    %v4890 = vpop.f32.mrf.mxu0
    %v4891 = vpop.f32.mrf.mxu0
    %4892 = vdwg.mxu0
    %4893 = vmatprep.subr.bf16.mxu0 0
    %4894 = vmatpush1.bf16.msra.mxu0 %v3708
    %4895 = vmatprep.subr.bf16.mxu0 0
    %4896 = vmatpush1.bf16.msra.mxu0 %v3707
    %4897 = vmatprep.subr.bf16.mxu0 0
    %4898 = vmatpush1.bf16.msra.mxu0 %v3706
    %4899 = vmatprep.subr.bf16.mxu0 0
    %4900 = vmatpush1.bf16.msra.mxu0 %v3705
    %4901 = vmatprep.subr.bf16.mxu0 0
    %4902 = vmatpush1.bf16.msra.mxu0 %v3704
    %4903 = vmatprep.subr.bf16.mxu0 0
    %4904 = vmatpush1.bf16.msra.mxu0 %v3703
    %4905 = vmatprep.subr.bf16.mxu0 0
    %4906 = vmatpush1.bf16.msra.mxu0 %v3702
    %4907 = vmatprep.subr.bf16.mxu0 0
    %4908 = vmatpush1.bf16.msra.mxu0 %v3701
    %4909 = vmatprep.subr.bf16.mxu0 0
    %4910 = vmatpush2.bf16.msra.mxu0 %v3716
    %4911 = vmatprep.subr.bf16.mxu0 0
    %4912 = vmatpush2.bf16.msra.mxu0 %v3715
    %4913 = vmatprep.subr.bf16.mxu0 0
    %4914 = vmatpush2.bf16.msra.mxu0 %v3714
    %4915 = vmatprep.subr.bf16.mxu0 0
    %4916 = vmatpush2.bf16.msra.mxu0 %v3713
    %4917 = vmatprep.subr.bf16.mxu0 0
    %4918 = vmatpush2.bf16.msra.mxu0 %v3712
    %4919 = vmatprep.subr.bf16.mxu0 0
    %4920 = vmatpush2.bf16.msra.mxu0 %v3711
    %4921 = vmatprep.subr.bf16.mxu0 0
    %4922 = vmatpush2.bf16.msra.mxu0 %v3710
    %4923 = vmatprep.subr.bf16.mxu0 0
    %4924 = vmatpush2.bf16.msra.mxu0 %v3709
    %4925 = vmatprep.mubr.bf16.mxu0 %v417
    %4926 = vmatmul.mubr.bf16.gmra.mxu0 %v416
    %v4927 = vpop.f32.mrf.mxu0
    %v4928 = vadd.f32 %v4888, %v4927
    %v4929 = vpop.f32.mrf.mxu0
    %v4930 = vpop.f32.mrf.mxu0
    %v4931 = vpop.f32.mrf.mxu0
    %4932 = vdwg.mxu0
    %4933 = vmatprep.subr.bf16.mxu0 0
    %4934 = vmatpush1.bf16.msra.mxu0 %v3724
    %4935 = vmatprep.subr.bf16.mxu0 0
    %4936 = vmatpush1.bf16.msra.mxu0 %v3723
    %4937 = vmatprep.subr.bf16.mxu0 0
    %4938 = vmatpush1.bf16.msra.mxu0 %v3722
    %4939 = vmatprep.subr.bf16.mxu0 0
    %4940 = vmatpush1.bf16.msra.mxu0 %v3721
    %4941 = vmatprep.subr.bf16.mxu0 0
    %4942 = vmatpush1.bf16.msra.mxu0 %v3720
    %4943 = vmatprep.subr.bf16.mxu0 0
    %4944 = vmatpush1.bf16.msra.mxu0 %v3719
    %4945 = vmatprep.subr.bf16.mxu0 0
    %4946 = vmatpush1.bf16.msra.mxu0 %v3718
    %4947 = vmatprep.subr.bf16.mxu0 0
    %4948 = vmatpush1.bf16.msra.mxu0 %v3717
    %4949 = vmatprep.subr.bf16.mxu0 0
    %4950 = vmatpush2.bf16.msra.mxu0 %v3732
    %4951 = vmatprep.subr.bf16.mxu0 0
    %4952 = vmatpush2.bf16.msra.mxu0 %v3731
    %4953 = vmatprep.subr.bf16.mxu0 0
    %4954 = vmatpush2.bf16.msra.mxu0 %v3730
    %4955 = vmatprep.subr.bf16.mxu0 0
    %4956 = vmatpush2.bf16.msra.mxu0 %v3729
    %4957 = vmatprep.subr.bf16.mxu0 0
    %4958 = vmatpush2.bf16.msra.mxu0 %v3728
    %4959 = vmatprep.subr.bf16.mxu0 0
    %4960 = vmatpush2.bf16.msra.mxu0 %v3727
    %4961 = vmatprep.subr.bf16.mxu0 0
    %4962 = vmatpush2.bf16.msra.mxu0 %v3726
    %4963 = vmatprep.subr.bf16.mxu0 0
    %4964 = vmatpush2.bf16.msra.mxu0 %v3725
    %4965 = vmatprep.mubr.bf16.mxu0 %v419
    %4966 = vmatmul.mubr.bf16.gmra.mxu0 %v418
    %v4967 = vpop.f32.mrf.mxu0
    %v4968 = vadd.f32 %v4928, %v4967
    %v4969 = vpop.f32.mrf.mxu0
    %v4970 = vpop.f32.mrf.mxu0
    %v4971 = vpop.f32.mrf.mxu0
    %4972 = vdwg.mxu0
    %4973 = vmatprep.subr.bf16.mxu0 0
    %4974 = vmatpush1.bf16.msra.mxu0 %v3740
    %4975 = vmatprep.subr.bf16.mxu0 0
    %4976 = vmatpush1.bf16.msra.mxu0 %v3739
    %4977 = vmatprep.subr.bf16.mxu0 0
    %4978 = vmatpush1.bf16.msra.mxu0 %v3738
    %4979 = vmatprep.subr.bf16.mxu0 0
    %4980 = vmatpush1.bf16.msra.mxu0 %v3737
    %4981 = vmatprep.subr.bf16.mxu0 0
    %4982 = vmatpush1.bf16.msra.mxu0 %v3736
    %4983 = vmatprep.subr.bf16.mxu0 0
    %4984 = vmatpush1.bf16.msra.mxu0 %v3735
    %4985 = vmatprep.subr.bf16.mxu0 0
    %4986 = vmatpush1.bf16.msra.mxu0 %v3734
    %4987 = vmatprep.subr.bf16.mxu0 0
    %4988 = vmatpush1.bf16.msra.mxu0 %v3733
    %4989 = vmatprep.subr.bf16.mxu0 0
    %4990 = vmatpush2.bf16.msra.mxu0 %v3748
    %4991 = vmatprep.subr.bf16.mxu0 0
    %4992 = vmatpush2.bf16.msra.mxu0 %v3747
    %4993 = vmatprep.subr.bf16.mxu0 0
    %4994 = vmatpush2.bf16.msra.mxu0 %v3746
    %4995 = vmatprep.subr.bf16.mxu0 0
    %4996 = vmatpush2.bf16.msra.mxu0 %v3745
    %4997 = vmatprep.subr.bf16.mxu0 0
    %4998 = vmatpush2.bf16.msra.mxu0 %v3744
    %4999 = vmatprep.subr.bf16.mxu0 0
    %5000 = vmatpush2.bf16.msra.mxu0 %v3743
    %5001 = vmatprep.subr.bf16.mxu0 0
    %5002 = vmatpush2.bf16.msra.mxu0 %v3742
    %5003 = vmatprep.subr.bf16.mxu0 0
    %5004 = vmatpush2.bf16.msra.mxu0 %v3741
    %5005 = vmatprep.mubr.bf16.mxu0 %v421
    %5006 = vmatmul.mubr.bf16.gmra.mxu0 %v420
    %v5007 = vpop.f32.mrf.mxu0
    %v5008 = vadd.f32 %v4968, %v5007
    %v5009 = vpop.f32.mrf.mxu0
    %v5010 = vpop.f32.mrf.mxu0
    %v5011 = vpop.f32.mrf.mxu0
    %5012 = vdwg.mxu0
    %5013 = vmatprep.subr.bf16.mxu0 0
    %5014 = vmatpush1.bf16.msra.mxu0 %v3756
    %5015 = vmatprep.subr.bf16.mxu0 0
    %5016 = vmatpush1.bf16.msra.mxu0 %v3755
    %5017 = vmatprep.subr.bf16.mxu0 0
    %5018 = vmatpush1.bf16.msra.mxu0 %v3754
    %5019 = vmatprep.subr.bf16.mxu0 0
    %5020 = vmatpush1.bf16.msra.mxu0 %v3753
    %5021 = vmatprep.subr.bf16.mxu0 0
    %5022 = vmatpush1.bf16.msra.mxu0 %v3752
    %5023 = vmatprep.subr.bf16.mxu0 0
    %5024 = vmatpush1.bf16.msra.mxu0 %v3751
    %5025 = vmatprep.subr.bf16.mxu0 0
    %5026 = vmatpush1.bf16.msra.mxu0 %v3750
    %5027 = vmatprep.subr.bf16.mxu0 0
    %5028 = vmatpush1.bf16.msra.mxu0 %v3749
    %5029 = vmatprep.subr.bf16.mxu0 0
    %5030 = vmatpush2.bf16.msra.mxu0 %v3764
    %5031 = vmatprep.subr.bf16.mxu0 0
    %5032 = vmatpush2.bf16.msra.mxu0 %v3763
    %5033 = vmatprep.subr.bf16.mxu0 0
    %5034 = vmatpush2.bf16.msra.mxu0 %v3762
    %5035 = vmatprep.subr.bf16.mxu0 0
    %5036 = vmatpush2.bf16.msra.mxu0 %v3761
    %5037 = vmatprep.subr.bf16.mxu0 0
    %5038 = vmatpush2.bf16.msra.mxu0 %v3760
    %5039 = vmatprep.subr.bf16.mxu0 0
    %5040 = vmatpush2.bf16.msra.mxu0 %v3759
    %5041 = vmatprep.subr.bf16.mxu0 0
    %5042 = vmatpush2.bf16.msra.mxu0 %v3758
    %5043 = vmatprep.subr.bf16.mxu0 0
    %5044 = vmatpush2.bf16.msra.mxu0 %v3757
    %5045 = vmatprep.mubr.bf16.mxu0 %v423
    %5046 = vmatmul.mubr.bf16.gmra.mxu0 %v422
    %v5047 = vpop.f32.mrf.mxu0
    %v5048 = vadd.f32 %v5008, %v5047
    %v5049 = vpop.f32.mrf.mxu0
    %v5050 = vpop.f32.mrf.mxu0
    %v5051 = vpop.f32.mrf.mxu0
    %5052 = vdwg.mxu0
    %5053 = vmatprep.subr.bf16.mxu0 0
    %5054 = vmatpush1.bf16.msra.mxu0 %v3772
    %5055 = vmatprep.subr.bf16.mxu0 0
    %5056 = vmatpush1.bf16.msra.mxu0 %v3771
    %5057 = vmatprep.subr.bf16.mxu0 0
    %5058 = vmatpush1.bf16.msra.mxu0 %v3770
    %5059 = vmatprep.subr.bf16.mxu0 0
    %5060 = vmatpush1.bf16.msra.mxu0 %v3769
    %5061 = vmatprep.subr.bf16.mxu0 0
    %5062 = vmatpush1.bf16.msra.mxu0 %v3768
    %5063 = vmatprep.subr.bf16.mxu0 0
    %5064 = vmatpush1.bf16.msra.mxu0 %v3767
    %5065 = vmatprep.subr.bf16.mxu0 0
    %5066 = vmatpush1.bf16.msra.mxu0 %v3766
    %5067 = vmatprep.subr.bf16.mxu0 0
    %5068 = vmatpush1.bf16.msra.mxu0 %v3765
    %5069 = vmatprep.subr.bf16.mxu0 0
    %5070 = vmatpush2.bf16.msra.mxu0 %v3780
    %5071 = vmatprep.subr.bf16.mxu0 0
    %5072 = vmatpush2.bf16.msra.mxu0 %v3779
    %5073 = vmatprep.subr.bf16.mxu0 0
    %5074 = vmatpush2.bf16.msra.mxu0 %v3778
    %5075 = vmatprep.subr.bf16.mxu0 0
    %5076 = vmatpush2.bf16.msra.mxu0 %v3777
    %5077 = vmatprep.subr.bf16.mxu0 0
    %5078 = vmatpush2.bf16.msra.mxu0 %v3776
    %5079 = vmatprep.subr.bf16.mxu0 0
    %5080 = vmatpush2.bf16.msra.mxu0 %v3775
    %5081 = vmatprep.subr.bf16.mxu0 0
    %5082 = vmatpush2.bf16.msra.mxu0 %v3774
    %5083 = vmatprep.subr.bf16.mxu0 0
    %5084 = vmatpush2.bf16.msra.mxu0 %v3773
    %5085 = vmatprep.mubr.bf16.mxu0 %v425
    %5086 = vmatmul.mubr.bf16.gmra.mxu0 %v424
    %v5087 = vpop.f32.mrf.mxu0
    %v5088 = vadd.f32 %v5048, %v5087
    %v5089 = vpop.f32.mrf.mxu0
    %v5090 = vpop.f32.mrf.mxu0
    %v5091 = vpop.f32.mrf.mxu0
    %5092 = vdwg.mxu0
    %5093 = vmatprep.subr.bf16.mxu0 0
    %5094 = vmatpush1.bf16.msra.mxu0 %v3788
    %5095 = vmatprep.subr.bf16.mxu0 0
    %5096 = vmatpush1.bf16.msra.mxu0 %v3787
    %5097 = vmatprep.subr.bf16.mxu0 0
    %5098 = vmatpush1.bf16.msra.mxu0 %v3786
    %5099 = vmatprep.subr.bf16.mxu0 0
    %5100 = vmatpush1.bf16.msra.mxu0 %v3785
    %5101 = vmatprep.subr.bf16.mxu0 0
    %5102 = vmatpush1.bf16.msra.mxu0 %v3784
    %5103 = vmatprep.subr.bf16.mxu0 0
    %5104 = vmatpush1.bf16.msra.mxu0 %v3783
    %5105 = vmatprep.subr.bf16.mxu0 0
    %5106 = vmatpush1.bf16.msra.mxu0 %v3782
    %5107 = vmatprep.subr.bf16.mxu0 0
    %5108 = vmatpush1.bf16.msra.mxu0 %v3781
    %5109 = vmatprep.subr.bf16.mxu0 0
    %5110 = vmatpush2.bf16.msra.mxu0 %v3796
    %5111 = vmatprep.subr.bf16.mxu0 0
    %5112 = vmatpush2.bf16.msra.mxu0 %v3795
    %5113 = vmatprep.subr.bf16.mxu0 0
    %5114 = vmatpush2.bf16.msra.mxu0 %v3794
    %5115 = vmatprep.subr.bf16.mxu0 0
    %5116 = vmatpush2.bf16.msra.mxu0 %v3793
    %5117 = vmatprep.subr.bf16.mxu0 0
    %5118 = vmatpush2.bf16.msra.mxu0 %v3792
    %5119 = vmatprep.subr.bf16.mxu0 0
    %5120 = vmatpush2.bf16.msra.mxu0 %v3791
    %5121 = vmatprep.subr.bf16.mxu0 0
    %5122 = vmatpush2.bf16.msra.mxu0 %v3790
    %5123 = vmatprep.subr.bf16.mxu0 0
    %5124 = vmatpush2.bf16.msra.mxu0 %v3789
    %5125 = vmatprep.mubr.bf16.mxu0 %v427
    %5126 = vmatmul.mubr.bf16.gmra.mxu0 %v426
    %v5127 = vpop.f32.mrf.mxu0
    %v5128 = vadd.f32 %v5088, %v5127
    %v5129 = vpop.f32.mrf.mxu0
    %v5130 = vpop.f32.mrf.mxu0
    %v5131 = vpop.f32.mrf.mxu0
    %5132 = vdwg.mxu0
    %5133 = vmatprep.subr.bf16.mxu0 0
    %5134 = vmatpush1.bf16.msra.mxu0 %v3804
    %5135 = vmatprep.subr.bf16.mxu0 0
    %5136 = vmatpush1.bf16.msra.mxu0 %v3803
    %5137 = vmatprep.subr.bf16.mxu0 0
    %5138 = vmatpush1.bf16.msra.mxu0 %v3802
    %5139 = vmatprep.subr.bf16.mxu0 0
    %5140 = vmatpush1.bf16.msra.mxu0 %v3801
    %5141 = vmatprep.subr.bf16.mxu0 0
    %5142 = vmatpush1.bf16.msra.mxu0 %v3800
    %5143 = vmatprep.subr.bf16.mxu0 0
    %5144 = vmatpush1.bf16.msra.mxu0 %v3799
    %5145 = vmatprep.subr.bf16.mxu0 0
    %5146 = vmatpush1.bf16.msra.mxu0 %v3798
    %5147 = vmatprep.subr.bf16.mxu0 0
    %5148 = vmatpush1.bf16.msra.mxu0 %v3797
    %5149 = vmatprep.subr.bf16.mxu0 0
    %5150 = vmatpush2.bf16.msra.mxu0 %v3812
    %5151 = vmatprep.subr.bf16.mxu0 0
    %5152 = vmatpush2.bf16.msra.mxu0 %v3811
    %5153 = vmatprep.subr.bf16.mxu0 0
    %5154 = vmatpush2.bf16.msra.mxu0 %v3810
    %5155 = vmatprep.subr.bf16.mxu0 0
    %5156 = vmatpush2.bf16.msra.mxu0 %v3809
    %5157 = vmatprep.subr.bf16.mxu0 0
    %5158 = vmatpush2.bf16.msra.mxu0 %v3808
    %5159 = vmatprep.subr.bf16.mxu0 0
    %5160 = vmatpush2.bf16.msra.mxu0 %v3807
    %5161 = vmatprep.subr.bf16.mxu0 0
    %5162 = vmatpush2.bf16.msra.mxu0 %v3806
    %5163 = vmatprep.subr.bf16.mxu0 0
    %5164 = vmatpush2.bf16.msra.mxu0 %v3805
    %5165 = vmatprep.mubr.bf16.mxu0 %v429
    %5166 = vmatmul.mubr.bf16.gmra.mxu0 %v428
    %v5167 = vpop.f32.mrf.mxu0
    %v5168 = vadd.f32 %v5128, %v5167
    %v5169 = vpop.f32.mrf.mxu0
    %v5170 = vpop.f32.mrf.mxu0
    %v5171 = vpop.f32.mrf.mxu0
    %5172 = vdwg.mxu0
    %5173 = vmatprep.subr.bf16.mxu0 0
    %5174 = vmatpush1.bf16.msra.mxu0 %v3820
    %5175 = vmatprep.subr.bf16.mxu0 0
    %5176 = vmatpush1.bf16.msra.mxu0 %v3819
    %5177 = vmatprep.subr.bf16.mxu0 0
    %5178 = vmatpush1.bf16.msra.mxu0 %v3818
    %5179 = vmatprep.subr.bf16.mxu0 0
    %5180 = vmatpush1.bf16.msra.mxu0 %v3817
    %5181 = vmatprep.subr.bf16.mxu0 0
    %5182 = vmatpush1.bf16.msra.mxu0 %v3816
    %5183 = vmatprep.subr.bf16.mxu0 0
    %5184 = vmatpush1.bf16.msra.mxu0 %v3815
    %5185 = vmatprep.subr.bf16.mxu0 0
    %5186 = vmatpush1.bf16.msra.mxu0 %v3814
    %5187 = vmatprep.subr.bf16.mxu0 0
    %5188 = vmatpush1.bf16.msra.mxu0 %v3813
    %5189 = vmatprep.subr.bf16.mxu0 0
    %5190 = vmatpush2.bf16.msra.mxu0 %v3828
    %5191 = vmatprep.subr.bf16.mxu0 0
    %5192 = vmatpush2.bf16.msra.mxu0 %v3827
    %5193 = vmatprep.subr.bf16.mxu0 0
    %5194 = vmatpush2.bf16.msra.mxu0 %v3826
    %5195 = vmatprep.subr.bf16.mxu0 0
    %5196 = vmatpush2.bf16.msra.mxu0 %v3825
    %5197 = vmatprep.subr.bf16.mxu0 0
    %5198 = vmatpush2.bf16.msra.mxu0 %v3824
    %5199 = vmatprep.subr.bf16.mxu0 0
    %5200 = vmatpush2.bf16.msra.mxu0 %v3823
    %5201 = vmatprep.subr.bf16.mxu0 0
    %5202 = vmatpush2.bf16.msra.mxu0 %v3822
    %5203 = vmatprep.subr.bf16.mxu0 0
    %5204 = vmatpush2.bf16.msra.mxu0 %v3821
    %5205 = vmatprep.mubr.bf16.mxu0 %v431
    %5206 = vmatmul.mubr.bf16.gmra.mxu0 %v430
    %v5207 = vpop.f32.mrf.mxu0
    %v5208 = vadd.f32 %v5168, %v5207
    %v5209 = vpop.f32.mrf.mxu0
    %v5210 = vpop.f32.mrf.mxu0
    %v5211 = vpop.f32.mrf.mxu0
    %5212 = vdwg.mxu0
    %5213 = vmatprep.subr.bf16.mxu0 0
    %5214 = vmatpush1.bf16.msra.mxu0 %v3836
    %5215 = vmatprep.subr.bf16.mxu0 0
    %5216 = vmatpush1.bf16.msra.mxu0 %v3835
    %5217 = vmatprep.subr.bf16.mxu0 0
    %5218 = vmatpush1.bf16.msra.mxu0 %v3834
    %5219 = vmatprep.subr.bf16.mxu0 0
    %5220 = vmatpush1.bf16.msra.mxu0 %v3833
    %5221 = vmatprep.subr.bf16.mxu0 0
    %5222 = vmatpush1.bf16.msra.mxu0 %v3832
    %5223 = vmatprep.subr.bf16.mxu0 0
    %5224 = vmatpush1.bf16.msra.mxu0 %v3831
    %5225 = vmatprep.subr.bf16.mxu0 0
    %5226 = vmatpush1.bf16.msra.mxu0 %v3830
    %5227 = vmatprep.subr.bf16.mxu0 0
    %5228 = vmatpush1.bf16.msra.mxu0 %v3829
    %5229 = vmatprep.subr.bf16.mxu0 0
    %5230 = vmatpush2.bf16.msra.mxu0 %v3844
    %5231 = vmatprep.subr.bf16.mxu0 0
    %5232 = vmatpush2.bf16.msra.mxu0 %v3843
    %5233 = vmatprep.subr.bf16.mxu0 0
    %5234 = vmatpush2.bf16.msra.mxu0 %v3842
    %5235 = vmatprep.subr.bf16.mxu0 0
    %5236 = vmatpush2.bf16.msra.mxu0 %v3841
    %5237 = vmatprep.subr.bf16.mxu0 0
    %5238 = vmatpush2.bf16.msra.mxu0 %v3840
    %5239 = vmatprep.subr.bf16.mxu0 0
    %5240 = vmatpush2.bf16.msra.mxu0 %v3839
    %5241 = vmatprep.subr.bf16.mxu0 0
    %5242 = vmatpush2.bf16.msra.mxu0 %v3838
    %5243 = vmatprep.subr.bf16.mxu0 0
    %5244 = vmatpush2.bf16.msra.mxu0 %v3837
    %5245 = vmatprep.mubr.bf16.mxu0 %v433
    %5246 = vmatmul.mubr.bf16.gmra.mxu0 %v432
    %v5247 = vpop.f32.mrf.mxu0
    %v5248 = vadd.f32 %v5208, %v5247
    %v5249 = vpop.f32.mrf.mxu0
    %v5250 = vpop.f32.mrf.mxu0
    %v5251 = vpop.f32.mrf.mxu0
    %5252 = vdwg.mxu0
    %5253 = vmatprep.subr.bf16.mxu0 0
    %5254 = vmatpush1.bf16.msra.mxu0 %v3852
    %5255 = vmatprep.subr.bf16.mxu0 0
    %5256 = vmatpush1.bf16.msra.mxu0 %v3851
    %5257 = vmatprep.subr.bf16.mxu0 0
    %5258 = vmatpush1.bf16.msra.mxu0 %v3850
    %5259 = vmatprep.subr.bf16.mxu0 0
    %5260 = vmatpush1.bf16.msra.mxu0 %v3849
    %5261 = vmatprep.subr.bf16.mxu0 0
    %5262 = vmatpush1.bf16.msra.mxu0 %v3848
    %5263 = vmatprep.subr.bf16.mxu0 0
    %5264 = vmatpush1.bf16.msra.mxu0 %v3847
    %5265 = vmatprep.subr.bf16.mxu0 0
    %5266 = vmatpush1.bf16.msra.mxu0 %v3846
    %5267 = vmatprep.subr.bf16.mxu0 0
    %5268 = vmatpush1.bf16.msra.mxu0 %v3845
    %5269 = vmatprep.subr.bf16.mxu0 0
    %5270 = vmatpush2.bf16.msra.mxu0 %v3860
    %5271 = vmatprep.subr.bf16.mxu0 0
    %5272 = vmatpush2.bf16.msra.mxu0 %v3859
    %5273 = vmatprep.subr.bf16.mxu0 0
    %5274 = vmatpush2.bf16.msra.mxu0 %v3858
    %5275 = vmatprep.subr.bf16.mxu0 0
    %5276 = vmatpush2.bf16.msra.mxu0 %v3857
    %5277 = vmatprep.subr.bf16.mxu0 0
    %5278 = vmatpush2.bf16.msra.mxu0 %v3856
    %5279 = vmatprep.subr.bf16.mxu0 0
    %5280 = vmatpush2.bf16.msra.mxu0 %v3855
    %5281 = vmatprep.subr.bf16.mxu0 0
    %5282 = vmatpush2.bf16.msra.mxu0 %v3854
    %5283 = vmatprep.subr.bf16.mxu0 0
    %5284 = vmatpush2.bf16.msra.mxu0 %v3853
    %5285 = vmatprep.mubr.bf16.mxu0 %v435
    %5286 = vmatmul.mubr.bf16.gmra.mxu0 %v434
    %v5287 = vpop.f32.mrf.mxu0
    %v5288 = vadd.f32 %v5248, %v5287
    %v5289 = vpop.f32.mrf.mxu0
    %v5290 = vpop.f32.mrf.mxu0
    %v5291 = vpop.f32.mrf.mxu0
    %5292 = vdwg.mxu0
    %5293 = vmatprep.subr.bf16.mxu0 0
    %5294 = vmatpush1.bf16.msra.mxu0 %v3868
    %5295 = vmatprep.subr.bf16.mxu0 0
    %5296 = vmatpush1.bf16.msra.mxu0 %v3867
    %5297 = vmatprep.subr.bf16.mxu0 0
    %5298 = vmatpush1.bf16.msra.mxu0 %v3866
    %5299 = vmatprep.subr.bf16.mxu0 0
    %5300 = vmatpush1.bf16.msra.mxu0 %v3865
    %5301 = vmatprep.subr.bf16.mxu0 0
    %5302 = vmatpush1.bf16.msra.mxu0 %v3864
    %5303 = vmatprep.subr.bf16.mxu0 0
    %5304 = vmatpush1.bf16.msra.mxu0 %v3863
    %5305 = vmatprep.subr.bf16.mxu0 0
    %5306 = vmatpush1.bf16.msra.mxu0 %v3862
    %5307 = vmatprep.subr.bf16.mxu0 0
    %5308 = vmatpush1.bf16.msra.mxu0 %v3861
    %5309 = vmatprep.subr.bf16.mxu0 0
    %5310 = vmatpush2.bf16.msra.mxu0 %v3876
    %5311 = vmatprep.subr.bf16.mxu0 0
    %5312 = vmatpush2.bf16.msra.mxu0 %v3875
    %5313 = vmatprep.subr.bf16.mxu0 0
    %5314 = vmatpush2.bf16.msra.mxu0 %v3874
    %5315 = vmatprep.subr.bf16.mxu0 0
    %5316 = vmatpush2.bf16.msra.mxu0 %v3873
    %5317 = vmatprep.subr.bf16.mxu0 0
    %5318 = vmatpush2.bf16.msra.mxu0 %v3872
    %5319 = vmatprep.subr.bf16.mxu0 0
    %5320 = vmatpush2.bf16.msra.mxu0 %v3871
    %5321 = vmatprep.subr.bf16.mxu0 0
    %5322 = vmatpush2.bf16.msra.mxu0 %v3870
    %5323 = vmatprep.subr.bf16.mxu0 0
    %5324 = vmatpush2.bf16.msra.mxu0 %v3869
    %5325 = vmatprep.mubr.bf16.mxu0 %v437
    %5326 = vmatmul.mubr.bf16.gmra.mxu0 %v436
    %v5327 = vpop.f32.mrf.mxu0
    %v5328 = vadd.f32 %v5288, %v5327
    %v5329 = vpop.f32.mrf.mxu0
    %v5330 = vpop.f32.mrf.mxu0
    %v5331 = vpop.f32.mrf.mxu0
    %5332 = vdwg.mxu0
    %5333 = vmatprep.subr.bf16.mxu0 0
    %5334 = vmatpush1.bf16.msra.mxu0 %v3884
    %5335 = vmatprep.subr.bf16.mxu0 0
    %5336 = vmatpush1.bf16.msra.mxu0 %v3883
    %5337 = vmatprep.subr.bf16.mxu0 0
    %5338 = vmatpush1.bf16.msra.mxu0 %v3882
    %5339 = vmatprep.subr.bf16.mxu0 0
    %5340 = vmatpush1.bf16.msra.mxu0 %v3881
    %5341 = vmatprep.subr.bf16.mxu0 0
    %5342 = vmatpush1.bf16.msra.mxu0 %v3880
    %5343 = vmatprep.subr.bf16.mxu0 0
    %5344 = vmatpush1.bf16.msra.mxu0 %v3879
    %5345 = vmatprep.subr.bf16.mxu0 0
    %5346 = vmatpush1.bf16.msra.mxu0 %v3878
    %5347 = vmatprep.subr.bf16.mxu0 0
    %5348 = vmatpush1.bf16.msra.mxu0 %v3877
    %5349 = vmatprep.subr.bf16.mxu0 0
    %5350 = vmatpush2.bf16.msra.mxu0 %v3892
    %5351 = vmatprep.subr.bf16.mxu0 0
    %5352 = vmatpush2.bf16.msra.mxu0 %v3891
    %5353 = vmatprep.subr.bf16.mxu0 0
    %5354 = vmatpush2.bf16.msra.mxu0 %v3890
    %5355 = vmatprep.subr.bf16.mxu0 0
    %5356 = vmatpush2.bf16.msra.mxu0 %v3889
    %5357 = vmatprep.subr.bf16.mxu0 0
    %5358 = vmatpush2.bf16.msra.mxu0 %v3888
    %5359 = vmatprep.subr.bf16.mxu0 0
    %5360 = vmatpush2.bf16.msra.mxu0 %v3887
    %5361 = vmatprep.subr.bf16.mxu0 0
    %5362 = vmatpush2.bf16.msra.mxu0 %v3886
    %5363 = vmatprep.subr.bf16.mxu0 0
    %5364 = vmatpush2.bf16.msra.mxu0 %v3885
    %5365 = vmatprep.mubr.bf16.mxu0 %v439
    %5366 = vmatmul.mubr.bf16.gmra.mxu0 %v438
    %v5367 = vpop.f32.mrf.mxu0
    %v5368 = vadd.f32 %v5328, %v5367
    %v5369 = vpop.f32.mrf.mxu0
    %v5370 = vpop.f32.mrf.mxu0
    %v5371 = vpop.f32.mrf.mxu0
    %5372 = vdwg.mxu0
    %5373 = vmatprep.subr.bf16.mxu0 0
    %5374 = vmatpush1.bf16.msra.mxu0 %v3900
    %5375 = vmatprep.subr.bf16.mxu0 0
    %5376 = vmatpush1.bf16.msra.mxu0 %v3899
    %5377 = vmatprep.subr.bf16.mxu0 0
    %5378 = vmatpush1.bf16.msra.mxu0 %v3898
    %5379 = vmatprep.subr.bf16.mxu0 0
    %5380 = vmatpush1.bf16.msra.mxu0 %v3897
    %5381 = vmatprep.subr.bf16.mxu0 0
    %5382 = vmatpush1.bf16.msra.mxu0 %v3896
    %5383 = vmatprep.subr.bf16.mxu0 0
    %5384 = vmatpush1.bf16.msra.mxu0 %v3895
    %5385 = vmatprep.subr.bf16.mxu0 0
    %5386 = vmatpush1.bf16.msra.mxu0 %v3894
    %5387 = vmatprep.subr.bf16.mxu0 0
    %5388 = vmatpush1.bf16.msra.mxu0 %v3893
    %5389 = vmatprep.subr.bf16.mxu0 0
    %5390 = vmatpush2.bf16.msra.mxu0 %v3908
    %5391 = vmatprep.subr.bf16.mxu0 0
    %5392 = vmatpush2.bf16.msra.mxu0 %v3907
    %5393 = vmatprep.subr.bf16.mxu0 0
    %5394 = vmatpush2.bf16.msra.mxu0 %v3906
    %5395 = vmatprep.subr.bf16.mxu0 0
    %5396 = vmatpush2.bf16.msra.mxu0 %v3905
    %5397 = vmatprep.subr.bf16.mxu0 0
    %5398 = vmatpush2.bf16.msra.mxu0 %v3904
    %5399 = vmatprep.subr.bf16.mxu0 0
    %5400 = vmatpush2.bf16.msra.mxu0 %v3903
    %5401 = vmatprep.subr.bf16.mxu0 0
    %5402 = vmatpush2.bf16.msra.mxu0 %v3902
    %5403 = vmatprep.subr.bf16.mxu0 0
    %5404 = vmatpush2.bf16.msra.mxu0 %v3901
    %5405 = vmatprep.mubr.bf16.mxu0 %v441
    %5406 = vmatmul.mubr.bf16.gmra.mxu0 %v440
    %v5407 = vpop.f32.mrf.mxu0
    %v5408 = vadd.f32 %v5368, %v5407
    %v5409 = vpop.f32.mrf.mxu0
    %v5410 = vpop.f32.mrf.mxu0
    %v5411 = vpop.f32.mrf.mxu0
    %5412 = vdwg.mxu0
    %5413 = vmatprep.subr.bf16.mxu0 0
    %5414 = vmatpush1.bf16.msra.mxu0 %v3916
    %5415 = vmatprep.subr.bf16.mxu0 0
    %5416 = vmatpush1.bf16.msra.mxu0 %v3915
    %5417 = vmatprep.subr.bf16.mxu0 0
    %5418 = vmatpush1.bf16.msra.mxu0 %v3914
    %5419 = vmatprep.subr.bf16.mxu0 0
    %5420 = vmatpush1.bf16.msra.mxu0 %v3913
    %5421 = vmatprep.subr.bf16.mxu0 0
    %5422 = vmatpush1.bf16.msra.mxu0 %v3912
    %5423 = vmatprep.subr.bf16.mxu0 0
    %5424 = vmatpush1.bf16.msra.mxu0 %v3911
    %5425 = vmatprep.subr.bf16.mxu0 0
    %5426 = vmatpush1.bf16.msra.mxu0 %v3910
    %5427 = vmatprep.subr.bf16.mxu0 0
    %5428 = vmatpush1.bf16.msra.mxu0 %v3909
    %5429 = vmatprep.subr.bf16.mxu0 0
    %5430 = vmatpush2.bf16.msra.mxu0 %v3924
    %5431 = vmatprep.subr.bf16.mxu0 0
    %5432 = vmatpush2.bf16.msra.mxu0 %v3923
    %5433 = vmatprep.subr.bf16.mxu0 0
    %5434 = vmatpush2.bf16.msra.mxu0 %v3922
    %5435 = vmatprep.subr.bf16.mxu0 0
    %5436 = vmatpush2.bf16.msra.mxu0 %v3921
    %5437 = vmatprep.subr.bf16.mxu0 0
    %5438 = vmatpush2.bf16.msra.mxu0 %v3920
    %5439 = vmatprep.subr.bf16.mxu0 0
    %5440 = vmatpush2.bf16.msra.mxu0 %v3919
    %5441 = vmatprep.subr.bf16.mxu0 0
    %5442 = vmatpush2.bf16.msra.mxu0 %v3918
    %5443 = vmatprep.subr.bf16.mxu0 0
    %5444 = vmatpush2.bf16.msra.mxu0 %v3917
    %5445 = vmatprep.mubr.bf16.mxu0 %v443
    %5446 = vmatmul.mubr.bf16.gmra.mxu0 %v442
    %v5447 = vpop.f32.mrf.mxu0
    %v5448 = vadd.f32 %v5408, %v5447
    %v5449 = vpop.f32.mrf.mxu0
    %v5450 = vpop.f32.mrf.mxu0
    %v5451 = vpop.f32.mrf.mxu0
    %5452 = vdwg.mxu0
    %5453 = vmatprep.subr.bf16.mxu0 0
    %5454 = vmatpush1.bf16.msra.mxu0 %v3932
    %5455 = vmatprep.subr.bf16.mxu0 0
    %5456 = vmatpush1.bf16.msra.mxu0 %v3931
    %5457 = vmatprep.subr.bf16.mxu0 0
    %5458 = vmatpush1.bf16.msra.mxu0 %v3930
    %5459 = vmatprep.subr.bf16.mxu0 0
    %5460 = vmatpush1.bf16.msra.mxu0 %v3929
    %5461 = vmatprep.subr.bf16.mxu0 0
    %5462 = vmatpush1.bf16.msra.mxu0 %v3928
    %5463 = vmatprep.subr.bf16.mxu0 0
    %5464 = vmatpush1.bf16.msra.mxu0 %v3927
    %5465 = vmatprep.subr.bf16.mxu0 0
    %5466 = vmatpush1.bf16.msra.mxu0 %v3926
    %5467 = vmatprep.subr.bf16.mxu0 0
    %5468 = vmatpush1.bf16.msra.mxu0 %v3925
    %5469 = vmatprep.subr.bf16.mxu0 0
    %5470 = vmatpush2.bf16.msra.mxu0 %v3940
    %5471 = vmatprep.subr.bf16.mxu0 0
    %5472 = vmatpush2.bf16.msra.mxu0 %v3939
    %5473 = vmatprep.subr.bf16.mxu0 0
    %5474 = vmatpush2.bf16.msra.mxu0 %v3938
    %5475 = vmatprep.subr.bf16.mxu0 0
    %5476 = vmatpush2.bf16.msra.mxu0 %v3937
    %5477 = vmatprep.subr.bf16.mxu0 0
    %5478 = vmatpush2.bf16.msra.mxu0 %v3936
    %5479 = vmatprep.subr.bf16.mxu0 0
    %5480 = vmatpush2.bf16.msra.mxu0 %v3935
    %5481 = vmatprep.subr.bf16.mxu0 0
    %5482 = vmatpush2.bf16.msra.mxu0 %v3934
    %5483 = vmatprep.subr.bf16.mxu0 0
    %5484 = vmatpush2.bf16.msra.mxu0 %v3933
    %5485 = vmatprep.mubr.bf16.mxu0 %v445
    %5486 = vmatmul.mubr.bf16.gmra.mxu0 %v444
    %v5487 = vpop.f32.mrf.mxu0
    %v5488 = vadd.f32 %v5448, %v5487
    %v5489 = vpop.f32.mrf.mxu0
    %v5490 = vpop.f32.mrf.mxu0
    %v5491 = vpop.f32.mrf.mxu0
    %5492 = vdwg.mxu0
    %5493 = vmatprep.subr.bf16.mxu0 0
    %5494 = vmatpush1.bf16.msra.mxu0 %v3948
    %5495 = vmatprep.subr.bf16.mxu0 0
    %5496 = vmatpush1.bf16.msra.mxu0 %v3947
    %5497 = vmatprep.subr.bf16.mxu0 0
    %5498 = vmatpush1.bf16.msra.mxu0 %v3946
    %5499 = vmatprep.subr.bf16.mxu0 0
    %5500 = vmatpush1.bf16.msra.mxu0 %v3945
    %5501 = vmatprep.subr.bf16.mxu0 0
    %5502 = vmatpush1.bf16.msra.mxu0 %v3944
    %5503 = vmatprep.subr.bf16.mxu0 0
    %5504 = vmatpush1.bf16.msra.mxu0 %v3943
    %5505 = vmatprep.subr.bf16.mxu0 0
    %5506 = vmatpush1.bf16.msra.mxu0 %v3942
    %5507 = vmatprep.subr.bf16.mxu0 0
    %5508 = vmatpush1.bf16.msra.mxu0 %v3941
    %5509 = vmatprep.subr.bf16.mxu0 0
    %5510 = vmatpush2.bf16.msra.mxu0 %v3956
    %5511 = vmatprep.subr.bf16.mxu0 0
    %5512 = vmatpush2.bf16.msra.mxu0 %v3955
    %5513 = vmatprep.subr.bf16.mxu0 0
    %5514 = vmatpush2.bf16.msra.mxu0 %v3954
    %5515 = vmatprep.subr.bf16.mxu0 0
    %5516 = vmatpush2.bf16.msra.mxu0 %v3953
    %5517 = vmatprep.subr.bf16.mxu0 0
    %5518 = vmatpush2.bf16.msra.mxu0 %v3952
    %5519 = vmatprep.subr.bf16.mxu0 0
    %5520 = vmatpush2.bf16.msra.mxu0 %v3951
    %5521 = vmatprep.subr.bf16.mxu0 0
    %5522 = vmatpush2.bf16.msra.mxu0 %v3950
    %5523 = vmatprep.subr.bf16.mxu0 0
    %5524 = vmatpush2.bf16.msra.mxu0 %v3949
    %5525 = vmatprep.mubr.bf16.mxu0 %v447
    %5526 = vmatmul.mubr.bf16.gmra.mxu0 %v446
    %v5527 = vpop.f32.mrf.mxu0
    %v5528 = vadd.f32 %v5488, %v5527
    %v5529 = vpop.f32.mrf.mxu0
    %v5530 = vpop.f32.mrf.mxu0
    %v5531 = vpop.f32.mrf.mxu0
    %5532 = vdwg.mxu0
    %5533 = vmatprep.subr.bf16.mxu0 0
    %5534 = vmatpush1.bf16.msra.mxu0 %v3964
    %5535 = vmatprep.subr.bf16.mxu0 0
    %5536 = vmatpush1.bf16.msra.mxu0 %v3963
    %5537 = vmatprep.subr.bf16.mxu0 0
    %5538 = vmatpush1.bf16.msra.mxu0 %v3962
    %5539 = vmatprep.subr.bf16.mxu0 0
    %5540 = vmatpush1.bf16.msra.mxu0 %v3961
    %5541 = vmatprep.subr.bf16.mxu0 0
    %5542 = vmatpush1.bf16.msra.mxu0 %v3960
    %5543 = vmatprep.subr.bf16.mxu0 0
    %5544 = vmatpush1.bf16.msra.mxu0 %v3959
    %5545 = vmatprep.subr.bf16.mxu0 0
    %5546 = vmatpush1.bf16.msra.mxu0 %v3958
    %5547 = vmatprep.subr.bf16.mxu0 0
    %5548 = vmatpush1.bf16.msra.mxu0 %v3957
    %5549 = vmatprep.subr.bf16.mxu0 0
    %5550 = vmatpush2.bf16.msra.mxu0 %v3972
    %5551 = vmatprep.subr.bf16.mxu0 0
    %5552 = vmatpush2.bf16.msra.mxu0 %v3971
    %5553 = vmatprep.subr.bf16.mxu0 0
    %5554 = vmatpush2.bf16.msra.mxu0 %v3970
    %5555 = vmatprep.subr.bf16.mxu0 0
    %5556 = vmatpush2.bf16.msra.mxu0 %v3969
    %5557 = vmatprep.subr.bf16.mxu0 0
    %5558 = vmatpush2.bf16.msra.mxu0 %v3968
    %5559 = vmatprep.subr.bf16.mxu0 0
    %5560 = vmatpush2.bf16.msra.mxu0 %v3967
    %5561 = vmatprep.subr.bf16.mxu0 0
    %5562 = vmatpush2.bf16.msra.mxu0 %v3966
    %5563 = vmatprep.subr.bf16.mxu0 0
    %5564 = vmatpush2.bf16.msra.mxu0 %v3965
    %5565 = vmatprep.mubr.bf16.mxu0 %v449
    %5566 = vmatmul.mubr.bf16.gmra.mxu0 %v448
    %v5567 = vpop.f32.mrf.mxu0
    %v5568 = vadd.f32 %v5528, %v5567
    %v5569 = vpop.f32.mrf.mxu0
    %v5570 = vpop.f32.mrf.mxu0
    %v5571 = vpop.f32.mrf.mxu0
    %5572 = vdwg.mxu0
    %5573 = vmatprep.subr.bf16.mxu0 0
    %5574 = vmatpush1.bf16.msra.mxu0 %v3980
    %5575 = vmatprep.subr.bf16.mxu0 0
    %5576 = vmatpush1.bf16.msra.mxu0 %v3979
    %5577 = vmatprep.subr.bf16.mxu0 0
    %5578 = vmatpush1.bf16.msra.mxu0 %v3978
    %5579 = vmatprep.subr.bf16.mxu0 0
    %5580 = vmatpush1.bf16.msra.mxu0 %v3977
    %5581 = vmatprep.subr.bf16.mxu0 0
    %5582 = vmatpush1.bf16.msra.mxu0 %v3976
    %5583 = vmatprep.subr.bf16.mxu0 0
    %5584 = vmatpush1.bf16.msra.mxu0 %v3975
    %5585 = vmatprep.subr.bf16.mxu0 0
    %5586 = vmatpush1.bf16.msra.mxu0 %v3974
    %5587 = vmatprep.subr.bf16.mxu0 0
    %5588 = vmatpush1.bf16.msra.mxu0 %v3973
    %5589 = vmatprep.subr.bf16.mxu0 0
    %5590 = vmatpush2.bf16.msra.mxu0 %v3988
    %5591 = vmatprep.subr.bf16.mxu0 0
    %5592 = vmatpush2.bf16.msra.mxu0 %v3987
    %5593 = vmatprep.subr.bf16.mxu0 0
    %5594 = vmatpush2.bf16.msra.mxu0 %v3986
    %5595 = vmatprep.subr.bf16.mxu0 0
    %5596 = vmatpush2.bf16.msra.mxu0 %v3985
    %5597 = vmatprep.subr.bf16.mxu0 0
    %5598 = vmatpush2.bf16.msra.mxu0 %v3984
    %5599 = vmatprep.subr.bf16.mxu0 0
    %5600 = vmatpush2.bf16.msra.mxu0 %v3983
    %5601 = vmatprep.subr.bf16.mxu0 0
    %5602 = vmatpush2.bf16.msra.mxu0 %v3982
    %5603 = vmatprep.subr.bf16.mxu0 0
    %5604 = vmatpush2.bf16.msra.mxu0 %v3981
    %5605 = vmatprep.mubr.bf16.mxu0 %v451
    %5606 = vmatmul.mubr.bf16.gmra.mxu0 %v450
    %v5607 = vpop.f32.mrf.mxu0
    %v5608 = vadd.f32 %v5568, %v5607
    %v5609 = vpop.f32.mrf.mxu0
    %v5610 = vpop.f32.mrf.mxu0
    %v5611 = vpop.f32.mrf.mxu0
    %5612 = vdwg.mxu0
    %5613 = vmatprep.subr.bf16.mxu0 0
    %5614 = vmatpush1.bf16.msra.mxu0 %v3996
    %5615 = vmatprep.subr.bf16.mxu0 0
    %5616 = vmatpush1.bf16.msra.mxu0 %v3995
    %5617 = vmatprep.subr.bf16.mxu0 0
    %5618 = vmatpush1.bf16.msra.mxu0 %v3994
    %5619 = vmatprep.subr.bf16.mxu0 0
    %5620 = vmatpush1.bf16.msra.mxu0 %v3993
    %5621 = vmatprep.subr.bf16.mxu0 0
    %5622 = vmatpush1.bf16.msra.mxu0 %v3992
    %5623 = vmatprep.subr.bf16.mxu0 0
    %5624 = vmatpush1.bf16.msra.mxu0 %v3991
    %5625 = vmatprep.subr.bf16.mxu0 0
    %5626 = vmatpush1.bf16.msra.mxu0 %v3990
    %5627 = vmatprep.subr.bf16.mxu0 0
    %5628 = vmatpush1.bf16.msra.mxu0 %v3989
    %5629 = vmatprep.subr.bf16.mxu0 0
    %5630 = vmatpush2.bf16.msra.mxu0 %v4004
    %5631 = vmatprep.subr.bf16.mxu0 0
    %5632 = vmatpush2.bf16.msra.mxu0 %v4003
    %5633 = vmatprep.subr.bf16.mxu0 0
    %5634 = vmatpush2.bf16.msra.mxu0 %v4002
    %5635 = vmatprep.subr.bf16.mxu0 0
    %5636 = vmatpush2.bf16.msra.mxu0 %v4001
    %5637 = vmatprep.subr.bf16.mxu0 0
    %5638 = vmatpush2.bf16.msra.mxu0 %v4000
    %5639 = vmatprep.subr.bf16.mxu0 0
    %5640 = vmatpush2.bf16.msra.mxu0 %v3999
    %5641 = vmatprep.subr.bf16.mxu0 0
    %5642 = vmatpush2.bf16.msra.mxu0 %v3998
    %5643 = vmatprep.subr.bf16.mxu0 0
    %5644 = vmatpush2.bf16.msra.mxu0 %v3997
    %5645 = vmatprep.mubr.bf16.mxu0 %v453
    %5646 = vmatmul.mubr.bf16.gmra.mxu0 %v452
    %v5647 = vpop.f32.mrf.mxu0
    %v5648 = vadd.f32 %v5608, %v5647
    %v5649 = vpop.f32.mrf.mxu0
    %v5650 = vpop.f32.mrf.mxu0
    %v5651 = vpop.f32.mrf.mxu0
    %5652 = vdwg.mxu0
    %5653 = vmatprep.subr.bf16.mxu0 0
    %5654 = vmatpush1.bf16.msra.mxu0 %v4012
    %5655 = vmatprep.subr.bf16.mxu0 0
    %5656 = vmatpush1.bf16.msra.mxu0 %v4011
    %5657 = vmatprep.subr.bf16.mxu0 0
    %5658 = vmatpush1.bf16.msra.mxu0 %v4010
    %5659 = vmatprep.subr.bf16.mxu0 0
    %5660 = vmatpush1.bf16.msra.mxu0 %v4009
    %5661 = vmatprep.subr.bf16.mxu0 0
    %5662 = vmatpush1.bf16.msra.mxu0 %v4008
    %5663 = vmatprep.subr.bf16.mxu0 0
    %5664 = vmatpush1.bf16.msra.mxu0 %v4007
    %5665 = vmatprep.subr.bf16.mxu0 0
    %5666 = vmatpush1.bf16.msra.mxu0 %v4006
    %5667 = vmatprep.subr.bf16.mxu0 0
    %5668 = vmatpush1.bf16.msra.mxu0 %v4005
    %5669 = vmatprep.subr.bf16.mxu0 0
    %5670 = vmatpush2.bf16.msra.mxu0 %v4020
    %5671 = vmatprep.subr.bf16.mxu0 0
    %5672 = vmatpush2.bf16.msra.mxu0 %v4019
    %5673 = vmatprep.subr.bf16.mxu0 0
    %5674 = vmatpush2.bf16.msra.mxu0 %v4018
    %5675 = vmatprep.subr.bf16.mxu0 0
    %5676 = vmatpush2.bf16.msra.mxu0 %v4017
    %5677 = vmatprep.subr.bf16.mxu0 0
    %5678 = vmatpush2.bf16.msra.mxu0 %v4016
    %5679 = vmatprep.subr.bf16.mxu0 0
    %5680 = vmatpush2.bf16.msra.mxu0 %v4015
    %5681 = vmatprep.subr.bf16.mxu0 0
    %5682 = vmatpush2.bf16.msra.mxu0 %v4014
    %5683 = vmatprep.subr.bf16.mxu0 0
    %5684 = vmatpush2.bf16.msra.mxu0 %v4013
    %5685 = vmatprep.mubr.bf16.mxu0 %v455
    %5686 = vmatmul.mubr.bf16.gmra.mxu0 %v454
    %v5687 = vpop.f32.mrf.mxu0
    %v5688 = vadd.f32 %v5648, %v5687
    %v5689 = vpop.f32.mrf.mxu0
    %v5690 = vpop.f32.mrf.mxu0
    %v5691 = vpop.f32.mrf.mxu0
    %5692 = vdwg.mxu0
    %5693 = vmatprep.subr.bf16.mxu0 0
    %5694 = vmatpush1.bf16.msra.mxu0 %v4028
    %5695 = vmatprep.subr.bf16.mxu0 0
    %5696 = vmatpush1.bf16.msra.mxu0 %v4027
    %5697 = vmatprep.subr.bf16.mxu0 0
    %5698 = vmatpush1.bf16.msra.mxu0 %v4026
    %5699 = vmatprep.subr.bf16.mxu0 0
    %5700 = vmatpush1.bf16.msra.mxu0 %v4025
    %5701 = vmatprep.subr.bf16.mxu0 0
    %5702 = vmatpush1.bf16.msra.mxu0 %v4024
    %5703 = vmatprep.subr.bf16.mxu0 0
    %5704 = vmatpush1.bf16.msra.mxu0 %v4023
    %5705 = vmatprep.subr.bf16.mxu0 0
    %5706 = vmatpush1.bf16.msra.mxu0 %v4022
    %5707 = vmatprep.subr.bf16.mxu0 0
    %5708 = vmatpush1.bf16.msra.mxu0 %v4021
    %5709 = vmatprep.subr.bf16.mxu0 0
    %5710 = vmatpush2.bf16.msra.mxu0 %v4036
    %5711 = vmatprep.subr.bf16.mxu0 0
    %5712 = vmatpush2.bf16.msra.mxu0 %v4035
    %5713 = vmatprep.subr.bf16.mxu0 0
    %5714 = vmatpush2.bf16.msra.mxu0 %v4034
    %5715 = vmatprep.subr.bf16.mxu0 0
    %5716 = vmatpush2.bf16.msra.mxu0 %v4033
    %5717 = vmatprep.subr.bf16.mxu0 0
    %5718 = vmatpush2.bf16.msra.mxu0 %v4032
    %5719 = vmatprep.subr.bf16.mxu0 0
    %5720 = vmatpush2.bf16.msra.mxu0 %v4031
    %5721 = vmatprep.subr.bf16.mxu0 0
    %5722 = vmatpush2.bf16.msra.mxu0 %v4030
    %5723 = vmatprep.subr.bf16.mxu0 0
    %5724 = vmatpush2.bf16.msra.mxu0 %v4029
    %5725 = vmatprep.mubr.bf16.mxu0 %v457
    %5726 = vmatmul.mubr.bf16.gmra.mxu0 %v456
    %v5727 = vpop.f32.mrf.mxu0
    %v5728 = vadd.f32 %v5688, %v5727
    %v5729 = vpop.f32.mrf.mxu0
    %v5730 = vpop.f32.mrf.mxu0
    %v5731 = vpop.f32.mrf.mxu0
    %5732 = vdwg.mxu0
    %5733 = vmatprep.subr.bf16.mxu0 0
    %5734 = vmatpush1.bf16.msra.mxu0 %v4044
    %5735 = vmatprep.subr.bf16.mxu0 0
    %5736 = vmatpush1.bf16.msra.mxu0 %v4043
    %5737 = vmatprep.subr.bf16.mxu0 0
    %5738 = vmatpush1.bf16.msra.mxu0 %v4042
    %5739 = vmatprep.subr.bf16.mxu0 0
    %5740 = vmatpush1.bf16.msra.mxu0 %v4041
    %5741 = vmatprep.subr.bf16.mxu0 0
    %5742 = vmatpush1.bf16.msra.mxu0 %v4040
    %5743 = vmatprep.subr.bf16.mxu0 0
    %5744 = vmatpush1.bf16.msra.mxu0 %v4039
    %5745 = vmatprep.subr.bf16.mxu0 0
    %5746 = vmatpush1.bf16.msra.mxu0 %v4038
    %5747 = vmatprep.subr.bf16.mxu0 0
    %5748 = vmatpush1.bf16.msra.mxu0 %v4037
    %5749 = vmatprep.subr.bf16.mxu0 0
    %5750 = vmatpush2.bf16.msra.mxu0 %v4052
    %5751 = vmatprep.subr.bf16.mxu0 0
    %5752 = vmatpush2.bf16.msra.mxu0 %v4051
    %5753 = vmatprep.subr.bf16.mxu0 0
    %5754 = vmatpush2.bf16.msra.mxu0 %v4050
    %5755 = vmatprep.subr.bf16.mxu0 0
    %5756 = vmatpush2.bf16.msra.mxu0 %v4049
    %5757 = vmatprep.subr.bf16.mxu0 0
    %5758 = vmatpush2.bf16.msra.mxu0 %v4048
    %5759 = vmatprep.subr.bf16.mxu0 0
    %5760 = vmatpush2.bf16.msra.mxu0 %v4047
    %5761 = vmatprep.subr.bf16.mxu0 0
    %5762 = vmatpush2.bf16.msra.mxu0 %v4046
    %5763 = vmatprep.subr.bf16.mxu0 0
    %5764 = vmatpush2.bf16.msra.mxu0 %v4045
    %5765 = vmatprep.mubr.bf16.mxu0 %v459
    %5766 = vmatmul.mubr.bf16.gmra.mxu0 %v458
    %v5767 = vpop.f32.mrf.mxu0
    %v5768 = vadd.f32 %v5728, %v5767
    %v5769 = vpop.f32.mrf.mxu0
    %v5770 = vpop.f32.mrf.mxu0
    %v5771 = vpop.f32.mrf.mxu0
    %5772 = vdwg.mxu0
    %5773 = vmatprep.subr.bf16.mxu0 0
    %5774 = vmatpush1.bf16.msra.mxu0 %v4060
    %5775 = vmatprep.subr.bf16.mxu0 0
    %5776 = vmatpush1.bf16.msra.mxu0 %v4059
    %5777 = vmatprep.subr.bf16.mxu0 0
    %5778 = vmatpush1.bf16.msra.mxu0 %v4058
    %5779 = vmatprep.subr.bf16.mxu0 0
    %5780 = vmatpush1.bf16.msra.mxu0 %v4057
    %5781 = vmatprep.subr.bf16.mxu0 0
    %5782 = vmatpush1.bf16.msra.mxu0 %v4056
    %5783 = vmatprep.subr.bf16.mxu0 0
    %5784 = vmatpush1.bf16.msra.mxu0 %v4055
    %5785 = vmatprep.subr.bf16.mxu0 0
    %5786 = vmatpush1.bf16.msra.mxu0 %v4054
    %5787 = vmatprep.subr.bf16.mxu0 0
    %5788 = vmatpush1.bf16.msra.mxu0 %v4053
    %5789 = vmatprep.subr.bf16.mxu0 0
    %5790 = vmatpush2.bf16.msra.mxu0 %v4068
    %5791 = vmatprep.subr.bf16.mxu0 0
    %5792 = vmatpush2.bf16.msra.mxu0 %v4067
    %5793 = vmatprep.subr.bf16.mxu0 0
    %5794 = vmatpush2.bf16.msra.mxu0 %v4066
    %5795 = vmatprep.subr.bf16.mxu0 0
    %5796 = vmatpush2.bf16.msra.mxu0 %v4065
    %5797 = vmatprep.subr.bf16.mxu0 0
    %5798 = vmatpush2.bf16.msra.mxu0 %v4064
    %5799 = vmatprep.subr.bf16.mxu0 0
    %5800 = vmatpush2.bf16.msra.mxu0 %v4063
    %5801 = vmatprep.subr.bf16.mxu0 0
    %5802 = vmatpush2.bf16.msra.mxu0 %v4062
    %5803 = vmatprep.subr.bf16.mxu0 0
    %5804 = vmatpush2.bf16.msra.mxu0 %v4061
    %5805 = vmatprep.mubr.bf16.mxu0 %v461
    %5806 = vmatmul.mubr.bf16.gmra.mxu0 %v460
    %v5807 = vpop.f32.mrf.mxu0
    %v5808 = vadd.f32 %v5768, %v5807
    %v5809 = vpop.f32.mrf.mxu0
    %v5810 = vpop.f32.mrf.mxu0
    %v5811 = vpop.f32.mrf.mxu0
    %5812 = vdwg.mxu0
    %5813 = vmatprep.subr.bf16.mxu0 0
    %5814 = vmatpush1.bf16.msra.mxu0 %v4076
    %5815 = vmatprep.subr.bf16.mxu0 0
    %5816 = vmatpush1.bf16.msra.mxu0 %v4075
    %5817 = vmatprep.subr.bf16.mxu0 0
    %5818 = vmatpush1.bf16.msra.mxu0 %v4074
    %5819 = vmatprep.subr.bf16.mxu0 0
    %5820 = vmatpush1.bf16.msra.mxu0 %v4073
    %5821 = vmatprep.subr.bf16.mxu0 0
    %5822 = vmatpush1.bf16.msra.mxu0 %v4072
    %5823 = vmatprep.subr.bf16.mxu0 0
    %5824 = vmatpush1.bf16.msra.mxu0 %v4071
    %5825 = vmatprep.subr.bf16.mxu0 0
    %5826 = vmatpush1.bf16.msra.mxu0 %v4070
    %5827 = vmatprep.subr.bf16.mxu0 0
    %5828 = vmatpush1.bf16.msra.mxu0 %v4069
    %5829 = vmatprep.subr.bf16.mxu0 0
    %5830 = vmatpush2.bf16.msra.mxu0 %v4084
    %5831 = vmatprep.subr.bf16.mxu0 0
    %5832 = vmatpush2.bf16.msra.mxu0 %v4083
    %5833 = vmatprep.subr.bf16.mxu0 0
    %5834 = vmatpush2.bf16.msra.mxu0 %v4082
    %5835 = vmatprep.subr.bf16.mxu0 0
    %5836 = vmatpush2.bf16.msra.mxu0 %v4081
    %5837 = vmatprep.subr.bf16.mxu0 0
    %5838 = vmatpush2.bf16.msra.mxu0 %v4080
    %5839 = vmatprep.subr.bf16.mxu0 0
    %5840 = vmatpush2.bf16.msra.mxu0 %v4079
    %5841 = vmatprep.subr.bf16.mxu0 0
    %5842 = vmatpush2.bf16.msra.mxu0 %v4078
    %5843 = vmatprep.subr.bf16.mxu0 0
    %5844 = vmatpush2.bf16.msra.mxu0 %v4077
    %5845 = vmatprep.mubr.bf16.mxu0 %v463
    %5846 = vmatmul.mubr.bf16.gmra.mxu0 %v462
    %v5847 = vpop.f32.mrf.mxu0
    %v5848 = vadd.f32 %v5808, %v5847
    %v5849 = vpop.f32.mrf.mxu0
    %v5850 = vpop.f32.mrf.mxu0
    %v5851 = vpop.f32.mrf.mxu0
    %5852 = vdwg.mxu0
    %5853 = vmatprep.subr.bf16.mxu0 0
    %5854 = vmatpush1.bf16.msra.mxu0 %v4092
    %5855 = vmatprep.subr.bf16.mxu0 0
    %5856 = vmatpush1.bf16.msra.mxu0 %v4091
    %5857 = vmatprep.subr.bf16.mxu0 0
    %5858 = vmatpush1.bf16.msra.mxu0 %v4090
    %5859 = vmatprep.subr.bf16.mxu0 0
    %5860 = vmatpush1.bf16.msra.mxu0 %v4089
    %5861 = vmatprep.subr.bf16.mxu0 0
    %5862 = vmatpush1.bf16.msra.mxu0 %v4088
    %5863 = vmatprep.subr.bf16.mxu0 0
    %5864 = vmatpush1.bf16.msra.mxu0 %v4087
    %5865 = vmatprep.subr.bf16.mxu0 0
    %5866 = vmatpush1.bf16.msra.mxu0 %v4086
    %5867 = vmatprep.subr.bf16.mxu0 0
    %5868 = vmatpush1.bf16.msra.mxu0 %v4085
    %5869 = vmatprep.subr.bf16.mxu0 0
    %5870 = vmatpush2.bf16.msra.mxu0 %v4100
    %5871 = vmatprep.subr.bf16.mxu0 0
    %5872 = vmatpush2.bf16.msra.mxu0 %v4099
    %5873 = vmatprep.subr.bf16.mxu0 0
    %5874 = vmatpush2.bf16.msra.mxu0 %v4098
    %5875 = vmatprep.subr.bf16.mxu0 0
    %5876 = vmatpush2.bf16.msra.mxu0 %v4097
    %5877 = vmatprep.subr.bf16.mxu0 0
    %5878 = vmatpush2.bf16.msra.mxu0 %v4096
    %5879 = vmatprep.subr.bf16.mxu0 0
    %5880 = vmatpush2.bf16.msra.mxu0 %v4095
    %5881 = vmatprep.subr.bf16.mxu0 0
    %5882 = vmatpush2.bf16.msra.mxu0 %v4094
    %5883 = vmatprep.subr.bf16.mxu0 0
    %5884 = vmatpush2.bf16.msra.mxu0 %v4093
    %5885 = vmatprep.mubr.bf16.mxu0 %v465
    %5886 = vmatmul.mubr.bf16.gmra.mxu0 %v464
    %v5887 = vpop.f32.mrf.mxu0
    %v5888 = vadd.f32 %v5848, %v5887
    %v5889 = vpop.f32.mrf.mxu0
    %v5890 = vpop.f32.mrf.mxu0
    %v5891 = vpop.f32.mrf.mxu0
    %5892 = vdwg.mxu0
    %v5893 = vld [vmem:[%s4] sm:$0x1]
    %v5895 = vlaneseq
    %v5896 = vshrl.u32 %v5895, 7
    %v5897 = vsub.s32 0, %v5896
    %v5898 = vrot.slane %v5893, %v5897
    %v5900 = vadd.f32 %v5888, %v5898
    %v5901 = vmax.f32 %v5900, 0.0
    %v5902 = vpack.c.bf16 %v5901, %v5901
    %v5903 = vld [vmem:[%s5] sm:$0xf]
    %v5904 = vld [vmem:[%s5 + $0x4] sm:$0xf]
    %v5905 = vld [vmem:[%s5 + $0x8] sm:$0xf]
    %v5906 = vld [vmem:[%s5 + $0xc] sm:$0xf]
    %v5907 = vld [vmem:[%s5 + $0x10] sm:$0xf]
    %v5908 = vld [vmem:[%s5 + $0x14] sm:$0xf]
    %v5909 = vld [vmem:[%s5 + $0x18] sm:$0xf]
    %v5910 = vld [vmem:[%s5 + $0x1c] sm:$0xf]
    %v5911 = vld [vmem:[%s5 + $0x20] sm:$0xf]
    %v5912 = vld [vmem:[%s5 + $0x24] sm:$0xf]
    %v5913 = vld [vmem:[%s5 + $0x28] sm:$0xf]
    %v5914 = vld [vmem:[%s5 + $0x2c] sm:$0xf]
    %v5915 = vld [vmem:[%s5 + $0x30] sm:$0xf]
    %v5916 = vld [vmem:[%s5 + $0x34] sm:$0xf]
    %v5917 = vld [vmem:[%s5 + $0x38] sm:$0xf]
    %v5918 = vld [vmem:[%s5 + $0x3c] sm:$0xf]
    %v5919 = vld [vmem:[%s6] sm:$0x1]
    %v5921 = vlaneseq
    %v5922 = vshrl.u32 %v5921, 7
    %v5923 = vsub.s32 0, %v5922
    %v5924 = vrot.slane %v5919, %v5923
    %v5942 = vunpack.c.l.b16 %v5903
    %v5943 = vunpack.c.l.b16 %v5904
    %v5944 = vunpack.c.l.b16 %v5905
    %v5945 = vunpack.c.l.b16 %v5906
    %v5946 = vunpack.c.l.b16 %v5907
    %v5947 = vunpack.c.l.b16 %v5908
    %v5948 = vunpack.c.l.b16 %v5909
    %v5949 = vunpack.c.l.b16 %v5910
    %v5950 = vunpack.c.l.b16 %v5911
    %v5951 = vunpack.c.l.b16 %v5912
    %v5952 = vunpack.c.l.b16 %v5913
    %v5953 = vunpack.c.l.b16 %v5914
    %v5954 = vunpack.c.l.b16 %v5915
    %v5955 = vunpack.c.l.b16 %v5916
    %v5956 = vunpack.c.l.b16 %v5917
    %v5957 = vunpack.c.l.b16 %v5918
    %v5958 = vpack.c.b16 %v5943, %v5942
    %v5959 = vpack.c.b16 %v5945, %v5944
    %v5960 = vpack.c.b16 %v5947, %v5946
    %v5961 = vpack.c.b16 %v5949, %v5948
    %v5962 = vpack.c.b16 %v5951, %v5950
    %v5963 = vpack.c.b16 %v5953, %v5952
    %v5964 = vpack.c.b16 %v5955, %v5954
    %v5965 = vpack.c.b16 %v5957, %v5956
    %5974 = vmatprep.subr.bf16.mxu0 0
    %5975 = vmatpush1.bf16.msra.mxu0 %v5965
    %5976 = vmatprep.subr.bf16.mxu0 0
    %5977 = vmatpush1.bf16.msra.mxu0 %v5964
    %5978 = vmatprep.subr.bf16.mxu0 0
    %5979 = vmatpush1.bf16.msra.mxu0 %v5963
    %5980 = vmatprep.subr.bf16.mxu0 0
    %5981 = vmatpush1.bf16.msra.mxu0 %v5962
    %5982 = vmatprep.subr.bf16.mxu0 0
    %5983 = vmatpush1.bf16.msra.mxu0 %v5961
    %5984 = vmatprep.subr.bf16.mxu0 0
    %5985 = vmatpush1.bf16.msra.mxu0 %v5960
    %5986 = vmatprep.subr.bf16.mxu0 0
    %5987 = vmatpush1.bf16.msra.mxu0 %v5959
    %5988 = vmatprep.subr.bf16.mxu0 0
    %5989 = vmatpush1.bf16.msra.mxu0 %v5958
    %5990 = vmatprep.subr.bf16.mxu0 0
    %5991 = vmatpush2.bf16.msra.mxu0 0
    %5992 = vmatprep.subr.bf16.mxu0 0
    %5993 = vmatpush2.bf16.msra.mxu0 0
    %5994 = vmatprep.subr.bf16.mxu0 0
    %5995 = vmatpush2.bf16.msra.mxu0 0
    %5996 = vmatprep.subr.bf16.mxu0 0
    %5997 = vmatpush2.bf16.msra.mxu0 0
    %5998 = vmatprep.subr.bf16.mxu0 0
    %5999 = vmatpush2.bf16.msra.mxu0 0
    %6000 = vmatprep.subr.bf16.mxu0 0
    %6001 = vmatpush2.bf16.msra.mxu0 0
    %6002 = vmatprep.subr.bf16.mxu0 0
    %6003 = vmatpush2.bf16.msra.mxu0 0
    %6004 = vmatprep.subr.bf16.mxu0 0
    %6005 = vmatpush2.bf16.msra.mxu0 0
    %6006 = vmatprep.mubr.bf16.mxu0 0
    %6007 = vmatmul.mubr.bf16.gmra.mxu0 %v5902
    %v6008 = vpop.f32.mrf.mxu0
    %v6009 = vadd.f32 %v5924, %v6008
    %v6010 = vpop.f32.mrf.mxu0
    %v6011 = vpop.f32.mrf.mxu0
    %v6012 = vpop.f32.mrf.mxu0
    %6013 = vdwg.mxu0
    %v6014 = vmax.f32 %v6009, 0.0
    %v6015 = vpack.c.bf16 %v6014, %v6014
    %v6016 = vld [vmem:[%s7] sm:$0xf]
    %v6017 = vld [vmem:[%s7 + $0x4] sm:$0xf]
    %v6018 = vld [vmem:[%s7 + $0x8] sm:$0xf]
    %v6019 = vld [vmem:[%s7 + $0xc] sm:$0xf]
    %v6020 = vld [vmem:[%s7 + $0x10] sm:$0xf]
    %v6021 = vld [vmem:[%s7 + $0x14] sm:$0xf]
    %v6022 = vld [vmem:[%s7 + $0x18] sm:$0xf]
    %v6023 = vld [vmem:[%s7 + $0x1c] sm:$0xf]
    %v6024 = vld [vmem:[%s8] sm:$0x1]
    %v6026 = vlaneseq
    %v6027 = vshrl.u32 %v6026, 7
    %v6028 = vsub.s32 0, %v6027
    %v6029 = vrot.slane %v6024, %v6028
    %v6039 = vunpack.c.l.b16 %v6016
    %v6040 = vunpack.c.l.b16 %v6017
    %v6041 = vunpack.c.l.b16 %v6018
    %v6042 = vunpack.c.l.b16 %v6019
    %v6043 = vunpack.c.l.b16 %v6020
    %v6044 = vunpack.c.l.b16 %v6021
    %v6045 = vunpack.c.l.b16 %v6022
    %v6046 = vunpack.c.l.b16 %v6023
    %v6047 = vpack.c.b16 %v6040, %v6039
    %v6048 = vpack.c.b16 %v6042, %v6041
    %v6049 = vpack.c.b16 %v6044, %v6043
    %v6050 = vpack.c.b16 %v6046, %v6045
    %vm6055 = vcmask 523264
    %v6057 = vsel %vm6055, %v6015, 0
    %6059 = vmatprep.subr.bf16.mxu0 0
    %6060 = vmatpush1.bf16.msra.mxu0 0
    %6061 = vmatprep.subr.bf16.mxu0 0
    %6062 = vmatpush1.bf16.msra.mxu0 0
    %6063 = vmatprep.subr.bf16.mxu0 0
    %6064 = vmatpush1.bf16.msra.mxu0 0
    %6065 = vmatprep.subr.bf16.mxu0 0
    %6066 = vmatpush1.bf16.msra.mxu0 0
    %6067 = vmatprep.subr.bf16.mxu0 0
    %6068 = vmatpush1.bf16.msra.mxu0 %v6050
    %6069 = vmatprep.subr.bf16.mxu0 0
    %6070 = vmatpush1.bf16.msra.mxu0 %v6049
    %6071 = vmatprep.subr.bf16.mxu0 0
    %6072 = vmatpush1.bf16.msra.mxu0 %v6048
    %6073 = vmatprep.subr.bf16.mxu0 0
    %6074 = vmatpush1.bf16.msra.mxu0 %v6047
    %6075 = vmatprep.subr.bf16.mxu0 0
    %6076 = vmatpush2.bf16.msra.mxu0 0
    %6077 = vmatprep.subr.bf16.mxu0 0
    %6078 = vmatpush2.bf16.msra.mxu0 0
    %6079 = vmatprep.subr.bf16.mxu0 0
    %6080 = vmatpush2.bf16.msra.mxu0 0
    %6081 = vmatprep.subr.bf16.mxu0 0
    %6082 = vmatpush2.bf16.msra.mxu0 0
    %6083 = vmatprep.subr.bf16.mxu0 0
    %6084 = vmatpush2.bf16.msra.mxu0 0
    %6085 = vmatprep.subr.bf16.mxu0 0
    %6086 = vmatpush2.bf16.msra.mxu0 0
    %6087 = vmatprep.subr.bf16.mxu0 0
    %6088 = vmatpush2.bf16.msra.mxu0 0
    %6089 = vmatprep.subr.bf16.mxu0 0
    %6090 = vmatpush2.bf16.msra.mxu0 0
    %6091 = vmatprep.mubr.bf16.mxu0 0
    %6092 = vmatmul.mubr.bf16.gmra.mxu0 %v6057
    %v6093 = vpop.f32.mrf.mxu0
    %v6094 = vadd.f32 %v6029, %v6093
    %v6095 = vpop.f32.mrf.mxu0
    %v6096 = vpop.f32.mrf.mxu0
    %v6097 = vpop.f32.mrf.mxu0
    %6098 = vdwg.mxu0
    %v6099 = vsub.f32 0.0, %v6094
    %v6100 = vmul.f32 %v6099, 1.442695
    %v6101 = vpow.pop %v6100
    %v6102 = vadd.f32 %v6101, 1.0
    %v6103 = vrcp.pop %v6102
    %vm6104 = vcmask 9216
    %6105 = vst.msk [vmem:[#allocation2] sm:$0x3] %vm6104, %v6103
    // Predicated region
    $region38: #{cnn_regressor_forward.3} parent=1 // pred_check
      _
    $region39: #{cnn_regressor_forward.3} parent=1 // pred_check_branch
      %6107 = sbr.rel (0) target = $region41
    $region40: #{cnn_regressor_forward.3} parent=1 // pred_region
      %s6109 = ssub.s32 32, 32
      %6110 = vsyncadd [#allocation3], %s6109
      %s6112 = sshll.u32 [#allocation2], 4
      %s6113 = int_to_ptr.vmem [resolvable:$true] %s6112
      %6115 = dma.vmem_to_hbm [thread:$0]  %s6113, 32, %s9, [#allocation3]
    $region41: #{cnn_regressor_forward.3} parent=1 // pred_fallthru
      _
    // Predicated region
    $region42: #{cnn_regressor_forward.3} parent=1 // pred_check
      _
    $region43: #{cnn_regressor_forward.3} parent=1 // pred_check_branch
      %6117 = sbr.rel (0) target = $region45
    $region44: #{cnn_regressor_forward.3} parent=1 // pred_region
      %6118 = dma.done [#allocation3], 32
    $region45: #{cnn_regressor_forward.3} parent=1 // pred_fallthru
      _
    %6119 = vsyncpa [#allocation3], 1

</llo_original>
